<compile_context>
chip_gen: v6e
topology: v6e:2x2x1
jax: 0.10.0
libtpu: 0.0.40
codegen_flags: <defaults>
</compile_context>

<pallas_src>
import functools

import jax
import jax.numpy as jnp
from jax.experimental import pallas as pl
from jax.experimental.pallas import tpu as pltpu

# ---------------- small-config hyper-parameters (SSLAE "huge=False" scaled down)
IMG = 16            # input spatial size
PATCH = 4           # patch size -> 4x4 = 16 tokens
EMBED = 128         # embed_dim (multiple of 128 -> lane-dense vregs / stores)
HEADS = 4           # head_dim = 32
DEPTH = 4
OUT_INDICES = (0, 1, 2, 3)   # features collected after every block
MLP_RATIO = 4
FUSE_CH = 128       # DPT post-process / fusion channels (lane-dense)
N_BINS = 256        # classify=True, n_bins=256
LN_EPS = 1e-6       # timm ViT eps (PyTorch nn.LayerNorm default would be 1e-5)

PATCH_DIM = PATCH * PATCH * 3
N_TOK = (IMG // PATCH) ** 2
HEAD_DIM = EMBED // HEADS


# ----------------------------------------------------------------------------
# Fused backbone kernel: patch-embed + pos + transformer block i + reassemble_i
# Runs once per grid step i in [0, DEPTH); tokens live in VMEM scratch.
# ----------------------------------------------------------------------------
def _backbone_kernel(patches_ref, pw_ref, pb_ref, pos_ref,
                     ln1g_ref, ln1b_ref, qkvw_ref, qkvb_ref,
                     projw_ref, projb_ref, ln2g_ref, ln2b_ref,
                     fc1w_ref, fc1b_ref, fc2w_ref, fc2b_ref,
                     rew_ref, reb_ref,
                     feat_ref,
                     tok_sc, attn_sc, *, batch):
    i = pl.program_id(0)

    def bf16_dot(a, w_ref_):
        # bf16 operands into the MXU, f32 accumulation.
        return jnp.dot(a.astype(jnp.bfloat16), w_ref_[...],
                       preferred_element_type=jnp.float32)

    @pl.when(i == 0)
    def _init():
        # patch-embed conv (k = s = PATCH) as a matmul, + bias + pos-embed.
        tok_sc[...] = bf16_dot(patches_ref[...], pw_ref) + pb_ref[...] + pos_ref[...]
        # TODO(synk): cls token / interpolated pos-embed of the original SSL ViT omitted.

    def layernorm(x, g, b):
        mu = jnp.mean(x, axis=-1, keepdims=True)
        xc = x - mu
        var = jnp.mean(xc * xc, axis=-1, keepdims=True)
        return xc * jax.lax.rsqrt(var + LN_EPS) * g + b

    tok = tok_sc[...]                                    # (M, EMBED) f32, M = B*N_TOK
    n_tok = tok_sc.shape[0] // batch
    scale = HEAD_DIM ** -0.5

    # ---- attention (pre-LN, residual fused) ----
    h = layernorm(tok, ln1g_ref[...], ln1b_ref[...])
    qkv = bf16_dot(h, qkvw_ref) + qkvb_ref[...]          # (M, 3*EMBED)
    for b in range(batch):                               # static loops, B*HEADS tiny
        r0 = b * n_tok
        for hh in range(HEADS):
            c0 = hh * HEAD_DIM
            qb = qkv[r0:r0 + n_tok, c0:c0 + HEAD_DIM] * scale
            kb = qkv[r0:r0 + n_tok, EMBED + c0:EMBED + c0 + HEAD_DIM]
            vb = qkv[r0:r0 + n_tok, 2 * EMBED + c0:2 * EMBED + c0 + HEAD_DIM]
            s = jnp.einsum("qd,kd->qk", qb, kb, preferred_element_type=jnp.float32)
            s = s - jnp.max(s, axis=-1, keepdims=True)
            p = jnp.exp(s)
            p = p * pl.reciprocal(jnp.sum(p, axis=-1, keepdims=True), approx=True)
            attn_sc[r0:r0 + n_tok, c0:c0 + HEAD_DIM] = jnp.dot(
                p, vb, preferred_element_type=jnp.float32)
    tok = tok + bf16_dot(attn_sc[...], projw_ref) + projb_ref[...]

    # ---- MLP (pre-LN, residual fused) ----
    # TODO(synk): tanh-approx GELU; PyTorch nn.GELU default is the exact erf form.
    h = layernorm(tok, ln2g_ref[...], ln2b_ref[...])
    h = jax.nn.gelu(bf16_dot(h, fc1w_ref) + fc1b_ref[...], approximate=True)
    tok = tok + bf16_dot(h, fc2w_ref) + fc2b_ref[...]
    tok_sc[...] = tok

    # ---- per-scale 1x1 reassemble projection (OUT_INDICES == all blocks) ----
    feat_ref[...] = (bf16_dot(tok, rew_ref) + reb_ref[...]).astype(feat_ref.dtype)


def _backbone_call(params, patches, pos_tiled, batch):
    M = patches.shape[0]
    E = EMBED
    h3, hm = 3 * E, MLP_RATIO * E

    def const2d(shape):       # shared across all grid steps (resident block)
        return pl.BlockSpec(shape, lambda i: (0, 0))

    def stacked(shape):       # per-block weights, selected by the grid index
        return pl.BlockSpec((None,) + shape, lambda i: (i, 0, 0))

    grid_spec = pltpu.PrefetchScalarGridSpec(
        num_scalar_prefetch=0,
        grid=(DEPTH,),
        in_specs=[
            const2d((M, PATCH_DIM)), const2d((PATCH_DIM, E)),
            const2d((1, E)), const2d((M, E)),
            stacked((1, E)), stacked((1, E)),              # ln1 g/b
            stacked((E, h3)), stacked((1, h3)),            # qkv
            stacked((E, E)), stacked((1, E)),              # proj
            stacked((1, E)), stacked((1, E)),              # ln2 g/b
            stacked((E, hm)), stacked((1, hm)),            # fc1
            stacked((hm, E)), stacked((1, E)),             # fc2
            stacked((E, FUSE_CH)), stacked((1, FUSE_CH)),  # reassemble 1x1
        ],
        out_specs=pl.BlockSpec((None, M, FUSE_CH), lambda i: (i, 0, 0)),
        scratch_shapes=[pltpu.VMEM((M, E), jnp.float32),   # resident tokens
                        pltpu.VMEM((M, E), jnp.float32)],  # attention output
    )
    return pl.pallas_call(
        functools.partial(_backbone_kernel, batch=batch),
        grid_spec=grid_spec,
        out_shape=jax.ShapeDtypeStruct((DEPTH, M, FUSE_CH), jnp.float32),
        compiler_params=pltpu.CompilerParams(
            dimension_semantics=("arbitrary",)),           # state carried across steps
    )(patches, params["patch_w"], params["patch_b"], pos_tiled,
      params["ln1_g"], params["ln1_b"], params["qkv_w"], params["qkv_b"],
      params["proj_w"], params["proj_b"], params["ln2_g"], params["ln2_b"],
      params["fc1_w"], params["fc1_b"], params["fc2_w"], params["fc2_b"],
      params["re_w"], params["re_b"])


# ----------------------------------------------------------------------------
# Decode-head kernels
# ----------------------------------------------------------------------------
def _fuse_conv_kernel(p_ref, w_ref, b_ref, res_ref, o_ref):
    # 3x3 conv (im2col'd) + bias + ReLU + residual add, fused.
    acc = jnp.dot(p_ref[...].astype(jnp.bfloat16), w_ref[...],
                  preferred_element_type=jnp.float32) + b_ref[...]
    o_ref[...] = jnp.maximum(acc, 0.0) + res_ref[...]


def _fuse_conv_call(patches, w, b, res):
    Mc, Kc = patches.shape
    F = w.shape[1]
    return pl.pallas_call(
        _fuse_conv_kernel,
        grid=(1,),
        in_specs=[pl.BlockSpec((Mc, Kc), lambda i: (0, 0)),
                  pl.BlockSpec((Kc, F), lambda i: (0, 0)),
                  pl.BlockSpec((1, F), lambda i: (0, 0)),
                  pl.BlockSpec((Mc, F), lambda i: (0, 0))],
        out_specs=pl.BlockSpec((Mc, F), lambda i: (0, 0)),
        out_shape=jax.ShapeDtypeStruct((Mc, F), jnp.float32),
    )(patches, w, b, res)


def _head_tail_kernel(p_ref, hw_ref, hb_ref, ow_ref, ob_ref, o_ref):
    # head 3x3 conv + ReLU -> 1x1 conv to n_bins -> channel softmax, fused.
    h = jnp.dot(p_ref[...].astype(jnp.bfloat16), hw_ref[...],
                preferred_element_type=jnp.float32) + hb_ref[...]
    h = jnp.maximum(h, 0.0)
    logits = jnp.dot(h.astype(jnp.bfloat16), ow_ref[...],
                     preferred_element_type=jnp.float32) + ob_ref[...]
    logits = logits - jnp.max(logits, axis=-1, keepdims=True)
    e = jnp.exp(logits)
    o_ref[...] = e * pl.reciprocal(jnp.sum(e, axis=-1, keepdims=True), approx=True)


def _head_tail_call(patches, hw, hb, ow, ob):
    Mh, Kh = patches.shape
    F = hw.shape[1]
    return pl.pallas_call(
        _head_tail_kernel,
        grid=(1,),
        in_specs=[pl.BlockSpec((Mh, Kh), lambda i: (0, 0)),
                  pl.BlockSpec((Kh, F), lambda i: (0, 0)),
                  pl.BlockSpec((1, F), lambda i: (0, 0)),
                  pl.BlockSpec((F, N_BINS), lambda i: (0, 0)),
                  pl.BlockSpec((1, N_BINS), lambda i: (0, 0))],
        out_specs=pl.BlockSpec((Mh, N_BINS), lambda i: (0, 0)),
        out_shape=jax.ShapeDtypeStruct((Mh, N_BINS), jnp.float32),
    )(patches, hw, hb, ow, ob)


def _im2col_3x3(x):
    # Plain-JAX glue (tiny maps at this scale).
    # TODO(synk): at real resolution do the 3x3 conv in-kernel with a halo'd
    # BlockSpec tile instead of materializing 9x the feature map.
    B, H, W, C = x.shape
    xp = jnp.pad(x, ((0, 0), (1, 1), (1, 1), (0, 0)))
    cols = [xp[:, dy:dy + H, dx:dx + W, :] for dy in range(3) for dx in range(3)]
    patches = jnp.stack(cols, axis=-2)            # (B, H, W, 9, C)
    return patches.reshape(B * H * W, 9 * C)


# ----------------------------------------------------------------------------
# Parameters (deterministic init; matmul weights stored bf16 for the MXU)
# ----------------------------------------------------------------------------
def init_params(key):
    keys = iter(jax.random.split(key, 32))

    def w(shape, std=0.02, dtype=jnp.float32):
        return (std * jax.random.normal(next(keys), shape, jnp.float32)).astype(dtype)

    zeros = lambda s: jnp.zeros(s, jnp.float32)
    D, E, F = DEPTH, EMBED, FUSE_CH
    n_fuse = len(OUT_INDICES) - 1
    return {
        # patch embed + pos
        "patch_w": w((PATCH_DIM, E), dtype=jnp.bfloat16),
        "patch_b": zeros((1, E)),
        "pos_embed": w((N_TOK, E)),
        # transformer blocks, stacked along a leading DEPTH axis (grid-selected)
        "ln1_g": jnp.ones((D, 1, E), jnp.float32),
        "ln1_b": jnp.zeros((D, 1, E), jnp.float32),
        "qkv_w": w((D, E, 3 * E), dtype=jnp.bfloat16),
        "qkv_b": jnp.zeros((D, 1, 3 * E), jnp.float32),
        "proj_w": w((D, E, E), dtype=jnp.bfloat16),
        "proj_b": jnp.zeros((D, 1, E), jnp.float32),
        "ln2_g": jnp.ones((D, 1, E), jnp.float32),
        "ln2_b": jnp.zeros((D, 1, E), jnp.float32),
        "fc1_w": w((D, E, MLP_RATIO * E), dtype=jnp.bfloat16),
        "fc1_b": jnp.zeros((D, 1, MLP_RATIO * E), jnp.float32),
        "fc2_w": w((D, MLP_RATIO * E, E), dtype=jnp.bfloat16),
        "fc2_b": jnp.zeros((D, 1, E), jnp.float32),
        # DPT-style decode head
        "re_w": w((D, E, F), dtype=jnp.bfloat16),        # per-scale 1x1 reassemble
        "re_b": jnp.zeros((D, 1, F), jnp.float32),
        "fuse_w": [w((9 * F, F), dtype=jnp.bfloat16) for _ in range(n_fuse)],
        "fuse_b": [zeros((1, F)) for _ in range(n_fuse)],
        "head_w": w((9 * F, F), dtype=jnp.bfloat16),
        "head_b": zeros((1, F)),
        "out_w": w((F, N_BINS), dtype=jnp.bfloat16),
        "out_b": zeros((1, N_BINS)),
    }


# ----------------------------------------------------------------------------
# Forward pass
# ----------------------------------------------------------------------------
def sslae_forward(params, x):
    B, Cin, H, W = x.shape
    x = jnp.transpose(x, (0, 2, 3, 1))                   # NCHW -> NHWC
    hp, wp = H // PATCH, W // PATCH
    M = B * hp * wp

    # patch-embed input (conv k=s=PATCH unfolded; matmul happens in the kernel)
    patches = x.reshape(B, hp, PATCH, wp, PATCH, Cin)
    patches = jnp.transpose(patches, (0, 1, 3, 2, 4, 5)).reshape(M, PATCH * PATCH * Cin)
    pos_tiled = jnp.tile(params["pos_embed"], (B, 1))    # broadcast pos over batch

    # ---- backbone: whole ViT + per-scale reassemble in ONE pallas_call ----
    feats = _backbone_call(params, patches, pos_tiled, B)        # (DEPTH, M, FUSE_CH)
    f = [feats[j].reshape(B, hp, wp, FUSE_CH) for j in range(DEPTH)]

    # ---- decode head: DPT-style fusion (3x3 conv + ReLU + residual per call) ----
    path = f[-1]
    for idx in range(DEPTH - 2, -1, -1):
        p3 = _im2col_3x3(path)
        path = _fuse_conv_call(p3, params["fuse_w"][idx], params["fuse_b"][idx],
                               f[idx].reshape(M, FUSE_CH)).reshape(B, hp, wp, FUSE_CH)
    # TODO(synk): real DPT uses multi-scale reassemble (transposed convs) + bilinear
    # interpolation; approximated here with single-scale fusion + 2x nearest upsample.
    # TODO(synk): at real scale, fold this upsample into the head conv's gather.
    path = jnp.repeat(jnp.repeat(path, 2, axis=1), 2, axis=2)

    # head 3x3 conv + ReLU + 1x1 conv to n_bins + softmax, fused (lane-dense out).
    ph = _im2col_3x3(path)
    probs = _head_tail_call(ph, params["head_w"], params["head_b"],
                            params["out_w"], params["out_b"])
    probs = probs.reshape(B, 2 * hp, 2 * wp, N_BINS)
    return jnp.transpose(probs, (0, 3, 1, 2))            # NCHW output


# ----------------------------------------------------------------------------
if __name__ == "__main__":
    key = jax.random.PRNGKey(0)
    pkey, xkey = jax.random.split(key)
    params = init_params(pkey)
    x = jax.random.normal(xkey, (2, 3, IMG, IMG), jnp.float32)   # NCHW input

    out = jax.jit(sslae_forward)(params, x)
    out = jax.block_until_ready(out)

    assert out.shape == (2, N_BINS, IMG // 2, IMG // 2), out.shape
    assert bool(jnp.all(jnp.isfinite(out)))
    # classify=True -> per-pixel distribution over n_bins sums to ~1
    # (EUP approximate reciprocal in the fused softmax leaves ~1e-3 rel. slack).
    assert bool(jnp.allclose(jnp.sum(out, axis=1), 1.0, atol=1e-2))
    print("KERNEL_OK")
</pallas_src>

<mosaic_0001>
module attributes {stable_mosaic.version = 11 : i64} {
  func.func @_backbone_kernel(%arg0: i32, %arg1: memref<32x48xf32, #tpu.memory_space<vmem>>, %arg2: memref<48x128xbf16, #tpu.memory_space<vmem>>, %arg3: memref<1x128xf32, #tpu.memory_space<vmem>>, %arg4: memref<32x128xf32, #tpu.memory_space<vmem>>, %arg5: memref<1x1x128xf32, #tpu.memory_space<vmem>>, %arg6: memref<1x1x128xf32, #tpu.memory_space<vmem>>, %arg7: memref<1x128x384xbf16, #tpu.memory_space<vmem>>, %arg8: memref<1x1x384xf32, #tpu.memory_space<vmem>>, %arg9: memref<1x128x128xbf16, #tpu.memory_space<vmem>>, %arg10: memref<1x1x128xf32, #tpu.memory_space<vmem>>, %arg11: memref<1x1x128xf32, #tpu.memory_space<vmem>>, %arg12: memref<1x1x128xf32, #tpu.memory_space<vmem>>, %arg13: memref<1x128x512xbf16, #tpu.memory_space<vmem>>, %arg14: memref<1x1x512xf32, #tpu.memory_space<vmem>>, %arg15: memref<1x512x128xbf16, #tpu.memory_space<vmem>>, %arg16: memref<1x1x128xf32, #tpu.memory_space<vmem>>, %arg17: memref<1x128x128xbf16, #tpu.memory_space<vmem>>, %arg18: memref<1x1x128xf32, #tpu.memory_space<vmem>>, %arg19: memref<1x32x128xf32, #tpu.memory_space<vmem>>, %arg20: memref<32x128xf32, #tpu.memory_space<vmem>>, %arg21: memref<32x128xf32, #tpu.memory_space<vmem>>) attributes {dimension_semantics = [#tpu.dimension_semantics<arbitrary>], iteration_bounds = array<i64: 4>, scalar_prefetch = 0 : i64, scratch_operands = 2 : i64, tpu.core_type = #tpu.core_type<tc>, window_params = [{pipeline_mode = #tpu.pipeline_mode<synchronous>, transform_indices = @transform_0, window_bounds = array<i64: 32, 48>}, {pipeline_mode = #tpu.pipeline_mode<synchronous>, transform_indices = @transform_1, window_bounds = array<i64: 48, 128>}, {pipeline_mode = #tpu.pipeline_mode<synchronous>, transform_indices = @transform_2, window_bounds = array<i64: 1, 128>}, {pipeline_mode = #tpu.pipeline_mode<synchronous>, transform_indices = @transform_3, window_bounds = array<i64: 32, 128>}, {transform_indices = @transform_4, window_bounds = array<i64: 1, 1, 128>}, {transform_indices = @transform_5, window_bounds = array<i64: 1, 1, 128>}, {transform_indices = @transform_6, window_bounds = array<i64: 1, 128, 384>}, {transform_indices = @transform_7, window_bounds = array<i64: 1, 1, 384>}, {transform_indices = @transform_8, window_bounds = array<i64: 1, 128, 128>}, {transform_indices = @transform_9, window_bounds = array<i64: 1, 1, 128>}, {transform_indices = @transform_10, window_bounds = array<i64: 1, 1, 128>}, {transform_indices = @transform_11, window_bounds = array<i64: 1, 1, 128>}, {transform_indices = @transform_12, window_bounds = array<i64: 1, 128, 512>}, {transform_indices = @transform_13, window_bounds = array<i64: 1, 1, 512>}, {transform_indices = @transform_14, window_bounds = array<i64: 1, 512, 128>}, {transform_indices = @transform_15, window_bounds = array<i64: 1, 1, 128>}, {transform_indices = @transform_16, window_bounds = array<i64: 1, 128, 128>}, {transform_indices = @transform_17, window_bounds = array<i64: 1, 1, 128>}, {transform_indices = @transform_18, window_bounds = array<i64: 1, 32, 128>}]} {
    %c0_i32 = arith.constant 0 : i32
    %0 = arith.cmpi eq, %arg0, %c0_i32 : i32
    %1 = arith.extui %0 : i1 to i32
    %c0_i32_0 = arith.constant 0 : i32
    %2 = arith.cmpi ne, %1, %c0_i32_0 : i32
    scf.if %2 {
      %c0_121 = arith.constant 0 : index
      %c0_122 = arith.constant 0 : index
      %256 = vector.load %arg1[%c0_121, %c0_122] : memref<32x48xf32, #tpu.memory_space<vmem>>, vector<32x48xf32>
      %257 = arith.truncf %256 : vector<32x48xf32> to vector<32x48xbf16>
      %c0_123 = arith.constant 0 : index
      %c0_124 = arith.constant 0 : index
      %258 = vector.load %arg2[%c0_123, %c0_124] : memref<48x128xbf16, #tpu.memory_space<vmem>>, vector<48x128xbf16>
      %cst_125 = arith.constant dense<0.000000e+00> : vector<32x128xf32>
      %259 = tpu.matmul %257, %258, %cst_125 {dimension_numbers = #tpu.dot_dimension_numbers<[1], [0], [0], [1], [0, 0, 1, 1], [], []>} : vector<32x48xbf16>, vector<48x128xbf16>, vector<32x128xf32> -> vector<32x128xf32>
      %c0_126 = arith.constant 0 : index
      %c0_127 = arith.constant 0 : index
      %260 = vector.load %arg3[%c0_126, %c0_127] : memref<1x128xf32, #tpu.memory_space<vmem>>, vector<1x128xf32>
      %261 = vector.broadcast %260 : vector<1x128xf32> to vector<32x128xf32>
      %262 = arith.addf %259, %261 : vector<32x128xf32>
      %c0_128 = arith.constant 0 : index
      %c0_129 = arith.constant 0 : index
      %263 = vector.load %arg4[%c0_128, %c0_129] : memref<32x128xf32, #tpu.memory_space<vmem>>, vector<32x128xf32>
      %264 = arith.addf %262, %263 : vector<32x128xf32>
      %c0_130 = arith.constant 0 : index
      %c0_131 = arith.constant 0 : index
      %265 = vector.load %arg20[%c0_130, %c0_131] : memref<32x128xf32, #tpu.memory_space<vmem>>, vector<32x128xf32>
      tpu.vector_store %arg20[%c0_130, %c0_131], %264 {strides = array<i32>} : memref<32x128xf32, #tpu.memory_space<vmem>>, vector<32x128xf32>,
    } else {
    }
    %c0 = arith.constant 0 : index
    %c0_1 = arith.constant 0 : index
    %3 = vector.load %arg20[%c0, %c0_1] : memref<32x128xf32, #tpu.memory_space<vmem>>, vector<32x128xf32>
    %c0_2 = arith.constant 0 : index
    %c0_3 = arith.constant 0 : index
    %c0_4 = arith.constant 0 : index
    %4 = vector.load %arg5[%c0_2, %c0_3, %c0_4] : memref<1x1x128xf32, #tpu.memory_space<vmem>>, vector<1x1x128xf32>
    %5 = vector.shape_cast %4 : vector<1x1x128xf32> to vector<1x128xf32>
    %c0_5 = arith.constant 0 : index
    %c0_6 = arith.constant 0 : index
    %c0_7 = arith.constant 0 : index
    %6 = vector.load %arg6[%c0_5, %c0_6, %c0_7] : memref<1x1x128xf32, #tpu.memory_space<vmem>>, vector<1x1x128xf32>
    %7 = vector.shape_cast %6 : vector<1x1x128xf32> to vector<1x128xf32>
    %cst = arith.constant dense<0.000000e+00> : vector<32xf32>
    %8 = vector.multi_reduction <add>, %3, %cst [1] : vector<32x128xf32> to vector<32xf32>
    %9 = vector.shape_cast %8 : vector<32xf32> to vector<32x1xf32>
    %cst_8 = arith.constant 1.280000e+02 : f32
    %10 = vector.broadcast %cst_8 : f32 to vector<32x1xf32>
    %11 = arith.divf %9, %10 : vector<32x1xf32>
    %12 = vector.broadcast %11 : vector<32x1xf32> to vector<32x128xf32>
    %13 = arith.subf %3, %12 : vector<32x128xf32>
    %14 = arith.mulf %13, %13 : vector<32x128xf32>
    %cst_9 = arith.constant dense<0.000000e+00> : vector<32xf32>
    %15 = vector.multi_reduction <add>, %14, %cst_9 [1] : vector<32x128xf32> to vector<32xf32>
    %16 = vector.shape_cast %15 : vector<32xf32> to vector<32x1xf32>
    %cst_10 = arith.constant 1.280000e+02 : f32
    %17 = vector.broadcast %cst_10 : f32 to vector<32x1xf32>
    %18 = arith.divf %16, %17 : vector<32x1xf32>
    %cst_11 = arith.constant 9.99999997E-7 : f32
    %19 = vector.broadcast %cst_11 : f32 to vector<32x1xf32>
    %20 = arith.addf %18, %19 : vector<32x1xf32>
    %21 = math.rsqrt %20 : vector<32x1xf32>
    %22 = vector.broadcast %21 : vector<32x1xf32> to vector<32x128xf32>
    %23 = arith.mulf %13, %22 : vector<32x128xf32>
    %24 = vector.broadcast %5 : vector<1x128xf32> to vector<32x128xf32>
    %25 = arith.mulf %23, %24 : vector<32x128xf32>
    %26 = vector.broadcast %7 : vector<1x128xf32> to vector<32x128xf32>
    %27 = arith.addf %25, %26 : vector<32x128xf32>
    %28 = arith.truncf %27 : vector<32x128xf32> to vector<32x128xbf16>
    %c0_12 = arith.constant 0 : index
    %c0_13 = arith.constant 0 : index
    %c0_14 = arith.constant 0 : index
    %29 = vector.load %arg7[%c0_12, %c0_13, %c0_14] : memref<1x128x384xbf16, #tpu.memory_space<vmem>>, vector<1x128x384xbf16>
    %30 = vector.shape_cast %29 : vector<1x128x384xbf16> to vector<128x384xbf16>
    %cst_15 = arith.constant dense<0.000000e+00> : vector<32x384xf32>
    %31 = tpu.matmul %28, %30, %cst_15 {dimension_numbers = #tpu.dot_dimension_numbers<[1], [0], [0], [1], [0, 0, 1, 1], [], []>} : vector<32x128xbf16>, vector<128x384xbf16>, vector<32x384xf32> -> vector<32x384xf32>
    %c0_16 = arith.constant 0 : index
    %c0_17 = arith.constant 0 : index
    %c0_18 = arith.constant 0 : index
    %32 = vector.load %arg8[%c0_16, %c0_17, %c0_18] : memref<1x1x384xf32, #tpu.memory_space<vmem>>, vector<1x1x384xf32>
    %33 = vector.shape_cast %32 : vector<1x1x384xf32> to vector<1x384xf32>
    %34 = vector.broadcast %33 : vector<1x384xf32> to vector<32x384xf32>
    %35 = arith.addf %31, %34 : vector<32x384xf32>
    %36 = vector.extract_strided_slice %35 {offsets = [0, 0], sizes = [16, 32], strides = [1, 1]} : vector<32x384xf32> to vector<16x32xf32>
    %cst_19 = arith.constant 0.176776692 : f32
    %37 = vector.broadcast %cst_19 : f32 to vector<16x32xf32>
    %38 = arith.mulf %36, %37 : vector<16x32xf32>
    %39 = vector.extract_strided_slice %35 {offsets = [0, 128], sizes = [16, 32], strides = [1, 1]} : vector<32x384xf32> to vector<16x32xf32>
    %40 = vector.extract_strided_slice %35 {offsets = [0, 256], sizes = [16, 32], strides = [1, 1]} : vector<32x384xf32> to vector<16x32xf32>
    "tpu.trace_start"() <{level = 10 : i32, message = "qd,kd->qk"}> : () -> ()
    %cst_20 = arith.constant dense<0.000000e+00> : vector<16x16xf32>
    %41 = tpu.matmul %38, %39, %cst_20 {dimension_numbers = #tpu.dot_dimension_numbers<[1], [1], [0], [0], [0, 0, 1, 0], [], []>} : vector<16x32xf32>, vector<16x32xf32>, vector<16x16xf32> -> vector<16x16xf32>
    "tpu.trace_stop"() : () -> ()
    %cst_21 = arith.constant dense<0xFF800000> : vector<16xf32>
    %42 = vector.multi_reduction <maximumf>, %41, %cst_21 [1] : vector<16x16xf32> to vector<16xf32>
    %43 = vector.shape_cast %42 : vector<16xf32> to vector<16x1xf32>
    %44 = vector.broadcast %43 : vector<16x1xf32> to vector<16x16xf32>
    %45 = arith.subf %41, %44 : vector<16x16xf32>
    %46 = math.exp %45 : vector<16x16xf32>
    %cst_22 = arith.constant dense<0.000000e+00> : vector<16xf32>
    %47 = vector.multi_reduction <add>, %46, %cst_22 [1] : vector<16x16xf32> to vector<16xf32>
    %48 = vector.shape_cast %47 : vector<16xf32> to vector<16x1xf32>
    %49 = tpu.reciprocal %48 {approx = true} : vector<16x1xf32> -> vector<16x1xf32>
    %50 = vector.broadcast %49 : vector<16x1xf32> to vector<16x16xf32>
    %51 = arith.mulf %46, %50 : vector<16x16xf32>
    %cst_23 = arith.constant dense<0.000000e+00> : vector<16x32xf32>
    %52 = tpu.matmul %51, %40, %cst_23 {dimension_numbers = #tpu.dot_dimension_numbers<[1], [0], [0], [1], [0, 0, 1, 1], [], []>} : vector<16x16xf32>, vector<16x32xf32>, vector<16x32xf32> -> vector<16x32xf32>
    %c0_24 = arith.constant 0 : index
    %c0_25 = arith.constant 0 : index
    %53 = vector.load %arg21[%c0_24, %c0_25] : memref<32x128xf32, #tpu.memory_space<vmem>>, vector<16x32xf32>
    tpu.vector_store %arg21[%c0_24, %c0_25], %52 {strides = array<i32>} : memref<32x128xf32, #tpu.memory_space<vmem>>, vector<16x32xf32>,
    %54 = vector.extract_strided_slice %35 {offsets = [0, 32], sizes = [16, 32], strides = [1, 1]} : vector<32x384xf32> to vector<16x32xf32>
    %cst_26 = arith.constant 0.176776692 : f32
    %55 = vector.broadcast %cst_26 : f32 to vector<16x32xf32>
    %56 = arith.mulf %54, %55 : vector<16x32xf32>
    %57 = vector.extract_strided_slice %35 {offsets = [0, 160], sizes = [16, 32], strides = [1, 1]} : vector<32x384xf32> to vector<16x32xf32>
    %58 = vector.extract_strided_slice %35 {offsets = [0, 288], sizes = [16, 32], strides = [1, 1]} : vector<32x384xf32> to vector<16x32xf32>
    "tpu.trace_start"() <{level = 10 : i32, message = "qd,kd->qk"}> : () -> ()
    %cst_27 = arith.constant dense<0.000000e+00> : vector<16x16xf32>
    %59 = tpu.matmul %56, %57, %cst_27 {dimension_numbers = #tpu.dot_dimension_numbers<[1], [1], [0], [0], [0, 0, 1, 0], [], []>} : vector<16x32xf32>, vector<16x32xf32>, vector<16x16xf32> -> vector<16x16xf32>
    "tpu.trace_stop"() : () -> ()
    %cst_28 = arith.constant dense<0xFF800000> : vector<16xf32>
    %60 = vector.multi_reduction <maximumf>, %59, %cst_28 [1] : vector<16x16xf32> to vector<16xf32>
    %61 = vector.shape_cast %60 : vector<16xf32> to vector<16x1xf32>
    %62 = vector.broadcast %61 : vector<16x1xf32> to vector<16x16xf32>
    %63 = arith.subf %59, %62 : vector<16x16xf32>
    %64 = math.exp %63 : vector<16x16xf32>
    %cst_29 = arith.constant dense<0.000000e+00> : vector<16xf32>
    %65 = vector.multi_reduction <add>, %64, %cst_29 [1] : vector<16x16xf32> to vector<16xf32>
    %66 = vector.shape_cast %65 : vector<16xf32> to vector<16x1xf32>
    %67 = tpu.reciprocal %66 {approx = true} : vector<16x1xf32> -> vector<16x1xf32>
    %68 = vector.broadcast %67 : vector<16x1xf32> to vector<16x16xf32>
    %69 = arith.mulf %64, %68 : vector<16x16xf32>
    %cst_30 = arith.constant dense<0.000000e+00> : vector<16x32xf32>
    %70 = tpu.matmul %69, %58, %cst_30 {dimension_numbers = #tpu.dot_dimension_numbers<[1], [0], [0], [1], [0, 0, 1, 1], [], []>} : vector<16x16xf32>, vector<16x32xf32>, vector<16x32xf32> -> vector<16x32xf32>
    %c0_31 = arith.constant 0 : index
    %c32 = arith.constant 32 : index
    %71 = vector.load %arg21[%c0_31, %c32] : memref<32x128xf32, #tpu.memory_space<vmem>>, vector<16x32xf32>
    tpu.vector_store %arg21[%c0_31, %c32], %70 {strides = array<i32>} : memref<32x128xf32, #tpu.memory_space<vmem>>, vector<16x32xf32>,
    %72 = vector.extract_strided_slice %35 {offsets = [0, 64], sizes = [16, 32], strides = [1, 1]} : vector<32x384xf32> to vector<16x32xf32>
    %cst_32 = arith.constant 0.176776692 : f32
    %73 = vector.broadcast %cst_32 : f32 to vector<16x32xf32>
    %74 = arith.mulf %72, %73 : vector<16x32xf32>
    %75 = vector.extract_strided_slice %35 {offsets = [0, 192], sizes = [16, 32], strides = [1, 1]} : vector<32x384xf32> to vector<16x32xf32>
    %76 = vector.extract_strided_slice %35 {offsets = [0, 320], sizes = [16, 32], strides = [1, 1]} : vector<32x384xf32> to vector<16x32xf32>
    "tpu.trace_start"() <{level = 10 : i32, message = "qd,kd->qk"}> : () -> ()
    %cst_33 = arith.constant dense<0.000000e+00> : vector<16x16xf32>
    %77 = tpu.matmul %74, %75, %cst_33 {dimension_numbers = #tpu.dot_dimension_numbers<[1], [1], [0], [0], [0, 0, 1, 0], [], []>} : vector<16x32xf32>, vector<16x32xf32>, vector<16x16xf32> -> vector<16x16xf32>
    "tpu.trace_stop"() : () -> ()
    %cst_34 = arith.constant dense<0xFF800000> : vector<16xf32>
    %78 = vector.multi_reduction <maximumf>, %77, %cst_34 [1] : vector<16x16xf32> to vector<16xf32>
    %79 = vector.shape_cast %78 : vector<16xf32> to vector<16x1xf32>
    %80 = vector.broadcast %79 : vector<16x1xf32> to vector<16x16xf32>
    %81 = arith.subf %77, %80 : vector<16x16xf32>
    %82 = math.exp %81 : vector<16x16xf32>
    %cst_35 = arith.constant dense<0.000000e+00> : vector<16xf32>
    %83 = vector.multi_reduction <add>, %82, %cst_35 [1] : vector<16x16xf32> to vector<16xf32>
    %84 = vector.shape_cast %83 : vector<16xf32> to vector<16x1xf32>
    %85 = tpu.reciprocal %84 {approx = true} : vector<16x1xf32> -> vector<16x1xf32>
    %86 = vector.broadcast %85 : vector<16x1xf32> to vector<16x16xf32>
    %87 = arith.mulf %82, %86 : vector<16x16xf32>
    %cst_36 = arith.constant dense<0.000000e+00> : vector<16x32xf32>
    %88 = tpu.matmul %87, %76, %cst_36 {dimension_numbers = #tpu.dot_dimension_numbers<[1], [0], [0], [1], [0, 0, 1, 1], [], []>} : vector<16x16xf32>, vector<16x32xf32>, vector<16x32xf32> -> vector<16x32xf32>
    %c0_37 = arith.constant 0 : index
    %c64 = arith.constant 64 : index
    %89 = vector.load %arg21[%c0_37, %c64] : memref<32x128xf32, #tpu.memory_space<vmem>>, vector<16x32xf32>
    tpu.vector_store %arg21[%c0_37, %c64], %88 {strides = array<i32>} : memref<32x128xf32, #tpu.memory_space<vmem>>, vector<16x32xf32>,
    %90 = vector.extract_strided_slice %35 {offsets = [0, 96], sizes = [16, 32], strides = [1, 1]} : vector<32x384xf32> to vector<16x32xf32>
    %cst_38 = arith.constant 0.176776692 : f32
    %91 = vector.broadcast %cst_38 : f32 to vector<16x32xf32>
    %92 = arith.mulf %90, %91 : vector<16x32xf32>
    %93 = vector.extract_strided_slice %35 {offsets = [0, 224], sizes = [16, 32], strides = [1, 1]} : vector<32x384xf32> to vector<16x32xf32>
    %94 = vector.extract_strided_slice %35 {offsets = [0, 352], sizes = [16, 32], strides = [1, 1]} : vector<32x384xf32> to vector<16x32xf32>
    "tpu.trace_start"() <{level = 10 : i32, message = "qd,kd->qk"}> : () -> ()
    %cst_39 = arith.constant dense<0.000000e+00> : vector<16x16xf32>
    %95 = tpu.matmul %92, %93, %cst_39 {dimension_numbers = #tpu.dot_dimension_numbers<[1], [1], [0], [0], [0, 0, 1, 0], [], []>} : vector<16x32xf32>, vector<16x32xf32>, vector<16x16xf32> -> vector<16x16xf32>
    "tpu.trace_stop"() : () -> ()
    %cst_40 = arith.constant dense<0xFF800000> : vector<16xf32>
    %96 = vector.multi_reduction <maximumf>, %95, %cst_40 [1] : vector<16x16xf32> to vector<16xf32>
    %97 = vector.shape_cast %96 : vector<16xf32> to vector<16x1xf32>
    %98 = vector.broadcast %97 : vector<16x1xf32> to vector<16x16xf32>
    %99 = arith.subf %95, %98 : vector<16x16xf32>
    %100 = math.exp %99 : vector<16x16xf32>
    %cst_41 = arith.constant dense<0.000000e+00> : vector<16xf32>
    %101 = vector.multi_reduction <add>, %100, %cst_41 [1] : vector<16x16xf32> to vector<16xf32>
    %102 = vector.shape_cast %101 : vector<16xf32> to vector<16x1xf32>
    %103 = tpu.reciprocal %102 {approx = true} : vector<16x1xf32> -> vector<16x1xf32>
    %104 = vector.broadcast %103 : vector<16x1xf32> to vector<16x16xf32>
    %105 = arith.mulf %100, %104 : vector<16x16xf32>
    %cst_42 = arith.constant dense<0.000000e+00> : vector<16x32xf32>
    %106 = tpu.matmul %105, %94, %cst_42 {dimension_numbers = #tpu.dot_dimension_numbers<[1], [0], [0], [1], [0, 0, 1, 1], [], []>} : vector<16x16xf32>, vector<16x32xf32>, vector<16x32xf32> -> vector<16x32xf32>
    %c0_43 = arith.constant 0 : index
    %c96 = arith.constant 96 : index
    %107 = vector.load %arg21[%c0_43, %c96] : memref<32x128xf32, #tpu.memory_space<vmem>>, vector<16x32xf32>
    tpu.vector_store %arg21[%c0_43, %c96], %106 {strides = array<i32>} : memref<32x128xf32, #tpu.memory_space<vmem>>, vector<16x32xf32>,
    %108 = vector.extract_strided_slice %35 {offsets = [16, 0], sizes = [16, 32], strides = [1, 1]} : vector<32x384xf32> to vector<16x32xf32>
    %cst_44 = arith.constant 0.176776692 : f32
    %109 = vector.broadcast %cst_44 : f32 to vector<16x32xf32>
    %110 = arith.mulf %108, %109 : vector<16x32xf32>
    %111 = vector.extract_strided_slice %35 {offsets = [16, 128], sizes = [16, 32], strides = [1, 1]} : vector<32x384xf32> to vector<16x32xf32>
    %112 = vector.extract_strided_slice %35 {offsets = [16, 256], sizes = [16, 32], strides = [1, 1]} : vector<32x384xf32> to vector<16x32xf32>
    "tpu.trace_start"() <{level = 10 : i32, message = "qd,kd->qk"}> : () -> ()
    %cst_45 = arith.constant dense<0.000000e+00> : vector<16x16xf32>
    %113 = tpu.matmul %110, %111, %cst_45 {dimension_numbers = #tpu.dot_dimension_numbers<[1], [1], [0], [0], [0, 0, 1, 0], [], []>} : vector<16x32xf32>, vector<16x32xf32>, vector<16x16xf32> -> vector<16x16xf32>
    "tpu.trace_stop"() : () -> ()
    %cst_46 = arith.constant dense<0xFF800000> : vector<16xf32>
    %114 = vector.multi_reduction <maximumf>, %113, %cst_46 [1] : vector<16x16xf32> to vector<16xf32>
    %115 = vector.shape_cast %114 : vector<16xf32> to vector<16x1xf32>
    %116 = vector.broadcast %115 : vector<16x1xf32> to vector<16x16xf32>
    %117 = arith.subf %113, %116 : vector<16x16xf32>
    %118 = math.exp %117 : vector<16x16xf32>
    %cst_47 = arith.constant dense<0.000000e+00> : vector<16xf32>
    %119 = vector.multi_reduction <add>, %118, %cst_47 [1] : vector<16x16xf32> to vector<16xf32>
    %120 = vector.shape_cast %119 : vector<16xf32> to vector<16x1xf32>
    %121 = tpu.reciprocal %120 {approx = true} : vector<16x1xf32> -> vector<16x1xf32>
    %122 = vector.broadcast %121 : vector<16x1xf32> to vector<16x16xf32>
    %123 = arith.mulf %118, %122 : vector<16x16xf32>
    %cst_48 = arith.constant dense<0.000000e+00> : vector<16x32xf32>
    %124 = tpu.matmul %123, %112, %cst_48 {dimension_numbers = #tpu.dot_dimension_numbers<[1], [0], [0], [1], [0, 0, 1, 1], [], []>} : vector<16x16xf32>, vector<16x32xf32>, vector<16x32xf32> -> vector<16x32xf32>
    %c16 = arith.constant 16 : index
    %c0_49 = arith.constant 0 : index
    %125 = vector.load %arg21[%c16, %c0_49] : memref<32x128xf32, #tpu.memory_space<vmem>>, vector<16x32xf32>
    tpu.vector_store %arg21[%c16, %c0_49], %124 {strides = array<i32>} : memref<32x128xf32, #tpu.memory_space<vmem>>, vector<16x32xf32>,
    %126 = vector.extract_strided_slice %35 {offsets = [16, 32], sizes = [16, 32], strides = [1, 1]} : vector<32x384xf32> to vector<16x32xf32>
    %cst_50 = arith.constant 0.176776692 : f32
    %127 = vector.broadcast %cst_50 : f32 to vector<16x32xf32>
    %128 = arith.mulf %126, %127 : vector<16x32xf32>
    %129 = vector.extract_strided_slice %35 {offsets = [16, 160], sizes = [16, 32], strides = [1, 1]} : vector<32x384xf32> to vector<16x32xf32>
    %130 = vector.extract_strided_slice %35 {offsets = [16, 288], sizes = [16, 32], strides = [1, 1]} : vector<32x384xf32> to vector<16x32xf32>
    "tpu.trace_start"() <{level = 10 : i32, message = "qd,kd->qk"}> : () -> ()
    %cst_51 = arith.constant dense<0.000000e+00> : vector<16x16xf32>
    %131 = tpu.matmul %128, %129, %cst_51 {dimension_numbers = #tpu.dot_dimension_numbers<[1], [1], [0], [0], [0, 0, 1, 0], [], []>} : vector<16x32xf32>, vector<16x32xf32>, vector<16x16xf32> -> vector<16x16xf32>
    "tpu.trace_stop"() : () -> ()
    %cst_52 = arith.constant dense<0xFF800000> : vector<16xf32>
    %132 = vector.multi_reduction <maximumf>, %131, %cst_52 [1] : vector<16x16xf32> to vector<16xf32>
    %133 = vector.shape_cast %132 : vector<16xf32> to vector<16x1xf32>
    %134 = vector.broadcast %133 : vector<16x1xf32> to vector<16x16xf32>
    %135 = arith.subf %131, %134 : vector<16x16xf32>
    %136 = math.exp %135 : vector<16x16xf32>
    %cst_53 = arith.constant dense<0.000000e+00> : vector<16xf32>
    %137 = vector.multi_reduction <add>, %136, %cst_53 [1] : vector<16x16xf32> to vector<16xf32>
    %138 = vector.shape_cast %137 : vector<16xf32> to vector<16x1xf32>
    %139 = tpu.reciprocal %138 {approx = true} : vector<16x1xf32> -> vector<16x1xf32>
    %140 = vector.broadcast %139 : vector<16x1xf32> to vector<16x16xf32>
    %141 = arith.mulf %136, %140 : vector<16x16xf32>
    %cst_54 = arith.constant dense<0.000000e+00> : vector<16x32xf32>
    %142 = tpu.matmul %141, %130, %cst_54 {dimension_numbers = #tpu.dot_dimension_numbers<[1], [0], [0], [1], [0, 0, 1, 1], [], []>} : vector<16x16xf32>, vector<16x32xf32>, vector<16x32xf32> -> vector<16x32xf32>
    %c16_55 = arith.constant 16 : index
    %c32_56 = arith.constant 32 : index
    %143 = vector.load %arg21[%c16_55, %c32_56] : memref<32x128xf32, #tpu.memory_space<vmem>>, vector<16x32xf32>
    tpu.vector_store %arg21[%c16_55, %c32_56], %142 {strides = array<i32>} : memref<32x128xf32, #tpu.memory_space<vmem>>, vector<16x32xf32>,
    %144 = vector.extract_strided_slice %35 {offsets = [16, 64], sizes = [16, 32], strides = [1, 1]} : vector<32x384xf32> to vector<16x32xf32>
    %cst_57 = arith.constant 0.176776692 : f32
    %145 = vector.broadcast %cst_57 : f32 to vector<16x32xf32>
    %146 = arith.mulf %144, %145 : vector<16x32xf32>
    %147 = vector.extract_strided_slice %35 {offsets = [16, 192], sizes = [16, 32], strides = [1, 1]} : vector<32x384xf32> to vector<16x32xf32>
    %148 = vector.extract_strided_slice %35 {offsets = [16, 320], sizes = [16, 32], strides = [1, 1]} : vector<32x384xf32> to vector<16x32xf32>
    "tpu.trace_start"() <{level = 10 : i32, message = "qd,kd->qk"}> : () -> ()
    %cst_58 = arith.constant dense<0.000000e+00> : vector<16x16xf32>
    %149 = tpu.matmul %146, %147, %cst_58 {dimension_numbers = #tpu.dot_dimension_numbers<[1], [1], [0], [0], [0, 0, 1, 0], [], []>} : vector<16x32xf32>, vector<16x32xf32>, vector<16x16xf32> -> vector<16x16xf32>
    "tpu.trace_stop"() : () -> ()
    %cst_59 = arith.constant dense<0xFF800000> : vector<16xf32>
    %150 = vector.multi_reduction <maximumf>, %149, %cst_59 [1] : vector<16x16xf32> to vector<16xf32>
    %151 = vector.shape_cast %150 : vector<16xf32> to vector<16x1xf32>
    %152 = vector.broadcast %151 : vector<16x1xf32> to vector<16x16xf32>
    %153 = arith.subf %149, %152 : vector<16x16xf32>
    %154 = math.exp %153 : vector<16x16xf32>
    %cst_60 = arith.constant dense<0.000000e+00> : vector<16xf32>
    %155 = vector.multi_reduction <add>, %154, %cst_60 [1] : vector<16x16xf32> to vector<16xf32>
    %156 = vector.shape_cast %155 : vector<16xf32> to vector<16x1xf32>
    %157 = tpu.reciprocal %156 {approx = true} : vector<16x1xf32> -> vector<16x1xf32>
    %158 = vector.broadcast %157 : vector<16x1xf32> to vector<16x16xf32>
    %159 = arith.mulf %154, %158 : vector<16x16xf32>
    %cst_61 = arith.constant dense<0.000000e+00> : vector<16x32xf32>
    %160 = tpu.matmul %159, %148, %cst_61 {dimension_numbers = #tpu.dot_dimension_numbers<[1], [0], [0], [1], [0, 0, 1, 1], [], []>} : vector<16x16xf32>, vector<16x32xf32>, vector<16x32xf32> -> vector<16x32xf32>
    %c16_62 = arith.constant 16 : index
    %c64_63 = arith.constant 64 : index
    %161 = vector.load %arg21[%c16_62, %c64_63] : memref<32x128xf32, #tpu.memory_space<vmem>>, vector<16x32xf32>
    tpu.vector_store %arg21[%c16_62, %c64_63], %160 {strides = array<i32>} : memref<32x128xf32, #tpu.memory_space<vmem>>, vector<16x32xf32>,
    %162 = vector.extract_strided_slice %35 {offsets = [16, 96], sizes = [16, 32], strides = [1, 1]} : vector<32x384xf32> to vector<16x32xf32>
    %cst_64 = arith.constant 0.176776692 : f32
    %163 = vector.broadcast %cst_64 : f32 to vector<16x32xf32>
    %164 = arith.mulf %162, %163 : vector<16x32xf32>
    %165 = vector.extract_strided_slice %35 {offsets = [16, 224], sizes = [16, 32], strides = [1, 1]} : vector<32x384xf32> to vector<16x32xf32>
    %166 = vector.extract_strided_slice %35 {offsets = [16, 352], sizes = [16, 32], strides = [1, 1]} : vector<32x384xf32> to vector<16x32xf32>
    "tpu.trace_start"() <{level = 10 : i32, message = "qd,kd->qk"}> : () -> ()
    %cst_65 = arith.constant dense<0.000000e+00> : vector<16x16xf32>
    %167 = tpu.matmul %164, %165, %cst_65 {dimension_numbers = #tpu.dot_dimension_numbers<[1], [1], [0], [0], [0, 0, 1, 0], [], []>} : vector<16x32xf32>, vector<16x32xf32>, vector<16x16xf32> -> vector<16x16xf32>
    "tpu.trace_stop"() : () -> ()
    %cst_66 = arith.constant dense<0xFF800000> : vector<16xf32>
    %168 = vector.multi_reduction <maximumf>, %167, %cst_66 [1] : vector<16x16xf32> to vector<16xf32>
    %169 = vector.shape_cast %168 : vector<16xf32> to vector<16x1xf32>
    %170 = vector.broadcast %169 : vector<16x1xf32> to vector<16x16xf32>
    %171 = arith.subf %167, %170 : vector<16x16xf32>
    %172 = math.exp %171 : vector<16x16xf32>
    %cst_67 = arith.constant dense<0.000000e+00> : vector<16xf32>
    %173 = vector.multi_reduction <add>, %172, %cst_67 [1] : vector<16x16xf32> to vector<16xf32>
    %174 = vector.shape_cast %173 : vector<16xf32> to vector<16x1xf32>
    %175 = tpu.reciprocal %174 {approx = true} : vector<16x1xf32> -> vector<16x1xf32>
    %176 = vector.broadcast %175 : vector<16x1xf32> to vector<16x16xf32>
    %177 = arith.mulf %172, %176 : vector<16x16xf32>
    %cst_68 = arith.constant dense<0.000000e+00> : vector<16x32xf32>
    %178 = tpu.matmul %177, %166, %cst_68 {dimension_numbers = #tpu.dot_dimension_numbers<[1], [0], [0], [1], [0, 0, 1, 1], [], []>} : vector<16x16xf32>, vector<16x32xf32>, vector<16x32xf32> -> vector<16x32xf32>
    %c16_69 = arith.constant 16 : index
    %c96_70 = arith.constant 96 : index
    %179 = vector.load %arg21[%c16_69, %c96_70] : memref<32x128xf32, #tpu.memory_space<vmem>>, vector<16x32xf32>
    tpu.vector_store %arg21[%c16_69, %c96_70], %178 {strides = array<i32>} : memref<32x128xf32, #tpu.memory_space<vmem>>, vector<16x32xf32>,
    %c0_71 = arith.constant 0 : index
    %c0_72 = arith.constant 0 : index
    %180 = vector.load %arg21[%c0_71, %c0_72] : memref<32x128xf32, #tpu.memory_space<vmem>>, vector<32x128xf32>
    %181 = arith.truncf %180 : vector<32x128xf32> to vector<32x128xbf16>
    %c0_73 = arith.constant 0 : index
    %c0_74 = arith.constant 0 : index
    %c0_75 = arith.constant 0 : index
    %182 = vector.load %arg9[%c0_73, %c0_74, %c0_75] : memref<1x128x128xbf16, #tpu.memory_space<vmem>>, vector<1x128x128xbf16>
    %183 = vector.shape_cast %182 : vector<1x128x128xbf16> to vector<128x128xbf16>
    %cst_76 = arith.constant dense<0.000000e+00> : vector<32x128xf32>
    %184 = tpu.matmul %181, %183, %cst_76 {dimension_numbers = #tpu.dot_dimension_numbers<[1], [0], [0], [1], [0, 0, 1, 1], [], []>} : vector<32x128xbf16>, vector<128x128xbf16>, vector<32x128xf32> -> vector<32x128xf32>
    %185 = arith.addf %3, %184 : vector<32x128xf32>
    %c0_77 = arith.constant 0 : index
    %c0_78 = arith.constant 0 : index
    %c0_79 = arith.constant 0 : index
    %186 = vector.load %arg10[%c0_77, %c0_78, %c0_79] : memref<1x1x128xf32, #tpu.memory_space<vmem>>, vector<1x1x128xf32>
    %187 = vector.shape_cast %186 : vector<1x1x128xf32> to vector<1x128xf32>
    %188 = vector.broadcast %187 : vector<1x128xf32> to vector<32x128xf32>
    %189 = arith.addf %185, %188 : vector<32x128xf32>
    %c0_80 = arith.constant 0 : index
    %c0_81 = arith.constant 0 : index
    %c0_82 = arith.constant 0 : index
    %190 = vector.load %arg11[%c0_80, %c0_81, %c0_82] : memref<1x1x128xf32, #tpu.memory_space<vmem>>, vector<1x1x128xf32>
    %191 = vector.shape_cast %190 : vector<1x1x128xf32> to vector<1x128xf32>
    %c0_83 = arith.constant 0 : index
    %c0_84 = arith.constant 0 : index
    %c0_85 = arith.constant 0 : index
    %192 = vector.load %arg12[%c0_83, %c0_84, %c0_85] : memref<1x1x128xf32, #tpu.memory_space<vmem>>, vector<1x1x128xf32>
    %193 = vector.shape_cast %192 : vector<1x1x128xf32> to vector<1x128xf32>
    %cst_86 = arith.constant dense<0.000000e+00> : vector<32xf32>
    %194 = vector.multi_reduction <add>, %189, %cst_86 [1] : vector<32x128xf32> to vector<32xf32>
    %195 = vector.shape_cast %194 : vector<32xf32> to vector<32x1xf32>
    %cst_87 = arith.constant 1.280000e+02 : f32
    %196 = vector.broadcast %cst_87 : f32 to vector<32x1xf32>
    %197 = arith.divf %195, %196 : vector<32x1xf32>
    %198 = vector.broadcast %197 : vector<32x1xf32> to vector<32x128xf32>
    %199 = arith.subf %189, %198 : vector<32x128xf32>
    %200 = arith.mulf %199, %199 : vector<32x128xf32>
    %cst_88 = arith.constant dense<0.000000e+00> : vector<32xf32>
    %201 = vector.multi_reduction <add>, %200, %cst_88 [1] : vector<32x128xf32> to vector<32xf32>
    %202 = vector.shape_cast %201 : vector<32xf32> to vector<32x1xf32>
    %cst_89 = arith.constant 1.280000e+02 : f32
    %203 = vector.broadcast %cst_89 : f32 to vector<32x1xf32>
    %204 = arith.divf %202, %203 : vector<32x1xf32>
    %cst_90 = arith.constant 9.99999997E-7 : f32
    %205 = vector.broadcast %cst_90 : f32 to vector<32x1xf32>
    %206 = arith.addf %204, %205 : vector<32x1xf32>
    %207 = math.rsqrt %206 : vector<32x1xf32>
    %208 = vector.broadcast %207 : vector<32x1xf32> to vector<32x128xf32>
    %209 = arith.mulf %199, %208 : vector<32x128xf32>
    %210 = vector.broadcast %191 : vector<1x128xf32> to vector<32x128xf32>
    %211 = arith.mulf %209, %210 : vector<32x128xf32>
    %212 = vector.broadcast %193 : vector<1x128xf32> to vector<32x128xf32>
    %213 = arith.addf %211, %212 : vector<32x128xf32>
    %214 = arith.truncf %213 : vector<32x128xf32> to vector<32x128xbf16>
    %c0_91 = arith.constant 0 : index
    %c0_92 = arith.constant 0 : index
    %c0_93 = arith.constant 0 : index
    %215 = vector.load %arg13[%c0_91, %c0_92, %c0_93] : memref<1x128x512xbf16, #tpu.memory_space<vmem>>, vector<1x128x512xbf16>
    %216 = vector.shape_cast %215 : vector<1x128x512xbf16> to vector<128x512xbf16>
    %cst_94 = arith.constant dense<0.000000e+00> : vector<32x512xf32>
    %217 = tpu.matmul %214, %216, %cst_94 {dimension_numbers = #tpu.dot_dimension_numbers<[1], [0], [0], [1], [0, 0, 1, 1], [], []>} : vector<32x128xbf16>, vector<128x512xbf16>, vector<32x512xf32> -> vector<32x512xf32>
    %c0_95 = arith.constant 0 : index
    %c0_96 = arith.constant 0 : index
    %c0_97 = arith.constant 0 : index
    %218 = vector.load %arg14[%c0_95, %c0_96, %c0_97] : memref<1x1x512xf32, #tpu.memory_space<vmem>>, vector<1x1x512xf32>
    %219 = vector.shape_cast %218 : vector<1x1x512xf32> to vector<1x512xf32>
    %220 = vector.broadcast %219 : vector<1x512xf32> to vector<32x512xf32>
    %221 = arith.addf %217, %220 : vector<32x512xf32>
    %222 = arith.mulf %221, %221 : vector<32x512xf32>
    %223 = arith.mulf %221, %222 : vector<32x512xf32>
    %cst_98 = arith.constant 4.471500e-02 : f32
    %224 = vector.broadcast %cst_98 : f32 to vector<32x512xf32>
    %225 = arith.mulf %224, %223 : vector<32x512xf32>
    %226 = arith.addf %221, %225 : vector<32x512xf32>
    %cst_99 = arith.constant 0.797884583 : f32
    %227 = vector.broadcast %cst_99 : f32 to vector<32x512xf32>
    %228 = arith.mulf %227, %226 : vector<32x512xf32>
    %229 = math.tanh %228 : vector<32x512xf32>
    %cst_100 = arith.constant 1.000000e+00 : f32
    %230 = vector.broadcast %cst_100 : f32 to vector<32x512xf32>
    %231 = arith.addf %230, %229 : vector<32x512xf32>
    %cst_101 = arith.constant 5.000000e-01 : f32
    %232 = vector.broadcast %cst_101 : f32 to vector<32x512xf32>
    %233 = arith.mulf %232, %231 : vector<32x512xf32>
    %234 = arith.mulf %221, %233 : vector<32x512xf32>
    %235 = arith.truncf %234 : vector<32x512xf32> to vector<32x512xbf16>
    %c0_102 = arith.constant 0 : index
    %c0_103 = arith.constant 0 : index
    %c0_104 = arith.constant 0 : index
    %236 = vector.load %arg15[%c0_102, %c0_103, %c0_104] : memref<1x512x128xbf16, #tpu.memory_space<vmem>>, vector<1x512x128xbf16>
    %237 = vector.shape_cast %236 : vector<1x512x128xbf16> to vector<512x128xbf16>
    %cst_105 = arith.constant dense<0.000000e+00> : vector<32x128xf32>
    %238 = tpu.matmul %235, %237, %cst_105 {dimension_numbers = #tpu.dot_dimension_numbers<[1], [0], [0], [1], [0, 0, 1, 1], [], []>} : vector<32x512xbf16>, vector<512x128xbf16>, vector<32x128xf32> -> vector<32x128xf32>
    %239 = arith.addf %189, %238 : vector<32x128xf32>
    %c0_106 = arith.constant 0 : index
    %c0_107 = arith.constant 0 : index
    %c0_108 = arith.constant 0 : index
    %240 = vector.load %arg16[%c0_106, %c0_107, %c0_108] : memref<1x1x128xf32, #tpu.memory_space<vmem>>, vector<1x1x128xf32>
    %241 = vector.shape_cast %240 : vector<1x1x128xf32> to vector<1x128xf32>
    %242 = vector.broadcast %241 : vector<1x128xf32> to vector<32x128xf32>
    %243 = arith.addf %239, %242 : vector<32x128xf32>
    %c0_109 = arith.constant 0 : index
    %c0_110 = arith.constant 0 : index
    %244 = vector.load %arg20[%c0_109, %c0_110] : memref<32x128xf32, #tpu.memory_space<vmem>>, vector<32x128xf32>
    tpu.vector_store %arg20[%c0_109, %c0_110], %243 {strides = array<i32>} : memref<32x128xf32, #tpu.memory_space<vmem>>, vector<32x128xf32>,
    %245 = arith.truncf %243 : vector<32x128xf32> to vector<32x128xbf16>
    %c0_111 = arith.constant 0 : index
    %c0_112 = arith.constant 0 : index
    %c0_113 = arith.constant 0 : index
    %246 = vector.load %arg17[%c0_111, %c0_112, %c0_113] : memref<1x128x128xbf16, #tpu.memory_space<vmem>>, vector<1x128x128xbf16>
    %247 = vector.shape_cast %246 : vector<1x128x128xbf16> to vector<128x128xbf16>
    %cst_114 = arith.constant dense<0.000000e+00> : vector<32x128xf32>
    %248 = tpu.matmul %245, %247, %cst_114 {dimension_numbers = #tpu.dot_dimension_numbers<[1], [0], [0], [1], [0, 0, 1, 1], [], []>} : vector<32x128xbf16>, vector<128x128xbf16>, vector<32x128xf32> -> vector<32x128xf32>
    %c0_115 = arith.constant 0 : index
    %c0_116 = arith.constant 0 : index
    %c0_117 = arith.constant 0 : index
    %249 = vector.load %arg18[%c0_115, %c0_116, %c0_117] : memref<1x1x128xf32, #tpu.memory_space<vmem>>, vector<1x1x128xf32>
    %250 = vector.shape_cast %249 : vector<1x1x128xf32> to vector<1x128xf32>
    %251 = vector.broadcast %250 : vector<1x128xf32> to vector<32x128xf32>
    %252 = arith.addf %248, %251 : vector<32x128xf32>
    %c0_118 = arith.constant 0 : index
    %c0_119 = arith.constant 0 : index
    %c0_120 = arith.constant 0 : index
    %253 = vector.load %arg19[%c0_118, %c0_119, %c0_120] : memref<1x32x128xf32, #tpu.memory_space<vmem>>, vector<1x32x128xf32>
    %254 = vector.shape_cast %253 : vector<1x32x128xf32> to vector<32x128xf32>
    %255 = vector.shape_cast %252 : vector<32x128xf32> to vector<1x32x128xf32>
    tpu.vector_store %arg19[%c0_118, %c0_119, %c0_120], %255 {strides = array<i32>} : memref<1x32x128xf32, #tpu.memory_space<vmem>>, vector<1x32x128xf32>,
    return
  }
  func.func @transform_0(%arg0: i32) -> (i32, i32) {
    %c0_i32 = arith.constant 0 : i32
    %c0_i32_0 = arith.constant 0 : i32
    %c0_i32_1 = arith.constant 0 : i32
    return %c0_i32, %c0_i32_0 : i32, i32
  }
  func.func @transform_1(%arg0: i32) -> (i32, i32) {
    %c0_i32 = arith.constant 0 : i32
    %c0_i32_0 = arith.constant 0 : i32
    %c0_i32_1 = arith.constant 0 : i32
    return %c0_i32, %c0_i32_0 : i32, i32
  }
  func.func @transform_2(%arg0: i32) -> (i32, i32) {
    %c0_i32 = arith.constant 0 : i32
    %c0_i32_0 = arith.constant 0 : i32
    %c0_i32_1 = arith.constant 0 : i32
    return %c0_i32, %c0_i32_0 : i32, i32
  }
  func.func @transform_3(%arg0: i32) -> (i32, i32) {
    %c0_i32 = arith.constant 0 : i32
    %c0_i32_0 = arith.constant 0 : i32
    %c0_i32_1 = arith.constant 0 : i32
    return %c0_i32, %c0_i32_0 : i32, i32
  }
  func.func @transform_4(%arg0: i32) -> (i32, i32, i32) {
    %c0_i32 = arith.constant 0 : i32
    %c0_i32_0 = arith.constant 0 : i32
    %c0_i32_1 = arith.constant 0 : i32
    return %arg0, %c0_i32, %c0_i32_0 : i32, i32, i32
  }
  func.func @transform_5(%arg0: i32) -> (i32, i32, i32) {
    %c0_i32 = arith.constant 0 : i32
    %c0_i32_0 = arith.constant 0 : i32
    %c0_i32_1 = arith.constant 0 : i32
    return %arg0, %c0_i32, %c0_i32_0 : i32, i32, i32
  }
  func.func @transform_6(%arg0: i32) -> (i32, i32, i32) {
    %c0_i32 = arith.constant 0 : i32
    %c0_i32_0 = arith.constant 0 : i32
    %c0_i32_1 = arith.constant 0 : i32
    return %arg0, %c0_i32, %c0_i32_0 : i32, i32, i32
  }
  func.func @transform_7(%arg0: i32) -> (i32, i32, i32) {
    %c0_i32 = arith.constant 0 : i32
    %c0_i32_0 = arith.constant 0 : i32
    %c0_i32_1 = arith.constant 0 : i32
    return %arg0, %c0_i32, %c0_i32_0 : i32, i32, i32
  }
  func.func @transform_8(%arg0: i32) -> (i32, i32, i32) {
    %c0_i32 = arith.constant 0 : i32
    %c0_i32_0 = arith.constant 0 : i32
    %c0_i32_1 = arith.constant 0 : i32
    return %arg0, %c0_i32, %c0_i32_0 : i32, i32, i32
  }
  func.func @transform_9(%arg0: i32) -> (i32, i32, i32) {
    %c0_i32 = arith.constant 0 : i32
    %c0_i32_0 = arith.constant 0 : i32
    %c0_i32_1 = arith.constant 0 : i32
    return %arg0, %c0_i32, %c0_i32_0 : i32, i32, i32
  }
  func.func @transform_10(%arg0: i32) -> (i32, i32, i32) {
    %c0_i32 = arith.constant 0 : i32
    %c0_i32_0 = arith.constant 0 : i32
    %c0_i32_1 = arith.constant 0 : i32
    return %arg0, %c0_i32, %c0_i32_0 : i32, i32, i32
  }
  func.func @transform_11(%arg0: i32) -> (i32, i32, i32) {
    %c0_i32 = arith.constant 0 : i32
    %c0_i32_0 = arith.constant 0 : i32
    %c0_i32_1 = arith.constant 0 : i32
    return %arg0, %c0_i32, %c0_i32_0 : i32, i32, i32
  }
  func.func @transform_12(%arg0: i32) -> (i32, i32, i32) {
    %c0_i32 = arith.constant 0 : i32
    %c0_i32_0 = arith.constant 0 : i32
    %c0_i32_1 = arith.constant 0 : i32
    return %arg0, %c0_i32, %c0_i32_0 : i32, i32, i32
  }
  func.func @transform_13(%arg0: i32) -> (i32, i32, i32) {
    %c0_i32 = arith.constant 0 : i32
    %c0_i32_0 = arith.constant 0 : i32
    %c0_i32_1 = arith.constant 0 : i32
    return %arg0, %c0_i32, %c0_i32_0 : i32, i32, i32
  }
  func.func @transform_14(%arg0: i32) -> (i32, i32, i32) {
    %c0_i32 = arith.constant 0 : i32
    %c0_i32_0 = arith.constant 0 : i32
    %c0_i32_1 = arith.constant 0 : i32
    return %arg0, %c0_i32, %c0_i32_0 : i32, i32, i32
  }
  func.func @transform_15(%arg0: i32) -> (i32, i32, i32) {
    %c0_i32 = arith.constant 0 : i32
    %c0_i32_0 = arith.constant 0 : i32
    %c0_i32_1 = arith.constant 0 : i32
    return %arg0, %c0_i32, %c0_i32_0 : i32, i32, i32
  }
  func.func @transform_16(%arg0: i32) -> (i32, i32, i32) {
    %c0_i32 = arith.constant 0 : i32
    %c0_i32_0 = arith.constant 0 : i32
    %c0_i32_1 = arith.constant 0 : i32
    return %arg0, %c0_i32, %c0_i32_0 : i32, i32, i32
  }
  func.func @transform_17(%arg0: i32) -> (i32, i32, i32) {
    %c0_i32 = arith.constant 0 : i32
    %c0_i32_0 = arith.constant 0 : i32
    %c0_i32_1 = arith.constant 0 : i32
    return %arg0, %c0_i32, %c0_i32_0 : i32, i32, i32
  }
  func.func @transform_18(%arg0: i32) -> (i32, i32, i32) {
    %c0_i32 = arith.constant 0 : i32
    %c0_i32_0 = arith.constant 0 : i32
    %c0_i32_1 = arith.constant 0 : i32
    return %arg0, %c0_i32, %c0_i32_0 : i32, i32, i32
  }
}

module attributes {stable_mosaic.version = 11 : i64} {
  func.func @_fuse_conv_kernel(%arg0: i32, %arg1: memref<32x1152xf32, #tpu.memory_space<vmem>>, %arg2: memref<1152x128xbf16, #tpu.memory_space<vmem>>, %arg3: memref<1x128xf32, #tpu.memory_space<vmem>>, %arg4: memref<32x128xf32, #tpu.memory_space<vmem>>, %arg5: memref<32x128xf32, #tpu.memory_space<vmem>>) attributes {dimension_semantics = [#tpu.dimension_semantics<arbitrary>], iteration_bounds = array<i64: 1>, scalar_prefetch = 0 : i64, scratch_operands = 0 : i64, tpu.core_type = #tpu.core_type<tc>, window_params = [{pipeline_mode = #tpu.pipeline_mode<synchronous>, transform_indices = @transform_0, window_bounds = array<i64: 32, 1152>}, {pipeline_mode = #tpu.pipeline_mode<synchronous>, transform_indices = @transform_1, window_bounds = array<i64: 1152, 128>}, {pipeline_mode = #tpu.pipeline_mode<synchronous>, transform_indices = @transform_2, window_bounds = array<i64: 1, 128>}, {pipeline_mode = #tpu.pipeline_mode<synchronous>, transform_indices = @transform_3, window_bounds = array<i64: 32, 128>}, {pipeline_mode = #tpu.pipeline_mode<synchronous>, transform_indices = @transform_4, window_bounds = array<i64: 32, 128>}]} {
    %c0 = arith.constant 0 : index
    %c0_0 = arith.constant 0 : index
    %0 = vector.load %arg1[%c0, %c0_0] : memref<32x1152xf32, #tpu.memory_space<vmem>>, vector<32x1152xf32>
    %1 = arith.truncf %0 : vector<32x1152xf32> to vector<32x1152xbf16>
    %c0_1 = arith.constant 0 : index
    %c0_2 = arith.constant 0 : index
    %2 = vector.load %arg2[%c0_1, %c0_2] : memref<1152x128xbf16, #tpu.memory_space<vmem>>, vector<1152x128xbf16>
    %cst = arith.constant dense<0.000000e+00> : vector<32x128xf32>
    %3 = tpu.matmul %1, %2, %cst {dimension_numbers = #tpu.dot_dimension_numbers<[1], [0], [0], [1], [0, 0, 1, 1], [], []>} : vector<32x1152xbf16>, vector<1152x128xbf16>, vector<32x128xf32> -> vector<32x128xf32>
    %c0_3 = arith.constant 0 : index
    %c0_4 = arith.constant 0 : index
    %4 = vector.load %arg3[%c0_3, %c0_4] : memref<1x128xf32, #tpu.memory_space<vmem>>, vector<1x128xf32>
    %5 = vector.broadcast %4 : vector<1x128xf32> to vector<32x128xf32>
    %6 = arith.addf %3, %5 : vector<32x128xf32>
    %cst_5 = arith.constant 0.000000e+00 : f32
    %7 = vector.broadcast %cst_5 : f32 to vector<32x128xf32>
    %8 = arith.maximumf %6, %7 : vector<32x128xf32>
    %c0_6 = arith.constant 0 : index
    %c0_7 = arith.constant 0 : index
    %9 = vector.load %arg4[%c0_6, %c0_7] : memref<32x128xf32, #tpu.memory_space<vmem>>, vector<32x128xf32>
    %10 = arith.addf %8, %9 : vector<32x128xf32>
    %c0_8 = arith.constant 0 : index
    %c0_9 = arith.constant 0 : index
    %11 = vector.load %arg5[%c0_8, %c0_9] : memref<32x128xf32, #tpu.memory_space<vmem>>, vector<32x128xf32>
    tpu.vector_store %arg5[%c0_8, %c0_9], %10 {strides = array<i32>} : memref<32x128xf32, #tpu.memory_space<vmem>>, vector<32x128xf32>,
    return
  }
  func.func @transform_0(%arg0: i32) -> (i32, i32) {
    %c0_i32 = arith.constant 0 : i32
    %c0_i32_0 = arith.constant 0 : i32
    %c0_i32_1 = arith.constant 0 : i32
    return %c0_i32, %c0_i32_0 : i32, i32
  }
  func.func @transform_1(%arg0: i32) -> (i32, i32) {
    %c0_i32 = arith.constant 0 : i32
    %c0_i32_0 = arith.constant 0 : i32
    %c0_i32_1 = arith.constant 0 : i32
    return %c0_i32, %c0_i32_0 : i32, i32
  }
  func.func @transform_2(%arg0: i32) -> (i32, i32) {
    %c0_i32 = arith.constant 0 : i32
    %c0_i32_0 = arith.constant 0 : i32
    %c0_i32_1 = arith.constant 0 : i32
    return %c0_i32, %c0_i32_0 : i32, i32
  }
  func.func @transform_3(%arg0: i32) -> (i32, i32) {
    %c0_i32 = arith.constant 0 : i32
    %c0_i32_0 = arith.constant 0 : i32
    %c0_i32_1 = arith.constant 0 : i32
    return %c0_i32, %c0_i32_0 : i32, i32
  }
  func.func @transform_4(%arg0: i32) -> (i32, i32) {
    %c0_i32 = arith.constant 0 : i32
    %c0_i32_0 = arith.constant 0 : i32
    %c0_i32_1 = arith.constant 0 : i32
    return %c0_i32, %c0_i32_0 : i32, i32
  }
}

module attributes {stable_mosaic.version = 11 : i64} {
  func.func @_head_tail_kernel(%arg0: i32, %arg1: memref<128x1152xf32, #tpu.memory_space<vmem>>, %arg2: memref<1152x128xbf16, #tpu.memory_space<vmem>>, %arg3: memref<1x128xf32, #tpu.memory_space<vmem>>, %arg4: memref<128x256xbf16, #tpu.memory_space<vmem>>, %arg5: memref<1x256xf32, #tpu.memory_space<vmem>>, %arg6: memref<128x256xf32, #tpu.memory_space<vmem>>) attributes {dimension_semantics = [#tpu.dimension_semantics<arbitrary>], iteration_bounds = array<i64: 1>, scalar_prefetch = 0 : i64, scratch_operands = 0 : i64, tpu.core_type = #tpu.core_type<tc>, window_params = [{pipeline_mode = #tpu.pipeline_mode<synchronous>, transform_indices = @transform_0, window_bounds = array<i64: 128, 1152>}, {pipeline_mode = #tpu.pipeline_mode<synchronous>, transform_indices = @transform_1, window_bounds = array<i64: 1152, 128>}, {pipeline_mode = #tpu.pipeline_mode<synchronous>, transform_indices = @transform_2, window_bounds = array<i64: 1, 128>}, {pipeline_mode = #tpu.pipeline_mode<synchronous>, transform_indices = @transform_3, window_bounds = array<i64: 128, 256>}, {pipeline_mode = #tpu.pipeline_mode<synchronous>, transform_indices = @transform_4, window_bounds = array<i64: 1, 256>}, {pipeline_mode = #tpu.pipeline_mode<synchronous>, transform_indices = @transform_5, window_bounds = array<i64: 128, 256>}]} {
    %c0 = arith.constant 0 : index
    %c0_0 = arith.constant 0 : index
    %0 = vector.load %arg1[%c0, %c0_0] : memref<128x1152xf32, #tpu.memory_space<vmem>>, vector<128x1152xf32>
    %1 = arith.truncf %0 : vector<128x1152xf32> to vector<128x1152xbf16>
    %c0_1 = arith.constant 0 : index
    %c0_2 = arith.constant 0 : index
    %2 = vector.load %arg2[%c0_1, %c0_2] : memref<1152x128xbf16, #tpu.memory_space<vmem>>, vector<1152x128xbf16>
    %cst = arith.constant dense<0.000000e+00> : vector<128x128xf32>
    %3 = tpu.matmul %1, %2, %cst {dimension_numbers = #tpu.dot_dimension_numbers<[1], [0], [0], [1], [0, 0, 1, 1], [], []>} : vector<128x1152xbf16>, vector<1152x128xbf16>, vector<128x128xf32> -> vector<128x128xf32>
    %c0_3 = arith.constant 0 : index
    %c0_4 = arith.constant 0 : index
    %4 = vector.load %arg3[%c0_3, %c0_4] : memref<1x128xf32, #tpu.memory_space<vmem>>, vector<1x128xf32>
    %5 = vector.broadcast %4 : vector<1x128xf32> to vector<128x128xf32>
    %6 = arith.addf %3, %5 : vector<128x128xf32>
    %cst_5 = arith.constant 0.000000e+00 : f32
    %7 = vector.broadcast %cst_5 : f32 to vector<128x128xf32>
    %8 = arith.maximumf %6, %7 : vector<128x128xf32>
    %9 = arith.truncf %8 : vector<128x128xf32> to vector<128x128xbf16>
    %c0_6 = arith.constant 0 : index
    %c0_7 = arith.constant 0 : index
    %10 = vector.load %arg4[%c0_6, %c0_7] : memref<128x256xbf16, #tpu.memory_space<vmem>>, vector<128x256xbf16>
    %cst_8 = arith.constant dense<0.000000e+00> : vector<128x256xf32>
    %11 = tpu.matmul %9, %10, %cst_8 {dimension_numbers = #tpu.dot_dimension_numbers<[1], [0], [0], [1], [0, 0, 1, 1], [], []>} : vector<128x128xbf16>, vector<128x256xbf16>, vector<128x256xf32> -> vector<128x256xf32>
    %c0_9 = arith.constant 0 : index
    %c0_10 = arith.constant 0 : index
    %12 = vector.load %arg5[%c0_9, %c0_10] : memref<1x256xf32, #tpu.memory_space<vmem>>, vector<1x256xf32>
    %13 = vector.broadcast %12 : vector<1x256xf32> to vector<128x256xf32>
    %14 = arith.addf %11, %13 : vector<128x256xf32>
    %cst_11 = arith.constant dense<0xFF800000> : vector<128xf32>
    %15 = vector.multi_reduction <maximumf>, %14, %cst_11 [1] : vector<128x256xf32> to vector<128xf32>
    %16 = vector.shape_cast %15 : vector<128xf32> to vector<128x1xf32>
    %17 = vector.broadcast %16 : vector<128x1xf32> to vector<128x256xf32>
    %18 = arith.subf %14, %17 : vector<128x256xf32>
    %19 = math.exp %18 : vector<128x256xf32>
    %cst_12 = arith.constant dense<0.000000e+00> : vector<128xf32>
    %20 = vector.multi_reduction <add>, %19, %cst_12 [1] : vector<128x256xf32> to vector<128xf32>
    %21 = vector.shape_cast %20 : vector<128xf32> to vector<128x1xf32>
    %22 = tpu.reciprocal %21 {approx = true} : vector<128x1xf32> -> vector<128x1xf32>
    %23 = vector.broadcast %22 : vector<128x1xf32> to vector<128x256xf32>
    %24 = arith.mulf %19, %23 : vector<128x256xf32>
    %c0_13 = arith.constant 0 : index
    %c0_14 = arith.constant 0 : index
    %25 = vector.load %arg6[%c0_13, %c0_14] : memref<128x256xf32, #tpu.memory_space<vmem>>, vector<128x256xf32>
    tpu.vector_store %arg6[%c0_13, %c0_14], %24 {strides = array<i32>} : memref<128x256xf32, #tpu.memory_space<vmem>>, vector<128x256xf32>,
    return
  }
  func.func @transform_0(%arg0: i32) -> (i32, i32) {
    %c0_i32 = arith.constant 0 : i32
    %c0_i32_0 = arith.constant 0 : i32
    %c0_i32_1 = arith.constant 0 : i32
    return %c0_i32, %c0_i32_0 : i32, i32
  }
  func.func @transform_1(%arg0: i32) -> (i32, i32) {
    %c0_i32 = arith.constant 0 : i32
    %c0_i32_0 = arith.constant 0 : i32
    %c0_i32_1 = arith.constant 0 : i32
    return %c0_i32, %c0_i32_0 : i32, i32
  }
  func.func @transform_2(%arg0: i32) -> (i32, i32) {
    %c0_i32 = arith.constant 0 : i32
    %c0_i32_0 = arith.constant 0 : i32
    %c0_i32_1 = arith.constant 0 : i32
    return %c0_i32, %c0_i32_0 : i32, i32
  }
  func.func @transform_3(%arg0: i32) -> (i32, i32) {
    %c0_i32 = arith.constant 0 : i32
    %c0_i32_0 = arith.constant 0 : i32
    %c0_i32_1 = arith.constant 0 : i32
    return %c0_i32, %c0_i32_0 : i32, i32
  }
  func.func @transform_4(%arg0: i32) -> (i32, i32) {
    %c0_i32 = arith.constant 0 : i32
    %c0_i32_0 = arith.constant 0 : i32
    %c0_i32_1 = arith.constant 0 : i32
    return %c0_i32, %c0_i32_0 : i32, i32
  }
  func.func @transform_5(%arg0: i32) -> (i32, i32) {
    %c0_i32 = arith.constant 0 : i32
    %c0_i32_0 = arith.constant 0 : i32
    %c0_i32_1 = arith.constant 0 : i32
    return %c0_i32, %c0_i32_0 : i32, i32
  }
}

</mosaic_0001>

<llo_original>
// kernel: sslae_forward.6
$region0: #{sslae_forward.6}
  #allocation0 [shape = 'u32[]', space=smem, size = 0x4, offset = 0x4, fixed_abs, tag = 'smem constant byte address 0x4 - core index']
  #allocation1 [shape = 'u32[144,128]{1,0:T(1,128)}', space=vmem, size = 0x12000, scoped, tag = 'internal scratch']
  %s0 = inlined_call_operand.vmem [shape: f32[32,1152], index: 0, kind: input, shape index: {}]
  %s1 = inlined_call_operand.vmem [shape: bf16[1152,128], index: 1, kind: input, shape index: {}]
  %s2 = inlined_call_operand.vmem [shape: f32[1,128], index: 2, kind: input, shape index: {}]
  %s3 = inlined_call_operand.vmem [shape: f32[32,128], index: 3, kind: input, shape index: {}]
  %s4 = inlined_call_operand.vmem [shape: f32[32,128], index: 4, kind: output, shape index: {}]
  %s5 = sld [smem:[#allocation0]]
  $region26: #{sslae_forward.6} parent=0
    _
  %s7 = ssub.s32 1, %s5
  %s8 = scalar_select 0, %s7, %s5
  // Predicated region
  $region2: #{sslae_forward.6} parent=0 // pred_check
    _
  $region3: #{sslae_forward.6} parent=0 // pred_check_branch
    %10 = sbr.rel (0) target = $region5
  $region4: #{sslae_forward.6} parent=0 // pred_region
    _
  $region5: #{sslae_forward.6} parent=0 // pred_fallthru
    _
  // Predicated region
  $region6: #{sslae_forward.6} parent=0 // pred_check
    _
  $region7: #{sslae_forward.6} parent=0 // pred_check_branch
    %12 = sbr.rel (0) target = $region9
  $region8: #{sslae_forward.6} parent=0 // pred_region
    _
  $region9: #{sslae_forward.6} parent=0 // pred_fallthru
    _
  // Predicated region
  $region10: #{sslae_forward.6} parent=0 // pred_check
    _
  $region11: #{sslae_forward.6} parent=0 // pred_check_branch
    %14 = sbr.rel (0) target = $region13
  $region12: #{sslae_forward.6} parent=0 // pred_region
    _
  $region13: #{sslae_forward.6} parent=0 // pred_fallthru
    _
  // Predicated region
  $region14: #{sslae_forward.6} parent=0 // pred_check
    _
  $region15: #{sslae_forward.6} parent=0 // pred_check_branch
    %16 = sbr.rel (0) target = $region17
  $region16: #{sslae_forward.6} parent=0 // pred_region
    _
  $region17: #{sslae_forward.6} parent=0 // pred_fallthru
    _
  %v18 = vld [vmem:[%s0] sm:$0xff]
  %v19 = vld [vmem:[%s0 + $0x8] sm:$0xff]
  %v20 = vld [vmem:[%s0 + $0x10] sm:$0xff]
  %v21 = vld [vmem:[%s0 + $0x18] sm:$0xff]
  %v22 = vld [vmem:[%s0 + $0x20] sm:$0xff]
  %v23 = vld [vmem:[%s0 + $0x28] sm:$0xff]
  %v24 = vld [vmem:[%s0 + $0x30] sm:$0xff]
  %v25 = vld [vmem:[%s0 + $0x38] sm:$0xff]
  %v26 = vld [vmem:[%s0 + $0x40] sm:$0xff]
  %v27 = vld [vmem:[%s0 + $0x48] sm:$0xff]
  %v28 = vld [vmem:[%s0 + $0x50] sm:$0xff]
  %v29 = vld [vmem:[%s0 + $0x58] sm:$0xff]
  %v30 = vld [vmem:[%s0 + $0x60] sm:$0xff]
  %v31 = vld [vmem:[%s0 + $0x68] sm:$0xff]
  %v32 = vld [vmem:[%s0 + $0x70] sm:$0xff]
  %v33 = vld [vmem:[%s0 + $0x78] sm:$0xff]
  %v34 = vld [vmem:[%s0 + $0x80] sm:$0xff]
  %v35 = vld [vmem:[%s0 + $0x88] sm:$0xff]
  %v36 = vld [vmem:[%s0 + $0x90] sm:$0xff]
  %v37 = vld [vmem:[%s0 + $0x98] sm:$0xff]
  %v38 = vld [vmem:[%s0 + $0xa0] sm:$0xff]
  %v39 = vld [vmem:[%s0 + $0xa8] sm:$0xff]
  %v40 = vld [vmem:[%s0 + $0xb0] sm:$0xff]
  %v41 = vld [vmem:[%s0 + $0xb8] sm:$0xff]
  %v42 = vld [vmem:[%s0 + $0xc0] sm:$0xff]
  %v43 = vld [vmem:[%s0 + $0xc8] sm:$0xff]
  %v44 = vld [vmem:[%s0 + $0xd0] sm:$0xff]
  %v45 = vld [vmem:[%s0 + $0xd8] sm:$0xff]
  %v46 = vld [vmem:[%s0 + $0xe0] sm:$0xff]
  %v47 = vld [vmem:[%s0 + $0xe8] sm:$0xff]
  %v48 = vld [vmem:[%s0 + $0xf0] sm:$0xff]
  %v49 = vld [vmem:[%s0 + $0xf8] sm:$0xff]
  %v50 = vld [vmem:[%s0 + $0x100] sm:$0xff]
  %v51 = vld [vmem:[%s0 + $0x108] sm:$0xff]
  %v52 = vld [vmem:[%s0 + $0x110] sm:$0xff]
  %v53 = vld [vmem:[%s0 + $0x118] sm:$0xff]
  %v54 = vpack.c.bf16 %v27, %v18
  %v55 = vpack.c.bf16 %v28, %v19
  %v56 = vpack.c.bf16 %v29, %v20
  %v57 = vpack.c.bf16 %v30, %v21
  %v58 = vpack.c.bf16 %v31, %v22
  %v59 = vpack.c.bf16 %v32, %v23
  %v60 = vpack.c.bf16 %v33, %v24
  %v61 = vpack.c.bf16 %v34, %v25
  %v62 = vpack.c.bf16 %v35, %v26
  %v63 = vpack.c.bf16 %v45, %v36
  %v64 = vpack.c.bf16 %v46, %v37
  %v65 = vpack.c.bf16 %v47, %v38
  %v66 = vpack.c.bf16 %v48, %v39
  %v67 = vpack.c.bf16 %v49, %v40
  %v68 = vpack.c.bf16 %v50, %v41
  %v69 = vpack.c.bf16 %v51, %v42
  %v70 = vpack.c.bf16 %v52, %v43
  %v71 = vpack.c.bf16 %v53, %v44
  %v72 = vld [vmem:[%s1] sm:$0xf]
  %v73 = vld [vmem:[%s1 + $0x4] sm:$0xf]
  %v74 = vld [vmem:[%s1 + $0x8] sm:$0xf]
  %v75 = vld [vmem:[%s1 + $0xc] sm:$0xf]
  %v76 = vld [vmem:[%s1 + $0x10] sm:$0xf]
  %v77 = vld [vmem:[%s1 + $0x14] sm:$0xf]
  %v78 = vld [vmem:[%s1 + $0x18] sm:$0xf]
  %v79 = vld [vmem:[%s1 + $0x1c] sm:$0xf]
  %v80 = vld [vmem:[%s1 + $0x20] sm:$0xf]
  %v81 = vld [vmem:[%s1 + $0x24] sm:$0xf]
  %v82 = vld [vmem:[%s1 + $0x28] sm:$0xf]
  %v83 = vld [vmem:[%s1 + $0x2c] sm:$0xf]
  %v84 = vld [vmem:[%s1 + $0x30] sm:$0xf]
  %v85 = vld [vmem:[%s1 + $0x34] sm:$0xf]
  %v86 = vld [vmem:[%s1 + $0x38] sm:$0xf]
  %v87 = vld [vmem:[%s1 + $0x3c] sm:$0xf]
  %v88 = vld [vmem:[%s1 + $0x40] sm:$0xf]
  %v89 = vld [vmem:[%s1 + $0x44] sm:$0xf]
  %v90 = vld [vmem:[%s1 + $0x48] sm:$0xf]
  %v91 = vld [vmem:[%s1 + $0x4c] sm:$0xf]
  %v92 = vld [vmem:[%s1 + $0x50] sm:$0xf]
  %v93 = vld [vmem:[%s1 + $0x54] sm:$0xf]
  %v94 = vld [vmem:[%s1 + $0x58] sm:$0xf]
  %v95 = vld [vmem:[%s1 + $0x5c] sm:$0xf]
  %v96 = vld [vmem:[%s1 + $0x60] sm:$0xf]
  %v97 = vld [vmem:[%s1 + $0x64] sm:$0xf]
  %v98 = vld [vmem:[%s1 + $0x68] sm:$0xf]
  %v99 = vld [vmem:[%s1 + $0x6c] sm:$0xf]
  %v100 = vld [vmem:[%s1 + $0x70] sm:$0xf]
  %v101 = vld [vmem:[%s1 + $0x74] sm:$0xf]
  %v102 = vld [vmem:[%s1 + $0x78] sm:$0xf]
  %v103 = vld [vmem:[%s1 + $0x7c] sm:$0xf]
  %v104 = vld [vmem:[%s1 + $0x80] sm:$0xf]
  %v105 = vld [vmem:[%s1 + $0x84] sm:$0xf]
  %v106 = vld [vmem:[%s1 + $0x88] sm:$0xf]
  %v107 = vld [vmem:[%s1 + $0x8c] sm:$0xf]
  %v108 = vld [vmem:[%s1 + $0x90] sm:$0xf]
  %v109 = vld [vmem:[%s1 + $0x94] sm:$0xf]
  %v110 = vld [vmem:[%s1 + $0x98] sm:$0xf]
  %v111 = vld [vmem:[%s1 + $0x9c] sm:$0xf]
  %v112 = vld [vmem:[%s1 + $0xa0] sm:$0xf]
  %v113 = vld [vmem:[%s1 + $0xa4] sm:$0xf]
  %v114 = vld [vmem:[%s1 + $0xa8] sm:$0xf]
  %v115 = vld [vmem:[%s1 + $0xac] sm:$0xf]
  %v116 = vld [vmem:[%s1 + $0xb0] sm:$0xf]
  %v117 = vld [vmem:[%s1 + $0xb4] sm:$0xf]
  %v118 = vld [vmem:[%s1 + $0xb8] sm:$0xf]
  %v119 = vld [vmem:[%s1 + $0xbc] sm:$0xf]
  %v120 = vld [vmem:[%s1 + $0xc0] sm:$0xf]
  %v121 = vld [vmem:[%s1 + $0xc4] sm:$0xf]
  %v122 = vld [vmem:[%s1 + $0xc8] sm:$0xf]
  %v123 = vld [vmem:[%s1 + $0xcc] sm:$0xf]
  %v124 = vld [vmem:[%s1 + $0xd0] sm:$0xf]
  %v125 = vld [vmem:[%s1 + $0xd4] sm:$0xf]
  %v126 = vld [vmem:[%s1 + $0xd8] sm:$0xf]
  %v127 = vld [vmem:[%s1 + $0xdc] sm:$0xf]
  %v128 = vld [vmem:[%s1 + $0xe0] sm:$0xf]
  %v129 = vld [vmem:[%s1 + $0xe4] sm:$0xf]
  %v130 = vld [vmem:[%s1 + $0xe8] sm:$0xf]
  %v131 = vld [vmem:[%s1 + $0xec] sm:$0xf]
  %v132 = vld [vmem:[%s1 + $0xf0] sm:$0xf]
  %v133 = vld [vmem:[%s1 + $0xf4] sm:$0xf]
  %v134 = vld [vmem:[%s1 + $0xf8] sm:$0xf]
  %v135 = vld [vmem:[%s1 + $0xfc] sm:$0xf]
  %v136 = vld [vmem:[%s1 + $0x100] sm:$0xf]
  %v137 = vld [vmem:[%s1 + $0x104] sm:$0xf]
  %v138 = vld [vmem:[%s1 + $0x108] sm:$0xf]
  %v139 = vld [vmem:[%s1 + $0x10c] sm:$0xf]
  %v140 = vld [vmem:[%s1 + $0x110] sm:$0xf]
  %v141 = vld [vmem:[%s1 + $0x114] sm:$0xf]
  %v142 = vld [vmem:[%s1 + $0x118] sm:$0xf]
  %v143 = vld [vmem:[%s1 + $0x11c] sm:$0xf]
  %v144 = vld [vmem:[%s1 + $0x120] sm:$0xf]
  %v145 = vld [vmem:[%s1 + $0x124] sm:$0xf]
  %v146 = vld [vmem:[%s1 + $0x128] sm:$0xf]
  %v147 = vld [vmem:[%s1 + $0x12c] sm:$0xf]
  %v148 = vld [vmem:[%s1 + $0x130] sm:$0xf]
  %v149 = vld [vmem:[%s1 + $0x134] sm:$0xf]
  %v150 = vld [vmem:[%s1 + $0x138] sm:$0xf]
  %v151 = vld [vmem:[%s1 + $0x13c] sm:$0xf]
  %v152 = vld [vmem:[%s1 + $0x140] sm:$0xf]
  %v153 = vld [vmem:[%s1 + $0x144] sm:$0xf]
  %v154 = vld [vmem:[%s1 + $0x148] sm:$0xf]
  %v155 = vld [vmem:[%s1 + $0x14c] sm:$0xf]
  %v156 = vld [vmem:[%s1 + $0x150] sm:$0xf]
  %v157 = vld [vmem:[%s1 + $0x154] sm:$0xf]
  %v158 = vld [vmem:[%s1 + $0x158] sm:$0xf]
  %v159 = vld [vmem:[%s1 + $0x15c] sm:$0xf]
  %v160 = vld [vmem:[%s1 + $0x160] sm:$0xf]
  %v161 = vld [vmem:[%s1 + $0x164] sm:$0xf]
  %v162 = vld [vmem:[%s1 + $0x168] sm:$0xf]
  %v163 = vld [vmem:[%s1 + $0x16c] sm:$0xf]
  %v164 = vld [vmem:[%s1 + $0x170] sm:$0xf]
  %v165 = vld [vmem:[%s1 + $0x174] sm:$0xf]
  %v166 = vld [vmem:[%s1 + $0x178] sm:$0xf]
  %v167 = vld [vmem:[%s1 + $0x17c] sm:$0xf]
  %v168 = vld [vmem:[%s1 + $0x180] sm:$0xf]
  %v169 = vld [vmem:[%s1 + $0x184] sm:$0xf]
  %v170 = vld [vmem:[%s1 + $0x188] sm:$0xf]
  %v171 = vld [vmem:[%s1 + $0x18c] sm:$0xf]
  %v172 = vld [vmem:[%s1 + $0x190] sm:$0xf]
  %v173 = vld [vmem:[%s1 + $0x194] sm:$0xf]
  %v174 = vld [vmem:[%s1 + $0x198] sm:$0xf]
  %v175 = vld [vmem:[%s1 + $0x19c] sm:$0xf]
  %v176 = vld [vmem:[%s1 + $0x1a0] sm:$0xf]
  %v177 = vld [vmem:[%s1 + $0x1a4] sm:$0xf]
  %v178 = vld [vmem:[%s1 + $0x1a8] sm:$0xf]
  %v179 = vld [vmem:[%s1 + $0x1ac] sm:$0xf]
  %v180 = vld [vmem:[%s1 + $0x1b0] sm:$0xf]
  %v181 = vld [vmem:[%s1 + $0x1b4] sm:$0xf]
  %v182 = vld [vmem:[%s1 + $0x1b8] sm:$0xf]
  %v183 = vld [vmem:[%s1 + $0x1bc] sm:$0xf]
  %v184 = vld [vmem:[%s1 + $0x1c0] sm:$0xf]
  %v185 = vld [vmem:[%s1 + $0x1c4] sm:$0xf]
  %v186 = vld [vmem:[%s1 + $0x1c8] sm:$0xf]
  %v187 = vld [vmem:[%s1 + $0x1cc] sm:$0xf]
  %v188 = vld [vmem:[%s1 + $0x1d0] sm:$0xf]
  %v189 = vld [vmem:[%s1 + $0x1d4] sm:$0xf]
  %v190 = vld [vmem:[%s1 + $0x1d8] sm:$0xf]
  %v191 = vld [vmem:[%s1 + $0x1dc] sm:$0xf]
  %v192 = vld [vmem:[%s1 + $0x1e0] sm:$0xf]
  %v193 = vld [vmem:[%s1 + $0x1e4] sm:$0xf]
  %v194 = vld [vmem:[%s1 + $0x1e8] sm:$0xf]
  %v195 = vld [vmem:[%s1 + $0x1ec] sm:$0xf]
  %v196 = vld [vmem:[%s1 + $0x1f0] sm:$0xf]
  %v197 = vld [vmem:[%s1 + $0x1f4] sm:$0xf]
  %v198 = vld [vmem:[%s1 + $0x1f8] sm:$0xf]
  %v199 = vld [vmem:[%s1 + $0x1fc] sm:$0xf]
  %v200 = vld [vmem:[%s1 + $0x200] sm:$0xf]
  %v201 = vld [vmem:[%s1 + $0x204] sm:$0xf]
  %v202 = vld [vmem:[%s1 + $0x208] sm:$0xf]
  %v203 = vld [vmem:[%s1 + $0x20c] sm:$0xf]
  %v204 = vld [vmem:[%s1 + $0x210] sm:$0xf]
  %v205 = vld [vmem:[%s1 + $0x214] sm:$0xf]
  %v206 = vld [vmem:[%s1 + $0x218] sm:$0xf]
  %v207 = vld [vmem:[%s1 + $0x21c] sm:$0xf]
  %v208 = vld [vmem:[%s1 + $0x220] sm:$0xf]
  %v209 = vld [vmem:[%s1 + $0x224] sm:$0xf]
  %v210 = vld [vmem:[%s1 + $0x228] sm:$0xf]
  %v211 = vld [vmem:[%s1 + $0x22c] sm:$0xf]
  %v212 = vld [vmem:[%s1 + $0x230] sm:$0xf]
  %v213 = vld [vmem:[%s1 + $0x234] sm:$0xf]
  %v214 = vld [vmem:[%s1 + $0x238] sm:$0xf]
  %v215 = vld [vmem:[%s1 + $0x23c] sm:$0xf]
  %v216 = vld [vmem:[%s2] sm:$0x1]
  %v218 = vlaneseq
  %v219 = vshrl.u32 %v218, 7
  %v220 = vsub.s32 0, %v219
  %v221 = vrot.slane %v216, %v220
  %v367 = vunpack.c.l.b16 %v72
  %v368 = vunpack.c.l.b16 %v73
  %v369 = vunpack.c.l.b16 %v74
  %v370 = vunpack.c.l.b16 %v75
  %v371 = vunpack.c.l.b16 %v76
  %v372 = vunpack.c.l.b16 %v77
  %v373 = vunpack.c.l.b16 %v78
  %v374 = vunpack.c.l.b16 %v79
  %v375 = vunpack.c.l.b16 %v80
  %v376 = vunpack.c.l.b16 %v81
  %v377 = vunpack.c.l.b16 %v82
  %v378 = vunpack.c.l.b16 %v83
  %v379 = vunpack.c.l.b16 %v84
  %v380 = vunpack.c.l.b16 %v85
  %v381 = vunpack.c.l.b16 %v86
  %v382 = vunpack.c.l.b16 %v87
  %v383 = vunpack.c.l.b16 %v88
  %v384 = vunpack.c.l.b16 %v89
  %v385 = vunpack.c.l.b16 %v90
  %v386 = vunpack.c.l.b16 %v91
  %v387 = vunpack.c.l.b16 %v92
  %v388 = vunpack.c.l.b16 %v93
  %v389 = vunpack.c.l.b16 %v94
  %v390 = vunpack.c.l.b16 %v95
  %v391 = vunpack.c.l.b16 %v96
  %v392 = vunpack.c.l.b16 %v97
  %v393 = vunpack.c.l.b16 %v98
  %v394 = vunpack.c.l.b16 %v99
  %v395 = vunpack.c.l.b16 %v100
  %v396 = vunpack.c.l.b16 %v101
  %v397 = vunpack.c.l.b16 %v102
  %v398 = vunpack.c.l.b16 %v103
  %v399 = vunpack.c.l.b16 %v104
  %v400 = vunpack.c.l.b16 %v105
  %v401 = vunpack.c.l.b16 %v106
  %v402 = vunpack.c.l.b16 %v107
  %v403 = vunpack.c.l.b16 %v108
  %v404 = vunpack.c.l.b16 %v109
  %v405 = vunpack.c.l.b16 %v110
  %v406 = vunpack.c.l.b16 %v111
  %v407 = vunpack.c.l.b16 %v112
  %v408 = vunpack.c.l.b16 %v113
  %v409 = vunpack.c.l.b16 %v114
  %v410 = vunpack.c.l.b16 %v115
  %v411 = vunpack.c.l.b16 %v116
  %v412 = vunpack.c.l.b16 %v117
  %v413 = vunpack.c.l.b16 %v118
  %v414 = vunpack.c.l.b16 %v119
  %v415 = vunpack.c.l.b16 %v120
  %v416 = vunpack.c.l.b16 %v121
  %v417 = vunpack.c.l.b16 %v122
  %v418 = vunpack.c.l.b16 %v123
  %v419 = vunpack.c.l.b16 %v124
  %v420 = vunpack.c.l.b16 %v125
  %v421 = vunpack.c.l.b16 %v126
  %v422 = vunpack.c.l.b16 %v127
  %v423 = vunpack.c.l.b16 %v128
  %v424 = vunpack.c.l.b16 %v129
  %v425 = vunpack.c.l.b16 %v130
  %v426 = vunpack.c.l.b16 %v131
  %v427 = vunpack.c.l.b16 %v132
  %v428 = vunpack.c.l.b16 %v133
  %v429 = vunpack.c.l.b16 %v134
  %v430 = vunpack.c.l.b16 %v135
  %v431 = vunpack.c.l.b16 %v136
  %v432 = vunpack.c.l.b16 %v137
  %v433 = vunpack.c.l.b16 %v138
  %v434 = vunpack.c.l.b16 %v139
  %v435 = vunpack.c.l.b16 %v140
  %v436 = vunpack.c.l.b16 %v141
  %v437 = vunpack.c.l.b16 %v142
  %v438 = vunpack.c.l.b16 %v143
  %v439 = vunpack.c.l.b16 %v144
  %v440 = vunpack.c.l.b16 %v145
  %v441 = vunpack.c.l.b16 %v146
  %v442 = vunpack.c.l.b16 %v147
  %v443 = vunpack.c.l.b16 %v148
  %v444 = vunpack.c.l.b16 %v149
  %v445 = vunpack.c.l.b16 %v150
  %v446 = vunpack.c.l.b16 %v151
  %v447 = vunpack.c.l.b16 %v152
  %v448 = vunpack.c.l.b16 %v153
  %v449 = vunpack.c.l.b16 %v154
  %v450 = vunpack.c.l.b16 %v155
  %v451 = vunpack.c.l.b16 %v156
  %v452 = vunpack.c.l.b16 %v157
  %v453 = vunpack.c.l.b16 %v158
  %v454 = vunpack.c.l.b16 %v159
  %v455 = vunpack.c.l.b16 %v160
  %v456 = vunpack.c.l.b16 %v161
  %v457 = vunpack.c.l.b16 %v162
  %v458 = vunpack.c.l.b16 %v163
  %v459 = vunpack.c.l.b16 %v164
  %v460 = vunpack.c.l.b16 %v165
  %v461 = vunpack.c.l.b16 %v166
  %v462 = vunpack.c.l.b16 %v167
  %v463 = vunpack.c.l.b16 %v168
  %v464 = vunpack.c.l.b16 %v169
  %v465 = vunpack.c.l.b16 %v170
  %v466 = vunpack.c.l.b16 %v171
  %v467 = vunpack.c.l.b16 %v172
  %v468 = vunpack.c.l.b16 %v173
  %v469 = vunpack.c.l.b16 %v174
  %v470 = vunpack.c.l.b16 %v175
  %v471 = vunpack.c.l.b16 %v176
  %v472 = vunpack.c.l.b16 %v177
  %v473 = vunpack.c.l.b16 %v178
  %v474 = vunpack.c.l.b16 %v179
  %v475 = vunpack.c.l.b16 %v180
  %v476 = vunpack.c.l.b16 %v181
  %v477 = vunpack.c.l.b16 %v182
  %v478 = vunpack.c.l.b16 %v183
  %v479 = vunpack.c.l.b16 %v184
  %v480 = vunpack.c.l.b16 %v185
  %v481 = vunpack.c.l.b16 %v186
  %v482 = vunpack.c.l.b16 %v187
  %v483 = vunpack.c.l.b16 %v188
  %v484 = vunpack.c.l.b16 %v189
  %v485 = vunpack.c.l.b16 %v190
  %v486 = vunpack.c.l.b16 %v191
  %v487 = vunpack.c.l.b16 %v192
  %v488 = vunpack.c.l.b16 %v193
  %v489 = vunpack.c.l.b16 %v194
  %v490 = vunpack.c.l.b16 %v195
  %v491 = vunpack.c.l.b16 %v196
  %v492 = vunpack.c.l.b16 %v197
  %v493 = vunpack.c.l.b16 %v198
  %v494 = vunpack.c.l.b16 %v199
  %v495 = vunpack.c.l.b16 %v200
  %v496 = vunpack.c.l.b16 %v201
  %v497 = vunpack.c.l.b16 %v202
  %v498 = vunpack.c.l.b16 %v203
  %v499 = vunpack.c.l.b16 %v204
  %v500 = vunpack.c.l.b16 %v205
  %v501 = vunpack.c.l.b16 %v206
  %v502 = vunpack.c.l.b16 %v207
  %v503 = vunpack.c.l.b16 %v208
  %v504 = vunpack.c.l.b16 %v209
  %v505 = vunpack.c.l.b16 %v210
  %v506 = vunpack.c.l.b16 %v211
  %v507 = vunpack.c.l.b16 %v212
  %v508 = vunpack.c.l.b16 %v213
  %v509 = vunpack.c.l.b16 %v214
  %v510 = vunpack.c.l.b16 %v215
  %v511 = vpack.c.b16 %v368, %v367
  %v512 = vpack.c.b16 %v370, %v369
  %v513 = vpack.c.b16 %v372, %v371
  %v514 = vpack.c.b16 %v374, %v373
  %v515 = vpack.c.b16 %v376, %v375
  %v516 = vpack.c.b16 %v378, %v377
  %v517 = vpack.c.b16 %v380, %v379
  %v518 = vpack.c.b16 %v382, %v381
  %v519 = vpack.c.b16 %v384, %v383
  %v520 = vpack.c.b16 %v386, %v385
  %v521 = vpack.c.b16 %v388, %v387
  %v522 = vpack.c.b16 %v390, %v389
  %v523 = vpack.c.b16 %v392, %v391
  %v524 = vpack.c.b16 %v394, %v393
  %v525 = vpack.c.b16 %v396, %v395
  %v526 = vpack.c.b16 %v398, %v397
  %v527 = vpack.c.b16 %v400, %v399
  %v528 = vpack.c.b16 %v402, %v401
  %v529 = vpack.c.b16 %v404, %v403
  %v530 = vpack.c.b16 %v406, %v405
  %v531 = vpack.c.b16 %v408, %v407
  %v532 = vpack.c.b16 %v410, %v409
  %v533 = vpack.c.b16 %v412, %v411
  %v534 = vpack.c.b16 %v414, %v413
  %v535 = vpack.c.b16 %v416, %v415
  %v536 = vpack.c.b16 %v418, %v417
  %v537 = vpack.c.b16 %v420, %v419
  %v538 = vpack.c.b16 %v422, %v421
  %v539 = vpack.c.b16 %v424, %v423
  %v540 = vpack.c.b16 %v426, %v425
  %v541 = vpack.c.b16 %v428, %v427
  %v542 = vpack.c.b16 %v430, %v429
  %v543 = vpack.c.b16 %v432, %v431
  %v544 = vpack.c.b16 %v434, %v433
  %v545 = vpack.c.b16 %v436, %v435
  %v546 = vpack.c.b16 %v438, %v437
  %v547 = vpack.c.b16 %v440, %v439
  %v548 = vpack.c.b16 %v442, %v441
  %v549 = vpack.c.b16 %v444, %v443
  %v550 = vpack.c.b16 %v446, %v445
  %v551 = vpack.c.b16 %v448, %v447
  %v552 = vpack.c.b16 %v450, %v449
  %v553 = vpack.c.b16 %v452, %v451
  %v554 = vpack.c.b16 %v454, %v453
  %v555 = vpack.c.b16 %v456, %v455
  %v556 = vpack.c.b16 %v458, %v457
  %v557 = vpack.c.b16 %v460, %v459
  %v558 = vpack.c.b16 %v462, %v461
  %v559 = vpack.c.b16 %v464, %v463
  %v560 = vpack.c.b16 %v466, %v465
  %v561 = vpack.c.b16 %v468, %v467
  %v562 = vpack.c.b16 %v470, %v469
  %v563 = vpack.c.b16 %v472, %v471
  %v564 = vpack.c.b16 %v474, %v473
  %v565 = vpack.c.b16 %v476, %v475
  %v566 = vpack.c.b16 %v478, %v477
  %v567 = vpack.c.b16 %v480, %v479
  %v568 = vpack.c.b16 %v482, %v481
  %v569 = vpack.c.b16 %v484, %v483
  %v570 = vpack.c.b16 %v486, %v485
  %v571 = vpack.c.b16 %v488, %v487
  %v572 = vpack.c.b16 %v490, %v489
  %v573 = vpack.c.b16 %v492, %v491
  %v574 = vpack.c.b16 %v494, %v493
  %v575 = vpack.c.b16 %v496, %v495
  %v576 = vpack.c.b16 %v498, %v497
  %v577 = vpack.c.b16 %v500, %v499
  %v578 = vpack.c.b16 %v502, %v501
  %v579 = vpack.c.b16 %v504, %v503
  %v580 = vpack.c.b16 %v506, %v505
  %v581 = vpack.c.b16 %v508, %v507
  %v582 = vpack.c.b16 %v510, %v509
  %655 = vmatprep.subr.bf16.mxu0 0
  %656 = vmatpush1.bf16.msra.mxu0 %v518
  %657 = vmatprep.subr.bf16.mxu0 0
  %658 = vmatpush1.bf16.msra.mxu0 %v517
  %659 = vmatprep.subr.bf16.mxu0 0
  %660 = vmatpush1.bf16.msra.mxu0 %v516
  %661 = vmatprep.subr.bf16.mxu0 0
  %662 = vmatpush1.bf16.msra.mxu0 %v515
  %663 = vmatprep.subr.bf16.mxu0 0
  %664 = vmatpush1.bf16.msra.mxu0 %v514
  %665 = vmatprep.subr.bf16.mxu0 0
  %666 = vmatpush1.bf16.msra.mxu0 %v513
  %667 = vmatprep.subr.bf16.mxu0 0
  %668 = vmatpush1.bf16.msra.mxu0 %v512
  %669 = vmatprep.subr.bf16.mxu0 0
  %670 = vmatpush1.bf16.msra.mxu0 %v511
  %671 = vmatprep.subr.bf16.mxu0 0
  %672 = vmatpush2.bf16.msra.mxu0 %v526
  %673 = vmatprep.subr.bf16.mxu0 0
  %674 = vmatpush2.bf16.msra.mxu0 %v525
  %675 = vmatprep.subr.bf16.mxu0 0
  %676 = vmatpush2.bf16.msra.mxu0 %v524
  %677 = vmatprep.subr.bf16.mxu0 0
  %678 = vmatpush2.bf16.msra.mxu0 %v523
  %679 = vmatprep.subr.bf16.mxu0 0
  %680 = vmatpush2.bf16.msra.mxu0 %v522
  %681 = vmatprep.subr.bf16.mxu0 0
  %682 = vmatpush2.bf16.msra.mxu0 %v521
  %683 = vmatprep.subr.bf16.mxu0 0
  %684 = vmatpush2.bf16.msra.mxu0 %v520
  %685 = vmatprep.subr.bf16.mxu0 0
  %686 = vmatpush2.bf16.msra.mxu0 %v519
  %687 = vmatprep.mubr.bf16.mxu0 %v55
  %688 = vmatmul.mubr.bf16.gmra.mxu0 %v54
  %v689 = vpop.f32.mrf.mxu0
  %v690 = vadd.f32 %v221, %v689
  %v691 = vpop.f32.mrf.mxu0
  %v692 = vpop.f32.mrf.mxu0
  %v693 = vadd.f32 %v221, %v692
  %v694 = vpop.f32.mrf.mxu0
  %695 = vmatprep.mubr.bf16.mxu0 %v64
  %696 = vmatmul.mubr.bf16.gmra.mxu0 %v63
  %v697 = vpop.f32.mrf.mxu0
  %v698 = vadd.f32 %v221, %v697
  %v699 = vpop.f32.mrf.mxu0
  %v700 = vpop.f32.mrf.mxu0
  %v701 = vadd.f32 %v221, %v700
  %v702 = vpop.f32.mrf.mxu0
  %703 = vdwg.mxu0
  %704 = vmatprep.subr.bf16.mxu0 0
  %705 = vmatpush1.bf16.msra.mxu0 %v534
  %706 = vmatprep.subr.bf16.mxu0 0
  %707 = vmatpush1.bf16.msra.mxu0 %v533
  %708 = vmatprep.subr.bf16.mxu0 0
  %709 = vmatpush1.bf16.msra.mxu0 %v532
  %710 = vmatprep.subr.bf16.mxu0 0
  %711 = vmatpush1.bf16.msra.mxu0 %v531
  %712 = vmatprep.subr.bf16.mxu0 0
  %713 = vmatpush1.bf16.msra.mxu0 %v530
  %714 = vmatprep.subr.bf16.mxu0 0
  %715 = vmatpush1.bf16.msra.mxu0 %v529
  %716 = vmatprep.subr.bf16.mxu0 0
  %717 = vmatpush1.bf16.msra.mxu0 %v528
  %718 = vmatprep.subr.bf16.mxu0 0
  %719 = vmatpush1.bf16.msra.mxu0 %v527
  %720 = vmatprep.subr.bf16.mxu0 0
  %721 = vmatpush2.bf16.msra.mxu0 %v542
  %722 = vmatprep.subr.bf16.mxu0 0
  %723 = vmatpush2.bf16.msra.mxu0 %v541
  %724 = vmatprep.subr.bf16.mxu0 0
  %725 = vmatpush2.bf16.msra.mxu0 %v540
  %726 = vmatprep.subr.bf16.mxu0 0
  %727 = vmatpush2.bf16.msra.mxu0 %v539
  %728 = vmatprep.subr.bf16.mxu0 0
  %729 = vmatpush2.bf16.msra.mxu0 %v538
  %730 = vmatprep.subr.bf16.mxu0 0
  %731 = vmatpush2.bf16.msra.mxu0 %v537
  %732 = vmatprep.subr.bf16.mxu0 0
  %733 = vmatpush2.bf16.msra.mxu0 %v536
  %734 = vmatprep.subr.bf16.mxu0 0
  %735 = vmatpush2.bf16.msra.mxu0 %v535
  %736 = vmatprep.mubr.bf16.mxu0 %v57
  %737 = vmatmul.mubr.bf16.gmra.mxu0 %v56
  %v738 = vpop.f32.mrf.mxu0
  %v739 = vadd.f32 %v690, %v738
  %v740 = vpop.f32.mrf.mxu0
  %v741 = vpop.f32.mrf.mxu0
  %v742 = vadd.f32 %v693, %v741
  %v743 = vpop.f32.mrf.mxu0
  %744 = vmatprep.mubr.bf16.mxu0 %v66
  %745 = vmatmul.mubr.bf16.gmra.mxu0 %v65
  %v746 = vpop.f32.mrf.mxu0
  %v747 = vadd.f32 %v698, %v746
  %v748 = vpop.f32.mrf.mxu0
  %v749 = vpop.f32.mrf.mxu0
  %v750 = vadd.f32 %v701, %v749
  %v751 = vpop.f32.mrf.mxu0
  %752 = vdwg.mxu0
  %753 = vmatprep.subr.bf16.mxu0 0
  %754 = vmatpush1.bf16.msra.mxu0 %v550
  %755 = vmatprep.subr.bf16.mxu0 0
  %756 = vmatpush1.bf16.msra.mxu0 %v549
  %757 = vmatprep.subr.bf16.mxu0 0
  %758 = vmatpush1.bf16.msra.mxu0 %v548
  %759 = vmatprep.subr.bf16.mxu0 0
  %760 = vmatpush1.bf16.msra.mxu0 %v547
  %761 = vmatprep.subr.bf16.mxu0 0
  %762 = vmatpush1.bf16.msra.mxu0 %v546
  %763 = vmatprep.subr.bf16.mxu0 0
  %764 = vmatpush1.bf16.msra.mxu0 %v545
  %765 = vmatprep.subr.bf16.mxu0 0
  %766 = vmatpush1.bf16.msra.mxu0 %v544
  %767 = vmatprep.subr.bf16.mxu0 0
  %768 = vmatpush1.bf16.msra.mxu0 %v543
  %769 = vmatprep.subr.bf16.mxu0 0
  %770 = vmatpush2.bf16.msra.mxu0 %v558
  %771 = vmatprep.subr.bf16.mxu0 0
  %772 = vmatpush2.bf16.msra.mxu0 %v557
  %773 = vmatprep.subr.bf16.mxu0 0
  %774 = vmatpush2.bf16.msra.mxu0 %v556
  %775 = vmatprep.subr.bf16.mxu0 0
  %776 = vmatpush2.bf16.msra.mxu0 %v555
  %777 = vmatprep.subr.bf16.mxu0 0
  %778 = vmatpush2.bf16.msra.mxu0 %v554
  %779 = vmatprep.subr.bf16.mxu0 0
  %780 = vmatpush2.bf16.msra.mxu0 %v553
  %781 = vmatprep.subr.bf16.mxu0 0
  %782 = vmatpush2.bf16.msra.mxu0 %v552
  %783 = vmatprep.subr.bf16.mxu0 0
  %784 = vmatpush2.bf16.msra.mxu0 %v551
  %785 = vmatprep.mubr.bf16.mxu0 %v59
  %786 = vmatmul.mubr.bf16.gmra.mxu0 %v58
  %v787 = vpop.f32.mrf.mxu0
  %v788 = vadd.f32 %v739, %v787
  %v789 = vpop.f32.mrf.mxu0
  %v790 = vpop.f32.mrf.mxu0
  %v791 = vadd.f32 %v742, %v790
  %v792 = vpop.f32.mrf.mxu0
  %793 = vmatprep.mubr.bf16.mxu0 %v68
  %794 = vmatmul.mubr.bf16.gmra.mxu0 %v67
  %v795 = vpop.f32.mrf.mxu0
  %v796 = vadd.f32 %v747, %v795
  %v797 = vpop.f32.mrf.mxu0
  %v798 = vpop.f32.mrf.mxu0
  %v799 = vadd.f32 %v750, %v798
  %v800 = vpop.f32.mrf.mxu0
  %801 = vdwg.mxu0
  %802 = vmatprep.subr.bf16.mxu0 0
  %803 = vmatpush1.bf16.msra.mxu0 %v566
  %804 = vmatprep.subr.bf16.mxu0 0
  %805 = vmatpush1.bf16.msra.mxu0 %v565
  %806 = vmatprep.subr.bf16.mxu0 0
  %807 = vmatpush1.bf16.msra.mxu0 %v564
  %808 = vmatprep.subr.bf16.mxu0 0
  %809 = vmatpush1.bf16.msra.mxu0 %v563
  %810 = vmatprep.subr.bf16.mxu0 0
  %811 = vmatpush1.bf16.msra.mxu0 %v562
  %812 = vmatprep.subr.bf16.mxu0 0
  %813 = vmatpush1.bf16.msra.mxu0 %v561
  %814 = vmatprep.subr.bf16.mxu0 0
  %815 = vmatpush1.bf16.msra.mxu0 %v560
  %816 = vmatprep.subr.bf16.mxu0 0
  %817 = vmatpush1.bf16.msra.mxu0 %v559
  %818 = vmatprep.subr.bf16.mxu0 0
  %819 = vmatpush2.bf16.msra.mxu0 %v574
  %820 = vmatprep.subr.bf16.mxu0 0
  %821 = vmatpush2.bf16.msra.mxu0 %v573
  %822 = vmatprep.subr.bf16.mxu0 0
  %823 = vmatpush2.bf16.msra.mxu0 %v572
  %824 = vmatprep.subr.bf16.mxu0 0
  %825 = vmatpush2.bf16.msra.mxu0 %v571
  %826 = vmatprep.subr.bf16.mxu0 0
  %827 = vmatpush2.bf16.msra.mxu0 %v570
  %828 = vmatprep.subr.bf16.mxu0 0
  %829 = vmatpush2.bf16.msra.mxu0 %v569
  %830 = vmatprep.subr.bf16.mxu0 0
  %831 = vmatpush2.bf16.msra.mxu0 %v568
  %832 = vmatprep.subr.bf16.mxu0 0
  %833 = vmatpush2.bf16.msra.mxu0 %v567
  %834 = vmatprep.mubr.bf16.mxu0 %v61
  %835 = vmatmul.mubr.bf16.gmra.mxu0 %v60
  %v836 = vpop.f32.mrf.mxu0
  %v837 = vadd.f32 %v788, %v836
  %v838 = vpop.f32.mrf.mxu0
  %v839 = vpop.f32.mrf.mxu0
  %v840 = vadd.f32 %v791, %v839
  %v841 = vpop.f32.mrf.mxu0
  %842 = vmatprep.mubr.bf16.mxu0 %v70
  %843 = vmatmul.mubr.bf16.gmra.mxu0 %v69
  %v844 = vpop.f32.mrf.mxu0
  %v845 = vadd.f32 %v796, %v844
  %v846 = vpop.f32.mrf.mxu0
  %v847 = vpop.f32.mrf.mxu0
  %v848 = vadd.f32 %v799, %v847
  %v849 = vpop.f32.mrf.mxu0
  %850 = vdwg.mxu0
  %851 = vmatprep.subr.bf16.mxu0 0
  %852 = vmatpush1.bf16.msra.mxu0 %v582
  %853 = vmatprep.subr.bf16.mxu0 0
  %854 = vmatpush1.bf16.msra.mxu0 %v581
  %855 = vmatprep.subr.bf16.mxu0 0
  %856 = vmatpush1.bf16.msra.mxu0 %v580
  %857 = vmatprep.subr.bf16.mxu0 0
  %858 = vmatpush1.bf16.msra.mxu0 %v579
  %859 = vmatprep.subr.bf16.mxu0 0
  %860 = vmatpush1.bf16.msra.mxu0 %v578
  %861 = vmatprep.subr.bf16.mxu0 0
  %862 = vmatpush1.bf16.msra.mxu0 %v577
  %863 = vmatprep.subr.bf16.mxu0 0
  %864 = vmatpush1.bf16.msra.mxu0 %v576
  %865 = vmatprep.subr.bf16.mxu0 0
  %866 = vmatpush1.bf16.msra.mxu0 %v575
  %867 = vmatprep.subr.bf16.mxu0 0
  %868 = vmatpush2.bf16.msra.mxu0 0
  %869 = vmatprep.subr.bf16.mxu0 0
  %870 = vmatpush2.bf16.msra.mxu0 0
  %871 = vmatprep.subr.bf16.mxu0 0
  %872 = vmatpush2.bf16.msra.mxu0 0
  %873 = vmatprep.subr.bf16.mxu0 0
  %874 = vmatpush2.bf16.msra.mxu0 0
  %875 = vmatprep.subr.bf16.mxu0 0
  %876 = vmatpush2.bf16.msra.mxu0 0
  %877 = vmatprep.subr.bf16.mxu0 0
  %878 = vmatpush2.bf16.msra.mxu0 0
  %879 = vmatprep.subr.bf16.mxu0 0
  %880 = vmatpush2.bf16.msra.mxu0 0
  %881 = vmatprep.subr.bf16.mxu0 0
  %882 = vmatpush2.bf16.msra.mxu0 0
  %883 = vmatprep.mubr.bf16.mxu0 0
  %884 = vmatmul.mubr.bf16.gmra.mxu0 %v62
  %v885 = vpop.f32.mrf.mxu0
  %v886 = vadd.f32 %v837, %v885
  %v887 = vpop.f32.mrf.mxu0
  %v888 = vpop.f32.mrf.mxu0
  %v889 = vadd.f32 %v840, %v888
  %v890 = vpop.f32.mrf.mxu0
  %891 = vmatprep.mubr.bf16.mxu0 0
  %892 = vmatmul.mubr.bf16.gmra.mxu0 %v71
  %v893 = vpop.f32.mrf.mxu0
  %v894 = vadd.f32 %v845, %v893
  %v895 = vpop.f32.mrf.mxu0
  %v896 = vpop.f32.mrf.mxu0
  %v897 = vadd.f32 %v848, %v896
  %v898 = vpop.f32.mrf.mxu0
  %899 = vdwg.mxu0
  %v900 = vmax.f32 %v886, 0.0
  %v901 = vmax.f32 %v889, 0.0
  %v902 = vmax.f32 %v894, 0.0
  %v903 = vmax.f32 %v897, 0.0
  %v904 = vld [vmem:[%s3] sm:$0xff]
  %v905 = vld [vmem:[%s3 + $0x8] sm:$0xff]
  %v906 = vld [vmem:[%s3 + $0x10] sm:$0xff]
  %v907 = vld [vmem:[%s3 + $0x18] sm:$0xff]
  %v908 = vadd.f32 %v900, %v904
  %v909 = vadd.f32 %v901, %v905
  %v910 = vadd.f32 %v902, %v906
  %v911 = vadd.f32 %v903, %v907
  %912 = vst [vmem:[%s4] sm:$0xff] %v908
  %913 = vst [vmem:[%s4 + $0x8] sm:$0xff] %v909
  %914 = vst [vmem:[%s4 + $0x10] sm:$0xff] %v910
  %915 = vst [vmem:[%s4 + $0x18] sm:$0xff] %v911
  // Predicated region
  $region18: #{sslae_forward.6} parent=0 // pred_check
    _
  $region19: #{sslae_forward.6} parent=0 // pred_check_branch
    %917 = sbr.rel (0) target = $region21
  $region20: #{sslae_forward.6} parent=0 // pred_region
    _
  $region21: #{sslae_forward.6} parent=0 // pred_fallthru
    _
  // Predicated region
  $region22: #{sslae_forward.6} parent=0 // pred_check
    _
  $region23: #{sslae_forward.6} parent=0 // pred_check_branch
    %919 = sbr.rel (0) target = $region25
  $region24: #{sslae_forward.6} parent=0 // pred_region
    _
  $region25: #{sslae_forward.6} parent=0 // pred_fallthru
    _

// kernel: sslae_forward.9
$region0: #{sslae_forward.9}
  #allocation0 [shape = 'u32[]', space=smem, size = 0x4, offset = 0x4, fixed_abs, tag = 'smem constant byte address 0x4 - core index']
  #allocation1 [shape = 'u32[144,128]{1,0:T(1,128)}', space=vmem, size = 0x12000, scoped, tag = 'internal scratch']
  %s0 = inlined_call_operand.vmem [shape: f32[128,1152], index: 0, kind: input, shape index: {}]
  %s1 = inlined_call_operand.vmem [shape: bf16[1152,128], index: 1, kind: input, shape index: {}]
  %s2 = inlined_call_operand.vmem [shape: f32[1,128], index: 2, kind: input, shape index: {}]
  %s3 = inlined_call_operand.vmem [shape: bf16[128,256], index: 3, kind: input, shape index: {}]
  %s4 = inlined_call_operand.vmem [shape: f32[1,256], index: 4, kind: input, shape index: {}]
  %s5 = inlined_call_operand.hbm [shape: f32[128,256], index: 5, kind: output, shape index: {}]
  %s6 = sld [smem:[#allocation0]]
  $region30: #{sslae_forward.9} parent=0
    _
  %s8 = ssub.s32 1, %s6
  %s9 = scalar_select 0, %s8, %s6
  $region1: #{sslae_forward.9} parent=0
    #allocation2 [shape = 'u8[131072]{0}', space=vmem, size = 0x20000, scoped, tag = 'output window, operand 0, single buffered']
    #allocation3 [shape = 's32[1]{0}', space=sflag, size = 0x4, scoped, tag = 'scoped memory for sslae_forward.9']
    %10 = vsyncpa [#allocation3], 0
    // Predicated region
    $region2: #{sslae_forward.9} parent=1 // pred_check
      _
    $region3: #{sslae_forward.9} parent=1 // pred_check_branch
      %12 = sbr.rel (0) target = $region5
    $region4: #{sslae_forward.9} parent=1 // pred_region
      _
    $region5: #{sslae_forward.9} parent=1 // pred_fallthru
      _
    // Predicated region
    $region6: #{sslae_forward.9} parent=1 // pred_check
      _
    $region7: #{sslae_forward.9} parent=1 // pred_check_branch
      %14 = sbr.rel (0) target = $region9
    $region8: #{sslae_forward.9} parent=1 // pred_region
      _
    $region9: #{sslae_forward.9} parent=1 // pred_fallthru
      _
    // Predicated region
    $region10: #{sslae_forward.9} parent=1 // pred_check
      _
    $region11: #{sslae_forward.9} parent=1 // pred_check_branch
      %16 = sbr.rel (0) target = $region13
    $region12: #{sslae_forward.9} parent=1 // pred_region
      _
    $region13: #{sslae_forward.9} parent=1 // pred_fallthru
      _
    // Predicated region
    $region14: #{sslae_forward.9} parent=1 // pred_check
      _
    $region15: #{sslae_forward.9} parent=1 // pred_check_branch
      %18 = sbr.rel (0) target = $region17
    $region16: #{sslae_forward.9} parent=1 // pred_region
      _
    $region17: #{sslae_forward.9} parent=1 // pred_fallthru
      _
    // Predicated region
    $region18: #{sslae_forward.9} parent=1 // pred_check
      _
    $region19: #{sslae_forward.9} parent=1 // pred_check_branch
      %20 = sbr.rel (0) target = $region21
    $region20: #{sslae_forward.9} parent=1 // pred_region
      _
    $region21: #{sslae_forward.9} parent=1 // pred_fallthru
      _
    %v22 = vld [vmem:[%s0] sm:$0xff]
    %v23 = vld [vmem:[%s0 + $0x8] sm:$0xff]
    %v24 = vld [vmem:[%s0 + $0x10] sm:$0xff]
    %v25 = vld [vmem:[%s0 + $0x18] sm:$0xff]
    %v26 = vld [vmem:[%s0 + $0x20] sm:$0xff]
    %v27 = vld [vmem:[%s0 + $0x28] sm:$0xff]
    %v28 = vld [vmem:[%s0 + $0x30] sm:$0xff]
    %v29 = vld [vmem:[%s0 + $0x38] sm:$0xff]
    %v30 = vld [vmem:[%s0 + $0x40] sm:$0xff]
    %v31 = vld [vmem:[%s0 + $0x48] sm:$0xff]
    %v32 = vld [vmem:[%s0 + $0x50] sm:$0xff]
    %v33 = vld [vmem:[%s0 + $0x58] sm:$0xff]
    %v34 = vld [vmem:[%s0 + $0x60] sm:$0xff]
    %v35 = vld [vmem:[%s0 + $0x68] sm:$0xff]
    %v36 = vld [vmem:[%s0 + $0x70] sm:$0xff]
    %v37 = vld [vmem:[%s0 + $0x78] sm:$0xff]
    %v38 = vld [vmem:[%s0 + $0x80] sm:$0xff]
    %v39 = vld [vmem:[%s0 + $0x88] sm:$0xff]
    %v40 = vld [vmem:[%s0 + $0x90] sm:$0xff]
    %v41 = vld [vmem:[%s0 + $0x98] sm:$0xff]
    %v42 = vld [vmem:[%s0 + $0xa0] sm:$0xff]
    %v43 = vld [vmem:[%s0 + $0xa8] sm:$0xff]
    %v44 = vld [vmem:[%s0 + $0xb0] sm:$0xff]
    %v45 = vld [vmem:[%s0 + $0xb8] sm:$0xff]
    %v46 = vld [vmem:[%s0 + $0xc0] sm:$0xff]
    %v47 = vld [vmem:[%s0 + $0xc8] sm:$0xff]
    %v48 = vld [vmem:[%s0 + $0xd0] sm:$0xff]
    %v49 = vld [vmem:[%s0 + $0xd8] sm:$0xff]
    %v50 = vld [vmem:[%s0 + $0xe0] sm:$0xff]
    %v51 = vld [vmem:[%s0 + $0xe8] sm:$0xff]
    %v52 = vld [vmem:[%s0 + $0xf0] sm:$0xff]
    %v53 = vld [vmem:[%s0 + $0xf8] sm:$0xff]
    %v54 = vld [vmem:[%s0 + $0x100] sm:$0xff]
    %v55 = vld [vmem:[%s0 + $0x108] sm:$0xff]
    %v56 = vld [vmem:[%s0 + $0x110] sm:$0xff]
    %v57 = vld [vmem:[%s0 + $0x118] sm:$0xff]
    %v58 = vld [vmem:[%s0 + $0x120] sm:$0xff]
    %v59 = vld [vmem:[%s0 + $0x128] sm:$0xff]
    %v60 = vld [vmem:[%s0 + $0x130] sm:$0xff]
    %v61 = vld [vmem:[%s0 + $0x138] sm:$0xff]
    %v62 = vld [vmem:[%s0 + $0x140] sm:$0xff]
    %v63 = vld [vmem:[%s0 + $0x148] sm:$0xff]
    %v64 = vld [vmem:[%s0 + $0x150] sm:$0xff]
    %v65 = vld [vmem:[%s0 + $0x158] sm:$0xff]
    %v66 = vld [vmem:[%s0 + $0x160] sm:$0xff]
    %v67 = vld [vmem:[%s0 + $0x168] sm:$0xff]
    %v68 = vld [vmem:[%s0 + $0x170] sm:$0xff]
    %v69 = vld [vmem:[%s0 + $0x178] sm:$0xff]
    %v70 = vld [vmem:[%s0 + $0x180] sm:$0xff]
    %v71 = vld [vmem:[%s0 + $0x188] sm:$0xff]
    %v72 = vld [vmem:[%s0 + $0x190] sm:$0xff]
    %v73 = vld [vmem:[%s0 + $0x198] sm:$0xff]
    %v74 = vld [vmem:[%s0 + $0x1a0] sm:$0xff]
    %v75 = vld [vmem:[%s0 + $0x1a8] sm:$0xff]
    %v76 = vld [vmem:[%s0 + $0x1b0] sm:$0xff]
    %v77 = vld [vmem:[%s0 + $0x1b8] sm:$0xff]
    %v78 = vld [vmem:[%s0 + $0x1c0] sm:$0xff]
    %v79 = vld [vmem:[%s0 + $0x1c8] sm:$0xff]
    %v80 = vld [vmem:[%s0 + $0x1d0] sm:$0xff]
    %v81 = vld [vmem:[%s0 + $0x1d8] sm:$0xff]
    %v82 = vld [vmem:[%s0 + $0x1e0] sm:$0xff]
    %v83 = vld [vmem:[%s0 + $0x1e8] sm:$0xff]
    %v84 = vld [vmem:[%s0 + $0x1f0] sm:$0xff]
    %v85 = vld [vmem:[%s0 + $0x1f8] sm:$0xff]
    %v86 = vld [vmem:[%s0 + $0x200] sm:$0xff]
    %v87 = vld [vmem:[%s0 + $0x208] sm:$0xff]
    %v88 = vld [vmem:[%s0 + $0x210] sm:$0xff]
    %v89 = vld [vmem:[%s0 + $0x218] sm:$0xff]
    %v90 = vld [vmem:[%s0 + $0x220] sm:$0xff]
    %v91 = vld [vmem:[%s0 + $0x228] sm:$0xff]
    %v92 = vld [vmem:[%s0 + $0x230] sm:$0xff]
    %v93 = vld [vmem:[%s0 + $0x238] sm:$0xff]
    %v94 = vld [vmem:[%s0 + $0x240] sm:$0xff]
    %v95 = vld [vmem:[%s0 + $0x248] sm:$0xff]
    %v96 = vld [vmem:[%s0 + $0x250] sm:$0xff]
    %v97 = vld [vmem:[%s0 + $0x258] sm:$0xff]
    %v98 = vld [vmem:[%s0 + $0x260] sm:$0xff]
    %v99 = vld [vmem:[%s0 + $0x268] sm:$0xff]
    %v100 = vld [vmem:[%s0 + $0x270] sm:$0xff]
    %v101 = vld [vmem:[%s0 + $0x278] sm:$0xff]
    %v102 = vld [vmem:[%s0 + $0x280] sm:$0xff]
    %v103 = vld [vmem:[%s0 + $0x288] sm:$0xff]
    %v104 = vld [vmem:[%s0 + $0x290] sm:$0xff]
    %v105 = vld [vmem:[%s0 + $0x298] sm:$0xff]
    %v106 = vld [vmem:[%s0 + $0x2a0] sm:$0xff]
    %v107 = vld [vmem:[%s0 + $0x2a8] sm:$0xff]
    %v108 = vld [vmem:[%s0 + $0x2b0] sm:$0xff]
    %v109 = vld [vmem:[%s0 + $0x2b8] sm:$0xff]
    %v110 = vld [vmem:[%s0 + $0x2c0] sm:$0xff]
    %v111 = vld [vmem:[%s0 + $0x2c8] sm:$0xff]
    %v112 = vld [vmem:[%s0 + $0x2d0] sm:$0xff]
    %v113 = vld [vmem:[%s0 + $0x2d8] sm:$0xff]
    %v114 = vld [vmem:[%s0 + $0x2e0] sm:$0xff]
    %v115 = vld [vmem:[%s0 + $0x2e8] sm:$0xff]
    %v116 = vld [vmem:[%s0 + $0x2f0] sm:$0xff]
    %v117 = vld [vmem:[%s0 + $0x2f8] sm:$0xff]
    %v118 = vld [vmem:[%s0 + $0x300] sm:$0xff]
    %v119 = vld [vmem:[%s0 + $0x308] sm:$0xff]
    %v120 = vld [vmem:[%s0 + $0x310] sm:$0xff]
    %v121 = vld [vmem:[%s0 + $0x318] sm:$0xff]
    %v122 = vld [vmem:[%s0 + $0x320] sm:$0xff]
    %v123 = vld [vmem:[%s0 + $0x328] sm:$0xff]
    %v124 = vld [vmem:[%s0 + $0x330] sm:$0xff]
    %v125 = vld [vmem:[%s0 + $0x338] sm:$0xff]
    %v126 = vld [vmem:[%s0 + $0x340] sm:$0xff]
    %v127 = vld [vmem:[%s0 + $0x348] sm:$0xff]
    %v128 = vld [vmem:[%s0 + $0x350] sm:$0xff]
    %v129 = vld [vmem:[%s0 + $0x358] sm:$0xff]
    %v130 = vld [vmem:[%s0 + $0x360] sm:$0xff]
    %v131 = vld [vmem:[%s0 + $0x368] sm:$0xff]
    %v132 = vld [vmem:[%s0 + $0x370] sm:$0xff]
    %v133 = vld [vmem:[%s0 + $0x378] sm:$0xff]
    %v134 = vld [vmem:[%s0 + $0x380] sm:$0xff]
    %v135 = vld [vmem:[%s0 + $0x388] sm:$0xff]
    %v136 = vld [vmem:[%s0 + $0x390] sm:$0xff]
    %v137 = vld [vmem:[%s0 + $0x398] sm:$0xff]
    %v138 = vld [vmem:[%s0 + $0x3a0] sm:$0xff]
    %v139 = vld [vmem:[%s0 + $0x3a8] sm:$0xff]
    %v140 = vld [vmem:[%s0 + $0x3b0] sm:$0xff]
    %v141 = vld [vmem:[%s0 + $0x3b8] sm:$0xff]
    %v142 = vld [vmem:[%s0 + $0x3c0] sm:$0xff]
    %v143 = vld [vmem:[%s0 + $0x3c8] sm:$0xff]
    %v144 = vld [vmem:[%s0 + $0x3d0] sm:$0xff]
    %v145 = vld [vmem:[%s0 + $0x3d8] sm:$0xff]
    %v146 = vld [vmem:[%s0 + $0x3e0] sm:$0xff]
    %v147 = vld [vmem:[%s0 + $0x3e8] sm:$0xff]
    %v148 = vld [vmem:[%s0 + $0x3f0] sm:$0xff]
    %v149 = vld [vmem:[%s0 + $0x3f8] sm:$0xff]
    %v150 = vld [vmem:[%s0 + $0x400] sm:$0xff]
    %v151 = vld [vmem:[%s0 + $0x408] sm:$0xff]
    %v152 = vld [vmem:[%s0 + $0x410] sm:$0xff]
    %v153 = vld [vmem:[%s0 + $0x418] sm:$0xff]
    %v154 = vld [vmem:[%s0 + $0x420] sm:$0xff]
    %v155 = vld [vmem:[%s0 + $0x428] sm:$0xff]
    %v156 = vld [vmem:[%s0 + $0x430] sm:$0xff]
    %v157 = vld [vmem:[%s0 + $0x438] sm:$0xff]
    %v158 = vld [vmem:[%s0 + $0x440] sm:$0xff]
    %v159 = vld [vmem:[%s0 + $0x448] sm:$0xff]
    %v160 = vld [vmem:[%s0 + $0x450] sm:$0xff]
    %v161 = vld [vmem:[%s0 + $0x458] sm:$0xff]
    %v162 = vld [vmem:[%s0 + $0x460] sm:$0xff]
    %v163 = vld [vmem:[%s0 + $0x468] sm:$0xff]
    %v164 = vld [vmem:[%s0 + $0x470] sm:$0xff]
    %v165 = vld [vmem:[%s0 + $0x478] sm:$0xff]
    %v166 = vpack.c.bf16 %v31, %v22
    %v167 = vpack.c.bf16 %v32, %v23
    %v168 = vpack.c.bf16 %v33, %v24
    %v169 = vpack.c.bf16 %v34, %v25
    %v170 = vpack.c.bf16 %v35, %v26
    %v171 = vpack.c.bf16 %v36, %v27
    %v172 = vpack.c.bf16 %v37, %v28
    %v173 = vpack.c.bf16 %v38, %v29
    %v174 = vpack.c.bf16 %v39, %v30
    %v175 = vpack.c.bf16 %v49, %v40
    %v176 = vpack.c.bf16 %v50, %v41
    %v177 = vpack.c.bf16 %v51, %v42
    %v178 = vpack.c.bf16 %v52, %v43
    %v179 = vpack.c.bf16 %v53, %v44
    %v180 = vpack.c.bf16 %v54, %v45
    %v181 = vpack.c.bf16 %v55, %v46
    %v182 = vpack.c.bf16 %v56, %v47
    %v183 = vpack.c.bf16 %v57, %v48
    %v184 = vpack.c.bf16 %v67, %v58
    %v185 = vpack.c.bf16 %v68, %v59
    %v186 = vpack.c.bf16 %v69, %v60
    %v187 = vpack.c.bf16 %v70, %v61
    %v188 = vpack.c.bf16 %v71, %v62
    %v189 = vpack.c.bf16 %v72, %v63
    %v190 = vpack.c.bf16 %v73, %v64
    %v191 = vpack.c.bf16 %v74, %v65
    %v192 = vpack.c.bf16 %v75, %v66
    %v193 = vpack.c.bf16 %v85, %v76
    %v194 = vpack.c.bf16 %v86, %v77
    %v195 = vpack.c.bf16 %v87, %v78
    %v196 = vpack.c.bf16 %v88, %v79
    %v197 = vpack.c.bf16 %v89, %v80
    %v198 = vpack.c.bf16 %v90, %v81
    %v199 = vpack.c.bf16 %v91, %v82
    %v200 = vpack.c.bf16 %v92, %v83
    %v201 = vpack.c.bf16 %v93, %v84
    %v202 = vpack.c.bf16 %v103, %v94
    %v203 = vpack.c.bf16 %v104, %v95
    %v204 = vpack.c.bf16 %v105, %v96
    %v205 = vpack.c.bf16 %v106, %v97
    %v206 = vpack.c.bf16 %v107, %v98
    %v207 = vpack.c.bf16 %v108, %v99
    %v208 = vpack.c.bf16 %v109, %v100
    %v209 = vpack.c.bf16 %v110, %v101
    %v210 = vpack.c.bf16 %v111, %v102
    %v211 = vpack.c.bf16 %v121, %v112
    %v212 = vpack.c.bf16 %v122, %v113
    %v213 = vpack.c.bf16 %v123, %v114
    %v214 = vpack.c.bf16 %v124, %v115
    %v215 = vpack.c.bf16 %v125, %v116
    %v216 = vpack.c.bf16 %v126, %v117
    %v217 = vpack.c.bf16 %v127, %v118
    %v218 = vpack.c.bf16 %v128, %v119
    %v219 = vpack.c.bf16 %v129, %v120
    %v220 = vpack.c.bf16 %v139, %v130
    %v221 = vpack.c.bf16 %v140, %v131
    %v222 = vpack.c.bf16 %v141, %v132
    %v223 = vpack.c.bf16 %v142, %v133
    %v224 = vpack.c.bf16 %v143, %v134
    %v225 = vpack.c.bf16 %v144, %v135
    %v226 = vpack.c.bf16 %v145, %v136
    %v227 = vpack.c.bf16 %v146, %v137
    %v228 = vpack.c.bf16 %v147, %v138
    %v229 = vpack.c.bf16 %v157, %v148
    %v230 = vpack.c.bf16 %v158, %v149
    %v231 = vpack.c.bf16 %v159, %v150
    %v232 = vpack.c.bf16 %v160, %v151
    %v233 = vpack.c.bf16 %v161, %v152
    %v234 = vpack.c.bf16 %v162, %v153
    %v235 = vpack.c.bf16 %v163, %v154
    %v236 = vpack.c.bf16 %v164, %v155
    %v237 = vpack.c.bf16 %v165, %v156
    %v238 = vld [vmem:[%s1] sm:$0xf]
    %v239 = vld [vmem:[%s1 + $0x4] sm:$0xf]
    %v240 = vld [vmem:[%s1 + $0x8] sm:$0xf]
    %v241 = vld [vmem:[%s1 + $0xc] sm:$0xf]
    %v242 = vld [vmem:[%s1 + $0x10] sm:$0xf]
    %v243 = vld [vmem:[%s1 + $0x14] sm:$0xf]
    %v244 = vld [vmem:[%s1 + $0x18] sm:$0xf]
    %v245 = vld [vmem:[%s1 + $0x1c] sm:$0xf]
    %v246 = vld [vmem:[%s1 + $0x20] sm:$0xf]
    %v247 = vld [vmem:[%s1 + $0x24] sm:$0xf]
    %v248 = vld [vmem:[%s1 + $0x28] sm:$0xf]
    %v249 = vld [vmem:[%s1 + $0x2c] sm:$0xf]
    %v250 = vld [vmem:[%s1 + $0x30] sm:$0xf]
    %v251 = vld [vmem:[%s1 + $0x34] sm:$0xf]
    %v252 = vld [vmem:[%s1 + $0x38] sm:$0xf]
    %v253 = vld [vmem:[%s1 + $0x3c] sm:$0xf]
    %v254 = vld [vmem:[%s1 + $0x40] sm:$0xf]
    %v255 = vld [vmem:[%s1 + $0x44] sm:$0xf]
    %v256 = vld [vmem:[%s1 + $0x48] sm:$0xf]
    %v257 = vld [vmem:[%s1 + $0x4c] sm:$0xf]
    %v258 = vld [vmem:[%s1 + $0x50] sm:$0xf]
    %v259 = vld [vmem:[%s1 + $0x54] sm:$0xf]
    %v260 = vld [vmem:[%s1 + $0x58] sm:$0xf]
    %v261 = vld [vmem:[%s1 + $0x5c] sm:$0xf]
    %v262 = vld [vmem:[%s1 + $0x60] sm:$0xf]
    %v263 = vld [vmem:[%s1 + $0x64] sm:$0xf]
    %v264 = vld [vmem:[%s1 + $0x68] sm:$0xf]
    %v265 = vld [vmem:[%s1 + $0x6c] sm:$0xf]
    %v266 = vld [vmem:[%s1 + $0x70] sm:$0xf]
    %v267 = vld [vmem:[%s1 + $0x74] sm:$0xf]
    %v268 = vld [vmem:[%s1 + $0x78] sm:$0xf]
    %v269 = vld [vmem:[%s1 + $0x7c] sm:$0xf]
    %v270 = vld [vmem:[%s1 + $0x80] sm:$0xf]
    %v271 = vld [vmem:[%s1 + $0x84] sm:$0xf]
    %v272 = vld [vmem:[%s1 + $0x88] sm:$0xf]
    %v273 = vld [vmem:[%s1 + $0x8c] sm:$0xf]
    %v274 = vld [vmem:[%s1 + $0x90] sm:$0xf]
    %v275 = vld [vmem:[%s1 + $0x94] sm:$0xf]
    %v276 = vld [vmem:[%s1 + $0x98] sm:$0xf]
    %v277 = vld [vmem:[%s1 + $0x9c] sm:$0xf]
    %v278 = vld [vmem:[%s1 + $0xa0] sm:$0xf]
    %v279 = vld [vmem:[%s1 + $0xa4] sm:$0xf]
    %v280 = vld [vmem:[%s1 + $0xa8] sm:$0xf]
    %v281 = vld [vmem:[%s1 + $0xac] sm:$0xf]
    %v282 = vld [vmem:[%s1 + $0xb0] sm:$0xf]
    %v283 = vld [vmem:[%s1 + $0xb4] sm:$0xf]
    %v284 = vld [vmem:[%s1 + $0xb8] sm:$0xf]
    %v285 = vld [vmem:[%s1 + $0xbc] sm:$0xf]
    %v286 = vld [vmem:[%s1 + $0xc0] sm:$0xf]
    %v287 = vld [vmem:[%s1 + $0xc4] sm:$0xf]
    %v288 = vld [vmem:[%s1 + $0xc8] sm:$0xf]
    %v289 = vld [vmem:[%s1 + $0xcc] sm:$0xf]
    %v290 = vld [vmem:[%s1 + $0xd0] sm:$0xf]
    %v291 = vld [vmem:[%s1 + $0xd4] sm:$0xf]
    %v292 = vld [vmem:[%s1 + $0xd8] sm:$0xf]
    %v293 = vld [vmem:[%s1 + $0xdc] sm:$0xf]
    %v294 = vld [vmem:[%s1 + $0xe0] sm:$0xf]
    %v295 = vld [vmem:[%s1 + $0xe4] sm:$0xf]
    %v296 = vld [vmem:[%s1 + $0xe8] sm:$0xf]
    %v297 = vld [vmem:[%s1 + $0xec] sm:$0xf]
    %v298 = vld [vmem:[%s1 + $0xf0] sm:$0xf]
    %v299 = vld [vmem:[%s1 + $0xf4] sm:$0xf]
    %v300 = vld [vmem:[%s1 + $0xf8] sm:$0xf]
    %v301 = vld [vmem:[%s1 + $0xfc] sm:$0xf]
    %v302 = vld [vmem:[%s1 + $0x100] sm:$0xf]
    %v303 = vld [vmem:[%s1 + $0x104] sm:$0xf]
    %v304 = vld [vmem:[%s1 + $0x108] sm:$0xf]
    %v305 = vld [vmem:[%s1 + $0x10c] sm:$0xf]
    %v306 = vld [vmem:[%s1 + $0x110] sm:$0xf]
    %v307 = vld [vmem:[%s1 + $0x114] sm:$0xf]
    %v308 = vld [vmem:[%s1 + $0x118] sm:$0xf]
    %v309 = vld [vmem:[%s1 + $0x11c] sm:$0xf]
    %v310 = vld [vmem:[%s1 + $0x120] sm:$0xf]
    %v311 = vld [vmem:[%s1 + $0x124] sm:$0xf]
    %v312 = vld [vmem:[%s1 + $0x128] sm:$0xf]
    %v313 = vld [vmem:[%s1 + $0x12c] sm:$0xf]
    %v314 = vld [vmem:[%s1 + $0x130] sm:$0xf]
    %v315 = vld [vmem:[%s1 + $0x134] sm:$0xf]
    %v316 = vld [vmem:[%s1 + $0x138] sm:$0xf]
    %v317 = vld [vmem:[%s1 + $0x13c] sm:$0xf]
    %v318 = vld [vmem:[%s1 + $0x140] sm:$0xf]
    %v319 = vld [vmem:[%s1 + $0x144] sm:$0xf]
    %v320 = vld [vmem:[%s1 + $0x148] sm:$0xf]
    %v321 = vld [vmem:[%s1 + $0x14c] sm:$0xf]
    %v322 = vld [vmem:[%s1 + $0x150] sm:$0xf]
    %v323 = vld [vmem:[%s1 + $0x154] sm:$0xf]
    %v324 = vld [vmem:[%s1 + $0x158] sm:$0xf]
    %v325 = vld [vmem:[%s1 + $0x15c] sm:$0xf]
    %v326 = vld [vmem:[%s1 + $0x160] sm:$0xf]
    %v327 = vld [vmem:[%s1 + $0x164] sm:$0xf]
    %v328 = vld [vmem:[%s1 + $0x168] sm:$0xf]
    %v329 = vld [vmem:[%s1 + $0x16c] sm:$0xf]
    %v330 = vld [vmem:[%s1 + $0x170] sm:$0xf]
    %v331 = vld [vmem:[%s1 + $0x174] sm:$0xf]
    %v332 = vld [vmem:[%s1 + $0x178] sm:$0xf]
    %v333 = vld [vmem:[%s1 + $0x17c] sm:$0xf]
    %v334 = vld [vmem:[%s1 + $0x180] sm:$0xf]
    %v335 = vld [vmem:[%s1 + $0x184] sm:$0xf]
    %v336 = vld [vmem:[%s1 + $0x188] sm:$0xf]
    %v337 = vld [vmem:[%s1 + $0x18c] sm:$0xf]
    %v338 = vld [vmem:[%s1 + $0x190] sm:$0xf]
    %v339 = vld [vmem:[%s1 + $0x194] sm:$0xf]
    %v340 = vld [vmem:[%s1 + $0x198] sm:$0xf]
    %v341 = vld [vmem:[%s1 + $0x19c] sm:$0xf]
    %v342 = vld [vmem:[%s1 + $0x1a0] sm:$0xf]
    %v343 = vld [vmem:[%s1 + $0x1a4] sm:$0xf]
    %v344 = vld [vmem:[%s1 + $0x1a8] sm:$0xf]
    %v345 = vld [vmem:[%s1 + $0x1ac] sm:$0xf]
    %v346 = vld [vmem:[%s1 + $0x1b0] sm:$0xf]
    %v347 = vld [vmem:[%s1 + $0x1b4] sm:$0xf]
    %v348 = vld [vmem:[%s1 + $0x1b8] sm:$0xf]
    %v349 = vld [vmem:[%s1 + $0x1bc] sm:$0xf]
    %v350 = vld [vmem:[%s1 + $0x1c0] sm:$0xf]
    %v351 = vld [vmem:[%s1 + $0x1c4] sm:$0xf]
    %v352 = vld [vmem:[%s1 + $0x1c8] sm:$0xf]
    %v353 = vld [vmem:[%s1 + $0x1cc] sm:$0xf]
    %v354 = vld [vmem:[%s1 + $0x1d0] sm:$0xf]
    %v355 = vld [vmem:[%s1 + $0x1d4] sm:$0xf]
    %v356 = vld [vmem:[%s1 + $0x1d8] sm:$0xf]
    %v357 = vld [vmem:[%s1 + $0x1dc] sm:$0xf]
    %v358 = vld [vmem:[%s1 + $0x1e0] sm:$0xf]
    %v359 = vld [vmem:[%s1 + $0x1e4] sm:$0xf]
    %v360 = vld [vmem:[%s1 + $0x1e8] sm:$0xf]
    %v361 = vld [vmem:[%s1 + $0x1ec] sm:$0xf]
    %v362 = vld [vmem:[%s1 + $0x1f0] sm:$0xf]
    %v363 = vld [vmem:[%s1 + $0x1f4] sm:$0xf]
    %v364 = vld [vmem:[%s1 + $0x1f8] sm:$0xf]
    %v365 = vld [vmem:[%s1 + $0x1fc] sm:$0xf]
    %v366 = vld [vmem:[%s1 + $0x200] sm:$0xf]
    %v367 = vld [vmem:[%s1 + $0x204] sm:$0xf]
    %v368 = vld [vmem:[%s1 + $0x208] sm:$0xf]
    %v369 = vld [vmem:[%s1 + $0x20c] sm:$0xf]
    %v370 = vld [vmem:[%s1 + $0x210] sm:$0xf]
    %v371 = vld [vmem:[%s1 + $0x214] sm:$0xf]
    %v372 = vld [vmem:[%s1 + $0x218] sm:$0xf]
    %v373 = vld [vmem:[%s1 + $0x21c] sm:$0xf]
    %v374 = vld [vmem:[%s1 + $0x220] sm:$0xf]
    %v375 = vld [vmem:[%s1 + $0x224] sm:$0xf]
    %v376 = vld [vmem:[%s1 + $0x228] sm:$0xf]
    %v377 = vld [vmem:[%s1 + $0x22c] sm:$0xf]
    %v378 = vld [vmem:[%s1 + $0x230] sm:$0xf]
    %v379 = vld [vmem:[%s1 + $0x234] sm:$0xf]
    %v380 = vld [vmem:[%s1 + $0x238] sm:$0xf]
    %v381 = vld [vmem:[%s1 + $0x23c] sm:$0xf]
    %v382 = vld [vmem:[%s2] sm:$0x1]
    %v384 = vlaneseq
    %v385 = vshrl.u32 %v384, 7
    %v386 = vsub.s32 0, %v385
    %v387 = vrot.slane %v382, %v386
    %v533 = vunpack.c.l.b16 %v238
    %v534 = vunpack.c.l.b16 %v239
    %v535 = vunpack.c.l.b16 %v240
    %v536 = vunpack.c.l.b16 %v241
    %v537 = vunpack.c.l.b16 %v242
    %v538 = vunpack.c.l.b16 %v243
    %v539 = vunpack.c.l.b16 %v244
    %v540 = vunpack.c.l.b16 %v245
    %v541 = vunpack.c.l.b16 %v246
    %v542 = vunpack.c.l.b16 %v247
    %v543 = vunpack.c.l.b16 %v248
    %v544 = vunpack.c.l.b16 %v249
    %v545 = vunpack.c.l.b16 %v250
    %v546 = vunpack.c.l.b16 %v251
    %v547 = vunpack.c.l.b16 %v252
    %v548 = vunpack.c.l.b16 %v253
    %v549 = vunpack.c.l.b16 %v254
    %v550 = vunpack.c.l.b16 %v255
    %v551 = vunpack.c.l.b16 %v256
    %v552 = vunpack.c.l.b16 %v257
    %v553 = vunpack.c.l.b16 %v258
    %v554 = vunpack.c.l.b16 %v259
    %v555 = vunpack.c.l.b16 %v260
    %v556 = vunpack.c.l.b16 %v261
    %v557 = vunpack.c.l.b16 %v262
    %v558 = vunpack.c.l.b16 %v263
    %v559 = vunpack.c.l.b16 %v264
    %v560 = vunpack.c.l.b16 %v265
    %v561 = vunpack.c.l.b16 %v266
    %v562 = vunpack.c.l.b16 %v267
    %v563 = vunpack.c.l.b16 %v268
    %v564 = vunpack.c.l.b16 %v269
    %v565 = vunpack.c.l.b16 %v270
    %v566 = vunpack.c.l.b16 %v271
    %v567 = vunpack.c.l.b16 %v272
    %v568 = vunpack.c.l.b16 %v273
    %v569 = vunpack.c.l.b16 %v274
    %v570 = vunpack.c.l.b16 %v275
    %v571 = vunpack.c.l.b16 %v276
    %v572 = vunpack.c.l.b16 %v277
    %v573 = vunpack.c.l.b16 %v278
    %v574 = vunpack.c.l.b16 %v279
    %v575 = vunpack.c.l.b16 %v280
    %v576 = vunpack.c.l.b16 %v281
    %v577 = vunpack.c.l.b16 %v282
    %v578 = vunpack.c.l.b16 %v283
    %v579 = vunpack.c.l.b16 %v284
    %v580 = vunpack.c.l.b16 %v285
    %v581 = vunpack.c.l.b16 %v286
    %v582 = vunpack.c.l.b16 %v287
    %v583 = vunpack.c.l.b16 %v288
    %v584 = vunpack.c.l.b16 %v289
    %v585 = vunpack.c.l.b16 %v290
    %v586 = vunpack.c.l.b16 %v291
    %v587 = vunpack.c.l.b16 %v292
    %v588 = vunpack.c.l.b16 %v293
    %v589 = vunpack.c.l.b16 %v294
    %v590 = vunpack.c.l.b16 %v295
    %v591 = vunpack.c.l.b16 %v296
    %v592 = vunpack.c.l.b16 %v297
    %v593 = vunpack.c.l.b16 %v298
    %v594 = vunpack.c.l.b16 %v299
    %v595 = vunpack.c.l.b16 %v300
    %v596 = vunpack.c.l.b16 %v301
    %v597 = vunpack.c.l.b16 %v302
    %v598 = vunpack.c.l.b16 %v303
    %v599 = vunpack.c.l.b16 %v304
    %v600 = vunpack.c.l.b16 %v305
    %v601 = vunpack.c.l.b16 %v306
    %v602 = vunpack.c.l.b16 %v307
    %v603 = vunpack.c.l.b16 %v308
    %v604 = vunpack.c.l.b16 %v309
    %v605 = vunpack.c.l.b16 %v310
    %v606 = vunpack.c.l.b16 %v311
    %v607 = vunpack.c.l.b16 %v312
    %v608 = vunpack.c.l.b16 %v313
    %v609 = vunpack.c.l.b16 %v314
    %v610 = vunpack.c.l.b16 %v315
    %v611 = vunpack.c.l.b16 %v316
    %v612 = vunpack.c.l.b16 %v317
    %v613 = vunpack.c.l.b16 %v318
    %v614 = vunpack.c.l.b16 %v319
    %v615 = vunpack.c.l.b16 %v320
    %v616 = vunpack.c.l.b16 %v321
    %v617 = vunpack.c.l.b16 %v322
    %v618 = vunpack.c.l.b16 %v323
    %v619 = vunpack.c.l.b16 %v324
    %v620 = vunpack.c.l.b16 %v325
    %v621 = vunpack.c.l.b16 %v326
    %v622 = vunpack.c.l.b16 %v327
    %v623 = vunpack.c.l.b16 %v328
    %v624 = vunpack.c.l.b16 %v329
    %v625 = vunpack.c.l.b16 %v330
    %v626 = vunpack.c.l.b16 %v331
    %v627 = vunpack.c.l.b16 %v332
    %v628 = vunpack.c.l.b16 %v333
    %v629 = vunpack.c.l.b16 %v334
    %v630 = vunpack.c.l.b16 %v335
    %v631 = vunpack.c.l.b16 %v336
    %v632 = vunpack.c.l.b16 %v337
    %v633 = vunpack.c.l.b16 %v338
    %v634 = vunpack.c.l.b16 %v339
    %v635 = vunpack.c.l.b16 %v340
    %v636 = vunpack.c.l.b16 %v341
    %v637 = vunpack.c.l.b16 %v342
    %v638 = vunpack.c.l.b16 %v343
    %v639 = vunpack.c.l.b16 %v344
    %v640 = vunpack.c.l.b16 %v345
    %v641 = vunpack.c.l.b16 %v346
    %v642 = vunpack.c.l.b16 %v347
    %v643 = vunpack.c.l.b16 %v348
    %v644 = vunpack.c.l.b16 %v349
    %v645 = vunpack.c.l.b16 %v350
    %v646 = vunpack.c.l.b16 %v351
    %v647 = vunpack.c.l.b16 %v352
    %v648 = vunpack.c.l.b16 %v353
    %v649 = vunpack.c.l.b16 %v354
    %v650 = vunpack.c.l.b16 %v355
    %v651 = vunpack.c.l.b16 %v356
    %v652 = vunpack.c.l.b16 %v357
    %v653 = vunpack.c.l.b16 %v358
    %v654 = vunpack.c.l.b16 %v359
    %v655 = vunpack.c.l.b16 %v360
    %v656 = vunpack.c.l.b16 %v361
    %v657 = vunpack.c.l.b16 %v362
    %v658 = vunpack.c.l.b16 %v363
    %v659 = vunpack.c.l.b16 %v364
    %v660 = vunpack.c.l.b16 %v365
    %v661 = vunpack.c.l.b16 %v366
    %v662 = vunpack.c.l.b16 %v367
    %v663 = vunpack.c.l.b16 %v368
    %v664 = vunpack.c.l.b16 %v369
    %v665 = vunpack.c.l.b16 %v370
    %v666 = vunpack.c.l.b16 %v371
    %v667 = vunpack.c.l.b16 %v372
    %v668 = vunpack.c.l.b16 %v373
    %v669 = vunpack.c.l.b16 %v374
    %v670 = vunpack.c.l.b16 %v375
    %v671 = vunpack.c.l.b16 %v376
    %v672 = vunpack.c.l.b16 %v377
    %v673 = vunpack.c.l.b16 %v378
    %v674 = vunpack.c.l.b16 %v379
    %v675 = vunpack.c.l.b16 %v380
    %v676 = vunpack.c.l.b16 %v381
    %v677 = vpack.c.b16 %v534, %v533
    %v678 = vpack.c.b16 %v536, %v535
    %v679 = vpack.c.b16 %v538, %v537
    %v680 = vpack.c.b16 %v540, %v539
    %v681 = vpack.c.b16 %v542, %v541
    %v682 = vpack.c.b16 %v544, %v543
    %v683 = vpack.c.b16 %v546, %v545
    %v684 = vpack.c.b16 %v548, %v547
    %v685 = vpack.c.b16 %v550, %v549
    %v686 = vpack.c.b16 %v552, %v551
    %v687 = vpack.c.b16 %v554, %v553
    %v688 = vpack.c.b16 %v556, %v555
    %v689 = vpack.c.b16 %v558, %v557
    %v690 = vpack.c.b16 %v560, %v559
    %v691 = vpack.c.b16 %v562, %v561
    %v692 = vpack.c.b16 %v564, %v563
    %v693 = vpack.c.b16 %v566, %v565
    %v694 = vpack.c.b16 %v568, %v567
    %v695 = vpack.c.b16 %v570, %v569
    %v696 = vpack.c.b16 %v572, %v571
    %v697 = vpack.c.b16 %v574, %v573
    %v698 = vpack.c.b16 %v576, %v575
    %v699 = vpack.c.b16 %v578, %v577
    %v700 = vpack.c.b16 %v580, %v579
    %v701 = vpack.c.b16 %v582, %v581
    %v702 = vpack.c.b16 %v584, %v583
    %v703 = vpack.c.b16 %v586, %v585
    %v704 = vpack.c.b16 %v588, %v587
    %v705 = vpack.c.b16 %v590, %v589
    %v706 = vpack.c.b16 %v592, %v591
    %v707 = vpack.c.b16 %v594, %v593
    %v708 = vpack.c.b16 %v596, %v595
    %v709 = vpack.c.b16 %v598, %v597
    %v710 = vpack.c.b16 %v600, %v599
    %v711 = vpack.c.b16 %v602, %v601
    %v712 = vpack.c.b16 %v604, %v603
    %v713 = vpack.c.b16 %v606, %v605
    %v714 = vpack.c.b16 %v608, %v607
    %v715 = vpack.c.b16 %v610, %v609
    %v716 = vpack.c.b16 %v612, %v611
    %v717 = vpack.c.b16 %v614, %v613
    %v718 = vpack.c.b16 %v616, %v615
    %v719 = vpack.c.b16 %v618, %v617
    %v720 = vpack.c.b16 %v620, %v619
    %v721 = vpack.c.b16 %v622, %v621
    %v722 = vpack.c.b16 %v624, %v623
    %v723 = vpack.c.b16 %v626, %v625
    %v724 = vpack.c.b16 %v628, %v627
    %v725 = vpack.c.b16 %v630, %v629
    %v726 = vpack.c.b16 %v632, %v631
    %v727 = vpack.c.b16 %v634, %v633
    %v728 = vpack.c.b16 %v636, %v635
    %v729 = vpack.c.b16 %v638, %v637
    %v730 = vpack.c.b16 %v640, %v639
    %v731 = vpack.c.b16 %v642, %v641
    %v732 = vpack.c.b16 %v644, %v643
    %v733 = vpack.c.b16 %v646, %v645
    %v734 = vpack.c.b16 %v648, %v647
    %v735 = vpack.c.b16 %v650, %v649
    %v736 = vpack.c.b16 %v652, %v651
    %v737 = vpack.c.b16 %v654, %v653
    %v738 = vpack.c.b16 %v656, %v655
    %v739 = vpack.c.b16 %v658, %v657
    %v740 = vpack.c.b16 %v660, %v659
    %v741 = vpack.c.b16 %v662, %v661
    %v742 = vpack.c.b16 %v664, %v663
    %v743 = vpack.c.b16 %v666, %v665
    %v744 = vpack.c.b16 %v668, %v667
    %v745 = vpack.c.b16 %v670, %v669
    %v746 = vpack.c.b16 %v672, %v671
    %v747 = vpack.c.b16 %v674, %v673
    %v748 = vpack.c.b16 %v676, %v675
    %821 = vmatprep.subr.bf16.mxu0 0
    %822 = vmatpush1.bf16.msra.mxu0 %v684
    %823 = vmatprep.subr.bf16.mxu0 0
    %824 = vmatpush1.bf16.msra.mxu0 %v683
    %825 = vmatprep.subr.bf16.mxu0 0
    %826 = vmatpush1.bf16.msra.mxu0 %v682
    %827 = vmatprep.subr.bf16.mxu0 0
    %828 = vmatpush1.bf16.msra.mxu0 %v681
    %829 = vmatprep.subr.bf16.mxu0 0
    %830 = vmatpush1.bf16.msra.mxu0 %v680
    %831 = vmatprep.subr.bf16.mxu0 0
    %832 = vmatpush1.bf16.msra.mxu0 %v679
    %833 = vmatprep.subr.bf16.mxu0 0
    %834 = vmatpush1.bf16.msra.mxu0 %v678
    %835 = vmatprep.subr.bf16.mxu0 0
    %836 = vmatpush1.bf16.msra.mxu0 %v677
    %837 = vmatprep.subr.bf16.mxu0 0
    %838 = vmatpush2.bf16.msra.mxu0 %v692
    %839 = vmatprep.subr.bf16.mxu0 0
    %840 = vmatpush2.bf16.msra.mxu0 %v691
    %841 = vmatprep.subr.bf16.mxu0 0
    %842 = vmatpush2.bf16.msra.mxu0 %v690
    %843 = vmatprep.subr.bf16.mxu0 0
    %844 = vmatpush2.bf16.msra.mxu0 %v689
    %845 = vmatprep.subr.bf16.mxu0 0
    %846 = vmatpush2.bf16.msra.mxu0 %v688
    %847 = vmatprep.subr.bf16.mxu0 0
    %848 = vmatpush2.bf16.msra.mxu0 %v687
    %849 = vmatprep.subr.bf16.mxu0 0
    %850 = vmatpush2.bf16.msra.mxu0 %v686
    %851 = vmatprep.subr.bf16.mxu0 0
    %852 = vmatpush2.bf16.msra.mxu0 %v685
    %853 = vmatprep.mubr.bf16.mxu0 %v167
    %854 = vmatmul.mubr.bf16.gmra.mxu0 %v166
    %v855 = vpop.f32.mrf.mxu0
    %v856 = vadd.f32 %v387, %v855
    %v857 = vpop.f32.mrf.mxu0
    %v858 = vpop.f32.mrf.mxu0
    %v859 = vadd.f32 %v387, %v858
    %v860 = vpop.f32.mrf.mxu0
    %861 = vmatprep.mubr.bf16.mxu0 %v176
    %862 = vmatmul.mubr.bf16.gmra.mxu0 %v175
    %v863 = vpop.f32.mrf.mxu0
    %v864 = vadd.f32 %v387, %v863
    %v865 = vpop.f32.mrf.mxu0
    %v866 = vpop.f32.mrf.mxu0
    %v867 = vadd.f32 %v387, %v866
    %v868 = vpop.f32.mrf.mxu0
    %869 = vmatprep.mubr.bf16.mxu0 %v185
    %870 = vmatmul.mubr.bf16.gmra.mxu0 %v184
    %v871 = vpop.f32.mrf.mxu0
    %v872 = vadd.f32 %v387, %v871
    %v873 = vpop.f32.mrf.mxu0
    %v874 = vpop.f32.mrf.mxu0
    %v875 = vadd.f32 %v387, %v874
    %v876 = vpop.f32.mrf.mxu0
    %877 = vmatprep.mubr.bf16.mxu0 %v194
    %878 = vmatmul.mubr.bf16.gmra.mxu0 %v193
    %v879 = vpop.f32.mrf.mxu0
    %v880 = vadd.f32 %v387, %v879
    %v881 = vpop.f32.mrf.mxu0
    %v882 = vpop.f32.mrf.mxu0
    %v883 = vadd.f32 %v387, %v882
    %v884 = vpop.f32.mrf.mxu0
    %885 = vmatprep.mubr.bf16.mxu0 %v203
    %886 = vmatmul.mubr.bf16.gmra.mxu0 %v202
    %v887 = vpop.f32.mrf.mxu0
    %v888 = vadd.f32 %v387, %v887
    %v889 = vpop.f32.mrf.mxu0
    %v890 = vpop.f32.mrf.mxu0
    %v891 = vadd.f32 %v387, %v890
    %v892 = vpop.f32.mrf.mxu0
    %893 = vmatprep.mubr.bf16.mxu0 %v212
    %894 = vmatmul.mubr.bf16.gmra.mxu0 %v211
    %v895 = vpop.f32.mrf.mxu0
    %v896 = vadd.f32 %v387, %v895
    %v897 = vpop.f32.mrf.mxu0
    %v898 = vpop.f32.mrf.mxu0
    %v899 = vadd.f32 %v387, %v898
    %v900 = vpop.f32.mrf.mxu0
    %901 = vmatprep.mubr.bf16.mxu0 %v221
    %902 = vmatmul.mubr.bf16.gmra.mxu0 %v220
    %v903 = vpop.f32.mrf.mxu0
    %v904 = vadd.f32 %v387, %v903
    %v905 = vpop.f32.mrf.mxu0
    %v906 = vpop.f32.mrf.mxu0
    %v907 = vadd.f32 %v387, %v906
    %v908 = vpop.f32.mrf.mxu0
    %909 = vmatprep.mubr.bf16.mxu0 %v230
    %910 = vmatmul.mubr.bf16.gmra.mxu0 %v229
    %v911 = vpop.f32.mrf.mxu0
    %v912 = vadd.f32 %v387, %v911
    %v913 = vpop.f32.mrf.mxu0
    %v914 = vpop.f32.mrf.mxu0
    %v915 = vadd.f32 %v387, %v914
    %v916 = vpop.f32.mrf.mxu0
    %917 = vdwg.mxu0
    %918 = vmatprep.subr.bf16.mxu0 0
    %919 = vmatpush1.bf16.msra.mxu0 %v700
    %920 = vmatprep.subr.bf16.mxu0 0
    %921 = vmatpush1.bf16.msra.mxu0 %v699
    %922 = vmatprep.subr.bf16.mxu0 0
    %923 = vmatpush1.bf16.msra.mxu0 %v698
    %924 = vmatprep.subr.bf16.mxu0 0
    %925 = vmatpush1.bf16.msra.mxu0 %v697
    %926 = vmatprep.subr.bf16.mxu0 0
    %927 = vmatpush1.bf16.msra.mxu0 %v696
    %928 = vmatprep.subr.bf16.mxu0 0
    %929 = vmatpush1.bf16.msra.mxu0 %v695
    %930 = vmatprep.subr.bf16.mxu0 0
    %931 = vmatpush1.bf16.msra.mxu0 %v694
    %932 = vmatprep.subr.bf16.mxu0 0
    %933 = vmatpush1.bf16.msra.mxu0 %v693
    %934 = vmatprep.subr.bf16.mxu0 0
    %935 = vmatpush2.bf16.msra.mxu0 %v708
    %936 = vmatprep.subr.bf16.mxu0 0
    %937 = vmatpush2.bf16.msra.mxu0 %v707
    %938 = vmatprep.subr.bf16.mxu0 0
    %939 = vmatpush2.bf16.msra.mxu0 %v706
    %940 = vmatprep.subr.bf16.mxu0 0
    %941 = vmatpush2.bf16.msra.mxu0 %v705
    %942 = vmatprep.subr.bf16.mxu0 0
    %943 = vmatpush2.bf16.msra.mxu0 %v704
    %944 = vmatprep.subr.bf16.mxu0 0
    %945 = vmatpush2.bf16.msra.mxu0 %v703
    %946 = vmatprep.subr.bf16.mxu0 0
    %947 = vmatpush2.bf16.msra.mxu0 %v702
    %948 = vmatprep.subr.bf16.mxu0 0
    %949 = vmatpush2.bf16.msra.mxu0 %v701
    %950 = vmatprep.mubr.bf16.mxu0 %v169
    %951 = vmatmul.mubr.bf16.gmra.mxu0 %v168
    %v952 = vpop.f32.mrf.mxu0
    %v953 = vadd.f32 %v856, %v952
    %v954 = vpop.f32.mrf.mxu0
    %v955 = vpop.f32.mrf.mxu0
    %v956 = vadd.f32 %v859, %v955
    %v957 = vpop.f32.mrf.mxu0
    %958 = vmatprep.mubr.bf16.mxu0 %v178
    %959 = vmatmul.mubr.bf16.gmra.mxu0 %v177
    %v960 = vpop.f32.mrf.mxu0
    %v961 = vadd.f32 %v864, %v960
    %v962 = vpop.f32.mrf.mxu0
    %v963 = vpop.f32.mrf.mxu0
    %v964 = vadd.f32 %v867, %v963
    %v965 = vpop.f32.mrf.mxu0
    %966 = vmatprep.mubr.bf16.mxu0 %v187
    %967 = vmatmul.mubr.bf16.gmra.mxu0 %v186
    %v968 = vpop.f32.mrf.mxu0
    %v969 = vadd.f32 %v872, %v968
    %v970 = vpop.f32.mrf.mxu0
    %v971 = vpop.f32.mrf.mxu0
    %v972 = vadd.f32 %v875, %v971
    %v973 = vpop.f32.mrf.mxu0
    %974 = vmatprep.mubr.bf16.mxu0 %v196
    %975 = vmatmul.mubr.bf16.gmra.mxu0 %v195
    %v976 = vpop.f32.mrf.mxu0
    %v977 = vadd.f32 %v880, %v976
    %v978 = vpop.f32.mrf.mxu0
    %v979 = vpop.f32.mrf.mxu0
    %v980 = vadd.f32 %v883, %v979
    %v981 = vpop.f32.mrf.mxu0
    %982 = vmatprep.mubr.bf16.mxu0 %v205
    %983 = vmatmul.mubr.bf16.gmra.mxu0 %v204
    %v984 = vpop.f32.mrf.mxu0
    %v985 = vadd.f32 %v888, %v984
    %v986 = vpop.f32.mrf.mxu0
    %v987 = vpop.f32.mrf.mxu0
    %v988 = vadd.f32 %v891, %v987
    %v989 = vpop.f32.mrf.mxu0
    %990 = vmatprep.mubr.bf16.mxu0 %v214
    %991 = vmatmul.mubr.bf16.gmra.mxu0 %v213
    %v992 = vpop.f32.mrf.mxu0
    %v993 = vadd.f32 %v896, %v992
    %v994 = vpop.f32.mrf.mxu0
    %v995 = vpop.f32.mrf.mxu0
    %v996 = vadd.f32 %v899, %v995
    %v997 = vpop.f32.mrf.mxu0
    %998 = vmatprep.mubr.bf16.mxu0 %v223
    %999 = vmatmul.mubr.bf16.gmra.mxu0 %v222
    %v1000 = vpop.f32.mrf.mxu0
    %v1001 = vadd.f32 %v904, %v1000
    %v1002 = vpop.f32.mrf.mxu0
    %v1003 = vpop.f32.mrf.mxu0
    %v1004 = vadd.f32 %v907, %v1003
    %v1005 = vpop.f32.mrf.mxu0
    %1006 = vmatprep.mubr.bf16.mxu0 %v232
    %1007 = vmatmul.mubr.bf16.gmra.mxu0 %v231
    %v1008 = vpop.f32.mrf.mxu0
    %v1009 = vadd.f32 %v912, %v1008
    %v1010 = vpop.f32.mrf.mxu0
    %v1011 = vpop.f32.mrf.mxu0
    %v1012 = vadd.f32 %v915, %v1011
    %v1013 = vpop.f32.mrf.mxu0
    %1014 = vdwg.mxu0
    %1015 = vmatprep.subr.bf16.mxu0 0
    %1016 = vmatpush1.bf16.msra.mxu0 %v716
    %1017 = vmatprep.subr.bf16.mxu0 0
    %1018 = vmatpush1.bf16.msra.mxu0 %v715
    %1019 = vmatprep.subr.bf16.mxu0 0
    %1020 = vmatpush1.bf16.msra.mxu0 %v714
    %1021 = vmatprep.subr.bf16.mxu0 0
    %1022 = vmatpush1.bf16.msra.mxu0 %v713
    %1023 = vmatprep.subr.bf16.mxu0 0
    %1024 = vmatpush1.bf16.msra.mxu0 %v712
    %1025 = vmatprep.subr.bf16.mxu0 0
    %1026 = vmatpush1.bf16.msra.mxu0 %v711
    %1027 = vmatprep.subr.bf16.mxu0 0
    %1028 = vmatpush1.bf16.msra.mxu0 %v710
    %1029 = vmatprep.subr.bf16.mxu0 0
    %1030 = vmatpush1.bf16.msra.mxu0 %v709
    %1031 = vmatprep.subr.bf16.mxu0 0
    %1032 = vmatpush2.bf16.msra.mxu0 %v724
    %1033 = vmatprep.subr.bf16.mxu0 0
    %1034 = vmatpush2.bf16.msra.mxu0 %v723
    %1035 = vmatprep.subr.bf16.mxu0 0
    %1036 = vmatpush2.bf16.msra.mxu0 %v722
    %1037 = vmatprep.subr.bf16.mxu0 0
    %1038 = vmatpush2.bf16.msra.mxu0 %v721
    %1039 = vmatprep.subr.bf16.mxu0 0
    %1040 = vmatpush2.bf16.msra.mxu0 %v720
    %1041 = vmatprep.subr.bf16.mxu0 0
    %1042 = vmatpush2.bf16.msra.mxu0 %v719
    %1043 = vmatprep.subr.bf16.mxu0 0
    %1044 = vmatpush2.bf16.msra.mxu0 %v718
    %1045 = vmatprep.subr.bf16.mxu0 0
    %1046 = vmatpush2.bf16.msra.mxu0 %v717
    %1047 = vmatprep.mubr.bf16.mxu0 %v171
    %1048 = vmatmul.mubr.bf16.gmra.mxu0 %v170
    %v1049 = vpop.f32.mrf.mxu0
    %v1050 = vadd.f32 %v953, %v1049
    %v1051 = vpop.f32.mrf.mxu0
    %v1052 = vpop.f32.mrf.mxu0
    %v1053 = vadd.f32 %v956, %v1052
    %v1054 = vpop.f32.mrf.mxu0
    %1055 = vmatprep.mubr.bf16.mxu0 %v180
    %1056 = vmatmul.mubr.bf16.gmra.mxu0 %v179
    %v1057 = vpop.f32.mrf.mxu0
    %v1058 = vadd.f32 %v961, %v1057
    %v1059 = vpop.f32.mrf.mxu0
    %v1060 = vpop.f32.mrf.mxu0
    %v1061 = vadd.f32 %v964, %v1060
    %v1062 = vpop.f32.mrf.mxu0
    %1063 = vmatprep.mubr.bf16.mxu0 %v189
    %1064 = vmatmul.mubr.bf16.gmra.mxu0 %v188
    %v1065 = vpop.f32.mrf.mxu0
    %v1066 = vadd.f32 %v969, %v1065
    %v1067 = vpop.f32.mrf.mxu0
    %v1068 = vpop.f32.mrf.mxu0
    %v1069 = vadd.f32 %v972, %v1068
    %v1070 = vpop.f32.mrf.mxu0
    %1071 = vmatprep.mubr.bf16.mxu0 %v198
    %1072 = vmatmul.mubr.bf16.gmra.mxu0 %v197
    %v1073 = vpop.f32.mrf.mxu0
    %v1074 = vadd.f32 %v977, %v1073
    %v1075 = vpop.f32.mrf.mxu0
    %v1076 = vpop.f32.mrf.mxu0
    %v1077 = vadd.f32 %v980, %v1076
    %v1078 = vpop.f32.mrf.mxu0
    %1079 = vmatprep.mubr.bf16.mxu0 %v207
    %1080 = vmatmul.mubr.bf16.gmra.mxu0 %v206
    %v1081 = vpop.f32.mrf.mxu0
    %v1082 = vadd.f32 %v985, %v1081
    %v1083 = vpop.f32.mrf.mxu0
    %v1084 = vpop.f32.mrf.mxu0
    %v1085 = vadd.f32 %v988, %v1084
    %v1086 = vpop.f32.mrf.mxu0
    %1087 = vmatprep.mubr.bf16.mxu0 %v216
    %1088 = vmatmul.mubr.bf16.gmra.mxu0 %v215
    %v1089 = vpop.f32.mrf.mxu0
    %v1090 = vadd.f32 %v993, %v1089
    %v1091 = vpop.f32.mrf.mxu0
    %v1092 = vpop.f32.mrf.mxu0
    %v1093 = vadd.f32 %v996, %v1092
    %v1094 = vpop.f32.mrf.mxu0
    %1095 = vmatprep.mubr.bf16.mxu0 %v225
    %1096 = vmatmul.mubr.bf16.gmra.mxu0 %v224
    %v1097 = vpop.f32.mrf.mxu0
    %v1098 = vadd.f32 %v1001, %v1097
    %v1099 = vpop.f32.mrf.mxu0
    %v1100 = vpop.f32.mrf.mxu0
    %v1101 = vadd.f32 %v1004, %v1100
    %v1102 = vpop.f32.mrf.mxu0
    %1103 = vmatprep.mubr.bf16.mxu0 %v234
    %1104 = vmatmul.mubr.bf16.gmra.mxu0 %v233
    %v1105 = vpop.f32.mrf.mxu0
    %v1106 = vadd.f32 %v1009, %v1105
    %v1107 = vpop.f32.mrf.mxu0
    %v1108 = vpop.f32.mrf.mxu0
    %v1109 = vadd.f32 %v1012, %v1108
    %v1110 = vpop.f32.mrf.mxu0
    %1111 = vdwg.mxu0
    %1112 = vmatprep.subr.bf16.mxu0 0
    %1113 = vmatpush1.bf16.msra.mxu0 %v732
    %1114 = vmatprep.subr.bf16.mxu0 0
    %1115 = vmatpush1.bf16.msra.mxu0 %v731
    %1116 = vmatprep.subr.bf16.mxu0 0
    %1117 = vmatpush1.bf16.msra.mxu0 %v730
    %1118 = vmatprep.subr.bf16.mxu0 0
    %1119 = vmatpush1.bf16.msra.mxu0 %v729
    %1120 = vmatprep.subr.bf16.mxu0 0
    %1121 = vmatpush1.bf16.msra.mxu0 %v728
    %1122 = vmatprep.subr.bf16.mxu0 0
    %1123 = vmatpush1.bf16.msra.mxu0 %v727
    %1124 = vmatprep.subr.bf16.mxu0 0
    %1125 = vmatpush1.bf16.msra.mxu0 %v726
    %1126 = vmatprep.subr.bf16.mxu0 0
    %1127 = vmatpush1.bf16.msra.mxu0 %v725
    %1128 = vmatprep.subr.bf16.mxu0 0
    %1129 = vmatpush2.bf16.msra.mxu0 %v740
    %1130 = vmatprep.subr.bf16.mxu0 0
    %1131 = vmatpush2.bf16.msra.mxu0 %v739
    %1132 = vmatprep.subr.bf16.mxu0 0
    %1133 = vmatpush2.bf16.msra.mxu0 %v738
    %1134 = vmatprep.subr.bf16.mxu0 0
    %1135 = vmatpush2.bf16.msra.mxu0 %v737
    %1136 = vmatprep.subr.bf16.mxu0 0
    %1137 = vmatpush2.bf16.msra.mxu0 %v736
    %1138 = vmatprep.subr.bf16.mxu0 0
    %1139 = vmatpush2.bf16.msra.mxu0 %v735
    %1140 = vmatprep.subr.bf16.mxu0 0
    %1141 = vmatpush2.bf16.msra.mxu0 %v734
    %1142 = vmatprep.subr.bf16.mxu0 0
    %1143 = vmatpush2.bf16.msra.mxu0 %v733
    %1144 = vmatprep.mubr.bf16.mxu0 %v173
    %1145 = vmatmul.mubr.bf16.gmra.mxu0 %v172
    %v1146 = vpop.f32.mrf.mxu0
    %v1147 = vadd.f32 %v1050, %v1146
    %v1148 = vpop.f32.mrf.mxu0
    %v1149 = vpop.f32.mrf.mxu0
    %v1150 = vadd.f32 %v1053, %v1149
    %v1151 = vpop.f32.mrf.mxu0
    %1152 = vmatprep.mubr.bf16.mxu0 %v182
    %1153 = vmatmul.mubr.bf16.gmra.mxu0 %v181
    %v1154 = vpop.f32.mrf.mxu0
    %v1155 = vadd.f32 %v1058, %v1154
    %v1156 = vpop.f32.mrf.mxu0
    %v1157 = vpop.f32.mrf.mxu0
    %v1158 = vadd.f32 %v1061, %v1157
    %v1159 = vpop.f32.mrf.mxu0
    %1160 = vmatprep.mubr.bf16.mxu0 %v191
    %1161 = vmatmul.mubr.bf16.gmra.mxu0 %v190
    %v1162 = vpop.f32.mrf.mxu0
    %v1163 = vadd.f32 %v1066, %v1162
    %v1164 = vpop.f32.mrf.mxu0
    %v1165 = vpop.f32.mrf.mxu0
    %v1166 = vadd.f32 %v1069, %v1165
    %v1167 = vpop.f32.mrf.mxu0
    %1168 = vmatprep.mubr.bf16.mxu0 %v200
    %1169 = vmatmul.mubr.bf16.gmra.mxu0 %v199
    %v1170 = vpop.f32.mrf.mxu0
    %v1171 = vadd.f32 %v1074, %v1170
    %v1172 = vpop.f32.mrf.mxu0
    %v1173 = vpop.f32.mrf.mxu0
    %v1174 = vadd.f32 %v1077, %v1173
    %v1175 = vpop.f32.mrf.mxu0
    %1176 = vmatprep.mubr.bf16.mxu0 %v209
    %1177 = vmatmul.mubr.bf16.gmra.mxu0 %v208
    %v1178 = vpop.f32.mrf.mxu0
    %v1179 = vadd.f32 %v1082, %v1178
    %v1180 = vpop.f32.mrf.mxu0
    %v1181 = vpop.f32.mrf.mxu0
    %v1182 = vadd.f32 %v1085, %v1181
    %v1183 = vpop.f32.mrf.mxu0
    %1184 = vmatprep.mubr.bf16.mxu0 %v218
    %1185 = vmatmul.mubr.bf16.gmra.mxu0 %v217
    %v1186 = vpop.f32.mrf.mxu0
    %v1187 = vadd.f32 %v1090, %v1186
    %v1188 = vpop.f32.mrf.mxu0
    %v1189 = vpop.f32.mrf.mxu0
    %v1190 = vadd.f32 %v1093, %v1189
    %v1191 = vpop.f32.mrf.mxu0
    %1192 = vmatprep.mubr.bf16.mxu0 %v227
    %1193 = vmatmul.mubr.bf16.gmra.mxu0 %v226
    %v1194 = vpop.f32.mrf.mxu0
    %v1195 = vadd.f32 %v1098, %v1194
    %v1196 = vpop.f32.mrf.mxu0
    %v1197 = vpop.f32.mrf.mxu0
    %v1198 = vadd.f32 %v1101, %v1197
    %v1199 = vpop.f32.mrf.mxu0
    %1200 = vmatprep.mubr.bf16.mxu0 %v236
    %1201 = vmatmul.mubr.bf16.gmra.mxu0 %v235
    %v1202 = vpop.f32.mrf.mxu0
    %v1203 = vadd.f32 %v1106, %v1202
    %v1204 = vpop.f32.mrf.mxu0
    %v1205 = vpop.f32.mrf.mxu0
    %v1206 = vadd.f32 %v1109, %v1205
    %v1207 = vpop.f32.mrf.mxu0
    %1208 = vdwg.mxu0
    %1209 = vmatprep.subr.bf16.mxu0 0
    %1210 = vmatpush1.bf16.msra.mxu0 %v748
    %1211 = vmatprep.subr.bf16.mxu0 0
    %1212 = vmatpush1.bf16.msra.mxu0 %v747
    %1213 = vmatprep.subr.bf16.mxu0 0
    %1214 = vmatpush1.bf16.msra.mxu0 %v746
    %1215 = vmatprep.subr.bf16.mxu0 0
    %1216 = vmatpush1.bf16.msra.mxu0 %v745
    %1217 = vmatprep.subr.bf16.mxu0 0
    %1218 = vmatpush1.bf16.msra.mxu0 %v744
    %1219 = vmatprep.subr.bf16.mxu0 0
    %1220 = vmatpush1.bf16.msra.mxu0 %v743
    %1221 = vmatprep.subr.bf16.mxu0 0
    %1222 = vmatpush1.bf16.msra.mxu0 %v742
    %1223 = vmatprep.subr.bf16.mxu0 0
    %1224 = vmatpush1.bf16.msra.mxu0 %v741
    %1225 = vmatprep.subr.bf16.mxu0 0
    %1226 = vmatpush2.bf16.msra.mxu0 0
    %1227 = vmatprep.subr.bf16.mxu0 0
    %1228 = vmatpush2.bf16.msra.mxu0 0
    %1229 = vmatprep.subr.bf16.mxu0 0
    %1230 = vmatpush2.bf16.msra.mxu0 0
    %1231 = vmatprep.subr.bf16.mxu0 0
    %1232 = vmatpush2.bf16.msra.mxu0 0
    %1233 = vmatprep.subr.bf16.mxu0 0
    %1234 = vmatpush2.bf16.msra.mxu0 0
    %1235 = vmatprep.subr.bf16.mxu0 0
    %1236 = vmatpush2.bf16.msra.mxu0 0
    %1237 = vmatprep.subr.bf16.mxu0 0
    %1238 = vmatpush2.bf16.msra.mxu0 0
    %1239 = vmatprep.subr.bf16.mxu0 0
    %1240 = vmatpush2.bf16.msra.mxu0 0
    %1241 = vmatprep.mubr.bf16.mxu0 0
    %1242 = vmatmul.mubr.bf16.gmra.mxu0 %v174
    %v1243 = vpop.f32.mrf.mxu0
    %v1244 = vadd.f32 %v1147, %v1243
    %v1245 = vpop.f32.mrf.mxu0
    %v1246 = vpop.f32.mrf.mxu0
    %v1247 = vadd.f32 %v1150, %v1246
    %v1248 = vpop.f32.mrf.mxu0
    %1249 = vmatprep.mubr.bf16.mxu0 0
    %1250 = vmatmul.mubr.bf16.gmra.mxu0 %v183
    %v1251 = vpop.f32.mrf.mxu0
    %v1252 = vadd.f32 %v1155, %v1251
    %v1253 = vpop.f32.mrf.mxu0
    %v1254 = vpop.f32.mrf.mxu0
    %v1255 = vadd.f32 %v1158, %v1254
    %v1256 = vpop.f32.mrf.mxu0
    %1257 = vmatprep.mubr.bf16.mxu0 0
    %1258 = vmatmul.mubr.bf16.gmra.mxu0 %v192
    %v1259 = vpop.f32.mrf.mxu0
    %v1260 = vadd.f32 %v1163, %v1259
    %v1261 = vpop.f32.mrf.mxu0
    %v1262 = vpop.f32.mrf.mxu0
    %v1263 = vadd.f32 %v1166, %v1262
    %v1264 = vpop.f32.mrf.mxu0
    %1265 = vmatprep.mubr.bf16.mxu0 0
    %1266 = vmatmul.mubr.bf16.gmra.mxu0 %v201
    %v1267 = vpop.f32.mrf.mxu0
    %v1268 = vadd.f32 %v1171, %v1267
    %v1269 = vpop.f32.mrf.mxu0
    %v1270 = vpop.f32.mrf.mxu0
    %v1271 = vadd.f32 %v1174, %v1270
    %v1272 = vpop.f32.mrf.mxu0
    %1273 = vmatprep.mubr.bf16.mxu0 0
    %1274 = vmatmul.mubr.bf16.gmra.mxu0 %v210
    %v1275 = vpop.f32.mrf.mxu0
    %v1276 = vadd.f32 %v1179, %v1275
    %v1277 = vpop.f32.mrf.mxu0
    %v1278 = vpop.f32.mrf.mxu0
    %v1279 = vadd.f32 %v1182, %v1278
    %v1280 = vpop.f32.mrf.mxu0
    %1281 = vmatprep.mubr.bf16.mxu0 0
    %1282 = vmatmul.mubr.bf16.gmra.mxu0 %v219
    %v1283 = vpop.f32.mrf.mxu0
    %v1284 = vadd.f32 %v1187, %v1283
    %v1285 = vpop.f32.mrf.mxu0
    %v1286 = vpop.f32.mrf.mxu0
    %v1287 = vadd.f32 %v1190, %v1286
    %v1288 = vpop.f32.mrf.mxu0
    %1289 = vmatprep.mubr.bf16.mxu0 0
    %1290 = vmatmul.mubr.bf16.gmra.mxu0 %v228
    %v1291 = vpop.f32.mrf.mxu0
    %v1292 = vadd.f32 %v1195, %v1291
    %v1293 = vpop.f32.mrf.mxu0
    %v1294 = vpop.f32.mrf.mxu0
    %v1295 = vadd.f32 %v1198, %v1294
    %v1296 = vpop.f32.mrf.mxu0
    %1297 = vmatprep.mubr.bf16.mxu0 0
    %1298 = vmatmul.mubr.bf16.gmra.mxu0 %v237
    %v1299 = vpop.f32.mrf.mxu0
    %v1300 = vadd.f32 %v1203, %v1299
    %v1301 = vpop.f32.mrf.mxu0
    %v1302 = vpop.f32.mrf.mxu0
    %v1303 = vadd.f32 %v1206, %v1302
    %v1304 = vpop.f32.mrf.mxu0
    %1305 = vdwg.mxu0
    %v1306 = vmax.f32 %v1244, 0.0
    %v1307 = vmax.f32 %v1247, 0.0
    %v1308 = vmax.f32 %v1252, 0.0
    %v1309 = vmax.f32 %v1255, 0.0
    %v1310 = vmax.f32 %v1260, 0.0
    %v1311 = vmax.f32 %v1263, 0.0
    %v1312 = vmax.f32 %v1268, 0.0
    %v1313 = vmax.f32 %v1271, 0.0
    %v1314 = vmax.f32 %v1276, 0.0
    %v1315 = vmax.f32 %v1279, 0.0
    %v1316 = vmax.f32 %v1284, 0.0
    %v1317 = vmax.f32 %v1287, 0.0
    %v1318 = vmax.f32 %v1292, 0.0
    %v1319 = vmax.f32 %v1295, 0.0
    %v1320 = vmax.f32 %v1300, 0.0
    %v1321 = vmax.f32 %v1303, 0.0
    %v1322 = vpack.c.bf16 %v1307, %v1306
    %v1323 = vpack.c.bf16 %v1309, %v1308
    %v1324 = vpack.c.bf16 %v1311, %v1310
    %v1325 = vpack.c.bf16 %v1313, %v1312
    %v1326 = vpack.c.bf16 %v1315, %v1314
    %v1327 = vpack.c.bf16 %v1317, %v1316
    %v1328 = vpack.c.bf16 %v1319, %v1318
    %v1329 = vpack.c.bf16 %v1321, %v1320
    %v1330 = vld [vmem:[%s3] sm:$0xff]
    %v1331 = vld [vmem:[%s3 + $0x8] sm:$0xff]
    %v1332 = vld [vmem:[%s3 + $0x10] sm:$0xff]
    %v1333 = vld [vmem:[%s3 + $0x18] sm:$0xff]
    %v1334 = vld [vmem:[%s3 + $0x20] sm:$0xff]
    %v1335 = vld [vmem:[%s3 + $0x28] sm:$0xff]
    %v1336 = vld [vmem:[%s3 + $0x30] sm:$0xff]
    %v1337 = vld [vmem:[%s3 + $0x38] sm:$0xff]
    %v1338 = vld [vmem:[%s3 + $0x40] sm:$0xff]
    %v1339 = vld [vmem:[%s3 + $0x48] sm:$0xff]
    %v1340 = vld [vmem:[%s3 + $0x50] sm:$0xff]
    %v1341 = vld [vmem:[%s3 + $0x58] sm:$0xff]
    %v1342 = vld [vmem:[%s3 + $0x60] sm:$0xff]
    %v1343 = vld [vmem:[%s3 + $0x68] sm:$0xff]
    %v1344 = vld [vmem:[%s3 + $0x70] sm:$0xff]
    %v1345 = vld [vmem:[%s3 + $0x78] sm:$0xff]
    %v1346 = vld [vmem:[%s4] sm:$0x3]
    %v1348 = vlaneseq
    %v1349 = vshrl.u32 %v1348, 7
    %v1350 = vsub.s32 0, %v1349
    %v1351 = vrot.slane %v1346, %v1350
    %v1352 = vlaneseq
    %v1353 = vshrl.u32 %v1352, 7
    %v1354 = vsub.s32 1, %v1353
    %v1355 = vrot.slane %v1346, %v1354
    %v1374 = vunpack.c.l.b16 %v1330
    %v1375 = vunpack.c.h.b16 %v1330
    %v1376 = vunpack.c.l.b16 %v1331
    %v1377 = vunpack.c.h.b16 %v1331
    %v1378 = vunpack.c.l.b16 %v1332
    %v1379 = vunpack.c.h.b16 %v1332
    %v1380 = vunpack.c.l.b16 %v1333
    %v1381 = vunpack.c.h.b16 %v1333
    %v1382 = vunpack.c.l.b16 %v1334
    %v1383 = vunpack.c.h.b16 %v1334
    %v1384 = vunpack.c.l.b16 %v1335
    %v1385 = vunpack.c.h.b16 %v1335
    %v1386 = vunpack.c.l.b16 %v1336
    %v1387 = vunpack.c.h.b16 %v1336
    %v1388 = vunpack.c.l.b16 %v1337
    %v1389 = vunpack.c.h.b16 %v1337
    %v1390 = vunpack.c.l.b16 %v1338
    %v1391 = vunpack.c.h.b16 %v1338
    %v1392 = vunpack.c.l.b16 %v1339
    %v1393 = vunpack.c.h.b16 %v1339
    %v1394 = vunpack.c.l.b16 %v1340
    %v1395 = vunpack.c.h.b16 %v1340
    %v1396 = vunpack.c.l.b16 %v1341
    %v1397 = vunpack.c.h.b16 %v1341
    %v1398 = vunpack.c.l.b16 %v1342
    %v1399 = vunpack.c.h.b16 %v1342
    %v1400 = vunpack.c.l.b16 %v1343
    %v1401 = vunpack.c.h.b16 %v1343
    %v1402 = vunpack.c.l.b16 %v1344
    %v1403 = vunpack.c.h.b16 %v1344
    %v1404 = vunpack.c.l.b16 %v1345
    %v1405 = vunpack.c.h.b16 %v1345
    %v1406 = vpack.c.b16 %v1376, %v1374
    %v1407 = vpack.c.b16 %v1377, %v1375
    %v1408 = vpack.c.b16 %v1380, %v1378
    %v1409 = vpack.c.b16 %v1381, %v1379
    %v1410 = vpack.c.b16 %v1384, %v1382
    %v1411 = vpack.c.b16 %v1385, %v1383
    %v1412 = vpack.c.b16 %v1388, %v1386
    %v1413 = vpack.c.b16 %v1389, %v1387
    %v1414 = vpack.c.b16 %v1392, %v1390
    %v1415 = vpack.c.b16 %v1393, %v1391
    %v1416 = vpack.c.b16 %v1396, %v1394
    %v1417 = vpack.c.b16 %v1397, %v1395
    %v1418 = vpack.c.b16 %v1400, %v1398
    %v1419 = vpack.c.b16 %v1401, %v1399
    %v1420 = vpack.c.b16 %v1404, %v1402
    %v1421 = vpack.c.b16 %v1405, %v1403
    %1438 = vmatprep.subr.bf16.mxu0 %v1421
    %1439 = vmatpush1.bf16.msra.mxu0 %v1420
    %1440 = vmatprep.subr.bf16.mxu0 %v1419
    %1441 = vmatpush1.bf16.msra.mxu0 %v1418
    %1442 = vmatprep.subr.bf16.mxu0 %v1417
    %1443 = vmatpush1.bf16.msra.mxu0 %v1416
    %1444 = vmatprep.subr.bf16.mxu0 %v1415
    %1445 = vmatpush1.bf16.msra.mxu0 %v1414
    %1446 = vmatprep.subr.bf16.mxu0 %v1413
    %1447 = vmatpush1.bf16.msra.mxu0 %v1412
    %1448 = vmatprep.subr.bf16.mxu0 %v1411
    %1449 = vmatpush1.bf16.msra.mxu0 %v1410
    %1450 = vmatprep.subr.bf16.mxu0 %v1409
    %1451 = vmatpush1.bf16.msra.mxu0 %v1408
    %1452 = vmatprep.subr.bf16.mxu0 %v1407
    %1453 = vmatpush1.bf16.msra.mxu0 %v1406
    %1454 = vmatprep.subr.bf16.mxu0 0
    %1455 = vmatpush2.bf16.msra.mxu0 0
    %1456 = vmatprep.subr.bf16.mxu0 0
    %1457 = vmatpush2.bf16.msra.mxu0 0
    %1458 = vmatprep.subr.bf16.mxu0 0
    %1459 = vmatpush2.bf16.msra.mxu0 0
    %1460 = vmatprep.subr.bf16.mxu0 0
    %1461 = vmatpush2.bf16.msra.mxu0 0
    %1462 = vmatprep.subr.bf16.mxu0 0
    %1463 = vmatpush2.bf16.msra.mxu0 0
    %1464 = vmatprep.subr.bf16.mxu0 0
    %1465 = vmatpush2.bf16.msra.mxu0 0
    %1466 = vmatprep.subr.bf16.mxu0 0
    %1467 = vmatpush2.bf16.msra.mxu0 0
    %1468 = vmatprep.subr.bf16.mxu0 0
    %1469 = vmatpush2.bf16.msra.mxu0 0
    %1470 = vmatprep.mubr.bf16.mxu0 0
    %1471 = vmatmul.mubr.bf16.gmra.mxu0 %v1322
    %v1472 = vpop.f32.mrf.mxu0
    %v1473 = vadd.f32 %v1351, %v1472
    %v1474 = vpop.f32.mrf.mxu0
    %v1475 = vadd.f32 %v1355, %v1474
    %v1476 = vpop.f32.mrf.mxu0
    %v1477 = vadd.f32 %v1351, %v1476
    %v1478 = vpop.f32.mrf.mxu0
    %v1479 = vadd.f32 %v1355, %v1478
    %1480 = vmatprep.mubr.bf16.mxu0 0
    %1481 = vmatmul.mubr.bf16.gmra.mxu0 %v1323
    %v1482 = vpop.f32.mrf.mxu0
    %v1483 = vadd.f32 %v1351, %v1482
    %v1484 = vpop.f32.mrf.mxu0
    %v1485 = vadd.f32 %v1355, %v1484
    %v1486 = vpop.f32.mrf.mxu0
    %v1487 = vadd.f32 %v1351, %v1486
    %v1488 = vpop.f32.mrf.mxu0
    %v1489 = vadd.f32 %v1355, %v1488
    %1490 = vmatprep.mubr.bf16.mxu0 0
    %1491 = vmatmul.mubr.bf16.gmra.mxu0 %v1324
    %v1492 = vpop.f32.mrf.mxu0
    %v1493 = vadd.f32 %v1351, %v1492
    %v1494 = vpop.f32.mrf.mxu0
    %v1495 = vadd.f32 %v1355, %v1494
    %v1496 = vpop.f32.mrf.mxu0
    %v1497 = vadd.f32 %v1351, %v1496
    %v1498 = vpop.f32.mrf.mxu0
    %v1499 = vadd.f32 %v1355, %v1498
    %1500 = vmatprep.mubr.bf16.mxu0 0
    %1501 = vmatmul.mubr.bf16.gmra.mxu0 %v1325
    %v1502 = vpop.f32.mrf.mxu0
    %v1503 = vadd.f32 %v1351, %v1502
    %v1504 = vpop.f32.mrf.mxu0
    %v1505 = vadd.f32 %v1355, %v1504
    %v1506 = vpop.f32.mrf.mxu0
    %v1507 = vadd.f32 %v1351, %v1506
    %v1508 = vpop.f32.mrf.mxu0
    %v1509 = vadd.f32 %v1355, %v1508
    %1510 = vmatprep.mubr.bf16.mxu0 0
    %1511 = vmatmul.mubr.bf16.gmra.mxu0 %v1326
    %v1512 = vpop.f32.mrf.mxu0
    %v1513 = vadd.f32 %v1351, %v1512
    %v1514 = vpop.f32.mrf.mxu0
    %v1515 = vadd.f32 %v1355, %v1514
    %v1516 = vpop.f32.mrf.mxu0
    %v1517 = vadd.f32 %v1351, %v1516
    %v1518 = vpop.f32.mrf.mxu0
    %v1519 = vadd.f32 %v1355, %v1518
    %1520 = vmatprep.mubr.bf16.mxu0 0
    %1521 = vmatmul.mubr.bf16.gmra.mxu0 %v1327
    %v1522 = vpop.f32.mrf.mxu0
    %v1523 = vadd.f32 %v1351, %v1522
    %v1524 = vpop.f32.mrf.mxu0
    %v1525 = vadd.f32 %v1355, %v1524
    %v1526 = vpop.f32.mrf.mxu0
    %v1527 = vadd.f32 %v1351, %v1526
    %v1528 = vpop.f32.mrf.mxu0
    %v1529 = vadd.f32 %v1355, %v1528
    %1530 = vmatprep.mubr.bf16.mxu0 0
    %1531 = vmatmul.mubr.bf16.gmra.mxu0 %v1328
    %v1532 = vpop.f32.mrf.mxu0
    %v1533 = vadd.f32 %v1351, %v1532
    %v1534 = vpop.f32.mrf.mxu0
    %v1535 = vadd.f32 %v1355, %v1534
    %v1536 = vpop.f32.mrf.mxu0
    %v1537 = vadd.f32 %v1351, %v1536
    %v1538 = vpop.f32.mrf.mxu0
    %v1539 = vadd.f32 %v1355, %v1538
    %1540 = vmatprep.mubr.bf16.mxu0 0
    %1541 = vmatmul.mubr.bf16.gmra.mxu0 %v1329
    %v1542 = vpop.f32.mrf.mxu0
    %v1543 = vadd.f32 %v1351, %v1542
    %v1544 = vpop.f32.mrf.mxu0
    %v1545 = vadd.f32 %v1355, %v1544
    %v1546 = vpop.f32.mrf.mxu0
    %v1547 = vadd.f32 %v1351, %v1546
    %v1548 = vpop.f32.mrf.mxu0
    %v1549 = vadd.f32 %v1355, %v1548
    %1550 = vdwg.mxu0
    %v1551 = vmax.f32 %v1473, %v1475
    %1552 = vmax.xlane.f32.xlu0 %v1551
    %v1553 = vpop.xlane.xlu0 %1552
    %v1554 = vmax.f32 %v1477, %v1479
    %1555 = vmax.xlane.f32.xlu0 %v1554
    %v1556 = vpop.xlane.xlu0 %1555
    %v1557 = vmax.f32 %v1483, %v1485
    %1558 = vmax.xlane.f32.xlu0 %v1557
    %v1559 = vpop.xlane.xlu0 %1558
    %v1560 = vmax.f32 %v1487, %v1489
    %1561 = vmax.xlane.f32.xlu0 %v1560
    %v1562 = vpop.xlane.xlu0 %1561
    %v1563 = vmax.f32 %v1493, %v1495
    %1564 = vmax.xlane.f32.xlu0 %v1563
    %v1565 = vpop.xlane.xlu0 %1564
    %v1566 = vmax.f32 %v1497, %v1499
    %1567 = vmax.xlane.f32.xlu0 %v1566
    %v1568 = vpop.xlane.xlu0 %1567
    %v1569 = vmax.f32 %v1503, %v1505
    %1570 = vmax.xlane.f32.xlu0 %v1569
    %v1571 = vpop.xlane.xlu0 %1570
    %v1572 = vmax.f32 %v1507, %v1509
    %1573 = vmax.xlane.f32.xlu0 %v1572
    %v1574 = vpop.xlane.xlu0 %1573
    %v1575 = vmax.f32 %v1513, %v1515
    %1576 = vmax.xlane.f32.xlu0 %v1575
    %v1577 = vpop.xlane.xlu0 %1576
    %v1578 = vmax.f32 %v1517, %v1519
    %1579 = vmax.xlane.f32.xlu0 %v1578
    %v1580 = vpop.xlane.xlu0 %1579
    %v1581 = vmax.f32 %v1523, %v1525
    %1582 = vmax.xlane.f32.xlu0 %v1581
    %v1583 = vpop.xlane.xlu0 %1582
    %v1584 = vmax.f32 %v1527, %v1529
    %1585 = vmax.xlane.f32.xlu0 %v1584
    %v1586 = vpop.xlane.xlu0 %1585
    %v1587 = vmax.f32 %v1533, %v1535
    %1588 = vmax.xlane.f32.xlu0 %v1587
    %v1589 = vpop.xlane.xlu0 %1588
    %v1590 = vmax.f32 %v1537, %v1539
    %1591 = vmax.xlane.f32.xlu0 %v1590
    %v1592 = vpop.xlane.xlu0 %1591
    %v1593 = vmax.f32 %v1543, %v1545
    %1594 = vmax.xlane.f32.xlu0 %v1593
    %v1595 = vpop.xlane.xlu0 %1594
    %v1596 = vmax.f32 %v1547, %v1549
    %1597 = vmax.xlane.f32.xlu0 %v1596
    %v1598 = vpop.xlane.xlu0 %1597
    %v1599 = vsub.f32 %v1473, %v1553
    %v1600 = vsub.f32 %v1475, %v1553
    %v1601 = vsub.f32 %v1477, %v1556
    %v1602 = vsub.f32 %v1479, %v1556
    %v1603 = vsub.f32 %v1483, %v1559
    %v1604 = vsub.f32 %v1485, %v1559
    %v1605 = vsub.f32 %v1487, %v1562
    %v1606 = vsub.f32 %v1489, %v1562
    %v1607 = vsub.f32 %v1493, %v1565
    %v1608 = vsub.f32 %v1495, %v1565
    %v1609 = vsub.f32 %v1497, %v1568
    %v1610 = vsub.f32 %v1499, %v1568
    %v1611 = vsub.f32 %v1503, %v1571
    %v1612 = vsub.f32 %v1505, %v1571
    %v1613 = vsub.f32 %v1507, %v1574
    %v1614 = vsub.f32 %v1509, %v1574
    %v1615 = vsub.f32 %v1513, %v1577
    %v1616 = vsub.f32 %v1515, %v1577
    %v1617 = vsub.f32 %v1517, %v1580
    %v1618 = vsub.f32 %v1519, %v1580
    %v1619 = vsub.f32 %v1523, %v1583
    %v1620 = vsub.f32 %v1525, %v1583
    %v1621 = vsub.f32 %v1527, %v1586
    %v1622 = vsub.f32 %v1529, %v1586
    %v1623 = vsub.f32 %v1533, %v1589
    %v1624 = vsub.f32 %v1535, %v1589
    %v1625 = vsub.f32 %v1537, %v1592
    %v1626 = vsub.f32 %v1539, %v1592
    %v1627 = vsub.f32 %v1543, %v1595
    %v1628 = vsub.f32 %v1545, %v1595
    %v1629 = vsub.f32 %v1547, %v1598
    %v1630 = vsub.f32 %v1549, %v1598
    %v1631 = vmul.f32 %v1599, 1.442695
    %v1632 = vpow.pop %v1631
    %v1633 = vmul.f32 %v1600, 1.442695
    %v1634 = vpow.pop %v1633
    %v1635 = vmul.f32 %v1601, 1.442695
    %v1636 = vpow.pop %v1635
    %v1637 = vmul.f32 %v1602, 1.442695
    %v1638 = vpow.pop %v1637
    %v1639 = vmul.f32 %v1603, 1.442695
    %v1640 = vpow.pop %v1639
    %v1641 = vmul.f32 %v1604, 1.442695
    %v1642 = vpow.pop %v1641
    %v1643 = vmul.f32 %v1605, 1.442695
    %v1644 = vpow.pop %v1643
    %v1645 = vmul.f32 %v1606, 1.442695
    %v1646 = vpow.pop %v1645
    %v1647 = vmul.f32 %v1607, 1.442695
    %v1648 = vpow.pop %v1647
    %v1649 = vmul.f32 %v1608, 1.442695
    %v1650 = vpow.pop %v1649
    %v1651 = vmul.f32 %v1609, 1.442695
    %v1652 = vpow.pop %v1651
    %v1653 = vmul.f32 %v1610, 1.442695
    %v1654 = vpow.pop %v1653
    %v1655 = vmul.f32 %v1611, 1.442695
    %v1656 = vpow.pop %v1655
    %v1657 = vmul.f32 %v1612, 1.442695
    %v1658 = vpow.pop %v1657
    %v1659 = vmul.f32 %v1613, 1.442695
    %v1660 = vpow.pop %v1659
    %v1661 = vmul.f32 %v1614, 1.442695
    %v1662 = vpow.pop %v1661
    %v1663 = vmul.f32 %v1615, 1.442695
    %v1664 = vpow.pop %v1663
    %v1665 = vmul.f32 %v1616, 1.442695
    %v1666 = vpow.pop %v1665
    %v1667 = vmul.f32 %v1617, 1.442695
    %v1668 = vpow.pop %v1667
    %v1669 = vmul.f32 %v1618, 1.442695
    %v1670 = vpow.pop %v1669
    %v1671 = vmul.f32 %v1619, 1.442695
    %v1672 = vpow.pop %v1671
    %v1673 = vmul.f32 %v1620, 1.442695
    %v1674 = vpow.pop %v1673
    %v1675 = vmul.f32 %v1621, 1.442695
    %v1676 = vpow.pop %v1675
    %v1677 = vmul.f32 %v1622, 1.442695
    %v1678 = vpow.pop %v1677
    %v1679 = vmul.f32 %v1623, 1.442695
    %v1680 = vpow.pop %v1679
    %v1681 = vmul.f32 %v1624, 1.442695
    %v1682 = vpow.pop %v1681
    %v1683 = vmul.f32 %v1625, 1.442695
    %v1684 = vpow.pop %v1683
    %v1685 = vmul.f32 %v1626, 1.442695
    %v1686 = vpow.pop %v1685
    %v1687 = vmul.f32 %v1627, 1.442695
    %v1688 = vpow.pop %v1687
    %v1689 = vmul.f32 %v1628, 1.442695
    %v1690 = vpow.pop %v1689
    %v1691 = vmul.f32 %v1629, 1.442695
    %v1692 = vpow.pop %v1691
    %v1693 = vmul.f32 %v1630, 1.442695
    %v1694 = vpow.pop %v1693
    %v1695 = vadd.f32 %v1632, %v1634
    %1696 = vadd.xlane.f32.xlu0 %v1695
    %v1697 = vpop.xlane.xlu0 %1696
    %v1698 = vadd.f32 %v1636, %v1638
    %1699 = vadd.xlane.f32.xlu0 %v1698
    %v1700 = vpop.xlane.xlu0 %1699
    %v1701 = vadd.f32 %v1640, %v1642
    %1702 = vadd.xlane.f32.xlu0 %v1701
    %v1703 = vpop.xlane.xlu0 %1702
    %v1704 = vadd.f32 %v1644, %v1646
    %1705 = vadd.xlane.f32.xlu0 %v1704
    %v1706 = vpop.xlane.xlu0 %1705
    %v1707 = vadd.f32 %v1648, %v1650
    %1708 = vadd.xlane.f32.xlu0 %v1707
    %v1709 = vpop.xlane.xlu0 %1708
    %v1710 = vadd.f32 %v1652, %v1654
    %1711 = vadd.xlane.f32.xlu0 %v1710
    %v1712 = vpop.xlane.xlu0 %1711
    %v1713 = vadd.f32 %v1656, %v1658
    %1714 = vadd.xlane.f32.xlu0 %v1713
    %v1715 = vpop.xlane.xlu0 %1714
    %v1716 = vadd.f32 %v1660, %v1662
    %1717 = vadd.xlane.f32.xlu0 %v1716
    %v1718 = vpop.xlane.xlu0 %1717
    %v1719 = vadd.f32 %v1664, %v1666
    %1720 = vadd.xlane.f32.xlu0 %v1719
    %v1721 = vpop.xlane.xlu0 %1720
    %v1722 = vadd.f32 %v1668, %v1670
    %1723 = vadd.xlane.f32.xlu0 %v1722
    %v1724 = vpop.xlane.xlu0 %1723
    %v1725 = vadd.f32 %v1672, %v1674
    %1726 = vadd.xlane.f32.xlu0 %v1725
    %v1727 = vpop.xlane.xlu0 %1726
    %v1728 = vadd.f32 %v1676, %v1678
    %1729 = vadd.xlane.f32.xlu0 %v1728
    %v1730 = vpop.xlane.xlu0 %1729
    %v1731 = vadd.f32 %v1680, %v1682
    %1732 = vadd.xlane.f32.xlu0 %v1731
    %v1733 = vpop.xlane.xlu0 %1732
    %v1734 = vadd.f32 %v1684, %v1686
    %1735 = vadd.xlane.f32.xlu0 %v1734
    %v1736 = vpop.xlane.xlu0 %1735
    %v1737 = vadd.f32 %v1688, %v1690
    %1738 = vadd.xlane.f32.xlu0 %v1737
    %v1739 = vpop.xlane.xlu0 %1738
    %v1740 = vadd.f32 %v1692, %v1694
    %1741 = vadd.xlane.f32.xlu0 %v1740
    %v1742 = vpop.xlane.xlu0 %1741
    %v1743 = vrcp.pop %v1697
    %v1744 = vrcp.pop %v1700
    %v1745 = vrcp.pop %v1703
    %v1746 = vrcp.pop %v1706
    %v1747 = vrcp.pop %v1709
    %v1748 = vrcp.pop %v1712
    %v1749 = vrcp.pop %v1715
    %v1750 = vrcp.pop %v1718
    %v1751 = vrcp.pop %v1721
    %v1752 = vrcp.pop %v1724
    %v1753 = vrcp.pop %v1727
    %v1754 = vrcp.pop %v1730
    %v1755 = vrcp.pop %v1733
    %v1756 = vrcp.pop %v1736
    %v1757 = vrcp.pop %v1739
    %v1758 = vrcp.pop %v1742
    %v1759 = vmul.f32 %v1632, %v1743
    %v1760 = vmul.f32 %v1634, %v1743
    %v1761 = vmul.f32 %v1636, %v1744
    %v1762 = vmul.f32 %v1638, %v1744
    %v1763 = vmul.f32 %v1640, %v1745
    %v1764 = vmul.f32 %v1642, %v1745
    %v1765 = vmul.f32 %v1644, %v1746
    %v1766 = vmul.f32 %v1646, %v1746
    %v1767 = vmul.f32 %v1648, %v1747
    %v1768 = vmul.f32 %v1650, %v1747
    %v1769 = vmul.f32 %v1652, %v1748
    %v1770 = vmul.f32 %v1654, %v1748
    %v1771 = vmul.f32 %v1656, %v1749
    %v1772 = vmul.f32 %v1658, %v1749
    %v1773 = vmul.f32 %v1660, %v1750
    %v1774 = vmul.f32 %v1662, %v1750
    %v1775 = vmul.f32 %v1664, %v1751
    %v1776 = vmul.f32 %v1666, %v1751
    %v1777 = vmul.f32 %v1668, %v1752
    %v1778 = vmul.f32 %v1670, %v1752
    %v1779 = vmul.f32 %v1672, %v1753
    %v1780 = vmul.f32 %v1674, %v1753
    %v1781 = vmul.f32 %v1676, %v1754
    %v1782 = vmul.f32 %v1678, %v1754
    %v1783 = vmul.f32 %v1680, %v1755
    %v1784 = vmul.f32 %v1682, %v1755
    %v1785 = vmul.f32 %v1684, %v1756
    %v1786 = vmul.f32 %v1686, %v1756
    %v1787 = vmul.f32 %v1688, %v1757
    %v1788 = vmul.f32 %v1690, %v1757
    %v1789 = vmul.f32 %v1692, %v1758
    %v1790 = vmul.f32 %v1694, %v1758
    %1791 = vst [vmem:[#allocation2] sm:$0xff] %v1759
    %1792 = vst [vmem:[#allocation2 + $0x8] sm:$0xff] %v1760
    %1793 = vst [vmem:[#allocation2 + $0x10] sm:$0xff] %v1761
    %1794 = vst [vmem:[#allocation2 + $0x18] sm:$0xff] %v1762
    %1795 = vst [vmem:[#allocation2 + $0x20] sm:$0xff] %v1763
    %1796 = vst [vmem:[#allocation2 + $0x28] sm:$0xff] %v1764
    %1797 = vst [vmem:[#allocation2 + $0x30] sm:$0xff] %v1765
    %1798 = vst [vmem:[#allocation2 + $0x38] sm:$0xff] %v1766
    %1799 = vst [vmem:[#allocation2 + $0x40] sm:$0xff] %v1767
    %1800 = vst [vmem:[#allocation2 + $0x48] sm:$0xff] %v1768
    %1801 = vst [vmem:[#allocation2 + $0x50] sm:$0xff] %v1769
    %1802 = vst [vmem:[#allocation2 + $0x58] sm:$0xff] %v1770
    %1803 = vst [vmem:[#allocation2 + $0x60] sm:$0xff] %v1771
    %1804 = vst [vmem:[#allocation2 + $0x68] sm:$0xff] %v1772
    %1805 = vst [vmem:[#allocation2 + $0x70] sm:$0xff] %v1773
    %1806 = vst [vmem:[#allocation2 + $0x78] sm:$0xff] %v1774
    %1807 = vst [vmem:[#allocation2 + $0x80] sm:$0xff] %v1775
    %1808 = vst [vmem:[#allocation2 + $0x88] sm:$0xff] %v1776
    %1809 = vst [vmem:[#allocation2 + $0x90] sm:$0xff] %v1777
    %1810 = vst [vmem:[#allocation2 + $0x98] sm:$0xff] %v1778
    %1811 = vst [vmem:[#allocation2 + $0xa0] sm:$0xff] %v1779
    %1812 = vst [vmem:[#allocation2 + $0xa8] sm:$0xff] %v1780
    %1813 = vst [vmem:[#allocation2 + $0xb0] sm:$0xff] %v1781
    %1814 = vst [vmem:[#allocation2 + $0xb8] sm:$0xff] %v1782
    %1815 = vst [vmem:[#allocation2 + $0xc0] sm:$0xff] %v1783
    %1816 = vst [vmem:[#allocation2 + $0xc8] sm:$0xff] %v1784
    %1817 = vst [vmem:[#allocation2 + $0xd0] sm:$0xff] %v1785
    %1818 = vst [vmem:[#allocation2 + $0xd8] sm:$0xff] %v1786
    %1819 = vst [vmem:[#allocation2 + $0xe0] sm:$0xff] %v1787
    %1820 = vst [vmem:[#allocation2 + $0xe8] sm:$0xff] %v1788
    %1821 = vst [vmem:[#allocation2 + $0xf0] sm:$0xff] %v1789
    %1822 = vst [vmem:[#allocation2 + $0xf8] sm:$0xff] %v1790
    // Predicated region
    $region22: #{sslae_forward.9} parent=1 // pred_check
      _
    $region23: #{sslae_forward.9} parent=1 // pred_check_branch
      %1824 = sbr.rel (0) target = $region25
    $region24: #{sslae_forward.9} parent=1 // pred_region
      %s1826 = ssub.s32 4096, 4096
      %1827 = vsyncadd [#allocation3], %s1826
      %s1828 = sshll.u32 [#allocation2], 4
      %s1829 = int_to_ptr.vmem [resolvable:$true] %s1828
      %1834 = dma.vmem_to_hbm [thread:$0]  %s1829, 4096, %s5, [#allocation3], 256, 256, 16
    $region25: #{sslae_forward.9} parent=1 // pred_fallthru
      _
    // Predicated region
    $region26: #{sslae_forward.9} parent=1 // pred_check
      _
    $region27: #{sslae_forward.9} parent=1 // pred_check_branch
      %1836 = sbr.rel (0) target = $region29
    $region28: #{sslae_forward.9} parent=1 // pred_region
      %1837 = dma.done [#allocation3], 4096
    $region29: #{sslae_forward.9} parent=1 // pred_fallthru
      _
    %1838 = vsyncpa [#allocation3], 1

// kernel: sslae_forward.5
$region0: #{sslae_forward.5}
  #allocation0 [shape = 'u32[]', space=smem, size = 0x4, offset = 0x4, fixed_abs, tag = 'smem constant byte address 0x4 - core index']
  #allocation1 [shape = 'u32[144,128]{1,0:T(1,128)}', space=vmem, size = 0x12000, scoped, tag = 'internal scratch']
  #allocation2 [shape = 'f32[32,128]{1,0:T(8,128)}', space=vmem, size = 0x4000, scoped, tag = 'scratch operand']
  #allocation3 [shape = 'f32[32,128]{1,0:T(8,128)}', space=vmem, size = 0x4000, scoped, tag = 'scratch operand']
  %s0 = inlined_call_operand.vmem [shape: f32[32,48], index: 0, kind: input, shape index: {}]
  %s1 = inlined_call_operand.vmem [shape: bf16[48,128], index: 1, kind: input, shape index: {}]
  %s2 = inlined_call_operand.hbm [shape: f32[1,128], index: 2, kind: input, shape index: {}]
  %s3 = inlined_call_operand.vmem [shape: f32[32,128], index: 3, kind: input, shape index: {}]
  %s4 = inlined_call_operand.hbm [shape: f32[4,1,128], index: 4, kind: input, shape index: {}]
  %s5 = inlined_call_operand.hbm [shape: f32[4,1,128], index: 5, kind: input, shape index: {}]
  %s6 = inlined_call_operand.vmem [shape: bf16[4,128,384], index: 6, kind: input, shape index: {}]
  %s7 = inlined_call_operand.vmem [shape: f32[4,1,384], index: 7, kind: input, shape index: {}]
  %s8 = inlined_call_operand.hbm [shape: bf16[4,128,128], index: 8, kind: input, shape index: {}]
  %s9 = inlined_call_operand.vmem [shape: f32[4,1,128], index: 9, kind: input, shape index: {}]
  %s10 = inlined_call_operand.hbm [shape: f32[4,1,128], index: 10, kind: input, shape index: {}]
  %s11 = inlined_call_operand.hbm [shape: f32[4,1,128], index: 11, kind: input, shape index: {}]
  %s12 = inlined_call_operand.vmem [shape: bf16[4,128,512], index: 12, kind: input, shape index: {}]
  %s13 = inlined_call_operand.hbm [shape: f32[4,1,512], index: 13, kind: input, shape index: {}]
  %s14 = inlined_call_operand.hbm [shape: bf16[4,512,128], index: 14, kind: input, shape index: {}]
  %s15 = inlined_call_operand.hbm [shape: f32[4,1,128], index: 15, kind: input, shape index: {}]
  %s16 = inlined_call_operand.hbm [shape: bf16[4,128,128], index: 16, kind: input, shape index: {}]
  %s17 = inlined_call_operand.hbm [shape: f32[4,1,128], index: 17, kind: input, shape index: {}]
  %s18 = inlined_call_operand.vmem [shape: f32[4,32,128], index: 18, kind: output, shape index: {}]
  %s19 = sld [smem:[#allocation0]]
  $region153: #{sslae_forward.5} parent=0
    _
  %s21 = ssub.s32 1, %s19
  %s22 = scalar_select 0, %s21, %s19
  $region1: #{sslae_forward.5} parent=0
    #allocation4 [shape = 'u8[512]{0}', space=vmem, size = 0x400, scoped, tag = 'input window, operand 2, single buffered']
    #allocation5 [shape = 's32[2]{0}', space=sflag, size = 0x8, scoped, tag = 'scoped memory for sslae_forward.5']
    #allocation6 [shape = 'u8[1024]{0}', space=vmem, size = 0x400, scoped, tag = 'input window, operand 4']
    #allocation7 [shape = 's32[2]{0}', space=sflag, size = 0x8, scoped, tag = 'scoped memory for sslae_forward.5']
    #allocation8 [shape = 'u8[1024]{0}', space=vmem, size = 0x400, scoped, tag = 'input window, operand 5']
    #allocation9 [shape = 'u8[65536]{0}', space=vmem, size = 0x10000, scoped, tag = 'input window, operand 8']
    #allocation10 [shape = 's32[2]{0}', space=sflag, size = 0x8, scoped, tag = 'scoped memory for sslae_forward.5']
    #allocation11 [shape = 'u8[1024]{0}', space=vmem, size = 0x400, scoped, tag = 'input window, operand 10']
    #allocation12 [shape = 'u8[1024]{0}', space=vmem, size = 0x400, scoped, tag = 'input window, operand 11']
    #allocation13 [shape = 's32[2]{0}', space=sflag, size = 0x8, scoped, tag = 'scoped memory for sslae_forward.5']
    #allocation14 [shape = 'u8[4096]{0}', space=vmem, size = 0x1000, scoped, tag = 'input window, operand 13']
    #allocation15 [shape = 'u8[262144]{0}', space=vmem, size = 0x40000, scoped, tag = 'input window, operand 14']
    #allocation16 [shape = 's32[2]{0}', space=sflag, size = 0x8, scoped, tag = 'scoped memory for sslae_forward.5']
    #allocation17 [shape = 'u8[1024]{0}', space=vmem, size = 0x400, scoped, tag = 'input window, operand 15']
    #allocation18 [shape = 'u8[65536]{0}', space=vmem, size = 0x10000, scoped, tag = 'input window, operand 16']
    #allocation19 [shape = 's32[2]{0}', space=sflag, size = 0x8, scoped, tag = 'scoped memory for sslae_forward.5']
    #allocation20 [shape = 'u8[1024]{0}', space=vmem, size = 0x400, scoped, tag = 'input window, operand 17']
    %23 = vsyncpa [#allocation5], 0
    %24 = vsyncpa [#allocation7], 0
    %s25 = scalar_lea.sflag [#allocation7], 1
    %26 = vsyncpa %s25, 0
    %27 = vsyncpa [#allocation10], 0
    %s28 = scalar_lea.sflag [#allocation10], 1
    %29 = vsyncpa %s28, 0
    %30 = vsyncpa [#allocation13], 0
    %s31 = scalar_lea.sflag [#allocation13], 1
    %32 = vsyncpa %s31, 0
    %33 = vsyncpa [#allocation16], 0
    %s34 = scalar_lea.sflag [#allocation16], 1
    %35 = vsyncpa %s34, 0
    %36 = vsyncpa [#allocation19], 0
    %s37 = scalar_lea.sflag [#allocation19], 1
    %38 = vsyncpa %s37, 0
    loop: start=0, step=1, limit=6
    $region2: #{sslae_forward.5} parent=1 // loop_pre_header
      _
    $region3: #{sslae_forward.5} parent=1 // loop_header
      %s40 = sphi 0, %s44
      %p41 = scmp.ge.s32.totalorder %s40, 6
      %s48 = sphi 0, %s48
      %s50 = sphi 0, %s48
      %s51 = sphi 0, %s50
      %s65 = sphi 0, %s51
      %s69 = sphi 0, %s69
      %s71 = sphi 0, %s69
      %s72 = sphi 0, %s71
      %s86 = sphi 0, %s72
      %s90 = sphi 0, %s90
      %s92 = sphi 0, %s90
      %s93 = sphi 0, %s92
      %s107 = sphi 0, %s93
      %s111 = sphi 0, %s111
      %s113 = sphi 0, %s111
      %s114 = sphi 0, %s113
      %s128 = sphi 0, %s114
      %s134 = sphi 0, %s136
      %s137 = sphi 0, %s134
      %s138 = sphi 0, %s137
      %s154 = sphi 0, %s138
      %s160 = sphi 0, %s162
      %s163 = sphi 0, %s160
      %s164 = sphi 0, %s163
      %s180 = sphi 0, %s164
      %s186 = sphi 0, %s188
      %s189 = sphi 0, %s186
      %s190 = sphi 0, %s189
      %s206 = sphi 0, %s190
      %s212 = sphi 0, %s214
      %s215 = sphi 0, %s212
      %s216 = sphi 0, %s215
      %s232 = sphi 0, %s216
      %s238 = sphi 0, %s240
      %s241 = sphi 0, %s238
      %s242 = sphi 0, %s241
      %s258 = sphi 0, %s242
      %s264 = sphi 0, %s266
      %s267 = sphi 0, %s264
      %s268 = sphi 0, %s267
      %s284 = sphi 0, %s268
      %s290 = sphi 0, %s292
      %s293 = sphi 0, %s290
      %s294 = sphi 0, %s293
      %s310 = sphi 0, %s294
      %s316 = sphi 0, %s318
      %s319 = sphi 0, %s316
      %s320 = sphi 0, %s319
      %s336 = sphi 0, %s320
      %s342 = sphi 0, %s344
      %s345 = sphi 0, %s342
      %s346 = sphi 0, %s345
      %s362 = sphi 0, %s346
      %s368 = sphi 0, %s370
      %s371 = sphi 0, %s368
      %s372 = sphi 0, %s371
      %s388 = sphi 0, %s372
      %s394 = sphi 0, %s396
      %s397 = sphi 0, %s394
      %s398 = sphi 0, %s397
      %s414 = sphi 0, %s398
      %s420 = sphi 0, %s422
      %s423 = sphi 0, %s420
      %s424 = sphi 0, %s423
      %s440 = sphi 0, %s424
      %s446 = sphi 0, %s448
      %s449 = sphi 0, %s446
      %s450 = sphi 0, %s449
      %s466 = sphi 0, %s450
      %s472 = sphi 0, %s474
      %s475 = sphi 0, %s472
      %s476 = sphi 0, %s475
      %s492 = sphi 0, %s476
      %s498 = sphi 0, %s500
      %s501 = sphi 0, %s498
      %s502 = sphi 0, %s501
      %s518 = sphi 0, %s502
    $region4: #{sslae_forward.5} parent=1 // loop_header_branch
      %43 = sbr.rel (%p41) target = $region8
    $region5: #{sslae_forward.5} parent=1 // loop_body
      %s45 = ssub.s32 %s40, 1
      %s46 = ssub.s32 %s40, 2
      %s47 = sadd.s32 %s40, 1
      %s49 = sadd.s32 %s48, 1
      %p52 = scmp.eq.s32.totalorder %s40, 3
      %p53 = scmp.ne.s32.totalorder %s48, %s50
      %p54 = scmp.eq.s32.totalorder %s40, 0
      %p55 = por %p53, %p54
      %p56 = scmp.ne.s32.totalorder %s48, %s50
      %p57 = scmp.eq.s32.totalorder %s45, 3
      %p58 = por %p56, %p57
      %p59 = scmp.ne.s32.totalorder %s50, %s51
      %p60 = scmp.eq.s32.totalorder %s45, 0
      %p61 = por %p59, %p60
      %p62 = scmp.ne.s32.totalorder %s50, %s51
      %p63 = scmp.eq.s32.totalorder %s46, 3
      %p64 = por %p62, %p63
      %p66 = scmp.ne.s32.totalorder %s51, %s65
      %p67 = scmp.eq.s32.totalorder %s46, 0
      %p68 = por %p66, %p67
      %s70 = sadd.s32 %s69, 1
      %p73 = scmp.eq.s32.totalorder %s40, 3
      %p74 = scmp.ne.s32.totalorder %s69, %s71
      %p75 = scmp.eq.s32.totalorder %s40, 0
      %p76 = por %p74, %p75
      %p77 = scmp.ne.s32.totalorder %s69, %s71
      %p78 = scmp.eq.s32.totalorder %s45, 3
      %p79 = por %p77, %p78
      %p80 = scmp.ne.s32.totalorder %s71, %s72
      %p81 = scmp.eq.s32.totalorder %s45, 0
      %p82 = por %p80, %p81
      %p83 = scmp.ne.s32.totalorder %s71, %s72
      %p84 = scmp.eq.s32.totalorder %s46, 3
      %p85 = por %p83, %p84
      %p87 = scmp.ne.s32.totalorder %s72, %s86
      %p88 = scmp.eq.s32.totalorder %s46, 0
      %p89 = por %p87, %p88
      %s91 = sadd.s32 %s90, 1
      %p94 = scmp.eq.s32.totalorder %s40, 3
      %p95 = scmp.ne.s32.totalorder %s90, %s92
      %p96 = scmp.eq.s32.totalorder %s40, 0
      %p97 = por %p95, %p96
      %p98 = scmp.ne.s32.totalorder %s90, %s92
      %p99 = scmp.eq.s32.totalorder %s45, 3
      %p100 = por %p98, %p99
      %p101 = scmp.ne.s32.totalorder %s92, %s93
      %p102 = scmp.eq.s32.totalorder %s45, 0
      %p103 = por %p101, %p102
      %p104 = scmp.ne.s32.totalorder %s92, %s93
      %p105 = scmp.eq.s32.totalorder %s46, 3
      %p106 = por %p104, %p105
      %p108 = scmp.ne.s32.totalorder %s93, %s107
      %p109 = scmp.eq.s32.totalorder %s46, 0
      %p110 = por %p108, %p109
      %s112 = sadd.s32 %s111, 1
      %p115 = scmp.eq.s32.totalorder %s40, 3
      %p116 = scmp.ne.s32.totalorder %s111, %s113
      %p117 = scmp.eq.s32.totalorder %s40, 0
      %p118 = por %p116, %p117
      %p119 = scmp.ne.s32.totalorder %s111, %s113
      %p120 = scmp.eq.s32.totalorder %s45, 3
      %p121 = por %p119, %p120
      %p122 = scmp.ne.s32.totalorder %s113, %s114
      %p123 = scmp.eq.s32.totalorder %s45, 0
      %p124 = por %p122, %p123
      %p125 = scmp.ne.s32.totalorder %s113, %s114
      %p126 = scmp.eq.s32.totalorder %s46, 3
      %p127 = por %p125, %p126
      %p129 = scmp.ne.s32.totalorder %s114, %s128
      %p130 = scmp.eq.s32.totalorder %s46, 0
      %p131 = por %p129, %p130
      %s132 = ssub.s32 %s40, %s47
      %p133 = scmp.eq.s32.totalorder %s132, 0
      %s135 = sadd.s32 %s134, 1
      %s136 = scalar_select %p133, %s134, %s135
      %p139 = pneg %p133
      %p140 = scmp.eq.s32.totalorder %s40, 3
      %p141 = por %p139, %p140
      %p142 = scmp.ne.s32.totalorder %s134, %s137
      %p143 = scmp.eq.s32.totalorder %s40, 0
      %p144 = por %p142, %p143
      %p145 = scmp.ne.s32.totalorder %s134, %s137
      %p146 = scmp.eq.s32.totalorder %s45, 3
      %p147 = por %p145, %p146
      %p148 = scmp.ne.s32.totalorder %s137, %s138
      %p149 = scmp.eq.s32.totalorder %s45, 0
      %p150 = por %p148, %p149
      %p151 = scmp.ne.s32.totalorder %s137, %s138
      %p152 = scmp.eq.s32.totalorder %s46, 3
      %p153 = por %p151, %p152
      %p155 = scmp.ne.s32.totalorder %s138, %s154
      %p156 = scmp.eq.s32.totalorder %s46, 0
      %p157 = por %p155, %p156
      %s158 = ssub.s32 %s40, %s47
      %p159 = scmp.eq.s32.totalorder %s158, 0
      %s161 = sadd.s32 %s160, 1
      %s162 = scalar_select %p159, %s160, %s161
      %p165 = pneg %p159
      %p166 = scmp.eq.s32.totalorder %s40, 3
      %p167 = por %p165, %p166
      %p168 = scmp.ne.s32.totalorder %s160, %s163
      %p169 = scmp.eq.s32.totalorder %s40, 0
      %p170 = por %p168, %p169
      %p171 = scmp.ne.s32.totalorder %s160, %s163
      %p172 = scmp.eq.s32.totalorder %s45, 3
      %p173 = por %p171, %p172
      %p174 = scmp.ne.s32.totalorder %s163, %s164
      %p175 = scmp.eq.s32.totalorder %s45, 0
      %p176 = por %p174, %p175
      %p177 = scmp.ne.s32.totalorder %s163, %s164
      %p178 = scmp.eq.s32.totalorder %s46, 3
      %p179 = por %p177, %p178
      %p181 = scmp.ne.s32.totalorder %s164, %s180
      %p182 = scmp.eq.s32.totalorder %s46, 0
      %p183 = por %p181, %p182
      %s184 = ssub.s32 %s40, %s47
      %p185 = scmp.eq.s32.totalorder %s184, 0
      %s187 = sadd.s32 %s186, 1
      %s188 = scalar_select %p185, %s186, %s187
      %p191 = pneg %p185
      %p192 = scmp.eq.s32.totalorder %s40, 3
      %p193 = por %p191, %p192
      %p194 = scmp.ne.s32.totalorder %s186, %s189
      %p195 = scmp.eq.s32.totalorder %s40, 0
      %p196 = por %p194, %p195
      %p197 = scmp.ne.s32.totalorder %s186, %s189
      %p198 = scmp.eq.s32.totalorder %s45, 3
      %p199 = por %p197, %p198
      %p200 = scmp.ne.s32.totalorder %s189, %s190
      %p201 = scmp.eq.s32.totalorder %s45, 0
      %p202 = por %p200, %p201
      %p203 = scmp.ne.s32.totalorder %s189, %s190
      %p204 = scmp.eq.s32.totalorder %s46, 3
      %p205 = por %p203, %p204
      %p207 = scmp.ne.s32.totalorder %s190, %s206
      %p208 = scmp.eq.s32.totalorder %s46, 0
      %p209 = por %p207, %p208
      %s210 = ssub.s32 %s40, %s47
      %p211 = scmp.eq.s32.totalorder %s210, 0
      %s213 = sadd.s32 %s212, 1
      %s214 = scalar_select %p211, %s212, %s213
      %p217 = pneg %p211
      %p218 = scmp.eq.s32.totalorder %s40, 3
      %p219 = por %p217, %p218
      %p220 = scmp.ne.s32.totalorder %s212, %s215
      %p221 = scmp.eq.s32.totalorder %s40, 0
      %p222 = por %p220, %p221
      %p223 = scmp.ne.s32.totalorder %s212, %s215
      %p224 = scmp.eq.s32.totalorder %s45, 3
      %p225 = por %p223, %p224
      %p226 = scmp.ne.s32.totalorder %s215, %s216
      %p227 = scmp.eq.s32.totalorder %s45, 0
      %p228 = por %p226, %p227
      %p229 = scmp.ne.s32.totalorder %s215, %s216
      %p230 = scmp.eq.s32.totalorder %s46, 3
      %p231 = por %p229, %p230
      %p233 = scmp.ne.s32.totalorder %s216, %s232
      %p234 = scmp.eq.s32.totalorder %s46, 0
      %p235 = por %p233, %p234
      %s236 = ssub.s32 %s40, %s47
      %p237 = scmp.eq.s32.totalorder %s236, 0
      %s239 = sadd.s32 %s238, 1
      %s240 = scalar_select %p237, %s238, %s239
      %p243 = pneg %p237
      %p244 = scmp.eq.s32.totalorder %s40, 3
      %p245 = por %p243, %p244
      %p246 = scmp.ne.s32.totalorder %s238, %s241
      %p247 = scmp.eq.s32.totalorder %s40, 0
      %p248 = por %p246, %p247
      %p249 = scmp.ne.s32.totalorder %s238, %s241
      %p250 = scmp.eq.s32.totalorder %s45, 3
      %p251 = por %p249, %p250
      %p252 = scmp.ne.s32.totalorder %s241, %s242
      %p253 = scmp.eq.s32.totalorder %s45, 0
      %p254 = por %p252, %p253
      %p255 = scmp.ne.s32.totalorder %s241, %s242
      %p256 = scmp.eq.s32.totalorder %s46, 3
      %p257 = por %p255, %p256
      %p259 = scmp.ne.s32.totalorder %s242, %s258
      %p260 = scmp.eq.s32.totalorder %s46, 0
      %p261 = por %p259, %p260
      %s262 = ssub.s32 %s40, %s47
      %p263 = scmp.eq.s32.totalorder %s262, 0
      %s265 = sadd.s32 %s264, 1
      %s266 = scalar_select %p263, %s264, %s265
      %p269 = pneg %p263
      %p270 = scmp.eq.s32.totalorder %s40, 3
      %p271 = por %p269, %p270
      %p272 = scmp.ne.s32.totalorder %s264, %s267
      %p273 = scmp.eq.s32.totalorder %s40, 0
      %p274 = por %p272, %p273
      %p275 = scmp.ne.s32.totalorder %s264, %s267
      %p276 = scmp.eq.s32.totalorder %s45, 3
      %p277 = por %p275, %p276
      %p278 = scmp.ne.s32.totalorder %s267, %s268
      %p279 = scmp.eq.s32.totalorder %s45, 0
      %p280 = por %p278, %p279
      %p281 = scmp.ne.s32.totalorder %s267, %s268
      %p282 = scmp.eq.s32.totalorder %s46, 3
      %p283 = por %p281, %p282
      %p285 = scmp.ne.s32.totalorder %s268, %s284
      %p286 = scmp.eq.s32.totalorder %s46, 0
      %p287 = por %p285, %p286
      %s288 = ssub.s32 %s40, %s47
      %p289 = scmp.eq.s32.totalorder %s288, 0
      %s291 = sadd.s32 %s290, 1
      %s292 = scalar_select %p289, %s290, %s291
      %p295 = pneg %p289
      %p296 = scmp.eq.s32.totalorder %s40, 3
      %p297 = por %p295, %p296
      %p298 = scmp.ne.s32.totalorder %s290, %s293
      %p299 = scmp.eq.s32.totalorder %s40, 0
      %p300 = por %p298, %p299
      %p301 = scmp.ne.s32.totalorder %s290, %s293
      %p302 = scmp.eq.s32.totalorder %s45, 3
      %p303 = por %p301, %p302
      %p304 = scmp.ne.s32.totalorder %s293, %s294
      %p305 = scmp.eq.s32.totalorder %s45, 0
      %p306 = por %p304, %p305
      %p307 = scmp.ne.s32.totalorder %s293, %s294
      %p308 = scmp.eq.s32.totalorder %s46, 3
      %p309 = por %p307, %p308
      %p311 = scmp.ne.s32.totalorder %s294, %s310
      %p312 = scmp.eq.s32.totalorder %s46, 0
      %p313 = por %p311, %p312
      %s314 = ssub.s32 %s40, %s47
      %p315 = scmp.eq.s32.totalorder %s314, 0
      %s317 = sadd.s32 %s316, 1
      %s318 = scalar_select %p315, %s316, %s317
      %p321 = pneg %p315
      %p322 = scmp.eq.s32.totalorder %s40, 3
      %p323 = por %p321, %p322
      %p324 = scmp.ne.s32.totalorder %s316, %s319
      %p325 = scmp.eq.s32.totalorder %s40, 0
      %p326 = por %p324, %p325
      %p327 = scmp.ne.s32.totalorder %s316, %s319
      %p328 = scmp.eq.s32.totalorder %s45, 3
      %p329 = por %p327, %p328
      %p330 = scmp.ne.s32.totalorder %s319, %s320
      %p331 = scmp.eq.s32.totalorder %s45, 0
      %p332 = por %p330, %p331
      %p333 = scmp.ne.s32.totalorder %s319, %s320
      %p334 = scmp.eq.s32.totalorder %s46, 3
      %p335 = por %p333, %p334
      %p337 = scmp.ne.s32.totalorder %s320, %s336
      %p338 = scmp.eq.s32.totalorder %s46, 0
      %p339 = por %p337, %p338
      %s340 = ssub.s32 %s40, %s47
      %p341 = scmp.eq.s32.totalorder %s340, 0
      %s343 = sadd.s32 %s342, 1
      %s344 = scalar_select %p341, %s342, %s343
      %p347 = pneg %p341
      %p348 = scmp.eq.s32.totalorder %s40, 3
      %p349 = por %p347, %p348
      %p350 = scmp.ne.s32.totalorder %s342, %s345
      %p351 = scmp.eq.s32.totalorder %s40, 0
      %p352 = por %p350, %p351
      %p353 = scmp.ne.s32.totalorder %s342, %s345
      %p354 = scmp.eq.s32.totalorder %s45, 3
      %p355 = por %p353, %p354
      %p356 = scmp.ne.s32.totalorder %s345, %s346
      %p357 = scmp.eq.s32.totalorder %s45, 0
      %p358 = por %p356, %p357
      %p359 = scmp.ne.s32.totalorder %s345, %s346
      %p360 = scmp.eq.s32.totalorder %s46, 3
      %p361 = por %p359, %p360
      %p363 = scmp.ne.s32.totalorder %s346, %s362
      %p364 = scmp.eq.s32.totalorder %s46, 0
      %p365 = por %p363, %p364
      %s366 = ssub.s32 %s40, %s47
      %p367 = scmp.eq.s32.totalorder %s366, 0
      %s369 = sadd.s32 %s368, 1
      %s370 = scalar_select %p367, %s368, %s369
      %p373 = pneg %p367
      %p374 = scmp.eq.s32.totalorder %s40, 3
      %p375 = por %p373, %p374
      %p376 = scmp.ne.s32.totalorder %s368, %s371
      %p377 = scmp.eq.s32.totalorder %s40, 0
      %p378 = por %p376, %p377
      %p379 = scmp.ne.s32.totalorder %s368, %s371
      %p380 = scmp.eq.s32.totalorder %s45, 3
      %p381 = por %p379, %p380
      %p382 = scmp.ne.s32.totalorder %s371, %s372
      %p383 = scmp.eq.s32.totalorder %s45, 0
      %p384 = por %p382, %p383
      %p385 = scmp.ne.s32.totalorder %s371, %s372
      %p386 = scmp.eq.s32.totalorder %s46, 3
      %p387 = por %p385, %p386
      %p389 = scmp.ne.s32.totalorder %s372, %s388
      %p390 = scmp.eq.s32.totalorder %s46, 0
      %p391 = por %p389, %p390
      %s392 = ssub.s32 %s40, %s47
      %p393 = scmp.eq.s32.totalorder %s392, 0
      %s395 = sadd.s32 %s394, 1
      %s396 = scalar_select %p393, %s394, %s395
      %p399 = pneg %p393
      %p400 = scmp.eq.s32.totalorder %s40, 3
      %p401 = por %p399, %p400
      %p402 = scmp.ne.s32.totalorder %s394, %s397
      %p403 = scmp.eq.s32.totalorder %s40, 0
      %p404 = por %p402, %p403
      %p405 = scmp.ne.s32.totalorder %s394, %s397
      %p406 = scmp.eq.s32.totalorder %s45, 3
      %p407 = por %p405, %p406
      %p408 = scmp.ne.s32.totalorder %s397, %s398
      %p409 = scmp.eq.s32.totalorder %s45, 0
      %p410 = por %p408, %p409
      %p411 = scmp.ne.s32.totalorder %s397, %s398
      %p412 = scmp.eq.s32.totalorder %s46, 3
      %p413 = por %p411, %p412
      %p415 = scmp.ne.s32.totalorder %s398, %s414
      %p416 = scmp.eq.s32.totalorder %s46, 0
      %p417 = por %p415, %p416
      %s418 = ssub.s32 %s40, %s47
      %p419 = scmp.eq.s32.totalorder %s418, 0
      %s421 = sadd.s32 %s420, 1
      %s422 = scalar_select %p419, %s420, %s421
      %p425 = pneg %p419
      %p426 = scmp.eq.s32.totalorder %s40, 3
      %p427 = por %p425, %p426
      %p428 = scmp.ne.s32.totalorder %s420, %s423
      %p429 = scmp.eq.s32.totalorder %s40, 0
      %p430 = por %p428, %p429
      %p431 = scmp.ne.s32.totalorder %s420, %s423
      %p432 = scmp.eq.s32.totalorder %s45, 3
      %p433 = por %p431, %p432
      %p434 = scmp.ne.s32.totalorder %s423, %s424
      %p435 = scmp.eq.s32.totalorder %s45, 0
      %p436 = por %p434, %p435
      %p437 = scmp.ne.s32.totalorder %s423, %s424
      %p438 = scmp.eq.s32.totalorder %s46, 3
      %p439 = por %p437, %p438
      %p441 = scmp.ne.s32.totalorder %s424, %s440
      %p442 = scmp.eq.s32.totalorder %s46, 0
      %p443 = por %p441, %p442
      %s444 = ssub.s32 %s40, %s47
      %p445 = scmp.eq.s32.totalorder %s444, 0
      %s447 = sadd.s32 %s446, 1
      %s448 = scalar_select %p445, %s446, %s447
      %p451 = pneg %p445
      %p452 = scmp.eq.s32.totalorder %s40, 3
      %p453 = por %p451, %p452
      %p454 = scmp.ne.s32.totalorder %s446, %s449
      %p455 = scmp.eq.s32.totalorder %s40, 0
      %p456 = por %p454, %p455
      %p457 = scmp.ne.s32.totalorder %s446, %s449
      %p458 = scmp.eq.s32.totalorder %s45, 3
      %p459 = por %p457, %p458
      %p460 = scmp.ne.s32.totalorder %s449, %s450
      %p461 = scmp.eq.s32.totalorder %s45, 0
      %p462 = por %p460, %p461
      %p463 = scmp.ne.s32.totalorder %s449, %s450
      %p464 = scmp.eq.s32.totalorder %s46, 3
      %p465 = por %p463, %p464
      %p467 = scmp.ne.s32.totalorder %s450, %s466
      %p468 = scmp.eq.s32.totalorder %s46, 0
      %p469 = por %p467, %p468
      %s470 = ssub.s32 %s40, %s47
      %p471 = scmp.eq.s32.totalorder %s470, 0
      %s473 = sadd.s32 %s472, 1
      %s474 = scalar_select %p471, %s472, %s473
      %p477 = pneg %p471
      %p478 = scmp.eq.s32.totalorder %s40, 3
      %p479 = por %p477, %p478
      %p480 = scmp.ne.s32.totalorder %s472, %s475
      %p481 = scmp.eq.s32.totalorder %s40, 0
      %p482 = por %p480, %p481
      %p483 = scmp.ne.s32.totalorder %s472, %s475
      %p484 = scmp.eq.s32.totalorder %s45, 3
      %p485 = por %p483, %p484
      %p486 = scmp.ne.s32.totalorder %s475, %s476
      %p487 = scmp.eq.s32.totalorder %s45, 0
      %p488 = por %p486, %p487
      %p489 = scmp.ne.s32.totalorder %s475, %s476
      %p490 = scmp.eq.s32.totalorder %s46, 3
      %p491 = por %p489, %p490
      %p493 = scmp.ne.s32.totalorder %s476, %s492
      %p494 = scmp.eq.s32.totalorder %s46, 0
      %p495 = por %p493, %p494
      %s496 = ssub.s32 %s40, %s47
      %p497 = scmp.eq.s32.totalorder %s496, 0
      %s499 = sadd.s32 %s498, 1
      %s500 = scalar_select %p497, %s498, %s499
      %p503 = pneg %p497
      %p504 = scmp.eq.s32.totalorder %s40, 3
      %p505 = por %p503, %p504
      %p506 = scmp.ne.s32.totalorder %s498, %s501
      %p507 = scmp.eq.s32.totalorder %s40, 0
      %p508 = por %p506, %p507
      %p509 = scmp.ne.s32.totalorder %s498, %s501
      %p510 = scmp.eq.s32.totalorder %s45, 3
      %p511 = por %p509, %p510
      %p512 = scmp.ne.s32.totalorder %s501, %s502
      %p513 = scmp.eq.s32.totalorder %s45, 0
      %p514 = por %p512, %p513
      %p515 = scmp.ne.s32.totalorder %s501, %s502
      %p516 = scmp.eq.s32.totalorder %s46, 3
      %p517 = por %p515, %p516
      %p519 = scmp.ne.s32.totalorder %s502, %s518
      %p520 = scmp.eq.s32.totalorder %s46, 0
      %p521 = por %p519, %p520
      %p522 = scmp.le.s32.totalorder 1, %s40
      %p523 = scmp.lt.s32.totalorder %s40, 5
      %p524 = pnand %p522, %p523
      %p525 = pneg %p524
      // Predicated region
      $region9: #{sslae_forward.5} parent=5 // pred_check
        _
      $region10: #{sslae_forward.5} parent=5 // pred_check_branch
        %527 = sbr.rel (%p524) target = $region12
      $region11: #{sslae_forward.5} parent=5 // pred_region
        %s528 = ssub.s32 %s40, 1
        // Predicated region
        $region13: #{sslae_forward.5} parent=11 // pred_check
          %p529 = pneg %p61
        $region14: #{sslae_forward.5} parent=11 // pred_check_branch
          %531 = sbr.rel (%p529) target = $region16
        $region15: #{sslae_forward.5} parent=11 // pred_region
          _
        $region16: #{sslae_forward.5} parent=11 // pred_fallthru
          _
        // Predicated region
        $region17: #{sslae_forward.5} parent=11 // pred_check
          %p532 = pneg %p82
        $region18: #{sslae_forward.5} parent=11 // pred_check_branch
          %534 = sbr.rel (%p532) target = $region20
        $region19: #{sslae_forward.5} parent=11 // pred_region
          _
        $region20: #{sslae_forward.5} parent=11 // pred_fallthru
          _
        // Predicated region
        $region21: #{sslae_forward.5} parent=11 // pred_check
          %p535 = pneg %p103
        $region22: #{sslae_forward.5} parent=11 // pred_check_branch
          %537 = sbr.rel (%p535) target = $region24
        $region23: #{sslae_forward.5} parent=11 // pred_region
          %s539 = ssub.s32 16, 16
          %540 = vsyncadd [#allocation5], %s539
          %s542 = sshll.u32 [#allocation4], 4
          %s543 = int_to_ptr.vmem [resolvable:$true] %s542
          %545 = dma.hbm_to_vmem [thread:$0]  %s2, 16, %s543, [#allocation5]
        $region24: #{sslae_forward.5} parent=11 // pred_fallthru
          _
        // Predicated region
        $region25: #{sslae_forward.5} parent=11 // pred_check
          %p546 = pneg %p124
        $region26: #{sslae_forward.5} parent=11 // pred_check_branch
          %548 = sbr.rel (%p546) target = $region28
        $region27: #{sslae_forward.5} parent=11 // pred_region
          _
        $region28: #{sslae_forward.5} parent=11 // pred_fallthru
          _
      $region12: #{sslae_forward.5} parent=5 // pred_fallthru
        _
      %p549 = scmp.lt.s32.totalorder %s40, 4
      // Predicated region
      $region29: #{sslae_forward.5} parent=5 // pred_check
        %p550 = pneg %p549
      $region30: #{sslae_forward.5} parent=5 // pred_check_branch
        %552 = sbr.rel (%p550) target = $region32
      $region31: #{sslae_forward.5} parent=5 // pred_region
        // Predicated region
        $region33: #{sslae_forward.5} parent=31 // pred_check
          %p553 = pneg %p144
        $region34: #{sslae_forward.5} parent=31 // pred_check_branch
          %555 = sbr.rel (%p553) target = $region36
        $region35: #{sslae_forward.5} parent=31 // pred_region
          %s556 = sand.u32 %s40, 1
          %s557 = scalar_lea.sflag [#allocation7], %s556
          %s558 = sand.u32 %s134, 1
          %s559 = scalar_lea.vmem [#allocation6], %s558
          %s561 = ssub.s32 16, 16
          %562 = vsyncadd %s557, %s561
          %s563 = smul.addr %s40, 16
          %s564 = scalar_lea.hbm %s4, %s563
          %s566 = sshll.u32 %s559, 4
          %s567 = int_to_ptr.vmem [resolvable:$true] %s566
          %569 = dma.hbm_to_vmem [thread:$0]  %s564, 16, %s567, %s557
        $region36: #{sslae_forward.5} parent=31 // pred_fallthru
          _
        // Predicated region
        $region37: #{sslae_forward.5} parent=31 // pred_check
          %p570 = pneg %p170
        $region38: #{sslae_forward.5} parent=31 // pred_check_branch
          %572 = sbr.rel (%p570) target = $region40
        $region39: #{sslae_forward.5} parent=31 // pred_region
          %s573 = sand.u32 %s40, 1
          %s574 = scalar_lea.sflag [#allocation7], %s573
          %s575 = sand.u32 %s160, 1
          %s576 = scalar_lea.vmem [#allocation8], %s575
          %s578 = ssub.s32 16, 16
          %579 = vsyncadd %s574, %s578
          %s580 = smul.addr %s40, 16
          %s581 = scalar_lea.hbm %s5, %s580
          %s583 = sshll.u32 %s576, 4
          %s584 = int_to_ptr.vmem [resolvable:$true] %s583
          %586 = dma.hbm_to_vmem [thread:$0]  %s581, 16, %s584, %s574
        $region40: #{sslae_forward.5} parent=31 // pred_fallthru
          _
        // Predicated region
        $region41: #{sslae_forward.5} parent=31 // pred_check
          %p587 = pneg %p196
        $region42: #{sslae_forward.5} parent=31 // pred_check_branch
          %589 = sbr.rel (%p587) target = $region44
        $region43: #{sslae_forward.5} parent=31 // pred_region
          %p590 = scmp.lt.s32.totalorder %s40, 3
          %s591 = scalar_select %p590, %s40, 3
          %s592 = smul.addr %s591, 48
          %s593 = smul.addr %s592, 4
          %s594 = scalar_lea.vmem %s6, %s593
        $region44: #{sslae_forward.5} parent=31 // pred_fallthru
          _
        // Predicated region
        $region45: #{sslae_forward.5} parent=31 // pred_check
          %p595 = pneg %p222
        $region46: #{sslae_forward.5} parent=31 // pred_check_branch
          %597 = sbr.rel (%p595) target = $region48
        $region47: #{sslae_forward.5} parent=31 // pred_region
          %p598 = scmp.lt.s32.totalorder %s40, 3
          %s599 = scalar_select %p598, %s40, 3
          %s600 = smul.addr %s599, 3
          %s601 = scalar_lea.vmem %s7, %s600
        $region48: #{sslae_forward.5} parent=31 // pred_fallthru
          _
        // Predicated region
        $region49: #{sslae_forward.5} parent=31 // pred_check
          %p602 = pneg %p248
        $region50: #{sslae_forward.5} parent=31 // pred_check_branch
          %604 = sbr.rel (%p602) target = $region52
        $region51: #{sslae_forward.5} parent=31 // pred_region
          %s605 = sand.u32 %s40, 1
          %s606 = scalar_lea.sflag [#allocation10], %s605
          %s607 = sand.u32 %s238, 1
          %s608 = smul.addr %s607, 64
          %s609 = scalar_lea.vmem [#allocation9], %s608
          %s611 = ssub.s32 1024, 1024
          %612 = vsyncadd %s606, %s611
          %s613 = smul.addr %s40, 16
          %s614 = smul.addr %s613, 64
          %s615 = scalar_lea.hbm %s8, %s614
          %s616 = sshll.u32 %s609, 4
          %s617 = int_to_ptr.vmem [resolvable:$true] %s616
          %622 = dma.hbm_to_vmem [thread:$0]  %s615, 1024, %s617, %s606, 64, 64, 4
        $region52: #{sslae_forward.5} parent=31 // pred_fallthru
          _
        // Predicated region
        $region53: #{sslae_forward.5} parent=31 // pred_check
          %p623 = pneg %p274
        $region54: #{sslae_forward.5} parent=31 // pred_check_branch
          %625 = sbr.rel (%p623) target = $region56
        $region55: #{sslae_forward.5} parent=31 // pred_region
          %p626 = scmp.lt.s32.totalorder %s40, 3
          %s627 = scalar_select %p626, %s40, 3
          %s628 = scalar_lea.vmem %s9, %s627
        $region56: #{sslae_forward.5} parent=31 // pred_fallthru
          _
        // Predicated region
        $region57: #{sslae_forward.5} parent=31 // pred_check
          %p629 = pneg %p300
        $region58: #{sslae_forward.5} parent=31 // pred_check_branch
          %631 = sbr.rel (%p629) target = $region60
        $region59: #{sslae_forward.5} parent=31 // pred_region
          %s632 = sand.u32 %s40, 1
          %s633 = scalar_lea.sflag [#allocation10], %s632
          %s634 = sand.u32 %s290, 1
          %s635 = scalar_lea.vmem [#allocation11], %s634
          %s637 = ssub.s32 16, 16
          %638 = vsyncadd %s633, %s637
          %s639 = smul.addr %s40, 16
          %s640 = scalar_lea.hbm %s10, %s639
          %s642 = sshll.u32 %s635, 4
          %s643 = int_to_ptr.vmem [resolvable:$true] %s642
          %645 = dma.hbm_to_vmem [thread:$0]  %s640, 16, %s643, %s633
        $region60: #{sslae_forward.5} parent=31 // pred_fallthru
          _
        // Predicated region
        $region61: #{sslae_forward.5} parent=31 // pred_check
          %p646 = pneg %p326
        $region62: #{sslae_forward.5} parent=31 // pred_check_branch
          %648 = sbr.rel (%p646) target = $region64
        $region63: #{sslae_forward.5} parent=31 // pred_region
          %s649 = sand.u32 %s40, 1
          %s650 = scalar_lea.sflag [#allocation13], %s649
          %s651 = sand.u32 %s316, 1
          %s652 = scalar_lea.vmem [#allocation12], %s651
          %s654 = ssub.s32 16, 16
          %655 = vsyncadd %s650, %s654
          %s656 = smul.addr %s40, 16
          %s657 = scalar_lea.hbm %s11, %s656
          %s659 = sshll.u32 %s652, 4
          %s660 = int_to_ptr.vmem [resolvable:$true] %s659
          %662 = dma.hbm_to_vmem [thread:$0]  %s657, 16, %s660, %s650
        $region64: #{sslae_forward.5} parent=31 // pred_fallthru
          _
        // Predicated region
        $region65: #{sslae_forward.5} parent=31 // pred_check
          %p663 = pneg %p352
        $region66: #{sslae_forward.5} parent=31 // pred_check_branch
          %665 = sbr.rel (%p663) target = $region68
        $region67: #{sslae_forward.5} parent=31 // pred_region
          %p666 = scmp.lt.s32.totalorder %s40, 3
          %s667 = scalar_select %p666, %s40, 3
          %s668 = smul.addr %s667, 64
          %s669 = smul.addr %s668, 4
          %s670 = scalar_lea.vmem %s12, %s669
        $region68: #{sslae_forward.5} parent=31 // pred_fallthru
          _
        // Predicated region
        $region69: #{sslae_forward.5} parent=31 // pred_check
          %p671 = pneg %p378
        $region70: #{sslae_forward.5} parent=31 // pred_check_branch
          %673 = sbr.rel (%p671) target = $region72
        $region71: #{sslae_forward.5} parent=31 // pred_region
          %s674 = sand.u32 %s40, 1
          %s675 = scalar_lea.sflag [#allocation13], %s674
          %s676 = sand.u32 %s368, 1
          %s677 = smul.addr %s676, 4
          %s678 = scalar_lea.vmem [#allocation14], %s677
          %s680 = ssub.s32 64, 64
          %681 = vsyncadd %s675, %s680
          %s682 = smul.addr %s40, 4
          %s683 = smul.addr %s682, 16
          %s684 = scalar_lea.hbm %s13, %s683
          %s686 = sshll.u32 %s678, 4
          %s687 = int_to_ptr.vmem [resolvable:$true] %s686
          %689 = dma.hbm_to_vmem [thread:$0]  %s684, 64, %s687, %s675
        $region72: #{sslae_forward.5} parent=31 // pred_fallthru
          _
        // Predicated region
        $region73: #{sslae_forward.5} parent=31 // pred_check
          %p690 = pneg %p404
        $region74: #{sslae_forward.5} parent=31 // pred_check_branch
          %692 = sbr.rel (%p690) target = $region76
        $region75: #{sslae_forward.5} parent=31 // pred_region
          %s693 = sand.u32 %s40, 1
          %s694 = scalar_lea.sflag [#allocation16], %s693
          %s695 = sand.u32 %s394, 1
          %s696 = smul.addr %s695, 256
          %s697 = scalar_lea.vmem [#allocation15], %s696
          %s699 = ssub.s32 4096, 4096
          %700 = vsyncadd %s694, %s699
          %s701 = smul.addr %s40, 64
          %s702 = smul.addr %s701, 64
          %s703 = scalar_lea.hbm %s14, %s702
          %s704 = sshll.u32 %s697, 4
          %s705 = int_to_ptr.vmem [resolvable:$true] %s704
          %710 = dma.hbm_to_vmem [thread:$0]  %s703, 4096, %s705, %s694, 64, 64, 4
        $region76: #{sslae_forward.5} parent=31 // pred_fallthru
          _
        // Predicated region
        $region77: #{sslae_forward.5} parent=31 // pred_check
          %p711 = pneg %p430
        $region78: #{sslae_forward.5} parent=31 // pred_check_branch
          %713 = sbr.rel (%p711) target = $region80
        $region79: #{sslae_forward.5} parent=31 // pred_region
          %s714 = sand.u32 %s40, 1
          %s715 = scalar_lea.sflag [#allocation16], %s714
          %s716 = sand.u32 %s420, 1
          %s717 = scalar_lea.vmem [#allocation17], %s716
          %s719 = ssub.s32 16, 16
          %720 = vsyncadd %s715, %s719
          %s721 = smul.addr %s40, 16
          %s722 = scalar_lea.hbm %s15, %s721
          %s724 = sshll.u32 %s717, 4
          %s725 = int_to_ptr.vmem [resolvable:$true] %s724
          %727 = dma.hbm_to_vmem [thread:$0]  %s722, 16, %s725, %s715
        $region80: #{sslae_forward.5} parent=31 // pred_fallthru
          _
        // Predicated region
        $region81: #{sslae_forward.5} parent=31 // pred_check
          %p728 = pneg %p456
        $region82: #{sslae_forward.5} parent=31 // pred_check_branch
          %730 = sbr.rel (%p728) target = $region84
        $region83: #{sslae_forward.5} parent=31 // pred_region
          %s731 = sand.u32 %s40, 1
          %s732 = scalar_lea.sflag [#allocation19], %s731
          %s733 = sand.u32 %s446, 1
          %s734 = smul.addr %s733, 64
          %s735 = scalar_lea.vmem [#allocation18], %s734
          %s737 = ssub.s32 1024, 1024
          %738 = vsyncadd %s732, %s737
          %s739 = smul.addr %s40, 16
          %s740 = smul.addr %s739, 64
          %s741 = scalar_lea.hbm %s16, %s740
          %s742 = sshll.u32 %s735, 4
          %s743 = int_to_ptr.vmem [resolvable:$true] %s742
          %748 = dma.hbm_to_vmem [thread:$0]  %s741, 1024, %s743, %s732, 64, 64, 4
        $region84: #{sslae_forward.5} parent=31 // pred_fallthru
          _
        // Predicated region
        $region85: #{sslae_forward.5} parent=31 // pred_check
          %p749 = pneg %p482
        $region86: #{sslae_forward.5} parent=31 // pred_check_branch
          %751 = sbr.rel (%p749) target = $region88
        $region87: #{sslae_forward.5} parent=31 // pred_region
          %s752 = sand.u32 %s40, 1
          %s753 = scalar_lea.sflag [#allocation19], %s752
          %s754 = sand.u32 %s472, 1
          %s755 = scalar_lea.vmem [#allocation20], %s754
          %s757 = ssub.s32 16, 16
          %758 = vsyncadd %s753, %s757
          %s759 = smul.addr %s40, 16
          %s760 = scalar_lea.hbm %s17, %s759
          %s762 = sshll.u32 %s755, 4
          %s763 = int_to_ptr.vmem [resolvable:$true] %s762
          %765 = dma.hbm_to_vmem [thread:$0]  %s760, 16, %s763, %s753
        $region88: #{sslae_forward.5} parent=31 // pred_fallthru
          _
      $region32: #{sslae_forward.5} parent=5 // pred_fallthru
        _
      %p766 = scmp.le.s32.totalorder 1, %s40
      %p767 = scmp.lt.s32.totalorder %s40, 5
      %p768 = pnand %p766, %p767
      %p769 = pneg %p768
      // Predicated region
      $region89: #{sslae_forward.5} parent=5 // pred_check
        _
      $region90: #{sslae_forward.5} parent=5 // pred_check_branch
        %771 = sbr.rel (%p768) target = $region92
      $region91: #{sslae_forward.5} parent=5 // pred_region
        %s772 = ssub.s32 %s40, 1
        // Predicated region
        $region93: #{sslae_forward.5} parent=91 // pred_check
          %p773 = pneg %p103
        $region94: #{sslae_forward.5} parent=91 // pred_check_branch
          %775 = sbr.rel (%p773) target = $region96
        $region95: #{sslae_forward.5} parent=91 // pred_region
          %776 = dma.done [#allocation5], 16
        $region96: #{sslae_forward.5} parent=91 // pred_fallthru
          _
        %s777 = sand.u32 %s45, 1
        %s778 = scalar_lea.sflag [#allocation7], %s777
        %s779 = sand.u32 %s137, 1
        %s780 = scalar_lea.vmem [#allocation6], %s779
        // Predicated region
        $region97: #{sslae_forward.5} parent=91 // pred_check
          %p781 = pneg %p150
        $region98: #{sslae_forward.5} parent=91 // pred_check_branch
          %783 = sbr.rel (%p781) target = $region100
        $region99: #{sslae_forward.5} parent=91 // pred_region
          %784 = dma.done %s778, 16
        $region100: #{sslae_forward.5} parent=91 // pred_fallthru
          _
        %s785 = sand.u32 %s45, 1
        %s786 = scalar_lea.sflag [#allocation7], %s785
        %s787 = sand.u32 %s163, 1
        %s788 = scalar_lea.vmem [#allocation8], %s787
        // Predicated region
        $region101: #{sslae_forward.5} parent=91 // pred_check
          %p789 = pneg %p176
        $region102: #{sslae_forward.5} parent=91 // pred_check_branch
          %791 = sbr.rel (%p789) target = $region104
        $region103: #{sslae_forward.5} parent=91 // pred_region
          %792 = dma.done %s786, 16
        $region104: #{sslae_forward.5} parent=91 // pred_fallthru
          _
        %s793 = sand.u32 %s45, 1
        %s794 = scalar_lea.sflag [#allocation10], %s793
        %s795 = sand.u32 %s241, 1
        %s796 = smul.addr %s795, 64
        %s797 = scalar_lea.vmem [#allocation9], %s796
        // Predicated region
        $region105: #{sslae_forward.5} parent=91 // pred_check
          %p798 = pneg %p254
        $region106: #{sslae_forward.5} parent=91 // pred_check_branch
          %800 = sbr.rel (%p798) target = $region108
        $region107: #{sslae_forward.5} parent=91 // pred_region
          %801 = dma.done %s794, 1024
        $region108: #{sslae_forward.5} parent=91 // pred_fallthru
          _
        %s802 = sand.u32 %s45, 1
        %s803 = scalar_lea.sflag [#allocation10], %s802
        %s804 = sand.u32 %s293, 1
        %s805 = scalar_lea.vmem [#allocation11], %s804
        // Predicated region
        $region109: #{sslae_forward.5} parent=91 // pred_check
          %p806 = pneg %p306
        $region110: #{sslae_forward.5} parent=91 // pred_check_branch
          %808 = sbr.rel (%p806) target = $region112
        $region111: #{sslae_forward.5} parent=91 // pred_region
          %809 = dma.done %s803, 16
        $region112: #{sslae_forward.5} parent=91 // pred_fallthru
          _
        %s810 = sand.u32 %s45, 1
        %s811 = scalar_lea.sflag [#allocation13], %s810
        %s812 = sand.u32 %s319, 1
        %s813 = scalar_lea.vmem [#allocation12], %s812
        // Predicated region
        $region113: #{sslae_forward.5} parent=91 // pred_check
          %p814 = pneg %p332
        $region114: #{sslae_forward.5} parent=91 // pred_check_branch
          %816 = sbr.rel (%p814) target = $region116
        $region115: #{sslae_forward.5} parent=91 // pred_region
          %817 = dma.done %s811, 16
        $region116: #{sslae_forward.5} parent=91 // pred_fallthru
          _
        %s818 = sand.u32 %s45, 1
        %s819 = scalar_lea.sflag [#allocation13], %s818
        %s820 = sand.u32 %s371, 1
        %s821 = smul.addr %s820, 4
        %s822 = scalar_lea.vmem [#allocation14], %s821
        // Predicated region
        $region117: #{sslae_forward.5} parent=91 // pred_check
          %p823 = pneg %p384
        $region118: #{sslae_forward.5} parent=91 // pred_check_branch
          %825 = sbr.rel (%p823) target = $region120
        $region119: #{sslae_forward.5} parent=91 // pred_region
          %826 = dma.done %s819, 64
        $region120: #{sslae_forward.5} parent=91 // pred_fallthru
          _
        %s827 = sand.u32 %s45, 1
        %s828 = scalar_lea.sflag [#allocation16], %s827
        %s829 = sand.u32 %s397, 1
        %s830 = smul.addr %s829, 256
        %s831 = scalar_lea.vmem [#allocation15], %s830
        // Predicated region
        $region121: #{sslae_forward.5} parent=91 // pred_check
          %p832 = pneg %p410
        $region122: #{sslae_forward.5} parent=91 // pred_check_branch
          %834 = sbr.rel (%p832) target = $region124
        $region123: #{sslae_forward.5} parent=91 // pred_region
          %835 = dma.done %s828, 4096
        $region124: #{sslae_forward.5} parent=91 // pred_fallthru
          _
        %s836 = sand.u32 %s45, 1
        %s837 = scalar_lea.sflag [#allocation16], %s836
        %s838 = sand.u32 %s423, 1
        %s839 = scalar_lea.vmem [#allocation17], %s838
        // Predicated region
        $region125: #{sslae_forward.5} parent=91 // pred_check
          %p840 = pneg %p436
        $region126: #{sslae_forward.5} parent=91 // pred_check_branch
          %842 = sbr.rel (%p840) target = $region128
        $region127: #{sslae_forward.5} parent=91 // pred_region
          %843 = dma.done %s837, 16
        $region128: #{sslae_forward.5} parent=91 // pred_fallthru
          _
        %s844 = sand.u32 %s45, 1
        %s845 = scalar_lea.sflag [#allocation19], %s844
        %s846 = sand.u32 %s449, 1
        %s847 = smul.addr %s846, 64
        %s848 = scalar_lea.vmem [#allocation18], %s847
        // Predicated region
        $region129: #{sslae_forward.5} parent=91 // pred_check
          %p849 = pneg %p462
        $region130: #{sslae_forward.5} parent=91 // pred_check_branch
          %851 = sbr.rel (%p849) target = $region132
        $region131: #{sslae_forward.5} parent=91 // pred_region
          %852 = dma.done %s845, 1024
        $region132: #{sslae_forward.5} parent=91 // pred_fallthru
          _
        %s853 = sand.u32 %s45, 1
        %s854 = scalar_lea.sflag [#allocation19], %s853
        %s855 = sand.u32 %s475, 1
        %s856 = scalar_lea.vmem [#allocation20], %s855
        // Predicated region
        $region133: #{sslae_forward.5} parent=91 // pred_check
          %p857 = pneg %p488
        $region134: #{sslae_forward.5} parent=91 // pred_check_branch
          %859 = sbr.rel (%p857) target = $region136
        $region135: #{sslae_forward.5} parent=91 // pred_region
          %860 = dma.done %s854, 16
        $region136: #{sslae_forward.5} parent=91 // pred_fallthru
          _
        %p861 = pneg %p61
        %p862 = pneg %p58
        %p863 = pneg %p82
        %p864 = pneg %p79
        %p865 = pneg %p103
        %p866 = pneg %p100
        %p867 = pneg %p124
        %p868 = pneg %p121
        %s869 = sand.u32 %s45, 1
        %s870 = scalar_lea.sflag [#allocation7], %s869
        %s871 = sand.u32 %s137, 1
        %s872 = scalar_lea.vmem [#allocation6], %s871
        %p873 = pneg %p150
        %p874 = pneg %p147
        %s875 = sand.u32 %s45, 1
        %s876 = scalar_lea.sflag [#allocation7], %s875
        %s877 = sand.u32 %s163, 1
        %s878 = scalar_lea.vmem [#allocation8], %s877
        %p879 = pneg %p176
        %p880 = pneg %p173
        %p881 = scmp.lt.s32.totalorder %s45, 3
        %s882 = scalar_select %p881, %s45, 3
        %s883 = smul.addr %s882, 48
        %s884 = smul.addr %s883, 4
        %s885 = scalar_lea.vmem %s6, %s884
        %p886 = pneg %p202
        %p887 = pneg %p199
        %p888 = scmp.lt.s32.totalorder %s45, 3
        %s889 = scalar_select %p888, %s45, 3
        %s890 = smul.addr %s889, 3
        %s891 = scalar_lea.vmem %s7, %s890
        %p892 = pneg %p228
        %p893 = pneg %p225
        %s894 = sand.u32 %s45, 1
        %s895 = scalar_lea.sflag [#allocation10], %s894
        %s896 = sand.u32 %s241, 1
        %s897 = smul.addr %s896, 64
        %s898 = scalar_lea.vmem [#allocation9], %s897
        %p899 = pneg %p254
        %p900 = pneg %p251
        %p901 = scmp.lt.s32.totalorder %s45, 3
        %s902 = scalar_select %p901, %s45, 3
        %s903 = scalar_lea.vmem %s9, %s902
        %p904 = pneg %p280
        %p905 = pneg %p277
        %s906 = sand.u32 %s45, 1
        %s907 = scalar_lea.sflag [#allocation10], %s906
        %s908 = sand.u32 %s293, 1
        %s909 = scalar_lea.vmem [#allocation11], %s908
        %p910 = pneg %p306
        %p911 = pneg %p303
        %s912 = sand.u32 %s45, 1
        %s913 = scalar_lea.sflag [#allocation13], %s912
        %s914 = sand.u32 %s319, 1
        %s915 = scalar_lea.vmem [#allocation12], %s914
        %p916 = pneg %p332
        %p917 = pneg %p329
        %p918 = scmp.lt.s32.totalorder %s45, 3
        %s919 = scalar_select %p918, %s45, 3
        %s920 = smul.addr %s919, 64
        %s921 = smul.addr %s920, 4
        %s922 = scalar_lea.vmem %s12, %s921
        %p923 = pneg %p358
        %p924 = pneg %p355
        %s925 = sand.u32 %s45, 1
        %s926 = scalar_lea.sflag [#allocation13], %s925
        %s927 = sand.u32 %s371, 1
        %s928 = smul.addr %s927, 4
        %s929 = scalar_lea.vmem [#allocation14], %s928
        %p930 = pneg %p384
        %p931 = pneg %p381
        %s932 = sand.u32 %s45, 1
        %s933 = scalar_lea.sflag [#allocation16], %s932
        %s934 = sand.u32 %s397, 1
        %s935 = smul.addr %s934, 256
        %s936 = scalar_lea.vmem [#allocation15], %s935
        %p937 = pneg %p410
        %p938 = pneg %p407
        %s939 = sand.u32 %s45, 1
        %s940 = scalar_lea.sflag [#allocation16], %s939
        %s941 = sand.u32 %s423, 1
        %s942 = scalar_lea.vmem [#allocation17], %s941
        %p943 = pneg %p436
        %p944 = pneg %p433
        %s945 = sand.u32 %s45, 1
        %s946 = scalar_lea.sflag [#allocation19], %s945
        %s947 = sand.u32 %s449, 1
        %s948 = smul.addr %s947, 64
        %s949 = scalar_lea.vmem [#allocation18], %s948
        %p950 = pneg %p462
        %p951 = pneg %p459
        %s952 = sand.u32 %s45, 1
        %s953 = scalar_lea.sflag [#allocation19], %s952
        %s954 = sand.u32 %s475, 1
        %s955 = scalar_lea.vmem [#allocation20], %s954
        %p956 = pneg %p488
        %p957 = pneg %p485
        %p958 = pneg %p514
        %p959 = pneg %p511
        %p960 = scmp.lt.s32.totalorder %s45, 3
        %s961 = scalar_select %p960, %s45, 3
        %s962 = smul.addr %s961, 4
        %s963 = smul.addr %s962, 8
        %s964 = scalar_lea.vmem %s18, %s963
        %p965 = scmp.lt.s32.totalorder %s45, 3
        %s966 = scalar_select %p965, %s45, 3
        %s967 = smul.addr %s966, 48
        %s968 = smul.addr %s967, 4
        %s969 = scalar_lea.vmem %s6, %s968
        %p970 = scmp.lt.s32.totalorder %s45, 3
        %s971 = scalar_select %p970, %s45, 3
        %s972 = smul.addr %s971, 3
        %s973 = scalar_lea.vmem %s7, %s972
        %p974 = scmp.lt.s32.totalorder %s45, 3
        %s975 = scalar_select %p974, %s45, 3
        %s976 = scalar_lea.vmem %s9, %s975
        %p977 = scmp.lt.s32.totalorder %s45, 3
        %s978 = scalar_select %p977, %s45, 3
        %s979 = smul.addr %s978, 64
        %s980 = smul.addr %s979, 4
        %s981 = scalar_lea.vmem %s12, %s980
        %p982 = scmp.lt.s32.totalorder %s45, 3
        %s983 = scalar_select %p982, %s45, 3
        %s984 = smul.addr %s983, 4
        %s985 = smul.addr %s984, 8
        %s986 = scalar_lea.vmem %s18, %s985
        %p988 = scmp.eq.s32.totalorder %s45, 0
        // Predicated region
        $region137: #{sslae_forward.5} parent=91 // pred_check
          %p989 = pneg %p988
        $region138: #{sslae_forward.5} parent=91 // pred_check_branch
          %991 = sbr.rel (%p989) target = $region140
        $region139: #{sslae_forward.5} parent=91 // pred_region
          %v992 = vld [vmem:[%s0] sm:$0xff]
          %v993 = vld [vmem:[%s0 + $0x8] sm:$0xff]
          %v994 = vld [vmem:[%s0 + $0x10] sm:$0xff]
          %v995 = vld [vmem:[%s0 + $0x18] sm:$0xff]
          %v996 = vpack.c.bf16 %v993, %v992
          %v997 = vpack.c.bf16 %v995, %v994
          %v998 = vld [vmem:[%s1] sm:$0xf]
          %v999 = vld [vmem:[%s1 + $0x4] sm:$0xf]
          %v1000 = vld [vmem:[%s1 + $0x8] sm:$0xf]
          %v1001 = vld [vmem:[%s1 + $0xc] sm:$0xf]
          %v1002 = vld [vmem:[%s1 + $0x10] sm:$0xf]
          %v1003 = vld [vmem:[%s1 + $0x14] sm:$0xf]
          %v1004 = vld [vmem:[#allocation4] sm:$0x1]
          %v1006 = vlaneseq
          %v1007 = vshrl.u32 %v1006, 7
          %v1008 = vsub.s32 0, %v1007
          %v1009 = vrot.slane %v1004, %v1008
          %v1017 = vunpack.c.l.b16 %v998
          %v1018 = vunpack.c.l.b16 %v999
          %v1019 = vunpack.c.l.b16 %v1000
          %v1020 = vunpack.c.l.b16 %v1001
          %v1021 = vunpack.c.l.b16 %v1002
          %v1022 = vunpack.c.l.b16 %v1003
          %v1023 = vpack.c.b16 %v1018, %v1017
          %v1024 = vpack.c.b16 %v1020, %v1019
          %v1025 = vpack.c.b16 %v1022, %v1021
          %vm1029 = vcmask 392192
          %v1031 = vsel %vm1029, %v996, 0
          %v1034 = vsel %vm1029, %v997, 0
          %1036 = vmatprep.subr.bf16.mxu0 0
          %1037 = vmatpush1.bf16.msra.mxu0 0
          %1038 = vmatprep.subr.bf16.mxu0 0
          %1039 = vmatpush1.bf16.msra.mxu0 0
          %1040 = vmatprep.subr.bf16.mxu0 0
          %1041 = vmatpush1.bf16.msra.mxu0 0
          %1042 = vmatprep.subr.bf16.mxu0 0
          %1043 = vmatpush1.bf16.msra.mxu0 0
          %1044 = vmatprep.subr.bf16.mxu0 0
          %1045 = vmatpush1.bf16.msra.mxu0 0
          %1046 = vmatprep.subr.bf16.mxu0 0
          %1047 = vmatpush1.bf16.msra.mxu0 %v1025
          %1048 = vmatprep.subr.bf16.mxu0 0
          %1049 = vmatpush1.bf16.msra.mxu0 %v1024
          %1050 = vmatprep.subr.bf16.mxu0 0
          %1051 = vmatpush1.bf16.msra.mxu0 %v1023
          %1052 = vmatprep.subr.bf16.mxu0 0
          %1053 = vmatpush2.bf16.msra.mxu0 0
          %1054 = vmatprep.subr.bf16.mxu0 0
          %1055 = vmatpush2.bf16.msra.mxu0 0
          %1056 = vmatprep.subr.bf16.mxu0 0
          %1057 = vmatpush2.bf16.msra.mxu0 0
          %1058 = vmatprep.subr.bf16.mxu0 0
          %1059 = vmatpush2.bf16.msra.mxu0 0
          %1060 = vmatprep.subr.bf16.mxu0 0
          %1061 = vmatpush2.bf16.msra.mxu0 0
          %1062 = vmatprep.subr.bf16.mxu0 0
          %1063 = vmatpush2.bf16.msra.mxu0 0
          %1064 = vmatprep.subr.bf16.mxu0 0
          %1065 = vmatpush2.bf16.msra.mxu0 0
          %1066 = vmatprep.subr.bf16.mxu0 0
          %1067 = vmatpush2.bf16.msra.mxu0 0
          %1068 = vmatprep.mubr.bf16.mxu0 0
          %1069 = vmatmul.mubr.bf16.gmra.mxu0 %v1031
          %v1070 = vpop.f32.mrf.mxu0
          %v1071 = vadd.f32 %v1009, %v1070
          %v1072 = vpop.f32.mrf.mxu0
          %v1073 = vpop.f32.mrf.mxu0
          %v1074 = vadd.f32 %v1009, %v1073
          %v1075 = vpop.f32.mrf.mxu0
          %1076 = vmatprep.mubr.bf16.mxu0 0
          %1077 = vmatmul.mubr.bf16.gmra.mxu0 %v1034
          %v1078 = vpop.f32.mrf.mxu0
          %v1079 = vadd.f32 %v1009, %v1078
          %v1080 = vpop.f32.mrf.mxu0
          %v1081 = vpop.f32.mrf.mxu0
          %v1082 = vadd.f32 %v1009, %v1081
          %v1083 = vpop.f32.mrf.mxu0
          %1084 = vdwg.mxu0
          %v1085 = vld [vmem:[%s3] sm:$0xff]
          %v1086 = vld [vmem:[%s3 + $0x8] sm:$0xff]
          %v1087 = vld [vmem:[%s3 + $0x10] sm:$0xff]
          %v1088 = vld [vmem:[%s3 + $0x18] sm:$0xff]
          %v1089 = vadd.f32 %v1071, %v1085
          %v1090 = vadd.f32 %v1074, %v1086
          %v1091 = vadd.f32 %v1079, %v1087
          %v1092 = vadd.f32 %v1082, %v1088
          %1093 = vst [vmem:[#allocation2] sm:$0xff] %v1089
          %1094 = vst [vmem:[#allocation2 + $0x8] sm:$0xff] %v1090
          %1095 = vst [vmem:[#allocation2 + $0x10] sm:$0xff] %v1091
          %1096 = vst [vmem:[#allocation2 + $0x18] sm:$0xff] %v1092
        $region140: #{sslae_forward.5} parent=91 // pred_fallthru
          _
        %v1097 = vld [vmem:[#allocation2] sm:$0xff]
        %v1098 = vld [vmem:[#allocation2 + $0x8] sm:$0xff]
        %v1099 = vld [vmem:[#allocation2 + $0x10] sm:$0xff]
        %v1100 = vld [vmem:[#allocation2 + $0x18] sm:$0xff]
        %v1101 = vld [vmem:[%s780] sm:$0x1]
        %v1102 = vld [vmem:[%s788] sm:$0x1]
        %1103 = vadd.xlane.f32.xlu0 %v1097
        %v1104 = vpop.xlane.xlu0 %1103
        %1105 = vadd.xlane.f32.xlu0 %v1098
        %v1106 = vpop.xlane.xlu0 %1105
        %1107 = vadd.xlane.f32.xlu0 %v1099
        %v1108 = vpop.xlane.xlu0 %1107
        %1109 = vadd.xlane.f32.xlu0 %v1100
        %v1110 = vpop.xlane.xlu0 %1109
        %v1111 = vrcp.pop 128.0
        %v1112 = vmul.f32 %v1104, %v1111
        %v1113 = vmul.f32 %v1106, %v1111
        %v1114 = vmul.f32 %v1108, %v1111
        %v1115 = vmul.f32 %v1110, %v1111
        %v1116 = vsub.f32 %v1097, %v1112
        %v1117 = vsub.f32 %v1098, %v1113
        %v1118 = vsub.f32 %v1099, %v1114
        %v1119 = vsub.f32 %v1100, %v1115
        %v1120 = vmul.f32 %v1116, %v1116
        %v1121 = vmul.f32 %v1117, %v1117
        %v1122 = vmul.f32 %v1118, %v1118
        %v1123 = vmul.f32 %v1119, %v1119
        %1124 = vadd.xlane.f32.xlu0 %v1120
        %v1125 = vpop.xlane.xlu0 %1124
        %1126 = vadd.xlane.f32.xlu0 %v1121
        %v1127 = vpop.xlane.xlu0 %1126
        %1128 = vadd.xlane.f32.xlu0 %v1122
        %v1129 = vpop.xlane.xlu0 %1128
        %1130 = vadd.xlane.f32.xlu0 %v1123
        %v1131 = vpop.xlane.xlu0 %1130
        %v1132 = vmul.f32 %v1125, %v1111
        %v1133 = vmul.f32 %v1127, %v1111
        %v1134 = vmul.f32 %v1129, %v1111
        %v1135 = vmul.f32 %v1131, %v1111
        %v1136 = vadd.f32 %v1132, 1e-06
        %v1137 = vadd.f32 %v1133, 1e-06
        %v1138 = vadd.f32 %v1134, 1e-06
        %v1139 = vadd.f32 %v1135, 1e-06
        %v1140 = vrsqrt.pop %v1136
        %v1141 = vrsqrt.pop %v1137
        %v1142 = vrsqrt.pop %v1138
        %v1143 = vrsqrt.pop %v1139
        %v1144 = vmul.f32 %v1116, %v1140
        %v1145 = vmul.f32 %v1117, %v1141
        %v1146 = vmul.f32 %v1118, %v1142
        %v1147 = vmul.f32 %v1119, %v1143
        %v1149 = vlaneseq
        %v1150 = vshrl.u32 %v1149, 7
        %v1151 = vsub.s32 0, %v1150
        %v1152 = vrot.slane %v1101, %v1151
        %v1154 = vmul.f32 %v1144, %v1152
        %v1155 = vmul.f32 %v1145, %v1152
        %v1156 = vmul.f32 %v1146, %v1152
        %v1157 = vmul.f32 %v1147, %v1152
        %v1159 = vlaneseq
        %v1160 = vshrl.u32 %v1159, 7
        %v1161 = vsub.s32 0, %v1160
        %v1162 = vrot.slane %v1102, %v1161
        %v1164 = vadd.f32 %v1154, %v1162
        %v1165 = vadd.f32 %v1155, %v1162
        %v1166 = vadd.f32 %v1156, %v1162
        %v1167 = vadd.f32 %v1157, %v1162
        %v1168 = vpack.c.bf16 %v1165, %v1164
        %v1169 = vpack.c.bf16 %v1167, %v1166
        %v1170 = vld [vmem:[%s969] sm:$0xff]
        %v1171 = vld [vmem:[%s969 + $0x8] sm:$0xf]
        %v1172 = vld [vmem:[%s969 + $0xc] sm:$0xff]
        %v1173 = vld [vmem:[%s969 + $0x14] sm:$0xf]
        %v1174 = vld [vmem:[%s969 + $0x18] sm:$0xff]
        %v1175 = vld [vmem:[%s969 + $0x20] sm:$0xf]
        %v1176 = vld [vmem:[%s969 + $0x24] sm:$0xff]
        %v1177 = vld [vmem:[%s969 + $0x2c] sm:$0xf]
        %v1178 = vld [vmem:[%s969 + $0x30] sm:$0xff]
        %v1179 = vld [vmem:[%s969 + $0x38] sm:$0xf]
        %v1180 = vld [vmem:[%s969 + $0x3c] sm:$0xff]
        %v1181 = vld [vmem:[%s969 + $0x44] sm:$0xf]
        %v1182 = vld [vmem:[%s969 + $0x48] sm:$0xff]
        %v1183 = vld [vmem:[%s969 + $0x50] sm:$0xf]
        %v1184 = vld [vmem:[%s969 + $0x54] sm:$0xff]
        %v1185 = vld [vmem:[%s969 + $0x5c] sm:$0xf]
        %v1186 = vld [vmem:[%s969 + $0x60] sm:$0xff]
        %v1187 = vld [vmem:[%s969 + $0x68] sm:$0xf]
        %v1188 = vld [vmem:[%s969 + $0x6c] sm:$0xff]
        %v1189 = vld [vmem:[%s969 + $0x74] sm:$0xf]
        %v1190 = vld [vmem:[%s969 + $0x78] sm:$0xff]
        %v1191 = vld [vmem:[%s969 + $0x80] sm:$0xf]
        %v1192 = vld [vmem:[%s969 + $0x84] sm:$0xff]
        %v1193 = vld [vmem:[%s969 + $0x8c] sm:$0xf]
        %v1194 = vld [vmem:[%s969 + $0x90] sm:$0xff]
        %v1195 = vld [vmem:[%s969 + $0x98] sm:$0xf]
        %v1196 = vld [vmem:[%s969 + $0x9c] sm:$0xff]
        %v1197 = vld [vmem:[%s969 + $0xa4] sm:$0xf]
        %v1198 = vld [vmem:[%s969 + $0xa8] sm:$0xff]
        %v1199 = vld [vmem:[%s969 + $0xb0] sm:$0xf]
        %v1200 = vld [vmem:[%s969 + $0xb4] sm:$0xff]
        %v1201 = vld [vmem:[%s969 + $0xbc] sm:$0xf]
        %v1202 = vld [vmem:[%s973] sm:$0x7]
        %v1204 = vlaneseq
        %v1205 = vshrl.u32 %v1204, 7
        %v1206 = vsub.s32 0, %v1205
        %v1207 = vrot.slane %v1202, %v1206
        %v1208 = vlaneseq
        %v1209 = vshrl.u32 %v1208, 7
        %v1210 = vsub.s32 1, %v1209
        %v1211 = vrot.slane %v1202, %v1210
        %v1212 = vlaneseq
        %v1213 = vshrl.u32 %v1212, 7
        %v1214 = vsub.s32 2, %v1213
        %v1215 = vrot.slane %v1202, %v1214
        %v1251 = vunpack.c.l.b16 %v1170
        %v1252 = vunpack.c.h.b16 %v1170
        %v1253 = vunpack.c.l.b16 %v1171
        %v1254 = vunpack.c.l.b16 %v1172
        %v1255 = vunpack.c.h.b16 %v1172
        %v1256 = vunpack.c.l.b16 %v1173
        %v1257 = vunpack.c.l.b16 %v1174
        %v1258 = vunpack.c.h.b16 %v1174
        %v1259 = vunpack.c.l.b16 %v1175
        %v1260 = vunpack.c.l.b16 %v1176
        %v1261 = vunpack.c.h.b16 %v1176
        %v1262 = vunpack.c.l.b16 %v1177
        %v1263 = vunpack.c.l.b16 %v1178
        %v1264 = vunpack.c.h.b16 %v1178
        %v1265 = vunpack.c.l.b16 %v1179
        %v1266 = vunpack.c.l.b16 %v1180
        %v1267 = vunpack.c.h.b16 %v1180
        %v1268 = vunpack.c.l.b16 %v1181
        %v1269 = vunpack.c.l.b16 %v1182
        %v1270 = vunpack.c.h.b16 %v1182
        %v1271 = vunpack.c.l.b16 %v1183
        %v1272 = vunpack.c.l.b16 %v1184
        %v1273 = vunpack.c.h.b16 %v1184
        %v1274 = vunpack.c.l.b16 %v1185
        %v1275 = vunpack.c.l.b16 %v1186
        %v1276 = vunpack.c.h.b16 %v1186
        %v1277 = vunpack.c.l.b16 %v1187
        %v1278 = vunpack.c.l.b16 %v1188
        %v1279 = vunpack.c.h.b16 %v1188
        %v1280 = vunpack.c.l.b16 %v1189
        %v1281 = vunpack.c.l.b16 %v1190
        %v1282 = vunpack.c.h.b16 %v1190
        %v1283 = vunpack.c.l.b16 %v1191
        %v1284 = vunpack.c.l.b16 %v1192
        %v1285 = vunpack.c.h.b16 %v1192
        %v1286 = vunpack.c.l.b16 %v1193
        %v1287 = vunpack.c.l.b16 %v1194
        %v1288 = vunpack.c.h.b16 %v1194
        %v1289 = vunpack.c.l.b16 %v1195
        %v1290 = vunpack.c.l.b16 %v1196
        %v1291 = vunpack.c.h.b16 %v1196
        %v1292 = vunpack.c.l.b16 %v1197
        %v1293 = vunpack.c.l.b16 %v1198
        %v1294 = vunpack.c.h.b16 %v1198
        %v1295 = vunpack.c.l.b16 %v1199
        %v1296 = vunpack.c.l.b16 %v1200
        %v1297 = vunpack.c.h.b16 %v1200
        %v1298 = vunpack.c.l.b16 %v1201
        %v1299 = vpack.c.b16 %v1254, %v1251
        %v1300 = vpack.c.b16 %v1255, %v1252
        %v1301 = vpack.c.b16 %v1256, %v1253
        %v1302 = vpack.c.b16 %v1260, %v1257
        %v1303 = vpack.c.b16 %v1261, %v1258
        %v1304 = vpack.c.b16 %v1262, %v1259
        %v1305 = vpack.c.b16 %v1266, %v1263
        %v1306 = vpack.c.b16 %v1267, %v1264
        %v1307 = vpack.c.b16 %v1268, %v1265
        %v1308 = vpack.c.b16 %v1272, %v1269
        %v1309 = vpack.c.b16 %v1273, %v1270
        %v1310 = vpack.c.b16 %v1274, %v1271
        %v1311 = vpack.c.b16 %v1278, %v1275
        %v1312 = vpack.c.b16 %v1279, %v1276
        %v1313 = vpack.c.b16 %v1280, %v1277
        %v1314 = vpack.c.b16 %v1284, %v1281
        %v1315 = vpack.c.b16 %v1285, %v1282
        %v1316 = vpack.c.b16 %v1286, %v1283
        %v1317 = vpack.c.b16 %v1290, %v1287
        %v1318 = vpack.c.b16 %v1291, %v1288
        %v1319 = vpack.c.b16 %v1292, %v1289
        %v1320 = vpack.c.b16 %v1296, %v1293
        %v1321 = vpack.c.b16 %v1297, %v1294
        %v1322 = vpack.c.b16 %v1298, %v1295
        %1347 = vmatprep.subr.bf16.mxu0 %v1321
        %1348 = vmatpush1.bf16.msra.mxu0 %v1320
        %1349 = vmatprep.subr.bf16.mxu0 %v1318
        %1350 = vmatpush1.bf16.msra.mxu0 %v1317
        %1351 = vmatprep.subr.bf16.mxu0 %v1315
        %1352 = vmatpush1.bf16.msra.mxu0 %v1314
        %1353 = vmatprep.subr.bf16.mxu0 %v1312
        %1354 = vmatpush1.bf16.msra.mxu0 %v1311
        %1355 = vmatprep.subr.bf16.mxu0 %v1309
        %1356 = vmatpush1.bf16.msra.mxu0 %v1308
        %1357 = vmatprep.subr.bf16.mxu0 %v1306
        %1358 = vmatpush1.bf16.msra.mxu0 %v1305
        %1359 = vmatprep.subr.bf16.mxu0 %v1303
        %1360 = vmatpush1.bf16.msra.mxu0 %v1302
        %1361 = vmatprep.subr.bf16.mxu0 %v1300
        %1362 = vmatpush1.bf16.msra.mxu0 %v1299
        %1363 = vmatprep.subr.bf16.mxu0 0
        %1364 = vmatpush2.bf16.msra.mxu0 0
        %1365 = vmatprep.subr.bf16.mxu0 0
        %1366 = vmatpush2.bf16.msra.mxu0 0
        %1367 = vmatprep.subr.bf16.mxu0 0
        %1368 = vmatpush2.bf16.msra.mxu0 0
        %1369 = vmatprep.subr.bf16.mxu0 0
        %1370 = vmatpush2.bf16.msra.mxu0 0
        %1371 = vmatprep.subr.bf16.mxu0 0
        %1372 = vmatpush2.bf16.msra.mxu0 0
        %1373 = vmatprep.subr.bf16.mxu0 0
        %1374 = vmatpush2.bf16.msra.mxu0 0
        %1375 = vmatprep.subr.bf16.mxu0 0
        %1376 = vmatpush2.bf16.msra.mxu0 0
        %1377 = vmatprep.subr.bf16.mxu0 0
        %1378 = vmatpush2.bf16.msra.mxu0 0
        %1379 = vmatprep.mubr.bf16.mxu0 0
        %1380 = vmatmul.mubr.bf16.gmra.mxu0 %v1168
        %v1381 = vpop.f32.mrf.mxu0
        %v1382 = vadd.f32 %v1207, %v1381
        %v1383 = vpop.f32.mrf.mxu0
        %v1384 = vadd.f32 %v1211, %v1383
        %v1385 = vpop.f32.mrf.mxu0
        %v1386 = vadd.f32 %v1207, %v1385
        %v1387 = vpop.f32.mrf.mxu0
        %v1388 = vadd.f32 %v1211, %v1387
        %1389 = vmatprep.mubr.bf16.mxu0 0
        %1390 = vmatmul.mubr.bf16.gmra.mxu0 %v1169
        %v1391 = vpop.f32.mrf.mxu0
        %v1392 = vadd.f32 %v1207, %v1391
        %v1393 = vpop.f32.mrf.mxu0
        %v1394 = vadd.f32 %v1211, %v1393
        %v1395 = vpop.f32.mrf.mxu0
        %v1396 = vadd.f32 %v1207, %v1395
        %v1397 = vpop.f32.mrf.mxu0
        %v1398 = vadd.f32 %v1211, %v1397
        %1399 = vdwg.mxu0
        %1400 = vmatprep.subr.bf16.mxu0 0
        %1401 = vmatpush1.bf16.msra.mxu0 %v1322
        %1402 = vmatprep.subr.bf16.mxu0 0
        %1403 = vmatpush1.bf16.msra.mxu0 %v1319
        %1404 = vmatprep.subr.bf16.mxu0 0
        %1405 = vmatpush1.bf16.msra.mxu0 %v1316
        %1406 = vmatprep.subr.bf16.mxu0 0
        %1407 = vmatpush1.bf16.msra.mxu0 %v1313
        %1408 = vmatprep.subr.bf16.mxu0 0
        %1409 = vmatpush1.bf16.msra.mxu0 %v1310
        %1410 = vmatprep.subr.bf16.mxu0 0
        %1411 = vmatpush1.bf16.msra.mxu0 %v1307
        %1412 = vmatprep.subr.bf16.mxu0 0
        %1413 = vmatpush1.bf16.msra.mxu0 %v1304
        %1414 = vmatprep.subr.bf16.mxu0 0
        %1415 = vmatpush1.bf16.msra.mxu0 %v1301
        %1416 = vmatprep.subr.bf16.mxu0 0
        %1417 = vmatpush2.bf16.msra.mxu0 0
        %1418 = vmatprep.subr.bf16.mxu0 0
        %1419 = vmatpush2.bf16.msra.mxu0 0
        %1420 = vmatprep.subr.bf16.mxu0 0
        %1421 = vmatpush2.bf16.msra.mxu0 0
        %1422 = vmatprep.subr.bf16.mxu0 0
        %1423 = vmatpush2.bf16.msra.mxu0 0
        %1424 = vmatprep.subr.bf16.mxu0 0
        %1425 = vmatpush2.bf16.msra.mxu0 0
        %1426 = vmatprep.subr.bf16.mxu0 0
        %1427 = vmatpush2.bf16.msra.mxu0 0
        %1428 = vmatprep.subr.bf16.mxu0 0
        %1429 = vmatpush2.bf16.msra.mxu0 0
        %1430 = vmatprep.subr.bf16.mxu0 0
        %1431 = vmatpush2.bf16.msra.mxu0 0
        %1432 = vmatprep.mubr.bf16.mxu0 0
        %1433 = vmatmul.mubr.bf16.gmra.mxu0 %v1168
        %v1434 = vpop.f32.mrf.mxu0
        %v1435 = vadd.f32 %v1215, %v1434
        %v1436 = vpop.f32.mrf.mxu0
        %v1437 = vpop.f32.mrf.mxu0
        %v1438 = vadd.f32 %v1215, %v1437
        %v1439 = vpop.f32.mrf.mxu0
        %1440 = vmatprep.mubr.bf16.mxu0 0
        %1441 = vmatmul.mubr.bf16.gmra.mxu0 %v1169
        %v1442 = vpop.f32.mrf.mxu0
        %v1443 = vadd.f32 %v1215, %v1442
        %v1444 = vpop.f32.mrf.mxu0
        %v1445 = vpop.f32.mrf.mxu0
        %v1446 = vadd.f32 %v1215, %v1445
        %v1447 = vpop.f32.mrf.mxu0
        %1448 = vdwg.mxu0
        %v1449 = vmul.f32 %v1382, 0.17677669
        %v1450 = vmul.f32 %v1386, 0.17677669
        %vm1451 = vcmask 261120
        %v1453 = vsel %vm1451, %v1449, 0
        %v1456 = vsel %vm1451, %v1450, 0
        %v1459 = vsel %vm1451, %v1384, 0
        %v1462 = vsel %vm1451, %v1388, 0
        %1464 = vmatprep.subr.mxu0 0.0
        %1465 = vmatpush1.xpose.msra.mxu0 0.0
        %1466 = vmatprep.subr.mxu0 0.0
        %1467 = vmatpush1.xpose.msra.mxu0 0.0
        %1468 = vmatprep.subr.mxu0 0.0
        %1469 = vmatpush1.xpose.msra.mxu0 0.0
        %1470 = vmatprep.subr.mxu0 0.0
        %1471 = vmatpush1.xpose.msra.mxu0 0.0
        %1472 = vmatprep.subr.mxu0 0.0
        %1473 = vmatpush1.xpose.msra.mxu0 0.0
        %1474 = vmatprep.subr.mxu0 0.0
        %1475 = vmatpush1.xpose.msra.mxu0 0.0
        %1476 = vmatprep.subr.mxu0 0.0
        %1477 = vmatpush1.xpose.msra.mxu0 0.0
        %1478 = vmatprep.subr.mxu0 0.0
        %1479 = vmatpush1.xpose.msra.mxu0 0.0
        %1480 = vmatprep.subr.mxu0 0.0
        %1481 = vmatpush1.xpose.msra.mxu0 0.0
        %1482 = vmatprep.subr.mxu0 0.0
        %1483 = vmatpush1.xpose.msra.mxu0 0.0
        %1484 = vmatprep.subr.mxu0 0.0
        %1485 = vmatpush1.xpose.msra.mxu0 0.0
        %1486 = vmatprep.subr.mxu0 0.0
        %1487 = vmatpush1.xpose.msra.mxu0 0.0
        %1488 = vmatprep.subr.mxu0 0.0
        %1489 = vmatpush1.xpose.msra.mxu0 0.0
        %1490 = vmatprep.subr.mxu0 0.0
        %1491 = vmatpush1.xpose.msra.mxu0 0.0
        %1492 = vmatprep.subr.mxu0 0.0
        %1493 = vmatpush1.xpose.msra.mxu0 %v1462
        %1494 = vmatprep.subr.mxu0 0.0
        %1495 = vmatpush1.xpose.msra.mxu0 %v1459
        %1496 = vmatprep.subr.mxu0 0.0
        %1497 = vmatpush2.xpose.msra.mxu0 0.0
        %1498 = vmatprep.subr.mxu0 0.0
        %1499 = vmatpush2.xpose.msra.mxu0 0.0
        %1500 = vmatprep.subr.mxu0 0.0
        %1501 = vmatpush2.xpose.msra.mxu0 0.0
        %1502 = vmatprep.subr.mxu0 0.0
        %1503 = vmatpush2.xpose.msra.mxu0 0.0
        %1504 = vmatprep.subr.mxu0 0.0
        %1505 = vmatpush2.xpose.msra.mxu0 0.0
        %1506 = vmatprep.subr.mxu0 0.0
        %1507 = vmatpush2.xpose.msra.mxu0 0.0
        %1508 = vmatprep.subr.mxu0 0.0
        %1509 = vmatpush2.xpose.msra.mxu0 0.0
        %1510 = vmatprep.subr.mxu0 0.0
        %1511 = vmatpush2.xpose.msra.mxu0 0.0
        %1512 = vmatprep.subr.mxu0 0.0
        %1513 = vmatpush2.xpose.msra.mxu0 0.0
        %1514 = vmatprep.subr.mxu0 0.0
        %1515 = vmatpush2.xpose.msra.mxu0 0.0
        %1516 = vmatprep.subr.mxu0 0.0
        %1517 = vmatpush2.xpose.msra.mxu0 0.0
        %1518 = vmatprep.subr.mxu0 0.0
        %1519 = vmatpush2.xpose.msra.mxu0 0.0
        %1520 = vmatprep.subr.mxu0 0.0
        %1521 = vmatpush2.xpose.msra.mxu0 0.0
        %1522 = vmatprep.subr.mxu0 0.0
        %1523 = vmatpush2.xpose.msra.mxu0 0.0
        %1524 = vmatprep.subr.mxu0 0.0
        %1525 = vmatpush2.xpose.msra.mxu0 0.0
        %1526 = vmatprep.subr.mxu0 0.0
        %1527 = vmatpush2.xpose.msra.mxu0 0.0
        %1528 = vmatprep.mubr.f32.mxu0 0.0
        %1529 = vmatmul.mubr.f32.gmra.mxu0 %v1453
        %v1530 = vpop.f32.mrf.mxu0
        %v1531 = vadd.f32 0.0, %v1530
        %v1532 = vpop.f32.mrf.mxu0
        %1533 = vmatprep.mubr.f32.mxu0 0.0
        %1534 = vmatmul.mubr.f32.gmra.mxu0 %v1456
        %v1535 = vpop.f32.mrf.mxu0
        %v1536 = vadd.f32 0.0, %v1535
        %v1537 = vpop.f32.mrf.mxu0
        %1538 = vdwg.mxu0
        %vm1539 = vcmask 130048
        %v1540 = vsel %vm1539, %v1531, -inf
        %1541 = vmax.xlane.f32.xlu0 %v1540
        %v1542 = vpop.xlane.xlu0 %1541
        %v1543 = vsel %vm1539, %v1536, -inf
        %1544 = vmax.xlane.f32.xlu0 %v1543
        %v1545 = vpop.xlane.xlu0 %1544
        %v1546 = vsub.f32 %v1531, %v1542
        %v1547 = vsub.f32 %v1536, %v1545
        %v1548 = vmul.f32 %v1546, 1.442695
        %v1549 = vpow.pop %v1548
        %v1550 = vmul.f32 %v1547, 1.442695
        %v1551 = vpow.pop %v1550
        %v1552 = vsel %vm1539, %v1549, 0.0
        %1553 = vadd.xlane.f32.xlu0 %v1552
        %v1554 = vpop.xlane.xlu0 %1553
        %v1555 = vsel %vm1539, %v1551, 0.0
        %1556 = vadd.xlane.f32.xlu0 %v1555
        %v1557 = vpop.xlane.xlu0 %1556
        %v1558 = vrcp.pop %v1554
        %v1559 = vrcp.pop %v1557
        %v1560 = vmul.f32 %v1549, %v1558
        %v1561 = vmul.f32 %v1551, %v1559
        %v1563 = vsel %vm1539, %v1560, 0
        %v1566 = vsel %vm1539, %v1561, 0
        %1568 = vmatprep.subr.mxu0 0.0
        %1569 = vmatpush1.msra.mxu0 0.0
        %1570 = vmatprep.subr.mxu0 0.0
        %1571 = vmatpush1.msra.mxu0 0.0
        %1572 = vmatprep.subr.mxu0 0.0
        %1573 = vmatpush1.msra.mxu0 0.0
        %1574 = vmatprep.subr.mxu0 0.0
        %1575 = vmatpush1.msra.mxu0 0.0
        %1576 = vmatprep.subr.mxu0 0.0
        %1577 = vmatpush1.msra.mxu0 0.0
        %1578 = vmatprep.subr.mxu0 0.0
        %1579 = vmatpush1.msra.mxu0 0.0
        %1580 = vmatprep.subr.mxu0 0.0
        %1581 = vmatpush1.msra.mxu0 0.0
        %1582 = vmatprep.subr.mxu0 0.0
        %1583 = vmatpush1.msra.mxu0 0.0
        %1584 = vmatprep.subr.mxu0 0.0
        %1585 = vmatpush1.msra.mxu0 0.0
        %1586 = vmatprep.subr.mxu0 0.0
        %1587 = vmatpush1.msra.mxu0 0.0
        %1588 = vmatprep.subr.mxu0 0.0
        %1589 = vmatpush1.msra.mxu0 0.0
        %1590 = vmatprep.subr.mxu0 0.0
        %1591 = vmatpush1.msra.mxu0 0.0
        %1592 = vmatprep.subr.mxu0 0.0
        %1593 = vmatpush1.msra.mxu0 0.0
        %1594 = vmatprep.subr.mxu0 0.0
        %1595 = vmatpush1.msra.mxu0 0.0
        %1596 = vmatprep.subr.mxu0 0.0
        %1597 = vmatpush1.msra.mxu0 %v1438
        %1598 = vmatprep.subr.mxu0 0.0
        %1599 = vmatpush1.msra.mxu0 %v1435
        %1600 = vmatprep.subr.mxu0 0.0
        %1601 = vmatpush2.msra.mxu0 0.0
        %1602 = vmatprep.subr.mxu0 0.0
        %1603 = vmatpush2.msra.mxu0 0.0
        %1604 = vmatprep.subr.mxu0 0.0
        %1605 = vmatpush2.msra.mxu0 0.0
        %1606 = vmatprep.subr.mxu0 0.0
        %1607 = vmatpush2.msra.mxu0 0.0
        %1608 = vmatprep.subr.mxu0 0.0
        %1609 = vmatpush2.msra.mxu0 0.0
        %1610 = vmatprep.subr.mxu0 0.0
        %1611 = vmatpush2.msra.mxu0 0.0
        %1612 = vmatprep.subr.mxu0 0.0
        %1613 = vmatpush2.msra.mxu0 0.0
        %1614 = vmatprep.subr.mxu0 0.0
        %1615 = vmatpush2.msra.mxu0 0.0
        %1616 = vmatprep.subr.mxu0 0.0
        %1617 = vmatpush2.msra.mxu0 0.0
        %1618 = vmatprep.subr.mxu0 0.0
        %1619 = vmatpush2.msra.mxu0 0.0
        %1620 = vmatprep.subr.mxu0 0.0
        %1621 = vmatpush2.msra.mxu0 0.0
        %1622 = vmatprep.subr.mxu0 0.0
        %1623 = vmatpush2.msra.mxu0 0.0
        %1624 = vmatprep.subr.mxu0 0.0
        %1625 = vmatpush2.msra.mxu0 0.0
        %1626 = vmatprep.subr.mxu0 0.0
        %1627 = vmatpush2.msra.mxu0 0.0
        %1628 = vmatprep.subr.mxu0 0.0
        %1629 = vmatpush2.msra.mxu0 0.0
        %1630 = vmatprep.subr.mxu0 0.0
        %1631 = vmatpush2.msra.mxu0 0.0
        %1632 = vmatprep.mubr.f32.mxu0 0.0
        %1633 = vmatmul.mubr.f32.gmra.mxu0 %v1563
        %v1634 = vpop.f32.mrf.mxu0
        %v1635 = vadd.f32 0.0, %v1634
        %v1636 = vpop.f32.mrf.mxu0
        %1637 = vmatprep.mubr.f32.mxu0 0.0
        %1638 = vmatmul.mubr.f32.gmra.mxu0 %v1566
        %v1639 = vpop.f32.mrf.mxu0
        %v1640 = vadd.f32 0.0, %v1639
        %v1641 = vpop.f32.mrf.mxu0
        %1642 = vdwg.mxu0
        %1643 = vst.msk [vmem:[#allocation3] sm:$0xff] %vm1451, %v1635
        %1644 = vst.msk [vmem:[#allocation3 + $0x8] sm:$0xff] %vm1451, %v1640
        %1645 = vrot.lane.b32.xlu0 %v1449, 96
        %v1646 = vpop.permute.xlu0 %1645
        %1647 = vrot.lane.b32.xlu0 %v1450, 96
        %v1648 = vpop.permute.xlu0 %1647
        %1649 = vrot.lane.b32.xlu0 %v1384, 96
        %v1650 = vpop.permute.xlu0 %1649
        %1651 = vrot.lane.b32.xlu0 %v1388, 96
        %v1652 = vpop.permute.xlu0 %1651
        %v1653 = vsel %vm1451, %v1646, 0
        %v1655 = vsel %vm1451, %v1648, 0
        %v1657 = vsel %vm1451, %v1650, 0
        %v1659 = vsel %vm1451, %v1652, 0
        %1661 = vmatprep.subr.mxu0 0.0
        %1662 = vmatpush1.xpose.msra.mxu0 0.0
        %1663 = vmatprep.subr.mxu0 0.0
        %1664 = vmatpush1.xpose.msra.mxu0 0.0
        %1665 = vmatprep.subr.mxu0 0.0
        %1666 = vmatpush1.xpose.msra.mxu0 0.0
        %1667 = vmatprep.subr.mxu0 0.0
        %1668 = vmatpush1.xpose.msra.mxu0 0.0
        %1669 = vmatprep.subr.mxu0 0.0
        %1670 = vmatpush1.xpose.msra.mxu0 0.0
        %1671 = vmatprep.subr.mxu0 0.0
        %1672 = vmatpush1.xpose.msra.mxu0 0.0
        %1673 = vmatprep.subr.mxu0 0.0
        %1674 = vmatpush1.xpose.msra.mxu0 0.0
        %1675 = vmatprep.subr.mxu0 0.0
        %1676 = vmatpush1.xpose.msra.mxu0 0.0
        %1677 = vmatprep.subr.mxu0 0.0
        %1678 = vmatpush1.xpose.msra.mxu0 0.0
        %1679 = vmatprep.subr.mxu0 0.0
        %1680 = vmatpush1.xpose.msra.mxu0 0.0
        %1681 = vmatprep.subr.mxu0 0.0
        %1682 = vmatpush1.xpose.msra.mxu0 0.0
        %1683 = vmatprep.subr.mxu0 0.0
        %1684 = vmatpush1.xpose.msra.mxu0 0.0
        %1685 = vmatprep.subr.mxu0 0.0
        %1686 = vmatpush1.xpose.msra.mxu0 0.0
        %1687 = vmatprep.subr.mxu0 0.0
        %1688 = vmatpush1.xpose.msra.mxu0 0.0
        %1689 = vmatprep.subr.mxu0 0.0
        %1690 = vmatpush1.xpose.msra.mxu0 %v1659
        %1691 = vmatprep.subr.mxu0 0.0
        %1692 = vmatpush1.xpose.msra.mxu0 %v1657
        %1693 = vmatprep.subr.mxu0 0.0
        %1694 = vmatpush2.xpose.msra.mxu0 0.0
        %1695 = vmatprep.subr.mxu0 0.0
        %1696 = vmatpush2.xpose.msra.mxu0 0.0
        %1697 = vmatprep.subr.mxu0 0.0
        %1698 = vmatpush2.xpose.msra.mxu0 0.0
        %1699 = vmatprep.subr.mxu0 0.0
        %1700 = vmatpush2.xpose.msra.mxu0 0.0
        %1701 = vmatprep.subr.mxu0 0.0
        %1702 = vmatpush2.xpose.msra.mxu0 0.0
        %1703 = vmatprep.subr.mxu0 0.0
        %1704 = vmatpush2.xpose.msra.mxu0 0.0
        %1705 = vmatprep.subr.mxu0 0.0
        %1706 = vmatpush2.xpose.msra.mxu0 0.0
        %1707 = vmatprep.subr.mxu0 0.0
        %1708 = vmatpush2.xpose.msra.mxu0 0.0
        %1709 = vmatprep.subr.mxu0 0.0
        %1710 = vmatpush2.xpose.msra.mxu0 0.0
        %1711 = vmatprep.subr.mxu0 0.0
        %1712 = vmatpush2.xpose.msra.mxu0 0.0
        %1713 = vmatprep.subr.mxu0 0.0
        %1714 = vmatpush2.xpose.msra.mxu0 0.0
        %1715 = vmatprep.subr.mxu0 0.0
        %1716 = vmatpush2.xpose.msra.mxu0 0.0
        %1717 = vmatprep.subr.mxu0 0.0
        %1718 = vmatpush2.xpose.msra.mxu0 0.0
        %1719 = vmatprep.subr.mxu0 0.0
        %1720 = vmatpush2.xpose.msra.mxu0 0.0
        %1721 = vmatprep.subr.mxu0 0.0
        %1722 = vmatpush2.xpose.msra.mxu0 0.0
        %1723 = vmatprep.subr.mxu0 0.0
        %1724 = vmatpush2.xpose.msra.mxu0 0.0
        %1725 = vmatprep.mubr.f32.mxu0 0.0
        %1726 = vmatmul.mubr.f32.gmra.mxu0 %v1653
        %v1727 = vpop.f32.mrf.mxu0
        %v1728 = vadd.f32 0.0, %v1727
        %v1729 = vpop.f32.mrf.mxu0
        %1730 = vmatprep.mubr.f32.mxu0 0.0
        %1731 = vmatmul.mubr.f32.gmra.mxu0 %v1655
        %v1732 = vpop.f32.mrf.mxu0
        %v1733 = vadd.f32 0.0, %v1732
        %v1734 = vpop.f32.mrf.mxu0
        %1735 = vdwg.mxu0
        %v1736 = vsel %vm1539, %v1728, -inf
        %1737 = vmax.xlane.f32.xlu0 %v1736
        %v1738 = vpop.xlane.xlu0 %1737
        %v1739 = vsel %vm1539, %v1733, -inf
        %1740 = vmax.xlane.f32.xlu0 %v1739
        %v1741 = vpop.xlane.xlu0 %1740
        %v1742 = vsub.f32 %v1728, %v1738
        %v1743 = vsub.f32 %v1733, %v1741
        %v1744 = vmul.f32 %v1742, 1.442695
        %v1745 = vpow.pop %v1744
        %v1746 = vmul.f32 %v1743, 1.442695
        %v1747 = vpow.pop %v1746
        %v1748 = vsel %vm1539, %v1745, 0.0
        %1749 = vadd.xlane.f32.xlu0 %v1748
        %v1750 = vpop.xlane.xlu0 %1749
        %v1751 = vsel %vm1539, %v1747, 0.0
        %1752 = vadd.xlane.f32.xlu0 %v1751
        %v1753 = vpop.xlane.xlu0 %1752
        %v1754 = vrcp.pop %v1750
        %v1755 = vrcp.pop %v1753
        %v1756 = vmul.f32 %v1745, %v1754
        %v1757 = vmul.f32 %v1747, %v1755
        %1760 = vrot.lane.b32.xlu0 %v1435, 96
        %v1761 = vpop.permute.xlu0 %1760
        %1762 = vrot.lane.b32.xlu0 %v1438, 96
        %v1763 = vpop.permute.xlu0 %1762
        %v1767 = vsel %vm1539, %v1756, 0
        %v1770 = vsel %vm1539, %v1757, 0
        %1772 = vmatprep.subr.mxu0 0.0
        %1773 = vmatpush1.msra.mxu0 0.0
        %1774 = vmatprep.subr.mxu0 0.0
        %1775 = vmatpush1.msra.mxu0 0.0
        %1776 = vmatprep.subr.mxu0 0.0
        %1777 = vmatpush1.msra.mxu0 0.0
        %1778 = vmatprep.subr.mxu0 0.0
        %1779 = vmatpush1.msra.mxu0 0.0
        %1780 = vmatprep.subr.mxu0 0.0
        %1781 = vmatpush1.msra.mxu0 0.0
        %1782 = vmatprep.subr.mxu0 0.0
        %1783 = vmatpush1.msra.mxu0 0.0
        %1784 = vmatprep.subr.mxu0 0.0
        %1785 = vmatpush1.msra.mxu0 0.0
        %1786 = vmatprep.subr.mxu0 0.0
        %1787 = vmatpush1.msra.mxu0 0.0
        %1788 = vmatprep.subr.mxu0 0.0
        %1789 = vmatpush1.msra.mxu0 0.0
        %1790 = vmatprep.subr.mxu0 0.0
        %1791 = vmatpush1.msra.mxu0 0.0
        %1792 = vmatprep.subr.mxu0 0.0
        %1793 = vmatpush1.msra.mxu0 0.0
        %1794 = vmatprep.subr.mxu0 0.0
        %1795 = vmatpush1.msra.mxu0 0.0
        %1796 = vmatprep.subr.mxu0 0.0
        %1797 = vmatpush1.msra.mxu0 0.0
        %1798 = vmatprep.subr.mxu0 0.0
        %1799 = vmatpush1.msra.mxu0 0.0
        %1800 = vmatprep.subr.mxu0 0.0
        %1801 = vmatpush1.msra.mxu0 %v1763
        %1802 = vmatprep.subr.mxu0 0.0
        %1803 = vmatpush1.msra.mxu0 %v1761
        %1804 = vmatprep.subr.mxu0 0.0
        %1805 = vmatpush2.msra.mxu0 0.0
        %1806 = vmatprep.subr.mxu0 0.0
        %1807 = vmatpush2.msra.mxu0 0.0
        %1808 = vmatprep.subr.mxu0 0.0
        %1809 = vmatpush2.msra.mxu0 0.0
        %1810 = vmatprep.subr.mxu0 0.0
        %1811 = vmatpush2.msra.mxu0 0.0
        %1812 = vmatprep.subr.mxu0 0.0
        %1813 = vmatpush2.msra.mxu0 0.0
        %1814 = vmatprep.subr.mxu0 0.0
        %1815 = vmatpush2.msra.mxu0 0.0
        %1816 = vmatprep.subr.mxu0 0.0
        %1817 = vmatpush2.msra.mxu0 0.0
        %1818 = vmatprep.subr.mxu0 0.0
        %1819 = vmatpush2.msra.mxu0 0.0
        %1820 = vmatprep.subr.mxu0 0.0
        %1821 = vmatpush2.msra.mxu0 0.0
        %1822 = vmatprep.subr.mxu0 0.0
        %1823 = vmatpush2.msra.mxu0 0.0
        %1824 = vmatprep.subr.mxu0 0.0
        %1825 = vmatpush2.msra.mxu0 0.0
        %1826 = vmatprep.subr.mxu0 0.0
        %1827 = vmatpush2.msra.mxu0 0.0
        %1828 = vmatprep.subr.mxu0 0.0
        %1829 = vmatpush2.msra.mxu0 0.0
        %1830 = vmatprep.subr.mxu0 0.0
        %1831 = vmatpush2.msra.mxu0 0.0
        %1832 = vmatprep.subr.mxu0 0.0
        %1833 = vmatpush2.msra.mxu0 0.0
        %1834 = vmatprep.subr.mxu0 0.0
        %1835 = vmatpush2.msra.mxu0 0.0
        %1836 = vmatprep.mubr.f32.mxu0 0.0
        %1837 = vmatmul.mubr.f32.gmra.mxu0 %v1767
        %v1838 = vpop.f32.mrf.mxu0
        %v1839 = vadd.f32 0.0, %v1838
        %v1840 = vpop.f32.mrf.mxu0
        %1841 = vmatprep.mubr.f32.mxu0 0.0
        %1842 = vmatmul.mubr.f32.gmra.mxu0 %v1770
        %v1843 = vpop.f32.mrf.mxu0
        %v1844 = vadd.f32 0.0, %v1843
        %v1845 = vpop.f32.mrf.mxu0
        %1846 = vdwg.mxu0
        %1849 = vrot.lane.b32.xlu0 %v1839, 32
        %v1850 = vpop.permute.xlu0 %1849
        %1851 = vrot.lane.b32.xlu0 %v1844, 32
        %v1852 = vpop.permute.xlu0 %1851
        %vm1855 = vcmask 523520
        %1856 = vst.msk [vmem:[#allocation3] sm:$0xff] %vm1855, %v1850
        %1857 = vst.msk [vmem:[#allocation3 + $0x8] sm:$0xff] %vm1855, %v1852
        %1858 = vrot.lane.b32.xlu0 %v1449, 64
        %v1859 = vpop.permute.xlu0 %1858
        %1860 = vrot.lane.b32.xlu0 %v1450, 64
        %v1861 = vpop.permute.xlu0 %1860
        %1862 = vrot.lane.b32.xlu0 %v1384, 64
        %v1863 = vpop.permute.xlu0 %1862
        %1864 = vrot.lane.b32.xlu0 %v1388, 64
        %v1865 = vpop.permute.xlu0 %1864
        %v1866 = vsel %vm1451, %v1859, 0
        %v1868 = vsel %vm1451, %v1861, 0
        %v1870 = vsel %vm1451, %v1863, 0
        %v1872 = vsel %vm1451, %v1865, 0
        %1874 = vmatprep.subr.mxu0 0.0
        %1875 = vmatpush1.xpose.msra.mxu0 0.0
        %1876 = vmatprep.subr.mxu0 0.0
        %1877 = vmatpush1.xpose.msra.mxu0 0.0
        %1878 = vmatprep.subr.mxu0 0.0
        %1879 = vmatpush1.xpose.msra.mxu0 0.0
        %1880 = vmatprep.subr.mxu0 0.0
        %1881 = vmatpush1.xpose.msra.mxu0 0.0
        %1882 = vmatprep.subr.mxu0 0.0
        %1883 = vmatpush1.xpose.msra.mxu0 0.0
        %1884 = vmatprep.subr.mxu0 0.0
        %1885 = vmatpush1.xpose.msra.mxu0 0.0
        %1886 = vmatprep.subr.mxu0 0.0
        %1887 = vmatpush1.xpose.msra.mxu0 0.0
        %1888 = vmatprep.subr.mxu0 0.0
        %1889 = vmatpush1.xpose.msra.mxu0 0.0
        %1890 = vmatprep.subr.mxu0 0.0
        %1891 = vmatpush1.xpose.msra.mxu0 0.0
        %1892 = vmatprep.subr.mxu0 0.0
        %1893 = vmatpush1.xpose.msra.mxu0 0.0
        %1894 = vmatprep.subr.mxu0 0.0
        %1895 = vmatpush1.xpose.msra.mxu0 0.0
        %1896 = vmatprep.subr.mxu0 0.0
        %1897 = vmatpush1.xpose.msra.mxu0 0.0
        %1898 = vmatprep.subr.mxu0 0.0
        %1899 = vmatpush1.xpose.msra.mxu0 0.0
        %1900 = vmatprep.subr.mxu0 0.0
        %1901 = vmatpush1.xpose.msra.mxu0 0.0
        %1902 = vmatprep.subr.mxu0 0.0
        %1903 = vmatpush1.xpose.msra.mxu0 %v1872
        %1904 = vmatprep.subr.mxu0 0.0
        %1905 = vmatpush1.xpose.msra.mxu0 %v1870
        %1906 = vmatprep.subr.mxu0 0.0
        %1907 = vmatpush2.xpose.msra.mxu0 0.0
        %1908 = vmatprep.subr.mxu0 0.0
        %1909 = vmatpush2.xpose.msra.mxu0 0.0
        %1910 = vmatprep.subr.mxu0 0.0
        %1911 = vmatpush2.xpose.msra.mxu0 0.0
        %1912 = vmatprep.subr.mxu0 0.0
        %1913 = vmatpush2.xpose.msra.mxu0 0.0
        %1914 = vmatprep.subr.mxu0 0.0
        %1915 = vmatpush2.xpose.msra.mxu0 0.0
        %1916 = vmatprep.subr.mxu0 0.0
        %1917 = vmatpush2.xpose.msra.mxu0 0.0
        %1918 = vmatprep.subr.mxu0 0.0
        %1919 = vmatpush2.xpose.msra.mxu0 0.0
        %1920 = vmatprep.subr.mxu0 0.0
        %1921 = vmatpush2.xpose.msra.mxu0 0.0
        %1922 = vmatprep.subr.mxu0 0.0
        %1923 = vmatpush2.xpose.msra.mxu0 0.0
        %1924 = vmatprep.subr.mxu0 0.0
        %1925 = vmatpush2.xpose.msra.mxu0 0.0
        %1926 = vmatprep.subr.mxu0 0.0
        %1927 = vmatpush2.xpose.msra.mxu0 0.0
        %1928 = vmatprep.subr.mxu0 0.0
        %1929 = vmatpush2.xpose.msra.mxu0 0.0
        %1930 = vmatprep.subr.mxu0 0.0
        %1931 = vmatpush2.xpose.msra.mxu0 0.0
        %1932 = vmatprep.subr.mxu0 0.0
        %1933 = vmatpush2.xpose.msra.mxu0 0.0
        %1934 = vmatprep.subr.mxu0 0.0
        %1935 = vmatpush2.xpose.msra.mxu0 0.0
        %1936 = vmatprep.subr.mxu0 0.0
        %1937 = vmatpush2.xpose.msra.mxu0 0.0
        %1938 = vmatprep.mubr.f32.mxu0 0.0
        %1939 = vmatmul.mubr.f32.gmra.mxu0 %v1866
        %v1940 = vpop.f32.mrf.mxu0
        %v1941 = vadd.f32 0.0, %v1940
        %v1942 = vpop.f32.mrf.mxu0
        %1943 = vmatprep.mubr.f32.mxu0 0.0
        %1944 = vmatmul.mubr.f32.gmra.mxu0 %v1868
        %v1945 = vpop.f32.mrf.mxu0
        %v1946 = vadd.f32 0.0, %v1945
        %v1947 = vpop.f32.mrf.mxu0
        %1948 = vdwg.mxu0
        %v1949 = vsel %vm1539, %v1941, -inf
        %1950 = vmax.xlane.f32.xlu0 %v1949
        %v1951 = vpop.xlane.xlu0 %1950
        %v1952 = vsel %vm1539, %v1946, -inf
        %1953 = vmax.xlane.f32.xlu0 %v1952
        %v1954 = vpop.xlane.xlu0 %1953
        %v1955 = vsub.f32 %v1941, %v1951
        %v1956 = vsub.f32 %v1946, %v1954
        %v1957 = vmul.f32 %v1955, 1.442695
        %v1958 = vpow.pop %v1957
        %v1959 = vmul.f32 %v1956, 1.442695
        %v1960 = vpow.pop %v1959
        %v1961 = vsel %vm1539, %v1958, 0.0
        %1962 = vadd.xlane.f32.xlu0 %v1961
        %v1963 = vpop.xlane.xlu0 %1962
        %v1964 = vsel %vm1539, %v1960, 0.0
        %1965 = vadd.xlane.f32.xlu0 %v1964
        %v1966 = vpop.xlane.xlu0 %1965
        %v1967 = vrcp.pop %v1963
        %v1968 = vrcp.pop %v1966
        %v1969 = vmul.f32 %v1958, %v1967
        %v1970 = vmul.f32 %v1960, %v1968
        %1971 = vrot.lane.b32.xlu0 %v1435, 64
        %v1972 = vpop.permute.xlu0 %1971
        %1973 = vrot.lane.b32.xlu0 %v1438, 64
        %v1974 = vpop.permute.xlu0 %1973
        %v1978 = vsel %vm1539, %v1969, 0
        %v1981 = vsel %vm1539, %v1970, 0
        %1983 = vmatprep.subr.mxu0 0.0
        %1984 = vmatpush1.msra.mxu0 0.0
        %1985 = vmatprep.subr.mxu0 0.0
        %1986 = vmatpush1.msra.mxu0 0.0
        %1987 = vmatprep.subr.mxu0 0.0
        %1988 = vmatpush1.msra.mxu0 0.0
        %1989 = vmatprep.subr.mxu0 0.0
        %1990 = vmatpush1.msra.mxu0 0.0
        %1991 = vmatprep.subr.mxu0 0.0
        %1992 = vmatpush1.msra.mxu0 0.0
        %1993 = vmatprep.subr.mxu0 0.0
        %1994 = vmatpush1.msra.mxu0 0.0
        %1995 = vmatprep.subr.mxu0 0.0
        %1996 = vmatpush1.msra.mxu0 0.0
        %1997 = vmatprep.subr.mxu0 0.0
        %1998 = vmatpush1.msra.mxu0 0.0
        %1999 = vmatprep.subr.mxu0 0.0
        %2000 = vmatpush1.msra.mxu0 0.0
        %2001 = vmatprep.subr.mxu0 0.0
        %2002 = vmatpush1.msra.mxu0 0.0
        %2003 = vmatprep.subr.mxu0 0.0
        %2004 = vmatpush1.msra.mxu0 0.0
        %2005 = vmatprep.subr.mxu0 0.0
        %2006 = vmatpush1.msra.mxu0 0.0
        %2007 = vmatprep.subr.mxu0 0.0
        %2008 = vmatpush1.msra.mxu0 0.0
        %2009 = vmatprep.subr.mxu0 0.0
        %2010 = vmatpush1.msra.mxu0 0.0
        %2011 = vmatprep.subr.mxu0 0.0
        %2012 = vmatpush1.msra.mxu0 %v1974
        %2013 = vmatprep.subr.mxu0 0.0
        %2014 = vmatpush1.msra.mxu0 %v1972
        %2015 = vmatprep.subr.mxu0 0.0
        %2016 = vmatpush2.msra.mxu0 0.0
        %2017 = vmatprep.subr.mxu0 0.0
        %2018 = vmatpush2.msra.mxu0 0.0
        %2019 = vmatprep.subr.mxu0 0.0
        %2020 = vmatpush2.msra.mxu0 0.0
        %2021 = vmatprep.subr.mxu0 0.0
        %2022 = vmatpush2.msra.mxu0 0.0
        %2023 = vmatprep.subr.mxu0 0.0
        %2024 = vmatpush2.msra.mxu0 0.0
        %2025 = vmatprep.subr.mxu0 0.0
        %2026 = vmatpush2.msra.mxu0 0.0
        %2027 = vmatprep.subr.mxu0 0.0
        %2028 = vmatpush2.msra.mxu0 0.0
        %2029 = vmatprep.subr.mxu0 0.0
        %2030 = vmatpush2.msra.mxu0 0.0
        %2031 = vmatprep.subr.mxu0 0.0
        %2032 = vmatpush2.msra.mxu0 0.0
        %2033 = vmatprep.subr.mxu0 0.0
        %2034 = vmatpush2.msra.mxu0 0.0
        %2035 = vmatprep.subr.mxu0 0.0
        %2036 = vmatpush2.msra.mxu0 0.0
        %2037 = vmatprep.subr.mxu0 0.0
        %2038 = vmatpush2.msra.mxu0 0.0
        %2039 = vmatprep.subr.mxu0 0.0
        %2040 = vmatpush2.msra.mxu0 0.0
        %2041 = vmatprep.subr.mxu0 0.0
        %2042 = vmatpush2.msra.mxu0 0.0
        %2043 = vmatprep.subr.mxu0 0.0
        %2044 = vmatpush2.msra.mxu0 0.0
        %2045 = vmatprep.subr.mxu0 0.0
        %2046 = vmatpush2.msra.mxu0 0.0
        %2047 = vmatprep.mubr.f32.mxu0 0.0
        %2048 = vmatmul.mubr.f32.gmra.mxu0 %v1978
        %v2049 = vpop.f32.mrf.mxu0
        %v2050 = vadd.f32 0.0, %v2049
        %v2051 = vpop.f32.mrf.mxu0
        %2052 = vmatprep.mubr.f32.mxu0 0.0
        %2053 = vmatmul.mubr.f32.gmra.mxu0 %v1981
        %v2054 = vpop.f32.mrf.mxu0
        %v2055 = vadd.f32 0.0, %v2054
        %v2056 = vpop.f32.mrf.mxu0
        %2057 = vdwg.mxu0
        %2060 = vrot.lane.b32.xlu0 %v2050, 64
        %v2061 = vpop.permute.xlu0 %2060
        %2062 = vrot.lane.b32.xlu0 %v2055, 64
        %v2063 = vpop.permute.xlu0 %2062
        %vm2066 = vcmask 785920
        %2067 = vst.msk [vmem:[#allocation3] sm:$0xff] %vm2066, %v2061
        %2068 = vst.msk [vmem:[#allocation3 + $0x8] sm:$0xff] %vm2066, %v2063
        %2069 = vrot.lane.b32.xlu0 %v1449, 32
        %v2070 = vpop.permute.xlu0 %2069
        %2071 = vrot.lane.b32.xlu0 %v1450, 32
        %v2072 = vpop.permute.xlu0 %2071
        %2073 = vrot.lane.b32.xlu0 %v1384, 32
        %v2074 = vpop.permute.xlu0 %2073
        %2075 = vrot.lane.b32.xlu0 %v1388, 32
        %v2076 = vpop.permute.xlu0 %2075
        %v2077 = vsel %vm1451, %v2070, 0
        %v2079 = vsel %vm1451, %v2072, 0
        %v2081 = vsel %vm1451, %v2074, 0
        %v2083 = vsel %vm1451, %v2076, 0
        %2085 = vmatprep.subr.mxu0 0.0
        %2086 = vmatpush1.xpose.msra.mxu0 0.0
        %2087 = vmatprep.subr.mxu0 0.0
        %2088 = vmatpush1.xpose.msra.mxu0 0.0
        %2089 = vmatprep.subr.mxu0 0.0
        %2090 = vmatpush1.xpose.msra.mxu0 0.0
        %2091 = vmatprep.subr.mxu0 0.0
        %2092 = vmatpush1.xpose.msra.mxu0 0.0
        %2093 = vmatprep.subr.mxu0 0.0
        %2094 = vmatpush1.xpose.msra.mxu0 0.0
        %2095 = vmatprep.subr.mxu0 0.0
        %2096 = vmatpush1.xpose.msra.mxu0 0.0
        %2097 = vmatprep.subr.mxu0 0.0
        %2098 = vmatpush1.xpose.msra.mxu0 0.0
        %2099 = vmatprep.subr.mxu0 0.0
        %2100 = vmatpush1.xpose.msra.mxu0 0.0
        %2101 = vmatprep.subr.mxu0 0.0
        %2102 = vmatpush1.xpose.msra.mxu0 0.0
        %2103 = vmatprep.subr.mxu0 0.0
        %2104 = vmatpush1.xpose.msra.mxu0 0.0
        %2105 = vmatprep.subr.mxu0 0.0
        %2106 = vmatpush1.xpose.msra.mxu0 0.0
        %2107 = vmatprep.subr.mxu0 0.0
        %2108 = vmatpush1.xpose.msra.mxu0 0.0
        %2109 = vmatprep.subr.mxu0 0.0
        %2110 = vmatpush1.xpose.msra.mxu0 0.0
        %2111 = vmatprep.subr.mxu0 0.0
        %2112 = vmatpush1.xpose.msra.mxu0 0.0
        %2113 = vmatprep.subr.mxu0 0.0
        %2114 = vmatpush1.xpose.msra.mxu0 %v2083
        %2115 = vmatprep.subr.mxu0 0.0
        %2116 = vmatpush1.xpose.msra.mxu0 %v2081
        %2117 = vmatprep.subr.mxu0 0.0
        %2118 = vmatpush2.xpose.msra.mxu0 0.0
        %2119 = vmatprep.subr.mxu0 0.0
        %2120 = vmatpush2.xpose.msra.mxu0 0.0
        %2121 = vmatprep.subr.mxu0 0.0
        %2122 = vmatpush2.xpose.msra.mxu0 0.0
        %2123 = vmatprep.subr.mxu0 0.0
        %2124 = vmatpush2.xpose.msra.mxu0 0.0
        %2125 = vmatprep.subr.mxu0 0.0
        %2126 = vmatpush2.xpose.msra.mxu0 0.0
        %2127 = vmatprep.subr.mxu0 0.0
        %2128 = vmatpush2.xpose.msra.mxu0 0.0
        %2129 = vmatprep.subr.mxu0 0.0
        %2130 = vmatpush2.xpose.msra.mxu0 0.0
        %2131 = vmatprep.subr.mxu0 0.0
        %2132 = vmatpush2.xpose.msra.mxu0 0.0
        %2133 = vmatprep.subr.mxu0 0.0
        %2134 = vmatpush2.xpose.msra.mxu0 0.0
        %2135 = vmatprep.subr.mxu0 0.0
        %2136 = vmatpush2.xpose.msra.mxu0 0.0
        %2137 = vmatprep.subr.mxu0 0.0
        %2138 = vmatpush2.xpose.msra.mxu0 0.0
        %2139 = vmatprep.subr.mxu0 0.0
        %2140 = vmatpush2.xpose.msra.mxu0 0.0
        %2141 = vmatprep.subr.mxu0 0.0
        %2142 = vmatpush2.xpose.msra.mxu0 0.0
        %2143 = vmatprep.subr.mxu0 0.0
        %2144 = vmatpush2.xpose.msra.mxu0 0.0
        %2145 = vmatprep.subr.mxu0 0.0
        %2146 = vmatpush2.xpose.msra.mxu0 0.0
        %2147 = vmatprep.subr.mxu0 0.0
        %2148 = vmatpush2.xpose.msra.mxu0 0.0
        %2149 = vmatprep.mubr.f32.mxu0 0.0
        %2150 = vmatmul.mubr.f32.gmra.mxu0 %v2077
        %v2151 = vpop.f32.mrf.mxu0
        %v2152 = vadd.f32 0.0, %v2151
        %v2153 = vpop.f32.mrf.mxu0
        %2154 = vmatprep.mubr.f32.mxu0 0.0
        %2155 = vmatmul.mubr.f32.gmra.mxu0 %v2079
        %v2156 = vpop.f32.mrf.mxu0
        %v2157 = vadd.f32 0.0, %v2156
        %v2158 = vpop.f32.mrf.mxu0
        %2159 = vdwg.mxu0
        %v2160 = vsel %vm1539, %v2152, -inf
        %2161 = vmax.xlane.f32.xlu0 %v2160
        %v2162 = vpop.xlane.xlu0 %2161
        %v2163 = vsel %vm1539, %v2157, -inf
        %2164 = vmax.xlane.f32.xlu0 %v2163
        %v2165 = vpop.xlane.xlu0 %2164
        %v2166 = vsub.f32 %v2152, %v2162
        %v2167 = vsub.f32 %v2157, %v2165
        %v2168 = vmul.f32 %v2166, 1.442695
        %v2169 = vpow.pop %v2168
        %v2170 = vmul.f32 %v2167, 1.442695
        %v2171 = vpow.pop %v2170
        %v2172 = vsel %vm1539, %v2169, 0.0
        %2173 = vadd.xlane.f32.xlu0 %v2172
        %v2174 = vpop.xlane.xlu0 %2173
        %v2175 = vsel %vm1539, %v2171, 0.0
        %2176 = vadd.xlane.f32.xlu0 %v2175
        %v2177 = vpop.xlane.xlu0 %2176
        %v2178 = vrcp.pop %v2174
        %v2179 = vrcp.pop %v2177
        %v2180 = vmul.f32 %v2169, %v2178
        %v2181 = vmul.f32 %v2171, %v2179
        %2182 = vrot.lane.b32.xlu0 %v1435, 32
        %v2183 = vpop.permute.xlu0 %2182
        %2184 = vrot.lane.b32.xlu0 %v1438, 32
        %v2185 = vpop.permute.xlu0 %2184
        %v2189 = vsel %vm1539, %v2180, 0
        %v2192 = vsel %vm1539, %v2181, 0
        %2194 = vmatprep.subr.mxu0 0.0
        %2195 = vmatpush1.msra.mxu0 0.0
        %2196 = vmatprep.subr.mxu0 0.0
        %2197 = vmatpush1.msra.mxu0 0.0
        %2198 = vmatprep.subr.mxu0 0.0
        %2199 = vmatpush1.msra.mxu0 0.0
        %2200 = vmatprep.subr.mxu0 0.0
        %2201 = vmatpush1.msra.mxu0 0.0
        %2202 = vmatprep.subr.mxu0 0.0
        %2203 = vmatpush1.msra.mxu0 0.0
        %2204 = vmatprep.subr.mxu0 0.0
        %2205 = vmatpush1.msra.mxu0 0.0
        %2206 = vmatprep.subr.mxu0 0.0
        %2207 = vmatpush1.msra.mxu0 0.0
        %2208 = vmatprep.subr.mxu0 0.0
        %2209 = vmatpush1.msra.mxu0 0.0
        %2210 = vmatprep.subr.mxu0 0.0
        %2211 = vmatpush1.msra.mxu0 0.0
        %2212 = vmatprep.subr.mxu0 0.0
        %2213 = vmatpush1.msra.mxu0 0.0
        %2214 = vmatprep.subr.mxu0 0.0
        %2215 = vmatpush1.msra.mxu0 0.0
        %2216 = vmatprep.subr.mxu0 0.0
        %2217 = vmatpush1.msra.mxu0 0.0
        %2218 = vmatprep.subr.mxu0 0.0
        %2219 = vmatpush1.msra.mxu0 0.0
        %2220 = vmatprep.subr.mxu0 0.0
        %2221 = vmatpush1.msra.mxu0 0.0
        %2222 = vmatprep.subr.mxu0 0.0
        %2223 = vmatpush1.msra.mxu0 %v2185
        %2224 = vmatprep.subr.mxu0 0.0
        %2225 = vmatpush1.msra.mxu0 %v2183
        %2226 = vmatprep.subr.mxu0 0.0
        %2227 = vmatpush2.msra.mxu0 0.0
        %2228 = vmatprep.subr.mxu0 0.0
        %2229 = vmatpush2.msra.mxu0 0.0
        %2230 = vmatprep.subr.mxu0 0.0
        %2231 = vmatpush2.msra.mxu0 0.0
        %2232 = vmatprep.subr.mxu0 0.0
        %2233 = vmatpush2.msra.mxu0 0.0
        %2234 = vmatprep.subr.mxu0 0.0
        %2235 = vmatpush2.msra.mxu0 0.0
        %2236 = vmatprep.subr.mxu0 0.0
        %2237 = vmatpush2.msra.mxu0 0.0
        %2238 = vmatprep.subr.mxu0 0.0
        %2239 = vmatpush2.msra.mxu0 0.0
        %2240 = vmatprep.subr.mxu0 0.0
        %2241 = vmatpush2.msra.mxu0 0.0
        %2242 = vmatprep.subr.mxu0 0.0
        %2243 = vmatpush2.msra.mxu0 0.0
        %2244 = vmatprep.subr.mxu0 0.0
        %2245 = vmatpush2.msra.mxu0 0.0
        %2246 = vmatprep.subr.mxu0 0.0
        %2247 = vmatpush2.msra.mxu0 0.0
        %2248 = vmatprep.subr.mxu0 0.0
        %2249 = vmatpush2.msra.mxu0 0.0
        %2250 = vmatprep.subr.mxu0 0.0
        %2251 = vmatpush2.msra.mxu0 0.0
        %2252 = vmatprep.subr.mxu0 0.0
        %2253 = vmatpush2.msra.mxu0 0.0
        %2254 = vmatprep.subr.mxu0 0.0
        %2255 = vmatpush2.msra.mxu0 0.0
        %2256 = vmatprep.subr.mxu0 0.0
        %2257 = vmatpush2.msra.mxu0 0.0
        %2258 = vmatprep.mubr.f32.mxu0 0.0
        %2259 = vmatmul.mubr.f32.gmra.mxu0 %v2189
        %v2260 = vpop.f32.mrf.mxu0
        %v2261 = vadd.f32 0.0, %v2260
        %v2262 = vpop.f32.mrf.mxu0
        %2263 = vmatprep.mubr.f32.mxu0 0.0
        %2264 = vmatmul.mubr.f32.gmra.mxu0 %v2192
        %v2265 = vpop.f32.mrf.mxu0
        %v2266 = vadd.f32 0.0, %v2265
        %v2267 = vpop.f32.mrf.mxu0
        %2268 = vdwg.mxu0
        %2271 = vrot.lane.b32.xlu0 %v2261, 96
        %v2272 = vpop.permute.xlu0 %2271
        %2273 = vrot.lane.b32.xlu0 %v2266, 96
        %v2274 = vpop.permute.xlu0 %2273
        %vm2277 = vcmask 1048320
        %2278 = vst.msk [vmem:[#allocation3] sm:$0xff] %vm2277, %v2272
        %2279 = vst.msk [vmem:[#allocation3 + $0x8] sm:$0xff] %vm2277, %v2274
        %v2280 = vmul.f32 %v1392, 0.17677669
        %v2281 = vmul.f32 %v1396, 0.17677669
        %v2283 = vsel %vm1451, %v2280, 0
        %v2286 = vsel %vm1451, %v2281, 0
        %v2289 = vsel %vm1451, %v1394, 0
        %v2292 = vsel %vm1451, %v1398, 0
        %2294 = vmatprep.subr.mxu0 0.0
        %2295 = vmatpush1.xpose.msra.mxu0 0.0
        %2296 = vmatprep.subr.mxu0 0.0
        %2297 = vmatpush1.xpose.msra.mxu0 0.0
        %2298 = vmatprep.subr.mxu0 0.0
        %2299 = vmatpush1.xpose.msra.mxu0 0.0
        %2300 = vmatprep.subr.mxu0 0.0
        %2301 = vmatpush1.xpose.msra.mxu0 0.0
        %2302 = vmatprep.subr.mxu0 0.0
        %2303 = vmatpush1.xpose.msra.mxu0 0.0
        %2304 = vmatprep.subr.mxu0 0.0
        %2305 = vmatpush1.xpose.msra.mxu0 0.0
        %2306 = vmatprep.subr.mxu0 0.0
        %2307 = vmatpush1.xpose.msra.mxu0 0.0
        %2308 = vmatprep.subr.mxu0 0.0
        %2309 = vmatpush1.xpose.msra.mxu0 0.0
        %2310 = vmatprep.subr.mxu0 0.0
        %2311 = vmatpush1.xpose.msra.mxu0 0.0
        %2312 = vmatprep.subr.mxu0 0.0
        %2313 = vmatpush1.xpose.msra.mxu0 0.0
        %2314 = vmatprep.subr.mxu0 0.0
        %2315 = vmatpush1.xpose.msra.mxu0 0.0
        %2316 = vmatprep.subr.mxu0 0.0
        %2317 = vmatpush1.xpose.msra.mxu0 0.0
        %2318 = vmatprep.subr.mxu0 0.0
        %2319 = vmatpush1.xpose.msra.mxu0 0.0
        %2320 = vmatprep.subr.mxu0 0.0
        %2321 = vmatpush1.xpose.msra.mxu0 0.0
        %2322 = vmatprep.subr.mxu0 0.0
        %2323 = vmatpush1.xpose.msra.mxu0 %v2292
        %2324 = vmatprep.subr.mxu0 0.0
        %2325 = vmatpush1.xpose.msra.mxu0 %v2289
        %2326 = vmatprep.subr.mxu0 0.0
        %2327 = vmatpush2.xpose.msra.mxu0 0.0
        %2328 = vmatprep.subr.mxu0 0.0
        %2329 = vmatpush2.xpose.msra.mxu0 0.0
        %2330 = vmatprep.subr.mxu0 0.0
        %2331 = vmatpush2.xpose.msra.mxu0 0.0
        %2332 = vmatprep.subr.mxu0 0.0
        %2333 = vmatpush2.xpose.msra.mxu0 0.0
        %2334 = vmatprep.subr.mxu0 0.0
        %2335 = vmatpush2.xpose.msra.mxu0 0.0
        %2336 = vmatprep.subr.mxu0 0.0
        %2337 = vmatpush2.xpose.msra.mxu0 0.0
        %2338 = vmatprep.subr.mxu0 0.0
        %2339 = vmatpush2.xpose.msra.mxu0 0.0
        %2340 = vmatprep.subr.mxu0 0.0
        %2341 = vmatpush2.xpose.msra.mxu0 0.0
        %2342 = vmatprep.subr.mxu0 0.0
        %2343 = vmatpush2.xpose.msra.mxu0 0.0
        %2344 = vmatprep.subr.mxu0 0.0
        %2345 = vmatpush2.xpose.msra.mxu0 0.0
        %2346 = vmatprep.subr.mxu0 0.0
        %2347 = vmatpush2.xpose.msra.mxu0 0.0
        %2348 = vmatprep.subr.mxu0 0.0
        %2349 = vmatpush2.xpose.msra.mxu0 0.0
        %2350 = vmatprep.subr.mxu0 0.0
        %2351 = vmatpush2.xpose.msra.mxu0 0.0
        %2352 = vmatprep.subr.mxu0 0.0
        %2353 = vmatpush2.xpose.msra.mxu0 0.0
        %2354 = vmatprep.subr.mxu0 0.0
        %2355 = vmatpush2.xpose.msra.mxu0 0.0
        %2356 = vmatprep.subr.mxu0 0.0
        %2357 = vmatpush2.xpose.msra.mxu0 0.0
        %2358 = vmatprep.mubr.f32.mxu0 0.0
        %2359 = vmatmul.mubr.f32.gmra.mxu0 %v2283
        %v2360 = vpop.f32.mrf.mxu0
        %v2361 = vadd.f32 0.0, %v2360
        %v2362 = vpop.f32.mrf.mxu0
        %2363 = vmatprep.mubr.f32.mxu0 0.0
        %2364 = vmatmul.mubr.f32.gmra.mxu0 %v2286
        %v2365 = vpop.f32.mrf.mxu0
        %v2366 = vadd.f32 0.0, %v2365
        %v2367 = vpop.f32.mrf.mxu0
        %2368 = vdwg.mxu0
        %v2369 = vsel %vm1539, %v2361, -inf
        %2370 = vmax.xlane.f32.xlu0 %v2369
        %v2371 = vpop.xlane.xlu0 %2370
        %v2372 = vsel %vm1539, %v2366, -inf
        %2373 = vmax.xlane.f32.xlu0 %v2372
        %v2374 = vpop.xlane.xlu0 %2373
        %v2375 = vsub.f32 %v2361, %v2371
        %v2376 = vsub.f32 %v2366, %v2374
        %v2377 = vmul.f32 %v2375, 1.442695
        %v2378 = vpow.pop %v2377
        %v2379 = vmul.f32 %v2376, 1.442695
        %v2380 = vpow.pop %v2379
        %v2381 = vsel %vm1539, %v2378, 0.0
        %2382 = vadd.xlane.f32.xlu0 %v2381
        %v2383 = vpop.xlane.xlu0 %2382
        %v2384 = vsel %vm1539, %v2380, 0.0
        %2385 = vadd.xlane.f32.xlu0 %v2384
        %v2386 = vpop.xlane.xlu0 %2385
        %v2387 = vrcp.pop %v2383
        %v2388 = vrcp.pop %v2386
        %v2389 = vmul.f32 %v2378, %v2387
        %v2390 = vmul.f32 %v2380, %v2388
        %v2392 = vsel %vm1539, %v2389, 0
        %v2395 = vsel %vm1539, %v2390, 0
        %2397 = vmatprep.subr.mxu0 0.0
        %2398 = vmatpush1.msra.mxu0 0.0
        %2399 = vmatprep.subr.mxu0 0.0
        %2400 = vmatpush1.msra.mxu0 0.0
        %2401 = vmatprep.subr.mxu0 0.0
        %2402 = vmatpush1.msra.mxu0 0.0
        %2403 = vmatprep.subr.mxu0 0.0
        %2404 = vmatpush1.msra.mxu0 0.0
        %2405 = vmatprep.subr.mxu0 0.0
        %2406 = vmatpush1.msra.mxu0 0.0
        %2407 = vmatprep.subr.mxu0 0.0
        %2408 = vmatpush1.msra.mxu0 0.0
        %2409 = vmatprep.subr.mxu0 0.0
        %2410 = vmatpush1.msra.mxu0 0.0
        %2411 = vmatprep.subr.mxu0 0.0
        %2412 = vmatpush1.msra.mxu0 0.0
        %2413 = vmatprep.subr.mxu0 0.0
        %2414 = vmatpush1.msra.mxu0 0.0
        %2415 = vmatprep.subr.mxu0 0.0
        %2416 = vmatpush1.msra.mxu0 0.0
        %2417 = vmatprep.subr.mxu0 0.0
        %2418 = vmatpush1.msra.mxu0 0.0
        %2419 = vmatprep.subr.mxu0 0.0
        %2420 = vmatpush1.msra.mxu0 0.0
        %2421 = vmatprep.subr.mxu0 0.0
        %2422 = vmatpush1.msra.mxu0 0.0
        %2423 = vmatprep.subr.mxu0 0.0
        %2424 = vmatpush1.msra.mxu0 0.0
        %2425 = vmatprep.subr.mxu0 0.0
        %2426 = vmatpush1.msra.mxu0 %v1446
        %2427 = vmatprep.subr.mxu0 0.0
        %2428 = vmatpush1.msra.mxu0 %v1443
        %2429 = vmatprep.subr.mxu0 0.0
        %2430 = vmatpush2.msra.mxu0 0.0
        %2431 = vmatprep.subr.mxu0 0.0
        %2432 = vmatpush2.msra.mxu0 0.0
        %2433 = vmatprep.subr.mxu0 0.0
        %2434 = vmatpush2.msra.mxu0 0.0
        %2435 = vmatprep.subr.mxu0 0.0
        %2436 = vmatpush2.msra.mxu0 0.0
        %2437 = vmatprep.subr.mxu0 0.0
        %2438 = vmatpush2.msra.mxu0 0.0
        %2439 = vmatprep.subr.mxu0 0.0
        %2440 = vmatpush2.msra.mxu0 0.0
        %2441 = vmatprep.subr.mxu0 0.0
        %2442 = vmatpush2.msra.mxu0 0.0
        %2443 = vmatprep.subr.mxu0 0.0
        %2444 = vmatpush2.msra.mxu0 0.0
        %2445 = vmatprep.subr.mxu0 0.0
        %2446 = vmatpush2.msra.mxu0 0.0
        %2447 = vmatprep.subr.mxu0 0.0
        %2448 = vmatpush2.msra.mxu0 0.0
        %2449 = vmatprep.subr.mxu0 0.0
        %2450 = vmatpush2.msra.mxu0 0.0
        %2451 = vmatprep.subr.mxu0 0.0
        %2452 = vmatpush2.msra.mxu0 0.0
        %2453 = vmatprep.subr.mxu0 0.0
        %2454 = vmatpush2.msra.mxu0 0.0
        %2455 = vmatprep.subr.mxu0 0.0
        %2456 = vmatpush2.msra.mxu0 0.0
        %2457 = vmatprep.subr.mxu0 0.0
        %2458 = vmatpush2.msra.mxu0 0.0
        %2459 = vmatprep.subr.mxu0 0.0
        %2460 = vmatpush2.msra.mxu0 0.0
        %2461 = vmatprep.mubr.f32.mxu0 0.0
        %2462 = vmatmul.mubr.f32.gmra.mxu0 %v2392
        %v2463 = vpop.f32.mrf.mxu0
        %v2464 = vadd.f32 0.0, %v2463
        %v2465 = vpop.f32.mrf.mxu0
        %2466 = vmatprep.mubr.f32.mxu0 0.0
        %2467 = vmatmul.mubr.f32.gmra.mxu0 %v2395
        %v2468 = vpop.f32.mrf.mxu0
        %v2469 = vadd.f32 0.0, %v2468
        %v2470 = vpop.f32.mrf.mxu0
        %2471 = vdwg.mxu0
        %2472 = vst.msk [vmem:[#allocation3 + $0x10] sm:$0xff] %vm1451, %v2464
        %2473 = vst.msk [vmem:[#allocation3 + $0x18] sm:$0xff] %vm1451, %v2469
        %2474 = vrot.lane.b32.xlu0 %v2280, 96
        %v2475 = vpop.permute.xlu0 %2474
        %2476 = vrot.lane.b32.xlu0 %v2281, 96
        %v2477 = vpop.permute.xlu0 %2476
        %2478 = vrot.lane.b32.xlu0 %v1394, 96
        %v2479 = vpop.permute.xlu0 %2478
        %2480 = vrot.lane.b32.xlu0 %v1398, 96
        %v2481 = vpop.permute.xlu0 %2480
        %v2482 = vsel %vm1451, %v2475, 0
        %v2484 = vsel %vm1451, %v2477, 0
        %v2486 = vsel %vm1451, %v2479, 0
        %v2488 = vsel %vm1451, %v2481, 0
        %2490 = vmatprep.subr.mxu0 0.0
        %2491 = vmatpush1.xpose.msra.mxu0 0.0
        %2492 = vmatprep.subr.mxu0 0.0
        %2493 = vmatpush1.xpose.msra.mxu0 0.0
        %2494 = vmatprep.subr.mxu0 0.0
        %2495 = vmatpush1.xpose.msra.mxu0 0.0
        %2496 = vmatprep.subr.mxu0 0.0
        %2497 = vmatpush1.xpose.msra.mxu0 0.0
        %2498 = vmatprep.subr.mxu0 0.0
        %2499 = vmatpush1.xpose.msra.mxu0 0.0
        %2500 = vmatprep.subr.mxu0 0.0
        %2501 = vmatpush1.xpose.msra.mxu0 0.0
        %2502 = vmatprep.subr.mxu0 0.0
        %2503 = vmatpush1.xpose.msra.mxu0 0.0
        %2504 = vmatprep.subr.mxu0 0.0
        %2505 = vmatpush1.xpose.msra.mxu0 0.0
        %2506 = vmatprep.subr.mxu0 0.0
        %2507 = vmatpush1.xpose.msra.mxu0 0.0
        %2508 = vmatprep.subr.mxu0 0.0
        %2509 = vmatpush1.xpose.msra.mxu0 0.0
        %2510 = vmatprep.subr.mxu0 0.0
        %2511 = vmatpush1.xpose.msra.mxu0 0.0
        %2512 = vmatprep.subr.mxu0 0.0
        %2513 = vmatpush1.xpose.msra.mxu0 0.0
        %2514 = vmatprep.subr.mxu0 0.0
        %2515 = vmatpush1.xpose.msra.mxu0 0.0
        %2516 = vmatprep.subr.mxu0 0.0
        %2517 = vmatpush1.xpose.msra.mxu0 0.0
        %2518 = vmatprep.subr.mxu0 0.0
        %2519 = vmatpush1.xpose.msra.mxu0 %v2488
        %2520 = vmatprep.subr.mxu0 0.0
        %2521 = vmatpush1.xpose.msra.mxu0 %v2486
        %2522 = vmatprep.subr.mxu0 0.0
        %2523 = vmatpush2.xpose.msra.mxu0 0.0
        %2524 = vmatprep.subr.mxu0 0.0
        %2525 = vmatpush2.xpose.msra.mxu0 0.0
        %2526 = vmatprep.subr.mxu0 0.0
        %2527 = vmatpush2.xpose.msra.mxu0 0.0
        %2528 = vmatprep.subr.mxu0 0.0
        %2529 = vmatpush2.xpose.msra.mxu0 0.0
        %2530 = vmatprep.subr.mxu0 0.0
        %2531 = vmatpush2.xpose.msra.mxu0 0.0
        %2532 = vmatprep.subr.mxu0 0.0
        %2533 = vmatpush2.xpose.msra.mxu0 0.0
        %2534 = vmatprep.subr.mxu0 0.0
        %2535 = vmatpush2.xpose.msra.mxu0 0.0
        %2536 = vmatprep.subr.mxu0 0.0
        %2537 = vmatpush2.xpose.msra.mxu0 0.0
        %2538 = vmatprep.subr.mxu0 0.0
        %2539 = vmatpush2.xpose.msra.mxu0 0.0
        %2540 = vmatprep.subr.mxu0 0.0
        %2541 = vmatpush2.xpose.msra.mxu0 0.0
        %2542 = vmatprep.subr.mxu0 0.0
        %2543 = vmatpush2.xpose.msra.mxu0 0.0
        %2544 = vmatprep.subr.mxu0 0.0
        %2545 = vmatpush2.xpose.msra.mxu0 0.0
        %2546 = vmatprep.subr.mxu0 0.0
        %2547 = vmatpush2.xpose.msra.mxu0 0.0
        %2548 = vmatprep.subr.mxu0 0.0
        %2549 = vmatpush2.xpose.msra.mxu0 0.0
        %2550 = vmatprep.subr.mxu0 0.0
        %2551 = vmatpush2.xpose.msra.mxu0 0.0
        %2552 = vmatprep.subr.mxu0 0.0
        %2553 = vmatpush2.xpose.msra.mxu0 0.0
        %2554 = vmatprep.mubr.f32.mxu0 0.0
        %2555 = vmatmul.mubr.f32.gmra.mxu0 %v2482
        %v2556 = vpop.f32.mrf.mxu0
        %v2557 = vadd.f32 0.0, %v2556
        %v2558 = vpop.f32.mrf.mxu0
        %2559 = vmatprep.mubr.f32.mxu0 0.0
        %2560 = vmatmul.mubr.f32.gmra.mxu0 %v2484
        %v2561 = vpop.f32.mrf.mxu0
        %v2562 = vadd.f32 0.0, %v2561
        %v2563 = vpop.f32.mrf.mxu0
        %2564 = vdwg.mxu0
        %v2565 = vsel %vm1539, %v2557, -inf
        %2566 = vmax.xlane.f32.xlu0 %v2565
        %v2567 = vpop.xlane.xlu0 %2566
        %v2568 = vsel %vm1539, %v2562, -inf
        %2569 = vmax.xlane.f32.xlu0 %v2568
        %v2570 = vpop.xlane.xlu0 %2569
        %v2571 = vsub.f32 %v2557, %v2567
        %v2572 = vsub.f32 %v2562, %v2570
        %v2573 = vmul.f32 %v2571, 1.442695
        %v2574 = vpow.pop %v2573
        %v2575 = vmul.f32 %v2572, 1.442695
        %v2576 = vpow.pop %v2575
        %v2577 = vsel %vm1539, %v2574, 0.0
        %2578 = vadd.xlane.f32.xlu0 %v2577
        %v2579 = vpop.xlane.xlu0 %2578
        %v2580 = vsel %vm1539, %v2576, 0.0
        %2581 = vadd.xlane.f32.xlu0 %v2580
        %v2582 = vpop.xlane.xlu0 %2581
        %v2583 = vrcp.pop %v2579
        %v2584 = vrcp.pop %v2582
        %v2585 = vmul.f32 %v2574, %v2583
        %v2586 = vmul.f32 %v2576, %v2584
        %2589 = vrot.lane.b32.xlu0 %v1443, 96
        %v2590 = vpop.permute.xlu0 %2589
        %2591 = vrot.lane.b32.xlu0 %v1446, 96
        %v2592 = vpop.permute.xlu0 %2591
        %v2596 = vsel %vm1539, %v2585, 0
        %v2599 = vsel %vm1539, %v2586, 0
        %2601 = vmatprep.subr.mxu0 0.0
        %2602 = vmatpush1.msra.mxu0 0.0
        %2603 = vmatprep.subr.mxu0 0.0
        %2604 = vmatpush1.msra.mxu0 0.0
        %2605 = vmatprep.subr.mxu0 0.0
        %2606 = vmatpush1.msra.mxu0 0.0
        %2607 = vmatprep.subr.mxu0 0.0
        %2608 = vmatpush1.msra.mxu0 0.0
        %2609 = vmatprep.subr.mxu0 0.0
        %2610 = vmatpush1.msra.mxu0 0.0
        %2611 = vmatprep.subr.mxu0 0.0
        %2612 = vmatpush1.msra.mxu0 0.0
        %2613 = vmatprep.subr.mxu0 0.0
        %2614 = vmatpush1.msra.mxu0 0.0
        %2615 = vmatprep.subr.mxu0 0.0
        %2616 = vmatpush1.msra.mxu0 0.0
        %2617 = vmatprep.subr.mxu0 0.0
        %2618 = vmatpush1.msra.mxu0 0.0
        %2619 = vmatprep.subr.mxu0 0.0
        %2620 = vmatpush1.msra.mxu0 0.0
        %2621 = vmatprep.subr.mxu0 0.0
        %2622 = vmatpush1.msra.mxu0 0.0
        %2623 = vmatprep.subr.mxu0 0.0
        %2624 = vmatpush1.msra.mxu0 0.0
        %2625 = vmatprep.subr.mxu0 0.0
        %2626 = vmatpush1.msra.mxu0 0.0
        %2627 = vmatprep.subr.mxu0 0.0
        %2628 = vmatpush1.msra.mxu0 0.0
        %2629 = vmatprep.subr.mxu0 0.0
        %2630 = vmatpush1.msra.mxu0 %v2592
        %2631 = vmatprep.subr.mxu0 0.0
        %2632 = vmatpush1.msra.mxu0 %v2590
        %2633 = vmatprep.subr.mxu0 0.0
        %2634 = vmatpush2.msra.mxu0 0.0
        %2635 = vmatprep.subr.mxu0 0.0
        %2636 = vmatpush2.msra.mxu0 0.0
        %2637 = vmatprep.subr.mxu0 0.0
        %2638 = vmatpush2.msra.mxu0 0.0
        %2639 = vmatprep.subr.mxu0 0.0
        %2640 = vmatpush2.msra.mxu0 0.0
        %2641 = vmatprep.subr.mxu0 0.0
        %2642 = vmatpush2.msra.mxu0 0.0
        %2643 = vmatprep.subr.mxu0 0.0
        %2644 = vmatpush2.msra.mxu0 0.0
        %2645 = vmatprep.subr.mxu0 0.0
        %2646 = vmatpush2.msra.mxu0 0.0
        %2647 = vmatprep.subr.mxu0 0.0
        %2648 = vmatpush2.msra.mxu0 0.0
        %2649 = vmatprep.subr.mxu0 0.0
        %2650 = vmatpush2.msra.mxu0 0.0
        %2651 = vmatprep.subr.mxu0 0.0
        %2652 = vmatpush2.msra.mxu0 0.0
        %2653 = vmatprep.subr.mxu0 0.0
        %2654 = vmatpush2.msra.mxu0 0.0
        %2655 = vmatprep.subr.mxu0 0.0
        %2656 = vmatpush2.msra.mxu0 0.0
        %2657 = vmatprep.subr.mxu0 0.0
        %2658 = vmatpush2.msra.mxu0 0.0
        %2659 = vmatprep.subr.mxu0 0.0
        %2660 = vmatpush2.msra.mxu0 0.0
        %2661 = vmatprep.subr.mxu0 0.0
        %2662 = vmatpush2.msra.mxu0 0.0
        %2663 = vmatprep.subr.mxu0 0.0
        %2664 = vmatpush2.msra.mxu0 0.0
        %2665 = vmatprep.mubr.f32.mxu0 0.0
        %2666 = vmatmul.mubr.f32.gmra.mxu0 %v2596
        %v2667 = vpop.f32.mrf.mxu0
        %v2668 = vadd.f32 0.0, %v2667
        %v2669 = vpop.f32.mrf.mxu0
        %2670 = vmatprep.mubr.f32.mxu0 0.0
        %2671 = vmatmul.mubr.f32.gmra.mxu0 %v2599
        %v2672 = vpop.f32.mrf.mxu0
        %v2673 = vadd.f32 0.0, %v2672
        %v2674 = vpop.f32.mrf.mxu0
        %2675 = vdwg.mxu0
        %2678 = vrot.lane.b32.xlu0 %v2668, 32
        %v2679 = vpop.permute.xlu0 %2678
        %2680 = vrot.lane.b32.xlu0 %v2673, 32
        %v2681 = vpop.permute.xlu0 %2680
        %2684 = vst.msk [vmem:[#allocation3 + $0x10] sm:$0xff] %vm1855, %v2679
        %2685 = vst.msk [vmem:[#allocation3 + $0x18] sm:$0xff] %vm1855, %v2681
        %2686 = vrot.lane.b32.xlu0 %v2280, 64
        %v2687 = vpop.permute.xlu0 %2686
        %2688 = vrot.lane.b32.xlu0 %v2281, 64
        %v2689 = vpop.permute.xlu0 %2688
        %2690 = vrot.lane.b32.xlu0 %v1394, 64
        %v2691 = vpop.permute.xlu0 %2690
        %2692 = vrot.lane.b32.xlu0 %v1398, 64
        %v2693 = vpop.permute.xlu0 %2692
        %v2694 = vsel %vm1451, %v2687, 0
        %v2696 = vsel %vm1451, %v2689, 0
        %v2698 = vsel %vm1451, %v2691, 0
        %v2700 = vsel %vm1451, %v2693, 0
        %2702 = vmatprep.subr.mxu0 0.0
        %2703 = vmatpush1.xpose.msra.mxu0 0.0
        %2704 = vmatprep.subr.mxu0 0.0
        %2705 = vmatpush1.xpose.msra.mxu0 0.0
        %2706 = vmatprep.subr.mxu0 0.0
        %2707 = vmatpush1.xpose.msra.mxu0 0.0
        %2708 = vmatprep.subr.mxu0 0.0
        %2709 = vmatpush1.xpose.msra.mxu0 0.0
        %2710 = vmatprep.subr.mxu0 0.0
        %2711 = vmatpush1.xpose.msra.mxu0 0.0
        %2712 = vmatprep.subr.mxu0 0.0
        %2713 = vmatpush1.xpose.msra.mxu0 0.0
        %2714 = vmatprep.subr.mxu0 0.0
        %2715 = vmatpush1.xpose.msra.mxu0 0.0
        %2716 = vmatprep.subr.mxu0 0.0
        %2717 = vmatpush1.xpose.msra.mxu0 0.0
        %2718 = vmatprep.subr.mxu0 0.0
        %2719 = vmatpush1.xpose.msra.mxu0 0.0
        %2720 = vmatprep.subr.mxu0 0.0
        %2721 = vmatpush1.xpose.msra.mxu0 0.0
        %2722 = vmatprep.subr.mxu0 0.0
        %2723 = vmatpush1.xpose.msra.mxu0 0.0
        %2724 = vmatprep.subr.mxu0 0.0
        %2725 = vmatpush1.xpose.msra.mxu0 0.0
        %2726 = vmatprep.subr.mxu0 0.0
        %2727 = vmatpush1.xpose.msra.mxu0 0.0
        %2728 = vmatprep.subr.mxu0 0.0
        %2729 = vmatpush1.xpose.msra.mxu0 0.0
        %2730 = vmatprep.subr.mxu0 0.0
        %2731 = vmatpush1.xpose.msra.mxu0 %v2700
        %2732 = vmatprep.subr.mxu0 0.0
        %2733 = vmatpush1.xpose.msra.mxu0 %v2698
        %2734 = vmatprep.subr.mxu0 0.0
        %2735 = vmatpush2.xpose.msra.mxu0 0.0
        %2736 = vmatprep.subr.mxu0 0.0
        %2737 = vmatpush2.xpose.msra.mxu0 0.0
        %2738 = vmatprep.subr.mxu0 0.0
        %2739 = vmatpush2.xpose.msra.mxu0 0.0
        %2740 = vmatprep.subr.mxu0 0.0
        %2741 = vmatpush2.xpose.msra.mxu0 0.0
        %2742 = vmatprep.subr.mxu0 0.0
        %2743 = vmatpush2.xpose.msra.mxu0 0.0
        %2744 = vmatprep.subr.mxu0 0.0
        %2745 = vmatpush2.xpose.msra.mxu0 0.0
        %2746 = vmatprep.subr.mxu0 0.0
        %2747 = vmatpush2.xpose.msra.mxu0 0.0
        %2748 = vmatprep.subr.mxu0 0.0
        %2749 = vmatpush2.xpose.msra.mxu0 0.0
        %2750 = vmatprep.subr.mxu0 0.0
        %2751 = vmatpush2.xpose.msra.mxu0 0.0
        %2752 = vmatprep.subr.mxu0 0.0
        %2753 = vmatpush2.xpose.msra.mxu0 0.0
        %2754 = vmatprep.subr.mxu0 0.0
        %2755 = vmatpush2.xpose.msra.mxu0 0.0
        %2756 = vmatprep.subr.mxu0 0.0
        %2757 = vmatpush2.xpose.msra.mxu0 0.0
        %2758 = vmatprep.subr.mxu0 0.0
        %2759 = vmatpush2.xpose.msra.mxu0 0.0
        %2760 = vmatprep.subr.mxu0 0.0
        %2761 = vmatpush2.xpose.msra.mxu0 0.0
        %2762 = vmatprep.subr.mxu0 0.0
        %2763 = vmatpush2.xpose.msra.mxu0 0.0
        %2764 = vmatprep.subr.mxu0 0.0
        %2765 = vmatpush2.xpose.msra.mxu0 0.0
        %2766 = vmatprep.mubr.f32.mxu0 0.0
        %2767 = vmatmul.mubr.f32.gmra.mxu0 %v2694
        %v2768 = vpop.f32.mrf.mxu0
        %v2769 = vadd.f32 0.0, %v2768
        %v2770 = vpop.f32.mrf.mxu0
        %2771 = vmatprep.mubr.f32.mxu0 0.0
        %2772 = vmatmul.mubr.f32.gmra.mxu0 %v2696
        %v2773 = vpop.f32.mrf.mxu0
        %v2774 = vadd.f32 0.0, %v2773
        %v2775 = vpop.f32.mrf.mxu0
        %2776 = vdwg.mxu0
        %v2777 = vsel %vm1539, %v2769, -inf
        %2778 = vmax.xlane.f32.xlu0 %v2777
        %v2779 = vpop.xlane.xlu0 %2778
        %v2780 = vsel %vm1539, %v2774, -inf
        %2781 = vmax.xlane.f32.xlu0 %v2780
        %v2782 = vpop.xlane.xlu0 %2781
        %v2783 = vsub.f32 %v2769, %v2779
        %v2784 = vsub.f32 %v2774, %v2782
        %v2785 = vmul.f32 %v2783, 1.442695
        %v2786 = vpow.pop %v2785
        %v2787 = vmul.f32 %v2784, 1.442695
        %v2788 = vpow.pop %v2787
        %v2789 = vsel %vm1539, %v2786, 0.0
        %2790 = vadd.xlane.f32.xlu0 %v2789
        %v2791 = vpop.xlane.xlu0 %2790
        %v2792 = vsel %vm1539, %v2788, 0.0
        %2793 = vadd.xlane.f32.xlu0 %v2792
        %v2794 = vpop.xlane.xlu0 %2793
        %v2795 = vrcp.pop %v2791
        %v2796 = vrcp.pop %v2794
        %v2797 = vmul.f32 %v2786, %v2795
        %v2798 = vmul.f32 %v2788, %v2796
        %2799 = vrot.lane.b32.xlu0 %v1443, 64
        %v2800 = vpop.permute.xlu0 %2799
        %2801 = vrot.lane.b32.xlu0 %v1446, 64
        %v2802 = vpop.permute.xlu0 %2801
        %v2806 = vsel %vm1539, %v2797, 0
        %v2809 = vsel %vm1539, %v2798, 0
        %2811 = vmatprep.subr.mxu0 0.0
        %2812 = vmatpush1.msra.mxu0 0.0
        %2813 = vmatprep.subr.mxu0 0.0
        %2814 = vmatpush1.msra.mxu0 0.0
        %2815 = vmatprep.subr.mxu0 0.0
        %2816 = vmatpush1.msra.mxu0 0.0
        %2817 = vmatprep.subr.mxu0 0.0
        %2818 = vmatpush1.msra.mxu0 0.0
        %2819 = vmatprep.subr.mxu0 0.0
        %2820 = vmatpush1.msra.mxu0 0.0
        %2821 = vmatprep.subr.mxu0 0.0
        %2822 = vmatpush1.msra.mxu0 0.0
        %2823 = vmatprep.subr.mxu0 0.0
        %2824 = vmatpush1.msra.mxu0 0.0
        %2825 = vmatprep.subr.mxu0 0.0
        %2826 = vmatpush1.msra.mxu0 0.0
        %2827 = vmatprep.subr.mxu0 0.0
        %2828 = vmatpush1.msra.mxu0 0.0
        %2829 = vmatprep.subr.mxu0 0.0
        %2830 = vmatpush1.msra.mxu0 0.0
        %2831 = vmatprep.subr.mxu0 0.0
        %2832 = vmatpush1.msra.mxu0 0.0
        %2833 = vmatprep.subr.mxu0 0.0
        %2834 = vmatpush1.msra.mxu0 0.0
        %2835 = vmatprep.subr.mxu0 0.0
        %2836 = vmatpush1.msra.mxu0 0.0
        %2837 = vmatprep.subr.mxu0 0.0
        %2838 = vmatpush1.msra.mxu0 0.0
        %2839 = vmatprep.subr.mxu0 0.0
        %2840 = vmatpush1.msra.mxu0 %v2802
        %2841 = vmatprep.subr.mxu0 0.0
        %2842 = vmatpush1.msra.mxu0 %v2800
        %2843 = vmatprep.subr.mxu0 0.0
        %2844 = vmatpush2.msra.mxu0 0.0
        %2845 = vmatprep.subr.mxu0 0.0
        %2846 = vmatpush2.msra.mxu0 0.0
        %2847 = vmatprep.subr.mxu0 0.0
        %2848 = vmatpush2.msra.mxu0 0.0
        %2849 = vmatprep.subr.mxu0 0.0
        %2850 = vmatpush2.msra.mxu0 0.0
        %2851 = vmatprep.subr.mxu0 0.0
        %2852 = vmatpush2.msra.mxu0 0.0
        %2853 = vmatprep.subr.mxu0 0.0
        %2854 = vmatpush2.msra.mxu0 0.0
        %2855 = vmatprep.subr.mxu0 0.0
        %2856 = vmatpush2.msra.mxu0 0.0
        %2857 = vmatprep.subr.mxu0 0.0
        %2858 = vmatpush2.msra.mxu0 0.0
        %2859 = vmatprep.subr.mxu0 0.0
        %2860 = vmatpush2.msra.mxu0 0.0
        %2861 = vmatprep.subr.mxu0 0.0
        %2862 = vmatpush2.msra.mxu0 0.0
        %2863 = vmatprep.subr.mxu0 0.0
        %2864 = vmatpush2.msra.mxu0 0.0
        %2865 = vmatprep.subr.mxu0 0.0
        %2866 = vmatpush2.msra.mxu0 0.0
        %2867 = vmatprep.subr.mxu0 0.0
        %2868 = vmatpush2.msra.mxu0 0.0
        %2869 = vmatprep.subr.mxu0 0.0
        %2870 = vmatpush2.msra.mxu0 0.0
        %2871 = vmatprep.subr.mxu0 0.0
        %2872 = vmatpush2.msra.mxu0 0.0
        %2873 = vmatprep.subr.mxu0 0.0
        %2874 = vmatpush2.msra.mxu0 0.0
        %2875 = vmatprep.mubr.f32.mxu0 0.0
        %2876 = vmatmul.mubr.f32.gmra.mxu0 %v2806
        %v2877 = vpop.f32.mrf.mxu0
        %v2878 = vadd.f32 0.0, %v2877
        %v2879 = vpop.f32.mrf.mxu0
        %2880 = vmatprep.mubr.f32.mxu0 0.0
        %2881 = vmatmul.mubr.f32.gmra.mxu0 %v2809
        %v2882 = vpop.f32.mrf.mxu0
        %v2883 = vadd.f32 0.0, %v2882
        %v2884 = vpop.f32.mrf.mxu0
        %2885 = vdwg.mxu0
        %2888 = vrot.lane.b32.xlu0 %v2878, 64
        %v2889 = vpop.permute.xlu0 %2888
        %2890 = vrot.lane.b32.xlu0 %v2883, 64
        %v2891 = vpop.permute.xlu0 %2890
        %2894 = vst.msk [vmem:[#allocation3 + $0x10] sm:$0xff] %vm2066, %v2889
        %2895 = vst.msk [vmem:[#allocation3 + $0x18] sm:$0xff] %vm2066, %v2891
        %2896 = vrot.lane.b32.xlu0 %v2280, 32
        %v2897 = vpop.permute.xlu0 %2896
        %2898 = vrot.lane.b32.xlu0 %v2281, 32
        %v2899 = vpop.permute.xlu0 %2898
        %2900 = vrot.lane.b32.xlu0 %v1394, 32
        %v2901 = vpop.permute.xlu0 %2900
        %2902 = vrot.lane.b32.xlu0 %v1398, 32
        %v2903 = vpop.permute.xlu0 %2902
        %v2904 = vsel %vm1451, %v2897, 0
        %v2906 = vsel %vm1451, %v2899, 0
        %v2908 = vsel %vm1451, %v2901, 0
        %v2910 = vsel %vm1451, %v2903, 0
        %2912 = vmatprep.subr.mxu0 0.0
        %2913 = vmatpush1.xpose.msra.mxu0 0.0
        %2914 = vmatprep.subr.mxu0 0.0
        %2915 = vmatpush1.xpose.msra.mxu0 0.0
        %2916 = vmatprep.subr.mxu0 0.0
        %2917 = vmatpush1.xpose.msra.mxu0 0.0
        %2918 = vmatprep.subr.mxu0 0.0
        %2919 = vmatpush1.xpose.msra.mxu0 0.0
        %2920 = vmatprep.subr.mxu0 0.0
        %2921 = vmatpush1.xpose.msra.mxu0 0.0
        %2922 = vmatprep.subr.mxu0 0.0
        %2923 = vmatpush1.xpose.msra.mxu0 0.0
        %2924 = vmatprep.subr.mxu0 0.0
        %2925 = vmatpush1.xpose.msra.mxu0 0.0
        %2926 = vmatprep.subr.mxu0 0.0
        %2927 = vmatpush1.xpose.msra.mxu0 0.0
        %2928 = vmatprep.subr.mxu0 0.0
        %2929 = vmatpush1.xpose.msra.mxu0 0.0
        %2930 = vmatprep.subr.mxu0 0.0
        %2931 = vmatpush1.xpose.msra.mxu0 0.0
        %2932 = vmatprep.subr.mxu0 0.0
        %2933 = vmatpush1.xpose.msra.mxu0 0.0
        %2934 = vmatprep.subr.mxu0 0.0
        %2935 = vmatpush1.xpose.msra.mxu0 0.0
        %2936 = vmatprep.subr.mxu0 0.0
        %2937 = vmatpush1.xpose.msra.mxu0 0.0
        %2938 = vmatprep.subr.mxu0 0.0
        %2939 = vmatpush1.xpose.msra.mxu0 0.0
        %2940 = vmatprep.subr.mxu0 0.0
        %2941 = vmatpush1.xpose.msra.mxu0 %v2910
        %2942 = vmatprep.subr.mxu0 0.0
        %2943 = vmatpush1.xpose.msra.mxu0 %v2908
        %2944 = vmatprep.subr.mxu0 0.0
        %2945 = vmatpush2.xpose.msra.mxu0 0.0
        %2946 = vmatprep.subr.mxu0 0.0
        %2947 = vmatpush2.xpose.msra.mxu0 0.0
        %2948 = vmatprep.subr.mxu0 0.0
        %2949 = vmatpush2.xpose.msra.mxu0 0.0
        %2950 = vmatprep.subr.mxu0 0.0
        %2951 = vmatpush2.xpose.msra.mxu0 0.0
        %2952 = vmatprep.subr.mxu0 0.0
        %2953 = vmatpush2.xpose.msra.mxu0 0.0
        %2954 = vmatprep.subr.mxu0 0.0
        %2955 = vmatpush2.xpose.msra.mxu0 0.0
        %2956 = vmatprep.subr.mxu0 0.0
        %2957 = vmatpush2.xpose.msra.mxu0 0.0
        %2958 = vmatprep.subr.mxu0 0.0
        %2959 = vmatpush2.xpose.msra.mxu0 0.0
        %2960 = vmatprep.subr.mxu0 0.0
        %2961 = vmatpush2.xpose.msra.mxu0 0.0
        %2962 = vmatprep.subr.mxu0 0.0
        %2963 = vmatpush2.xpose.msra.mxu0 0.0
        %2964 = vmatprep.subr.mxu0 0.0
        %2965 = vmatpush2.xpose.msra.mxu0 0.0
        %2966 = vmatprep.subr.mxu0 0.0
        %2967 = vmatpush2.xpose.msra.mxu0 0.0
        %2968 = vmatprep.subr.mxu0 0.0
        %2969 = vmatpush2.xpose.msra.mxu0 0.0
        %2970 = vmatprep.subr.mxu0 0.0
        %2971 = vmatpush2.xpose.msra.mxu0 0.0
        %2972 = vmatprep.subr.mxu0 0.0
        %2973 = vmatpush2.xpose.msra.mxu0 0.0
        %2974 = vmatprep.subr.mxu0 0.0
        %2975 = vmatpush2.xpose.msra.mxu0 0.0
        %2976 = vmatprep.mubr.f32.mxu0 0.0
        %2977 = vmatmul.mubr.f32.gmra.mxu0 %v2904
        %v2978 = vpop.f32.mrf.mxu0
        %v2979 = vadd.f32 0.0, %v2978
        %v2980 = vpop.f32.mrf.mxu0
        %2981 = vmatprep.mubr.f32.mxu0 0.0
        %2982 = vmatmul.mubr.f32.gmra.mxu0 %v2906
        %v2983 = vpop.f32.mrf.mxu0
        %v2984 = vadd.f32 0.0, %v2983
        %v2985 = vpop.f32.mrf.mxu0
        %2986 = vdwg.mxu0
        %v2987 = vsel %vm1539, %v2979, -inf
        %2988 = vmax.xlane.f32.xlu0 %v2987
        %v2989 = vpop.xlane.xlu0 %2988
        %v2990 = vsel %vm1539, %v2984, -inf
        %2991 = vmax.xlane.f32.xlu0 %v2990
        %v2992 = vpop.xlane.xlu0 %2991
        %v2993 = vsub.f32 %v2979, %v2989
        %v2994 = vsub.f32 %v2984, %v2992
        %v2995 = vmul.f32 %v2993, 1.442695
        %v2996 = vpow.pop %v2995
        %v2997 = vmul.f32 %v2994, 1.442695
        %v2998 = vpow.pop %v2997
        %v2999 = vsel %vm1539, %v2996, 0.0
        %3000 = vadd.xlane.f32.xlu0 %v2999
        %v3001 = vpop.xlane.xlu0 %3000
        %v3002 = vsel %vm1539, %v2998, 0.0
        %3003 = vadd.xlane.f32.xlu0 %v3002
        %v3004 = vpop.xlane.xlu0 %3003
        %v3005 = vrcp.pop %v3001
        %v3006 = vrcp.pop %v3004
        %v3007 = vmul.f32 %v2996, %v3005
        %v3008 = vmul.f32 %v2998, %v3006
        %3009 = vrot.lane.b32.xlu0 %v1443, 32
        %v3010 = vpop.permute.xlu0 %3009
        %3011 = vrot.lane.b32.xlu0 %v1446, 32
        %v3012 = vpop.permute.xlu0 %3011
        %v3016 = vsel %vm1539, %v3007, 0
        %v3019 = vsel %vm1539, %v3008, 0
        %3021 = vmatprep.subr.mxu0 0.0
        %3022 = vmatpush1.msra.mxu0 0.0
        %3023 = vmatprep.subr.mxu0 0.0
        %3024 = vmatpush1.msra.mxu0 0.0
        %3025 = vmatprep.subr.mxu0 0.0
        %3026 = vmatpush1.msra.mxu0 0.0
        %3027 = vmatprep.subr.mxu0 0.0
        %3028 = vmatpush1.msra.mxu0 0.0
        %3029 = vmatprep.subr.mxu0 0.0
        %3030 = vmatpush1.msra.mxu0 0.0
        %3031 = vmatprep.subr.mxu0 0.0
        %3032 = vmatpush1.msra.mxu0 0.0
        %3033 = vmatprep.subr.mxu0 0.0
        %3034 = vmatpush1.msra.mxu0 0.0
        %3035 = vmatprep.subr.mxu0 0.0
        %3036 = vmatpush1.msra.mxu0 0.0
        %3037 = vmatprep.subr.mxu0 0.0
        %3038 = vmatpush1.msra.mxu0 0.0
        %3039 = vmatprep.subr.mxu0 0.0
        %3040 = vmatpush1.msra.mxu0 0.0
        %3041 = vmatprep.subr.mxu0 0.0
        %3042 = vmatpush1.msra.mxu0 0.0
        %3043 = vmatprep.subr.mxu0 0.0
        %3044 = vmatpush1.msra.mxu0 0.0
        %3045 = vmatprep.subr.mxu0 0.0
        %3046 = vmatpush1.msra.mxu0 0.0
        %3047 = vmatprep.subr.mxu0 0.0
        %3048 = vmatpush1.msra.mxu0 0.0
        %3049 = vmatprep.subr.mxu0 0.0
        %3050 = vmatpush1.msra.mxu0 %v3012
        %3051 = vmatprep.subr.mxu0 0.0
        %3052 = vmatpush1.msra.mxu0 %v3010
        %3053 = vmatprep.subr.mxu0 0.0
        %3054 = vmatpush2.msra.mxu0 0.0
        %3055 = vmatprep.subr.mxu0 0.0
        %3056 = vmatpush2.msra.mxu0 0.0
        %3057 = vmatprep.subr.mxu0 0.0
        %3058 = vmatpush2.msra.mxu0 0.0
        %3059 = vmatprep.subr.mxu0 0.0
        %3060 = vmatpush2.msra.mxu0 0.0
        %3061 = vmatprep.subr.mxu0 0.0
        %3062 = vmatpush2.msra.mxu0 0.0
        %3063 = vmatprep.subr.mxu0 0.0
        %3064 = vmatpush2.msra.mxu0 0.0
        %3065 = vmatprep.subr.mxu0 0.0
        %3066 = vmatpush2.msra.mxu0 0.0
        %3067 = vmatprep.subr.mxu0 0.0
        %3068 = vmatpush2.msra.mxu0 0.0
        %3069 = vmatprep.subr.mxu0 0.0
        %3070 = vmatpush2.msra.mxu0 0.0
        %3071 = vmatprep.subr.mxu0 0.0
        %3072 = vmatpush2.msra.mxu0 0.0
        %3073 = vmatprep.subr.mxu0 0.0
        %3074 = vmatpush2.msra.mxu0 0.0
        %3075 = vmatprep.subr.mxu0 0.0
        %3076 = vmatpush2.msra.mxu0 0.0
        %3077 = vmatprep.subr.mxu0 0.0
        %3078 = vmatpush2.msra.mxu0 0.0
        %3079 = vmatprep.subr.mxu0 0.0
        %3080 = vmatpush2.msra.mxu0 0.0
        %3081 = vmatprep.subr.mxu0 0.0
        %3082 = vmatpush2.msra.mxu0 0.0
        %3083 = vmatprep.subr.mxu0 0.0
        %3084 = vmatpush2.msra.mxu0 0.0
        %3085 = vmatprep.mubr.f32.mxu0 0.0
        %3086 = vmatmul.mubr.f32.gmra.mxu0 %v3016
        %v3087 = vpop.f32.mrf.mxu0
        %v3088 = vadd.f32 0.0, %v3087
        %v3089 = vpop.f32.mrf.mxu0
        %3090 = vmatprep.mubr.f32.mxu0 0.0
        %3091 = vmatmul.mubr.f32.gmra.mxu0 %v3019
        %v3092 = vpop.f32.mrf.mxu0
        %v3093 = vadd.f32 0.0, %v3092
        %v3094 = vpop.f32.mrf.mxu0
        %3095 = vdwg.mxu0
        %3098 = vrot.lane.b32.xlu0 %v3088, 96
        %v3099 = vpop.permute.xlu0 %3098
        %3100 = vrot.lane.b32.xlu0 %v3093, 96
        %v3101 = vpop.permute.xlu0 %3100
        %3104 = vst.msk [vmem:[#allocation3 + $0x10] sm:$0xff] %vm2277, %v3099
        %3105 = vst.msk [vmem:[#allocation3 + $0x18] sm:$0xff] %vm2277, %v3101
        %v3106 = vld [vmem:[#allocation3] sm:$0xff]
        %v3107 = vld [vmem:[#allocation3 + $0x8] sm:$0xff]
        %v3108 = vld [vmem:[#allocation3 + $0x10] sm:$0xff]
        %v3109 = vld [vmem:[#allocation3 + $0x18] sm:$0xff]
        %v3110 = vpack.c.bf16 %v3107, %v3106
        %v3111 = vpack.c.bf16 %v3109, %v3108
        %v3112 = vld [vmem:[%s797] sm:$0xf]
        %v3113 = vld [vmem:[%s797 + $0x4] sm:$0xf]
        %v3114 = vld [vmem:[%s797 + $0x8] sm:$0xf]
        %v3115 = vld [vmem:[%s797 + $0xc] sm:$0xf]
        %v3116 = vld [vmem:[%s797 + $0x10] sm:$0xf]
        %v3117 = vld [vmem:[%s797 + $0x14] sm:$0xf]
        %v3118 = vld [vmem:[%s797 + $0x18] sm:$0xf]
        %v3119 = vld [vmem:[%s797 + $0x1c] sm:$0xf]
        %v3120 = vld [vmem:[%s797 + $0x20] sm:$0xf]
        %v3121 = vld [vmem:[%s797 + $0x24] sm:$0xf]
        %v3122 = vld [vmem:[%s797 + $0x28] sm:$0xf]
        %v3123 = vld [vmem:[%s797 + $0x2c] sm:$0xf]
        %v3124 = vld [vmem:[%s797 + $0x30] sm:$0xf]
        %v3125 = vld [vmem:[%s797 + $0x34] sm:$0xf]
        %v3126 = vld [vmem:[%s797 + $0x38] sm:$0xf]
        %v3127 = vld [vmem:[%s797 + $0x3c] sm:$0xf]
        %v3144 = vunpack.c.l.b16 %v3112
        %v3145 = vunpack.c.l.b16 %v3113
        %v3146 = vunpack.c.l.b16 %v3114
        %v3147 = vunpack.c.l.b16 %v3115
        %v3148 = vunpack.c.l.b16 %v3116
        %v3149 = vunpack.c.l.b16 %v3117
        %v3150 = vunpack.c.l.b16 %v3118
        %v3151 = vunpack.c.l.b16 %v3119
        %v3152 = vunpack.c.l.b16 %v3120
        %v3153 = vunpack.c.l.b16 %v3121
        %v3154 = vunpack.c.l.b16 %v3122
        %v3155 = vunpack.c.l.b16 %v3123
        %v3156 = vunpack.c.l.b16 %v3124
        %v3157 = vunpack.c.l.b16 %v3125
        %v3158 = vunpack.c.l.b16 %v3126
        %v3159 = vunpack.c.l.b16 %v3127
        %v3160 = vpack.c.b16 %v3145, %v3144
        %v3161 = vpack.c.b16 %v3147, %v3146
        %v3162 = vpack.c.b16 %v3149, %v3148
        %v3163 = vpack.c.b16 %v3151, %v3150
        %v3164 = vpack.c.b16 %v3153, %v3152
        %v3165 = vpack.c.b16 %v3155, %v3154
        %v3166 = vpack.c.b16 %v3157, %v3156
        %v3167 = vpack.c.b16 %v3159, %v3158
        %3176 = vmatprep.subr.bf16.mxu0 0
        %3177 = vmatpush1.bf16.msra.mxu0 %v3167
        %3178 = vmatprep.subr.bf16.mxu0 0
        %3179 = vmatpush1.bf16.msra.mxu0 %v3166
        %3180 = vmatprep.subr.bf16.mxu0 0
        %3181 = vmatpush1.bf16.msra.mxu0 %v3165
        %3182 = vmatprep.subr.bf16.mxu0 0
        %3183 = vmatpush1.bf16.msra.mxu0 %v3164
        %3184 = vmatprep.subr.bf16.mxu0 0
        %3185 = vmatpush1.bf16.msra.mxu0 %v3163
        %3186 = vmatprep.subr.bf16.mxu0 0
        %3187 = vmatpush1.bf16.msra.mxu0 %v3162
        %3188 = vmatprep.subr.bf16.mxu0 0
        %3189 = vmatpush1.bf16.msra.mxu0 %v3161
        %3190 = vmatprep.subr.bf16.mxu0 0
        %3191 = vmatpush1.bf16.msra.mxu0 %v3160
        %3192 = vmatprep.subr.bf16.mxu0 0
        %3193 = vmatpush2.bf16.msra.mxu0 0
        %3194 = vmatprep.subr.bf16.mxu0 0
        %3195 = vmatpush2.bf16.msra.mxu0 0
        %3196 = vmatprep.subr.bf16.mxu0 0
        %3197 = vmatpush2.bf16.msra.mxu0 0
        %3198 = vmatprep.subr.bf16.mxu0 0
        %3199 = vmatpush2.bf16.msra.mxu0 0
        %3200 = vmatprep.subr.bf16.mxu0 0
        %3201 = vmatpush2.bf16.msra.mxu0 0
        %3202 = vmatprep.subr.bf16.mxu0 0
        %3203 = vmatpush2.bf16.msra.mxu0 0
        %3204 = vmatprep.subr.bf16.mxu0 0
        %3205 = vmatpush2.bf16.msra.mxu0 0
        %3206 = vmatprep.subr.bf16.mxu0 0
        %3207 = vmatpush2.bf16.msra.mxu0 0
        %3208 = vmatprep.mubr.bf16.mxu0 0
        %3209 = vmatmul.mubr.bf16.gmra.mxu0 %v3110
        %v3210 = vpop.f32.mrf.mxu0
        %v3211 = vadd.f32 0.0, %v3210
        %v3212 = vpop.f32.mrf.mxu0
        %v3213 = vpop.f32.mrf.mxu0
        %v3214 = vadd.f32 0.0, %v3213
        %v3215 = vpop.f32.mrf.mxu0
        %3216 = vmatprep.mubr.bf16.mxu0 0
        %3217 = vmatmul.mubr.bf16.gmra.mxu0 %v3111
        %v3218 = vpop.f32.mrf.mxu0
        %v3219 = vadd.f32 0.0, %v3218
        %v3220 = vpop.f32.mrf.mxu0
        %v3221 = vpop.f32.mrf.mxu0
        %v3222 = vadd.f32 0.0, %v3221
        %v3223 = vpop.f32.mrf.mxu0
        %3224 = vdwg.mxu0
        %v3225 = vadd.f32 %v1097, %v3211
        %v3226 = vadd.f32 %v1098, %v3214
        %v3227 = vadd.f32 %v1099, %v3219
        %v3228 = vadd.f32 %v1100, %v3222
        %v3229 = vld [vmem:[%s976] sm:$0x1]
        %v3231 = vlaneseq
        %v3232 = vshrl.u32 %v3231, 7
        %v3233 = vsub.s32 0, %v3232
        %v3234 = vrot.slane %v3229, %v3233
        %v3236 = vadd.f32 %v3225, %v3234
        %v3237 = vadd.f32 %v3226, %v3234
        %v3238 = vadd.f32 %v3227, %v3234
        %v3239 = vadd.f32 %v3228, %v3234
        %v3240 = vld [vmem:[%s805] sm:$0x1]
        %v3241 = vld [vmem:[%s813] sm:$0x1]
        %3242 = vadd.xlane.f32.xlu0 %v3236
        %v3243 = vpop.xlane.xlu0 %3242
        %3244 = vadd.xlane.f32.xlu0 %v3237
        %v3245 = vpop.xlane.xlu0 %3244
        %3246 = vadd.xlane.f32.xlu0 %v3238
        %v3247 = vpop.xlane.xlu0 %3246
        %3248 = vadd.xlane.f32.xlu0 %v3239
        %v3249 = vpop.xlane.xlu0 %3248
        %v3250 = vmul.f32 %v3243, %v1111
        %v3251 = vmul.f32 %v3245, %v1111
        %v3252 = vmul.f32 %v3247, %v1111
        %v3253 = vmul.f32 %v3249, %v1111
        %v3254 = vsub.f32 %v3236, %v3250
        %v3255 = vsub.f32 %v3237, %v3251
        %v3256 = vsub.f32 %v3238, %v3252
        %v3257 = vsub.f32 %v3239, %v3253
        %v3258 = vmul.f32 %v3254, %v3254
        %v3259 = vmul.f32 %v3255, %v3255
        %v3260 = vmul.f32 %v3256, %v3256
        %v3261 = vmul.f32 %v3257, %v3257
        %3262 = vadd.xlane.f32.xlu0 %v3258
        %v3263 = vpop.xlane.xlu0 %3262
        %3264 = vadd.xlane.f32.xlu0 %v3259
        %v3265 = vpop.xlane.xlu0 %3264
        %3266 = vadd.xlane.f32.xlu0 %v3260
        %v3267 = vpop.xlane.xlu0 %3266
        %3268 = vadd.xlane.f32.xlu0 %v3261
        %v3269 = vpop.xlane.xlu0 %3268
        %v3270 = vmul.f32 %v3263, %v1111
        %v3271 = vmul.f32 %v3265, %v1111
        %v3272 = vmul.f32 %v3267, %v1111
        %v3273 = vmul.f32 %v3269, %v1111
        %v3274 = vadd.f32 %v3270, 1e-06
        %v3275 = vadd.f32 %v3271, 1e-06
        %v3276 = vadd.f32 %v3272, 1e-06
        %v3277 = vadd.f32 %v3273, 1e-06
        %v3278 = vrsqrt.pop %v3274
        %v3279 = vrsqrt.pop %v3275
        %v3280 = vrsqrt.pop %v3276
        %v3281 = vrsqrt.pop %v3277
        %v3282 = vmul.f32 %v3254, %v3278
        %v3283 = vmul.f32 %v3255, %v3279
        %v3284 = vmul.f32 %v3256, %v3280
        %v3285 = vmul.f32 %v3257, %v3281
        %v3287 = vlaneseq
        %v3288 = vshrl.u32 %v3287, 7
        %v3289 = vsub.s32 0, %v3288
        %v3290 = vrot.slane %v3240, %v3289
        %v3292 = vmul.f32 %v3282, %v3290
        %v3293 = vmul.f32 %v3283, %v3290
        %v3294 = vmul.f32 %v3284, %v3290
        %v3295 = vmul.f32 %v3285, %v3290
        %v3297 = vlaneseq
        %v3298 = vshrl.u32 %v3297, 7
        %v3299 = vsub.s32 0, %v3298
        %v3300 = vrot.slane %v3241, %v3299
        %v3302 = vadd.f32 %v3292, %v3300
        %v3303 = vadd.f32 %v3293, %v3300
        %v3304 = vadd.f32 %v3294, %v3300
        %v3305 = vadd.f32 %v3295, %v3300
        %v3306 = vpack.c.bf16 %v3303, %v3302
        %v3307 = vpack.c.bf16 %v3305, %v3304
        %v3308 = vld [vmem:[%s981] sm:$0xff]
        %v3309 = vld [vmem:[%s981 + $0x8] sm:$0xff]
        %v3310 = vld [vmem:[%s981 + $0x10] sm:$0xff]
        %v3311 = vld [vmem:[%s981 + $0x18] sm:$0xff]
        %v3312 = vld [vmem:[%s981 + $0x20] sm:$0xff]
        %v3313 = vld [vmem:[%s981 + $0x28] sm:$0xff]
        %v3314 = vld [vmem:[%s981 + $0x30] sm:$0xff]
        %v3315 = vld [vmem:[%s981 + $0x38] sm:$0xff]
        %v3316 = vld [vmem:[%s981 + $0x40] sm:$0xff]
        %v3317 = vld [vmem:[%s981 + $0x48] sm:$0xff]
        %v3318 = vld [vmem:[%s981 + $0x50] sm:$0xff]
        %v3319 = vld [vmem:[%s981 + $0x58] sm:$0xff]
        %v3320 = vld [vmem:[%s981 + $0x60] sm:$0xff]
        %v3321 = vld [vmem:[%s981 + $0x68] sm:$0xff]
        %v3322 = vld [vmem:[%s981 + $0x70] sm:$0xff]
        %v3323 = vld [vmem:[%s981 + $0x78] sm:$0xff]
        %v3324 = vld [vmem:[%s981 + $0x80] sm:$0xff]
        %v3325 = vld [vmem:[%s981 + $0x88] sm:$0xff]
        %v3326 = vld [vmem:[%s981 + $0x90] sm:$0xff]
        %v3327 = vld [vmem:[%s981 + $0x98] sm:$0xff]
        %v3328 = vld [vmem:[%s981 + $0xa0] sm:$0xff]
        %v3329 = vld [vmem:[%s981 + $0xa8] sm:$0xff]
        %v3330 = vld [vmem:[%s981 + $0xb0] sm:$0xff]
        %v3331 = vld [vmem:[%s981 + $0xb8] sm:$0xff]
        %v3332 = vld [vmem:[%s981 + $0xc0] sm:$0xff]
        %v3333 = vld [vmem:[%s981 + $0xc8] sm:$0xff]
        %v3334 = vld [vmem:[%s981 + $0xd0] sm:$0xff]
        %v3335 = vld [vmem:[%s981 + $0xd8] sm:$0xff]
        %v3336 = vld [vmem:[%s981 + $0xe0] sm:$0xff]
        %v3337 = vld [vmem:[%s981 + $0xe8] sm:$0xff]
        %v3338 = vld [vmem:[%s981 + $0xf0] sm:$0xff]
        %v3339 = vld [vmem:[%s981 + $0xf8] sm:$0xff]
        %v3340 = vld [vmem:[%s822] sm:$0xf]
        %v3342 = vlaneseq
        %v3343 = vshrl.u32 %v3342, 7
        %v3344 = vsub.s32 0, %v3343
        %v3345 = vrot.slane %v3340, %v3344
        %v3346 = vlaneseq
        %v3347 = vshrl.u32 %v3346, 7
        %v3348 = vsub.s32 1, %v3347
        %v3349 = vrot.slane %v3340, %v3348
        %v3350 = vlaneseq
        %v3351 = vshrl.u32 %v3350, 7
        %v3352 = vsub.s32 2, %v3351
        %v3353 = vrot.slane %v3340, %v3352
        %v3354 = vlaneseq
        %v3355 = vshrl.u32 %v3354, 7
        %v3356 = vsub.s32 3, %v3355
        %v3357 = vrot.slane %v3340, %v3356
        %v3394 = vunpack.c.l.b16 %v3308
        %v3395 = vunpack.c.h.b16 %v3308
        %v3396 = vunpack.c.l.b16 %v3309
        %v3397 = vunpack.c.h.b16 %v3309
        %v3398 = vunpack.c.l.b16 %v3310
        %v3399 = vunpack.c.h.b16 %v3310
        %v3400 = vunpack.c.l.b16 %v3311
        %v3401 = vunpack.c.h.b16 %v3311
        %v3402 = vunpack.c.l.b16 %v3312
        %v3403 = vunpack.c.h.b16 %v3312
        %v3404 = vunpack.c.l.b16 %v3313
        %v3405 = vunpack.c.h.b16 %v3313
        %v3406 = vunpack.c.l.b16 %v3314
        %v3407 = vunpack.c.h.b16 %v3314
        %v3408 = vunpack.c.l.b16 %v3315
        %v3409 = vunpack.c.h.b16 %v3315
        %v3410 = vunpack.c.l.b16 %v3316
        %v3411 = vunpack.c.h.b16 %v3316
        %v3412 = vunpack.c.l.b16 %v3317
        %v3413 = vunpack.c.h.b16 %v3317
        %v3414 = vunpack.c.l.b16 %v3318
        %v3415 = vunpack.c.h.b16 %v3318
        %v3416 = vunpack.c.l.b16 %v3319
        %v3417 = vunpack.c.h.b16 %v3319
        %v3418 = vunpack.c.l.b16 %v3320
        %v3419 = vunpack.c.h.b16 %v3320
        %v3420 = vunpack.c.l.b16 %v3321
        %v3421 = vunpack.c.h.b16 %v3321
        %v3422 = vunpack.c.l.b16 %v3322
        %v3423 = vunpack.c.h.b16 %v3322
        %v3424 = vunpack.c.l.b16 %v3323
        %v3425 = vunpack.c.h.b16 %v3323
        %v3426 = vunpack.c.l.b16 %v3324
        %v3427 = vunpack.c.h.b16 %v3324
        %v3428 = vunpack.c.l.b16 %v3325
        %v3429 = vunpack.c.h.b16 %v3325
        %v3430 = vunpack.c.l.b16 %v3326
        %v3431 = vunpack.c.h.b16 %v3326
        %v3432 = vunpack.c.l.b16 %v3327
        %v3433 = vunpack.c.h.b16 %v3327
        %v3434 = vunpack.c.l.b16 %v3328
        %v3435 = vunpack.c.h.b16 %v3328
        %v3436 = vunpack.c.l.b16 %v3329
        %v3437 = vunpack.c.h.b16 %v3329
        %v3438 = vunpack.c.l.b16 %v3330
        %v3439 = vunpack.c.h.b16 %v3330
        %v3440 = vunpack.c.l.b16 %v3331
        %v3441 = vunpack.c.h.b16 %v3331
        %v3442 = vunpack.c.l.b16 %v3332
        %v3443 = vunpack.c.h.b16 %v3332
        %v3444 = vunpack.c.l.b16 %v3333
        %v3445 = vunpack.c.h.b16 %v3333
        %v3446 = vunpack.c.l.b16 %v3334
        %v3447 = vunpack.c.h.b16 %v3334
        %v3448 = vunpack.c.l.b16 %v3335
        %v3449 = vunpack.c.h.b16 %v3335
        %v3450 = vunpack.c.l.b16 %v3336
        %v3451 = vunpack.c.h.b16 %v3336
        %v3452 = vunpack.c.l.b16 %v3337
        %v3453 = vunpack.c.h.b16 %v3337
        %v3454 = vunpack.c.l.b16 %v3338
        %v3455 = vunpack.c.h.b16 %v3338
        %v3456 = vunpack.c.l.b16 %v3339
        %v3457 = vunpack.c.h.b16 %v3339
        %v3458 = vpack.c.b16 %v3398, %v3394
        %v3459 = vpack.c.b16 %v3399, %v3395
        %v3460 = vpack.c.b16 %v3400, %v3396
        %v3461 = vpack.c.b16 %v3401, %v3397
        %v3462 = vpack.c.b16 %v3406, %v3402
        %v3463 = vpack.c.b16 %v3407, %v3403
        %v3464 = vpack.c.b16 %v3408, %v3404
        %v3465 = vpack.c.b16 %v3409, %v3405
        %v3466 = vpack.c.b16 %v3414, %v3410
        %v3467 = vpack.c.b16 %v3415, %v3411
        %v3468 = vpack.c.b16 %v3416, %v3412
        %v3469 = vpack.c.b16 %v3417, %v3413
        %v3470 = vpack.c.b16 %v3422, %v3418
        %v3471 = vpack.c.b16 %v3423, %v3419
        %v3472 = vpack.c.b16 %v3424, %v3420
        %v3473 = vpack.c.b16 %v3425, %v3421
        %v3474 = vpack.c.b16 %v3430, %v3426
        %v3475 = vpack.c.b16 %v3431, %v3427
        %v3476 = vpack.c.b16 %v3432, %v3428
        %v3477 = vpack.c.b16 %v3433, %v3429
        %v3478 = vpack.c.b16 %v3438, %v3434
        %v3479 = vpack.c.b16 %v3439, %v3435
        %v3480 = vpack.c.b16 %v3440, %v3436
        %v3481 = vpack.c.b16 %v3441, %v3437
        %v3482 = vpack.c.b16 %v3446, %v3442
        %v3483 = vpack.c.b16 %v3447, %v3443
        %v3484 = vpack.c.b16 %v3448, %v3444
        %v3485 = vpack.c.b16 %v3449, %v3445
        %v3486 = vpack.c.b16 %v3454, %v3450
        %v3487 = vpack.c.b16 %v3455, %v3451
        %v3488 = vpack.c.b16 %v3456, %v3452
        %v3489 = vpack.c.b16 %v3457, %v3453
        %3522 = vmatprep.subr.bf16.mxu0 %v3487
        %3523 = vmatpush1.bf16.msra.mxu0 %v3486
        %3524 = vmatprep.subr.bf16.mxu0 %v3483
        %3525 = vmatpush1.bf16.msra.mxu0 %v3482
        %3526 = vmatprep.subr.bf16.mxu0 %v3479
        %3527 = vmatpush1.bf16.msra.mxu0 %v3478
        %3528 = vmatprep.subr.bf16.mxu0 %v3475
        %3529 = vmatpush1.bf16.msra.mxu0 %v3474
        %3530 = vmatprep.subr.bf16.mxu0 %v3471
        %3531 = vmatpush1.bf16.msra.mxu0 %v3470
        %3532 = vmatprep.subr.bf16.mxu0 %v3467
        %3533 = vmatpush1.bf16.msra.mxu0 %v3466
        %3534 = vmatprep.subr.bf16.mxu0 %v3463
        %3535 = vmatpush1.bf16.msra.mxu0 %v3462
        %3536 = vmatprep.subr.bf16.mxu0 %v3459
        %3537 = vmatpush1.bf16.msra.mxu0 %v3458
        %3538 = vmatprep.subr.bf16.mxu0 0
        %3539 = vmatpush2.bf16.msra.mxu0 0
        %3540 = vmatprep.subr.bf16.mxu0 0
        %3541 = vmatpush2.bf16.msra.mxu0 0
        %3542 = vmatprep.subr.bf16.mxu0 0
        %3543 = vmatpush2.bf16.msra.mxu0 0
        %3544 = vmatprep.subr.bf16.mxu0 0
        %3545 = vmatpush2.bf16.msra.mxu0 0
        %3546 = vmatprep.subr.bf16.mxu0 0
        %3547 = vmatpush2.bf16.msra.mxu0 0
        %3548 = vmatprep.subr.bf16.mxu0 0
        %3549 = vmatpush2.bf16.msra.mxu0 0
        %3550 = vmatprep.subr.bf16.mxu0 0
        %3551 = vmatpush2.bf16.msra.mxu0 0
        %3552 = vmatprep.subr.bf16.mxu0 0
        %3553 = vmatpush2.bf16.msra.mxu0 0
        %3554 = vmatprep.mubr.bf16.mxu0 0
        %3555 = vmatmul.mubr.bf16.gmra.mxu0 %v3306
        %v3556 = vpop.f32.mrf.mxu0
        %v3557 = vadd.f32 %v3345, %v3556
        %v3558 = vpop.f32.mrf.mxu0
        %v3559 = vadd.f32 %v3349, %v3558
        %v3560 = vpop.f32.mrf.mxu0
        %v3561 = vadd.f32 %v3345, %v3560
        %v3562 = vpop.f32.mrf.mxu0
        %v3563 = vadd.f32 %v3349, %v3562
        %3564 = vmatprep.mubr.bf16.mxu0 0
        %3565 = vmatmul.mubr.bf16.gmra.mxu0 %v3307
        %v3566 = vpop.f32.mrf.mxu0
        %v3567 = vadd.f32 %v3345, %v3566
        %v3568 = vpop.f32.mrf.mxu0
        %v3569 = vadd.f32 %v3349, %v3568
        %v3570 = vpop.f32.mrf.mxu0
        %v3571 = vadd.f32 %v3345, %v3570
        %v3572 = vpop.f32.mrf.mxu0
        %v3573 = vadd.f32 %v3349, %v3572
        %3574 = vdwg.mxu0
        %3575 = vmatprep.subr.bf16.mxu0 %v3489
        %3576 = vmatpush1.bf16.msra.mxu0 %v3488
        %3577 = vmatprep.subr.bf16.mxu0 %v3485
        %3578 = vmatpush1.bf16.msra.mxu0 %v3484
        %3579 = vmatprep.subr.bf16.mxu0 %v3481
        %3580 = vmatpush1.bf16.msra.mxu0 %v3480
        %3581 = vmatprep.subr.bf16.mxu0 %v3477
        %3582 = vmatpush1.bf16.msra.mxu0 %v3476
        %3583 = vmatprep.subr.bf16.mxu0 %v3473
        %3584 = vmatpush1.bf16.msra.mxu0 %v3472
        %3585 = vmatprep.subr.bf16.mxu0 %v3469
        %3586 = vmatpush1.bf16.msra.mxu0 %v3468
        %3587 = vmatprep.subr.bf16.mxu0 %v3465
        %3588 = vmatpush1.bf16.msra.mxu0 %v3464
        %3589 = vmatprep.subr.bf16.mxu0 %v3461
        %3590 = vmatpush1.bf16.msra.mxu0 %v3460
        %3591 = vmatprep.subr.bf16.mxu0 0
        %3592 = vmatpush2.bf16.msra.mxu0 0
        %3593 = vmatprep.subr.bf16.mxu0 0
        %3594 = vmatpush2.bf16.msra.mxu0 0
        %3595 = vmatprep.subr.bf16.mxu0 0
        %3596 = vmatpush2.bf16.msra.mxu0 0
        %3597 = vmatprep.subr.bf16.mxu0 0
        %3598 = vmatpush2.bf16.msra.mxu0 0
        %3599 = vmatprep.subr.bf16.mxu0 0
        %3600 = vmatpush2.bf16.msra.mxu0 0
        %3601 = vmatprep.subr.bf16.mxu0 0
        %3602 = vmatpush2.bf16.msra.mxu0 0
        %3603 = vmatprep.subr.bf16.mxu0 0
        %3604 = vmatpush2.bf16.msra.mxu0 0
        %3605 = vmatprep.subr.bf16.mxu0 0
        %3606 = vmatpush2.bf16.msra.mxu0 0
        %3607 = vmatprep.mubr.bf16.mxu0 0
        %3608 = vmatmul.mubr.bf16.gmra.mxu0 %v3306
        %v3609 = vpop.f32.mrf.mxu0
        %v3610 = vadd.f32 %v3353, %v3609
        %v3611 = vpop.f32.mrf.mxu0
        %v3612 = vadd.f32 %v3357, %v3611
        %v3613 = vpop.f32.mrf.mxu0
        %v3614 = vadd.f32 %v3353, %v3613
        %v3615 = vpop.f32.mrf.mxu0
        %v3616 = vadd.f32 %v3357, %v3615
        %3617 = vmatprep.mubr.bf16.mxu0 0
        %3618 = vmatmul.mubr.bf16.gmra.mxu0 %v3307
        %v3619 = vpop.f32.mrf.mxu0
        %v3620 = vadd.f32 %v3353, %v3619
        %v3621 = vpop.f32.mrf.mxu0
        %v3622 = vadd.f32 %v3357, %v3621
        %v3623 = vpop.f32.mrf.mxu0
        %v3624 = vadd.f32 %v3353, %v3623
        %v3625 = vpop.f32.mrf.mxu0
        %v3626 = vadd.f32 %v3357, %v3625
        %3627 = vdwg.mxu0
        %v3628 = vmul.f32 %v3557, %v3557
        %v3629 = vmul.f32 %v3559, %v3559
        %v3630 = vmul.f32 %v3610, %v3610
        %v3631 = vmul.f32 %v3612, %v3612
        %v3632 = vmul.f32 %v3561, %v3561
        %v3633 = vmul.f32 %v3563, %v3563
        %v3634 = vmul.f32 %v3614, %v3614
        %v3635 = vmul.f32 %v3616, %v3616
        %v3636 = vmul.f32 %v3567, %v3567
        %v3637 = vmul.f32 %v3569, %v3569
        %v3638 = vmul.f32 %v3620, %v3620
        %v3639 = vmul.f32 %v3622, %v3622
        %v3640 = vmul.f32 %v3571, %v3571
        %v3641 = vmul.f32 %v3573, %v3573
        %v3642 = vmul.f32 %v3624, %v3624
        %v3643 = vmul.f32 %v3626, %v3626
        %v3644 = vmul.f32 %v3557, %v3628
        %v3645 = vmul.f32 %v3559, %v3629
        %v3646 = vmul.f32 %v3610, %v3630
        %v3647 = vmul.f32 %v3612, %v3631
        %v3648 = vmul.f32 %v3561, %v3632
        %v3649 = vmul.f32 %v3563, %v3633
        %v3650 = vmul.f32 %v3614, %v3634
        %v3651 = vmul.f32 %v3616, %v3635
        %v3652 = vmul.f32 %v3567, %v3636
        %v3653 = vmul.f32 %v3569, %v3637
        %v3654 = vmul.f32 %v3620, %v3638
        %v3655 = vmul.f32 %v3622, %v3639
        %v3656 = vmul.f32 %v3571, %v3640
        %v3657 = vmul.f32 %v3573, %v3641
        %v3658 = vmul.f32 %v3624, %v3642
        %v3659 = vmul.f32 %v3626, %v3643
        %v3660 = vmul.f32 %v3644, 0.044715
        %v3661 = vmul.f32 %v3645, 0.044715
        %v3662 = vmul.f32 %v3646, 0.044715
        %v3663 = vmul.f32 %v3647, 0.044715
        %v3664 = vmul.f32 %v3648, 0.044715
        %v3665 = vmul.f32 %v3649, 0.044715
        %v3666 = vmul.f32 %v3650, 0.044715
        %v3667 = vmul.f32 %v3651, 0.044715
        %v3668 = vmul.f32 %v3652, 0.044715
        %v3669 = vmul.f32 %v3653, 0.044715
        %v3670 = vmul.f32 %v3654, 0.044715
        %v3671 = vmul.f32 %v3655, 0.044715
        %v3672 = vmul.f32 %v3656, 0.044715
        %v3673 = vmul.f32 %v3657, 0.044715
        %v3674 = vmul.f32 %v3658, 0.044715
        %v3675 = vmul.f32 %v3659, 0.044715
        %v3676 = vadd.f32 %v3557, %v3660
        %v3677 = vadd.f32 %v3559, %v3661
        %v3678 = vadd.f32 %v3610, %v3662
        %v3679 = vadd.f32 %v3612, %v3663
        %v3680 = vadd.f32 %v3561, %v3664
        %v3681 = vadd.f32 %v3563, %v3665
        %v3682 = vadd.f32 %v3614, %v3666
        %v3683 = vadd.f32 %v3616, %v3667
        %v3684 = vadd.f32 %v3567, %v3668
        %v3685 = vadd.f32 %v3569, %v3669
        %v3686 = vadd.f32 %v3620, %v3670
        %v3687 = vadd.f32 %v3622, %v3671
        %v3688 = vadd.f32 %v3571, %v3672
        %v3689 = vadd.f32 %v3573, %v3673
        %v3690 = vadd.f32 %v3624, %v3674
        %v3691 = vadd.f32 %v3626, %v3675
        %v3692 = vmul.f32 %v3676, 0.7978846
        %v3693 = vmul.f32 %v3677, 0.7978846
        %v3694 = vmul.f32 %v3678, 0.7978846
        %v3695 = vmul.f32 %v3679, 0.7978846
        %v3696 = vmul.f32 %v3680, 0.7978846
        %v3697 = vmul.f32 %v3681, 0.7978846
        %v3698 = vmul.f32 %v3682, 0.7978846
        %v3699 = vmul.f32 %v3683, 0.7978846
        %v3700 = vmul.f32 %v3684, 0.7978846
        %v3701 = vmul.f32 %v3685, 0.7978846
        %v3702 = vmul.f32 %v3686, 0.7978846
        %v3703 = vmul.f32 %v3687, 0.7978846
        %v3704 = vmul.f32 %v3688, 0.7978846
        %v3705 = vmul.f32 %v3689, 0.7978846
        %v3706 = vmul.f32 %v3690, 0.7978846
        %v3707 = vmul.f32 %v3691, 0.7978846
        %v3708 = vtanh.pop %v3692
        %v3709 = vtanh.pop %v3693
        %v3710 = vtanh.pop %v3694
        %v3711 = vtanh.pop %v3695
        %v3712 = vtanh.pop %v3696
        %v3713 = vtanh.pop %v3697
        %v3714 = vtanh.pop %v3698
        %v3715 = vtanh.pop %v3699
        %v3716 = vtanh.pop %v3700
        %v3717 = vtanh.pop %v3701
        %v3718 = vtanh.pop %v3702
        %v3719 = vtanh.pop %v3703
        %v3720 = vtanh.pop %v3704
        %v3721 = vtanh.pop %v3705
        %v3722 = vtanh.pop %v3706
        %v3723 = vtanh.pop %v3707
        %v3724 = vadd.f32 %v3708, 1.0
        %v3725 = vadd.f32 %v3709, 1.0
        %v3726 = vadd.f32 %v3710, 1.0
        %v3727 = vadd.f32 %v3711, 1.0
        %v3728 = vadd.f32 %v3712, 1.0
        %v3729 = vadd.f32 %v3713, 1.0
        %v3730 = vadd.f32 %v3714, 1.0
        %v3731 = vadd.f32 %v3715, 1.0
        %v3732 = vadd.f32 %v3716, 1.0
        %v3733 = vadd.f32 %v3717, 1.0
        %v3734 = vadd.f32 %v3718, 1.0
        %v3735 = vadd.f32 %v3719, 1.0
        %v3736 = vadd.f32 %v3720, 1.0
        %v3737 = vadd.f32 %v3721, 1.0
        %v3738 = vadd.f32 %v3722, 1.0
        %v3739 = vadd.f32 %v3723, 1.0
        %v3740 = vmul.f32 %v3724, 0.5
        %v3741 = vmul.f32 %v3725, 0.5
        %v3742 = vmul.f32 %v3726, 0.5
        %v3743 = vmul.f32 %v3727, 0.5
        %v3744 = vmul.f32 %v3728, 0.5
        %v3745 = vmul.f32 %v3729, 0.5
        %v3746 = vmul.f32 %v3730, 0.5
        %v3747 = vmul.f32 %v3731, 0.5
        %v3748 = vmul.f32 %v3732, 0.5
        %v3749 = vmul.f32 %v3733, 0.5
        %v3750 = vmul.f32 %v3734, 0.5
        %v3751 = vmul.f32 %v3735, 0.5
        %v3752 = vmul.f32 %v3736, 0.5
        %v3753 = vmul.f32 %v3737, 0.5
        %v3754 = vmul.f32 %v3738, 0.5
        %v3755 = vmul.f32 %v3739, 0.5
        %v3756 = vmul.f32 %v3557, %v3740
        %v3757 = vmul.f32 %v3559, %v3741
        %v3758 = vmul.f32 %v3610, %v3742
        %v3759 = vmul.f32 %v3612, %v3743
        %v3760 = vmul.f32 %v3561, %v3744
        %v3761 = vmul.f32 %v3563, %v3745
        %v3762 = vmul.f32 %v3614, %v3746
        %v3763 = vmul.f32 %v3616, %v3747
        %v3764 = vmul.f32 %v3567, %v3748
        %v3765 = vmul.f32 %v3569, %v3749
        %v3766 = vmul.f32 %v3620, %v3750
        %v3767 = vmul.f32 %v3622, %v3751
        %v3768 = vmul.f32 %v3571, %v3752
        %v3769 = vmul.f32 %v3573, %v3753
        %v3770 = vmul.f32 %v3624, %v3754
        %v3771 = vmul.f32 %v3626, %v3755
        %v3772 = vpack.c.bf16 %v3760, %v3756
        %v3773 = vpack.c.bf16 %v3761, %v3757
        %v3774 = vpack.c.bf16 %v3762, %v3758
        %v3775 = vpack.c.bf16 %v3763, %v3759
        %v3776 = vpack.c.bf16 %v3768, %v3764
        %v3777 = vpack.c.bf16 %v3769, %v3765
        %v3778 = vpack.c.bf16 %v3770, %v3766
        %v3779 = vpack.c.bf16 %v3771, %v3767
        %v3780 = vld [vmem:[%s831] sm:$0xf]
        %v3781 = vld [vmem:[%s831 + $0x4] sm:$0xf]
        %v3782 = vld [vmem:[%s831 + $0x8] sm:$0xf]
        %v3783 = vld [vmem:[%s831 + $0xc] sm:$0xf]
        %v3784 = vld [vmem:[%s831 + $0x10] sm:$0xf]
        %v3785 = vld [vmem:[%s831 + $0x14] sm:$0xf]
        %v3786 = vld [vmem:[%s831 + $0x18] sm:$0xf]
        %v3787 = vld [vmem:[%s831 + $0x1c] sm:$0xf]
        %v3788 = vld [vmem:[%s831 + $0x20] sm:$0xf]
        %v3789 = vld [vmem:[%s831 + $0x24] sm:$0xf]
        %v3790 = vld [vmem:[%s831 + $0x28] sm:$0xf]
        %v3791 = vld [vmem:[%s831 + $0x2c] sm:$0xf]
        %v3792 = vld [vmem:[%s831 + $0x30] sm:$0xf]
        %v3793 = vld [vmem:[%s831 + $0x34] sm:$0xf]
        %v3794 = vld [vmem:[%s831 + $0x38] sm:$0xf]
        %v3795 = vld [vmem:[%s831 + $0x3c] sm:$0xf]
        %v3796 = vld [vmem:[%s831 + $0x40] sm:$0xf]
        %v3797 = vld [vmem:[%s831 + $0x44] sm:$0xf]
        %v3798 = vld [vmem:[%s831 + $0x48] sm:$0xf]
        %v3799 = vld [vmem:[%s831 + $0x4c] sm:$0xf]
        %v3800 = vld [vmem:[%s831 + $0x50] sm:$0xf]
        %v3801 = vld [vmem:[%s831 + $0x54] sm:$0xf]
        %v3802 = vld [vmem:[%s831 + $0x58] sm:$0xf]
        %v3803 = vld [vmem:[%s831 + $0x5c] sm:$0xf]
        %v3804 = vld [vmem:[%s831 + $0x60] sm:$0xf]
        %v3805 = vld [vmem:[%s831 + $0x64] sm:$0xf]
        %v3806 = vld [vmem:[%s831 + $0x68] sm:$0xf]
        %v3807 = vld [vmem:[%s831 + $0x6c] sm:$0xf]
        %v3808 = vld [vmem:[%s831 + $0x70] sm:$0xf]
        %v3809 = vld [vmem:[%s831 + $0x74] sm:$0xf]
        %v3810 = vld [vmem:[%s831 + $0x78] sm:$0xf]
        %v3811 = vld [vmem:[%s831 + $0x7c] sm:$0xf]
        %v3812 = vld [vmem:[%s831 + $0x80] sm:$0xf]
        %v3813 = vld [vmem:[%s831 + $0x84] sm:$0xf]
        %v3814 = vld [vmem:[%s831 + $0x88] sm:$0xf]
        %v3815 = vld [vmem:[%s831 + $0x8c] sm:$0xf]
        %v3816 = vld [vmem:[%s831 + $0x90] sm:$0xf]
        %v3817 = vld [vmem:[%s831 + $0x94] sm:$0xf]
        %v3818 = vld [vmem:[%s831 + $0x98] sm:$0xf]
        %v3819 = vld [vmem:[%s831 + $0x9c] sm:$0xf]
        %v3820 = vld [vmem:[%s831 + $0xa0] sm:$0xf]
        %v3821 = vld [vmem:[%s831 + $0xa4] sm:$0xf]
        %v3822 = vld [vmem:[%s831 + $0xa8] sm:$0xf]
        %v3823 = vld [vmem:[%s831 + $0xac] sm:$0xf]
        %v3824 = vld [vmem:[%s831 + $0xb0] sm:$0xf]
        %v3825 = vld [vmem:[%s831 + $0xb4] sm:$0xf]
        %v3826 = vld [vmem:[%s831 + $0xb8] sm:$0xf]
        %v3827 = vld [vmem:[%s831 + $0xbc] sm:$0xf]
        %v3828 = vld [vmem:[%s831 + $0xc0] sm:$0xf]
        %v3829 = vld [vmem:[%s831 + $0xc4] sm:$0xf]
        %v3830 = vld [vmem:[%s831 + $0xc8] sm:$0xf]
        %v3831 = vld [vmem:[%s831 + $0xcc] sm:$0xf]
        %v3832 = vld [vmem:[%s831 + $0xd0] sm:$0xf]
        %v3833 = vld [vmem:[%s831 + $0xd4] sm:$0xf]
        %v3834 = vld [vmem:[%s831 + $0xd8] sm:$0xf]
        %v3835 = vld [vmem:[%s831 + $0xdc] sm:$0xf]
        %v3836 = vld [vmem:[%s831 + $0xe0] sm:$0xf]
        %v3837 = vld [vmem:[%s831 + $0xe4] sm:$0xf]
        %v3838 = vld [vmem:[%s831 + $0xe8] sm:$0xf]
        %v3839 = vld [vmem:[%s831 + $0xec] sm:$0xf]
        %v3840 = vld [vmem:[%s831 + $0xf0] sm:$0xf]
        %v3841 = vld [vmem:[%s831 + $0xf4] sm:$0xf]
        %v3842 = vld [vmem:[%s831 + $0xf8] sm:$0xf]
        %v3843 = vld [vmem:[%s831 + $0xfc] sm:$0xf]
        %v3908 = vunpack.c.l.b16 %v3780
        %v3909 = vunpack.c.l.b16 %v3781
        %v3910 = vunpack.c.l.b16 %v3782
        %v3911 = vunpack.c.l.b16 %v3783
        %v3912 = vunpack.c.l.b16 %v3784
        %v3913 = vunpack.c.l.b16 %v3785
        %v3914 = vunpack.c.l.b16 %v3786
        %v3915 = vunpack.c.l.b16 %v3787
        %v3916 = vunpack.c.l.b16 %v3788
        %v3917 = vunpack.c.l.b16 %v3789
        %v3918 = vunpack.c.l.b16 %v3790
        %v3919 = vunpack.c.l.b16 %v3791
        %v3920 = vunpack.c.l.b16 %v3792
        %v3921 = vunpack.c.l.b16 %v3793
        %v3922 = vunpack.c.l.b16 %v3794
        %v3923 = vunpack.c.l.b16 %v3795
        %v3924 = vunpack.c.l.b16 %v3796
        %v3925 = vunpack.c.l.b16 %v3797
        %v3926 = vunpack.c.l.b16 %v3798
        %v3927 = vunpack.c.l.b16 %v3799
        %v3928 = vunpack.c.l.b16 %v3800
        %v3929 = vunpack.c.l.b16 %v3801
        %v3930 = vunpack.c.l.b16 %v3802
        %v3931 = vunpack.c.l.b16 %v3803
        %v3932 = vunpack.c.l.b16 %v3804
        %v3933 = vunpack.c.l.b16 %v3805
        %v3934 = vunpack.c.l.b16 %v3806
        %v3935 = vunpack.c.l.b16 %v3807
        %v3936 = vunpack.c.l.b16 %v3808
        %v3937 = vunpack.c.l.b16 %v3809
        %v3938 = vunpack.c.l.b16 %v3810
        %v3939 = vunpack.c.l.b16 %v3811
        %v3940 = vunpack.c.l.b16 %v3812
        %v3941 = vunpack.c.l.b16 %v3813
        %v3942 = vunpack.c.l.b16 %v3814
        %v3943 = vunpack.c.l.b16 %v3815
        %v3944 = vunpack.c.l.b16 %v3816
        %v3945 = vunpack.c.l.b16 %v3817
        %v3946 = vunpack.c.l.b16 %v3818
        %v3947 = vunpack.c.l.b16 %v3819
        %v3948 = vunpack.c.l.b16 %v3820
        %v3949 = vunpack.c.l.b16 %v3821
        %v3950 = vunpack.c.l.b16 %v3822
        %v3951 = vunpack.c.l.b16 %v3823
        %v3952 = vunpack.c.l.b16 %v3824
        %v3953 = vunpack.c.l.b16 %v3825
        %v3954 = vunpack.c.l.b16 %v3826
        %v3955 = vunpack.c.l.b16 %v3827
        %v3956 = vunpack.c.l.b16 %v3828
        %v3957 = vunpack.c.l.b16 %v3829
        %v3958 = vunpack.c.l.b16 %v3830
        %v3959 = vunpack.c.l.b16 %v3831
        %v3960 = vunpack.c.l.b16 %v3832
        %v3961 = vunpack.c.l.b16 %v3833
        %v3962 = vunpack.c.l.b16 %v3834
        %v3963 = vunpack.c.l.b16 %v3835
        %v3964 = vunpack.c.l.b16 %v3836
        %v3965 = vunpack.c.l.b16 %v3837
        %v3966 = vunpack.c.l.b16 %v3838
        %v3967 = vunpack.c.l.b16 %v3839
        %v3968 = vunpack.c.l.b16 %v3840
        %v3969 = vunpack.c.l.b16 %v3841
        %v3970 = vunpack.c.l.b16 %v3842
        %v3971 = vunpack.c.l.b16 %v3843
        %v3972 = vpack.c.b16 %v3909, %v3908
        %v3973 = vpack.c.b16 %v3911, %v3910
        %v3974 = vpack.c.b16 %v3913, %v3912
        %v3975 = vpack.c.b16 %v3915, %v3914
        %v3976 = vpack.c.b16 %v3917, %v3916
        %v3977 = vpack.c.b16 %v3919, %v3918
        %v3978 = vpack.c.b16 %v3921, %v3920
        %v3979 = vpack.c.b16 %v3923, %v3922
        %v3980 = vpack.c.b16 %v3925, %v3924
        %v3981 = vpack.c.b16 %v3927, %v3926
        %v3982 = vpack.c.b16 %v3929, %v3928
        %v3983 = vpack.c.b16 %v3931, %v3930
        %v3984 = vpack.c.b16 %v3933, %v3932
        %v3985 = vpack.c.b16 %v3935, %v3934
        %v3986 = vpack.c.b16 %v3937, %v3936
        %v3987 = vpack.c.b16 %v3939, %v3938
        %v3988 = vpack.c.b16 %v3941, %v3940
        %v3989 = vpack.c.b16 %v3943, %v3942
        %v3990 = vpack.c.b16 %v3945, %v3944
        %v3991 = vpack.c.b16 %v3947, %v3946
        %v3992 = vpack.c.b16 %v3949, %v3948
        %v3993 = vpack.c.b16 %v3951, %v3950
        %v3994 = vpack.c.b16 %v3953, %v3952
        %v3995 = vpack.c.b16 %v3955, %v3954
        %v3996 = vpack.c.b16 %v3957, %v3956
        %v3997 = vpack.c.b16 %v3959, %v3958
        %v3998 = vpack.c.b16 %v3961, %v3960
        %v3999 = vpack.c.b16 %v3963, %v3962
        %v4000 = vpack.c.b16 %v3965, %v3964
        %v4001 = vpack.c.b16 %v3967, %v3966
        %v4002 = vpack.c.b16 %v3969, %v3968
        %v4003 = vpack.c.b16 %v3971, %v3970
        %4036 = vmatprep.subr.bf16.mxu0 0
        %4037 = vmatpush1.bf16.msra.mxu0 %v3979
        %4038 = vmatprep.subr.bf16.mxu0 0
        %4039 = vmatpush1.bf16.msra.mxu0 %v3978
        %4040 = vmatprep.subr.bf16.mxu0 0
        %4041 = vmatpush1.bf16.msra.mxu0 %v3977
        %4042 = vmatprep.subr.bf16.mxu0 0
        %4043 = vmatpush1.bf16.msra.mxu0 %v3976
        %4044 = vmatprep.subr.bf16.mxu0 0
        %4045 = vmatpush1.bf16.msra.mxu0 %v3975
        %4046 = vmatprep.subr.bf16.mxu0 0
        %4047 = vmatpush1.bf16.msra.mxu0 %v3974
        %4048 = vmatprep.subr.bf16.mxu0 0
        %4049 = vmatpush1.bf16.msra.mxu0 %v3973
        %4050 = vmatprep.subr.bf16.mxu0 0
        %4051 = vmatpush1.bf16.msra.mxu0 %v3972
        %4052 = vmatprep.subr.bf16.mxu0 0
        %4053 = vmatpush2.bf16.msra.mxu0 %v3987
        %4054 = vmatprep.subr.bf16.mxu0 0
        %4055 = vmatpush2.bf16.msra.mxu0 %v3986
        %4056 = vmatprep.subr.bf16.mxu0 0
        %4057 = vmatpush2.bf16.msra.mxu0 %v3985
        %4058 = vmatprep.subr.bf16.mxu0 0
        %4059 = vmatpush2.bf16.msra.mxu0 %v3984
        %4060 = vmatprep.subr.bf16.mxu0 0
        %4061 = vmatpush2.bf16.msra.mxu0 %v3983
        %4062 = vmatprep.subr.bf16.mxu0 0
        %4063 = vmatpush2.bf16.msra.mxu0 %v3982
        %4064 = vmatprep.subr.bf16.mxu0 0
        %4065 = vmatpush2.bf16.msra.mxu0 %v3981
        %4066 = vmatprep.subr.bf16.mxu0 0
        %4067 = vmatpush2.bf16.msra.mxu0 %v3980
        %4068 = vmatprep.mubr.bf16.mxu0 %v3773
        %4069 = vmatmul.mubr.bf16.gmra.mxu0 %v3772
        %v4070 = vpop.f32.mrf.mxu0
        %v4071 = vadd.f32 0.0, %v4070
        %v4072 = vpop.f32.mrf.mxu0
        %v4073 = vpop.f32.mrf.mxu0
        %v4074 = vadd.f32 0.0, %v4073
        %v4075 = vpop.f32.mrf.mxu0
        %4076 = vmatprep.mubr.bf16.mxu0 %v3777
        %4077 = vmatmul.mubr.bf16.gmra.mxu0 %v3776
        %v4078 = vpop.f32.mrf.mxu0
        %v4079 = vadd.f32 0.0, %v4078
        %v4080 = vpop.f32.mrf.mxu0
        %v4081 = vpop.f32.mrf.mxu0
        %v4082 = vadd.f32 0.0, %v4081
        %v4083 = vpop.f32.mrf.mxu0
        %4084 = vdwg.mxu0
        %4085 = vmatprep.subr.bf16.mxu0 0
        %4086 = vmatpush1.bf16.msra.mxu0 %v3995
        %4087 = vmatprep.subr.bf16.mxu0 0
        %4088 = vmatpush1.bf16.msra.mxu0 %v3994
        %4089 = vmatprep.subr.bf16.mxu0 0
        %4090 = vmatpush1.bf16.msra.mxu0 %v3993
        %4091 = vmatprep.subr.bf16.mxu0 0
        %4092 = vmatpush1.bf16.msra.mxu0 %v3992
        %4093 = vmatprep.subr.bf16.mxu0 0
        %4094 = vmatpush1.bf16.msra.mxu0 %v3991
        %4095 = vmatprep.subr.bf16.mxu0 0
        %4096 = vmatpush1.bf16.msra.mxu0 %v3990
        %4097 = vmatprep.subr.bf16.mxu0 0
        %4098 = vmatpush1.bf16.msra.mxu0 %v3989
        %4099 = vmatprep.subr.bf16.mxu0 0
        %4100 = vmatpush1.bf16.msra.mxu0 %v3988
        %4101 = vmatprep.subr.bf16.mxu0 0
        %4102 = vmatpush2.bf16.msra.mxu0 %v4003
        %4103 = vmatprep.subr.bf16.mxu0 0
        %4104 = vmatpush2.bf16.msra.mxu0 %v4002
        %4105 = vmatprep.subr.bf16.mxu0 0
        %4106 = vmatpush2.bf16.msra.mxu0 %v4001
        %4107 = vmatprep.subr.bf16.mxu0 0
        %4108 = vmatpush2.bf16.msra.mxu0 %v4000
        %4109 = vmatprep.subr.bf16.mxu0 0
        %4110 = vmatpush2.bf16.msra.mxu0 %v3999
        %4111 = vmatprep.subr.bf16.mxu0 0
        %4112 = vmatpush2.bf16.msra.mxu0 %v3998
        %4113 = vmatprep.subr.bf16.mxu0 0
        %4114 = vmatpush2.bf16.msra.mxu0 %v3997
        %4115 = vmatprep.subr.bf16.mxu0 0
        %4116 = vmatpush2.bf16.msra.mxu0 %v3996
        %4117 = vmatprep.mubr.bf16.mxu0 %v3775
        %4118 = vmatmul.mubr.bf16.gmra.mxu0 %v3774
        %v4119 = vpop.f32.mrf.mxu0
        %v4120 = vadd.f32 %v4071, %v4119
        %v4121 = vpop.f32.mrf.mxu0
        %v4122 = vpop.f32.mrf.mxu0
        %v4123 = vadd.f32 %v4074, %v4122
        %v4124 = vpop.f32.mrf.mxu0
        %4125 = vmatprep.mubr.bf16.mxu0 %v3779
        %4126 = vmatmul.mubr.bf16.gmra.mxu0 %v3778
        %v4127 = vpop.f32.mrf.mxu0
        %v4128 = vadd.f32 %v4079, %v4127
        %v4129 = vpop.f32.mrf.mxu0
        %v4130 = vpop.f32.mrf.mxu0
        %v4131 = vadd.f32 %v4082, %v4130
        %v4132 = vpop.f32.mrf.mxu0
        %4133 = vdwg.mxu0
        %v4134 = vadd.f32 %v3236, %v4120
        %v4135 = vadd.f32 %v3237, %v4123
        %v4136 = vadd.f32 %v3238, %v4128
        %v4137 = vadd.f32 %v3239, %v4131
        %v4138 = vld [vmem:[%s839] sm:$0x1]
        %v4140 = vlaneseq
        %v4141 = vshrl.u32 %v4140, 7
        %v4142 = vsub.s32 0, %v4141
        %v4143 = vrot.slane %v4138, %v4142
        %v4145 = vadd.f32 %v4134, %v4143
        %v4146 = vadd.f32 %v4135, %v4143
        %v4147 = vadd.f32 %v4136, %v4143
        %v4148 = vadd.f32 %v4137, %v4143
        %4149 = vst [vmem:[#allocation2] sm:$0xff] %v4145
        %4150 = vst [vmem:[#allocation2 + $0x8] sm:$0xff] %v4146
        %4151 = vst [vmem:[#allocation2 + $0x10] sm:$0xff] %v4147
        %4152 = vst [vmem:[#allocation2 + $0x18] sm:$0xff] %v4148
        %v4153 = vpack.c.bf16 %v4146, %v4145
        %v4154 = vpack.c.bf16 %v4148, %v4147
        %v4155 = vld [vmem:[%s848] sm:$0xf]
        %v4156 = vld [vmem:[%s848 + $0x4] sm:$0xf]
        %v4157 = vld [vmem:[%s848 + $0x8] sm:$0xf]
        %v4158 = vld [vmem:[%s848 + $0xc] sm:$0xf]
        %v4159 = vld [vmem:[%s848 + $0x10] sm:$0xf]
        %v4160 = vld [vmem:[%s848 + $0x14] sm:$0xf]
        %v4161 = vld [vmem:[%s848 + $0x18] sm:$0xf]
        %v4162 = vld [vmem:[%s848 + $0x1c] sm:$0xf]
        %v4163 = vld [vmem:[%s848 + $0x20] sm:$0xf]
        %v4164 = vld [vmem:[%s848 + $0x24] sm:$0xf]
        %v4165 = vld [vmem:[%s848 + $0x28] sm:$0xf]
        %v4166 = vld [vmem:[%s848 + $0x2c] sm:$0xf]
        %v4167 = vld [vmem:[%s848 + $0x30] sm:$0xf]
        %v4168 = vld [vmem:[%s848 + $0x34] sm:$0xf]
        %v4169 = vld [vmem:[%s848 + $0x38] sm:$0xf]
        %v4170 = vld [vmem:[%s848 + $0x3c] sm:$0xf]
        %v4171 = vld [vmem:[%s856] sm:$0x1]
        %v4173 = vlaneseq
        %v4174 = vshrl.u32 %v4173, 7
        %v4175 = vsub.s32 0, %v4174
        %v4176 = vrot.slane %v4171, %v4175
        %v4194 = vunpack.c.l.b16 %v4155
        %v4195 = vunpack.c.l.b16 %v4156
        %v4196 = vunpack.c.l.b16 %v4157
        %v4197 = vunpack.c.l.b16 %v4158
        %v4198 = vunpack.c.l.b16 %v4159
        %v4199 = vunpack.c.l.b16 %v4160
        %v4200 = vunpack.c.l.b16 %v4161
        %v4201 = vunpack.c.l.b16 %v4162
        %v4202 = vunpack.c.l.b16 %v4163
        %v4203 = vunpack.c.l.b16 %v4164
        %v4204 = vunpack.c.l.b16 %v4165
        %v4205 = vunpack.c.l.b16 %v4166
        %v4206 = vunpack.c.l.b16 %v4167
        %v4207 = vunpack.c.l.b16 %v4168
        %v4208 = vunpack.c.l.b16 %v4169
        %v4209 = vunpack.c.l.b16 %v4170
        %v4210 = vpack.c.b16 %v4195, %v4194
        %v4211 = vpack.c.b16 %v4197, %v4196
        %v4212 = vpack.c.b16 %v4199, %v4198
        %v4213 = vpack.c.b16 %v4201, %v4200
        %v4214 = vpack.c.b16 %v4203, %v4202
        %v4215 = vpack.c.b16 %v4205, %v4204
        %v4216 = vpack.c.b16 %v4207, %v4206
        %v4217 = vpack.c.b16 %v4209, %v4208
        %4226 = vmatprep.subr.bf16.mxu0 0
        %4227 = vmatpush1.bf16.msra.mxu0 %v4217
        %4228 = vmatprep.subr.bf16.mxu0 0
        %4229 = vmatpush1.bf16.msra.mxu0 %v4216
        %4230 = vmatprep.subr.bf16.mxu0 0
        %4231 = vmatpush1.bf16.msra.mxu0 %v4215
        %4232 = vmatprep.subr.bf16.mxu0 0
        %4233 = vmatpush1.bf16.msra.mxu0 %v4214
        %4234 = vmatprep.subr.bf16.mxu0 0
        %4235 = vmatpush1.bf16.msra.mxu0 %v4213
        %4236 = vmatprep.subr.bf16.mxu0 0
        %4237 = vmatpush1.bf16.msra.mxu0 %v4212
        %4238 = vmatprep.subr.bf16.mxu0 0
        %4239 = vmatpush1.bf16.msra.mxu0 %v4211
        %4240 = vmatprep.subr.bf16.mxu0 0
        %4241 = vmatpush1.bf16.msra.mxu0 %v4210
        %4242 = vmatprep.subr.bf16.mxu0 0
        %4243 = vmatpush2.bf16.msra.mxu0 0
        %4244 = vmatprep.subr.bf16.mxu0 0
        %4245 = vmatpush2.bf16.msra.mxu0 0
        %4246 = vmatprep.subr.bf16.mxu0 0
        %4247 = vmatpush2.bf16.msra.mxu0 0
        %4248 = vmatprep.subr.bf16.mxu0 0
        %4249 = vmatpush2.bf16.msra.mxu0 0
        %4250 = vmatprep.subr.bf16.mxu0 0
        %4251 = vmatpush2.bf16.msra.mxu0 0
        %4252 = vmatprep.subr.bf16.mxu0 0
        %4253 = vmatpush2.bf16.msra.mxu0 0
        %4254 = vmatprep.subr.bf16.mxu0 0
        %4255 = vmatpush2.bf16.msra.mxu0 0
        %4256 = vmatprep.subr.bf16.mxu0 0
        %4257 = vmatpush2.bf16.msra.mxu0 0
        %4258 = vmatprep.mubr.bf16.mxu0 0
        %4259 = vmatmul.mubr.bf16.gmra.mxu0 %v4153
        %v4260 = vpop.f32.mrf.mxu0
        %v4261 = vadd.f32 %v4176, %v4260
        %v4262 = vpop.f32.mrf.mxu0
        %v4263 = vpop.f32.mrf.mxu0
        %v4264 = vadd.f32 %v4176, %v4263
        %v4265 = vpop.f32.mrf.mxu0
        %4266 = vmatprep.mubr.bf16.mxu0 0
        %4267 = vmatmul.mubr.bf16.gmra.mxu0 %v4154
        %v4268 = vpop.f32.mrf.mxu0
        %v4269 = vadd.f32 %v4176, %v4268
        %v4270 = vpop.f32.mrf.mxu0
        %v4271 = vpop.f32.mrf.mxu0
        %v4272 = vadd.f32 %v4176, %v4271
        %v4273 = vpop.f32.mrf.mxu0
        %4274 = vdwg.mxu0
        %4275 = vst [vmem:[%s986] sm:$0xff] %v4261
        %4276 = vst [vmem:[%s986 + $0x8] sm:$0xff] %v4264
        %4277 = vst [vmem:[%s986 + $0x10] sm:$0xff] %v4269
        %4278 = vst [vmem:[%s986 + $0x18] sm:$0xff] %v4272
        %p4279 = scmp.lt.s32.totalorder %s45, 3
        %s4280 = scalar_select %p4279, %s45, 3
        %s4281 = smul.addr %s4280, 4
        %s4282 = smul.addr %s4281, 8
        %s4283 = scalar_lea.vmem %s18, %s4282
        // Predicated region
        $region141: #{sslae_forward.5} parent=91 // pred_check
          %p4284 = pneg %p511
        $region142: #{sslae_forward.5} parent=91 // pred_check_branch
          %4286 = sbr.rel (%p4284) target = $region144
        $region143: #{sslae_forward.5} parent=91 // pred_region
          _
        $region144: #{sslae_forward.5} parent=91 // pred_fallthru
          _
      $region92: #{sslae_forward.5} parent=5 // pred_fallthru
        _
      %p4287 = scmp.le.s32.totalorder 2, %s40
      // Predicated region
      $region145: #{sslae_forward.5} parent=5 // pred_check
        %p4288 = pneg %p4287
      $region146: #{sslae_forward.5} parent=5 // pred_check_branch
        %4290 = sbr.rel (%p4288) target = $region148
      $region147: #{sslae_forward.5} parent=5 // pred_region
        %s4291 = ssub.s32 %s40, 2
        // Predicated region
        $region149: #{sslae_forward.5} parent=147 // pred_check
          %p4292 = pneg %p517
        $region150: #{sslae_forward.5} parent=147 // pred_check_branch
          %4294 = sbr.rel (%p4292) target = $region152
        $region151: #{sslae_forward.5} parent=147 // pred_region
          %p4295 = scmp.lt.s32.totalorder %s46, 3
          %s4296 = scalar_select %p4295, %s46, 3
          %s4297 = smul.addr %s4296, 4
          %s4298 = smul.addr %s4297, 8
          %s4299 = scalar_lea.vmem %s18, %s4298
        $region152: #{sslae_forward.5} parent=147 // pred_fallthru
          _
      $region148: #{sslae_forward.5} parent=5 // pred_fallthru
        _
    $region6: #{sslae_forward.5} parent=1 // loop_footer
      %s44 = sadd.s32 1, %s40
    $region7: #{sslae_forward.5} parent=1 // loop_footer_branch
      %39 = sbr.rel target = $region3
    $region8: #{sslae_forward.5} parent=1 // loop_exit
      _
    %4300 = vsyncpa [#allocation5], 1
    %s4301 = scalar_lea.sflag [#allocation5], 1
    %4302 = vsyncpa %s4301, 1
    %4303 = vsyncpa [#allocation7], 1
    %s4304 = scalar_lea.sflag [#allocation7], 1
    %4305 = vsyncpa %s4304, 1
    %4306 = vsyncpa [#allocation10], 1
    %s4307 = scalar_lea.sflag [#allocation10], 1
    %4308 = vsyncpa %s4307, 1
    %4309 = vsyncpa [#allocation13], 1
    %s4310 = scalar_lea.sflag [#allocation13], 1
    %4311 = vsyncpa %s4310, 1
    %4312 = vsyncpa [#allocation16], 1
    %s4313 = scalar_lea.sflag [#allocation16], 1
    %4314 = vsyncpa %s4313, 1
    %4315 = vsyncpa [#allocation19], 1
    %s4316 = scalar_lea.sflag [#allocation19], 1
    %4317 = vsyncpa %s4316, 1

</llo_original>
